<compile_context>
chip_gen: v7x
topology: tpu7x:2x2x1
jax: 0.10.0
libtpu: 0.0.40
codegen_flags: <defaults>
</compile_context>

<pallas_src>
import functools

import jax
import jax.numpy as jnp
from jax import lax
from jax.experimental import pallas as pl
from jax.experimental.pallas import tpu as pltpu


def _round_up(x, m):
    return (x + m - 1) // m * m


_VMEM_LIMIT = 32 * 1024 * 1024  # safe on v5e (raises 16MiB default) / v6e / v7x


# ---------------------------------------------------------------------------
# Kernel 1: gridded matmul + bias + ReLU (used for conv1 via im2col glue).
#   x (M, K) bf16 @ w (K, N) bf16 + b (1, N) f32 -> out (M, N) bf16
#   Grid tiles M ("parallel"); w/b use constant index_maps so they stay
#   VMEM-resident; x/out tiles are double-buffered by the BlockSpec pipeline.
# ---------------------------------------------------------------------------

def _matmul_bias_relu_kernel(x_ref, w_ref, b_ref, o_ref):
    acc = jnp.dot(x_ref[...], w_ref[...], preferred_element_type=jnp.float32)
    o_ref[...] = jnp.maximum(acc + b_ref[...], 0.0).astype(o_ref.dtype)


def matmul_bias_relu(x, w, b, *, tm=512):
    M, K = x.shape
    N = w.shape[1]
    tm = min(tm, _round_up(M, 8))
    Mp = _round_up(M, tm)
    if Mp != M:                       # one cheap jnp.pad (zero rows are sliced off)
        x = jnp.pad(x, ((0, Mp - M), (0, 0)))
    out = pl.pallas_call(
        _matmul_bias_relu_kernel,
        out_shape=jax.ShapeDtypeStruct((Mp, N), jnp.bfloat16),
        grid=(Mp // tm,),
        in_specs=[
            pl.BlockSpec((tm, K), lambda i: (i, 0)),
            pl.BlockSpec((K, N), lambda i: (0, 0)),
            pl.BlockSpec((1, N), lambda i: (0, 0)),
        ],
        out_specs=pl.BlockSpec((tm, N), lambda i: (i, 0)),
        compiler_params=pltpu.CompilerParams(
            dimension_semantics=("parallel",),
            vmem_limit_bytes=_VMEM_LIMIT),
        cost_estimate=pl.CostEstimate(
            flops=2 * Mp * K * N,
            transcendentals=0,
            bytes_accessed=Mp * K * 2 + K * N * 2 + Mp * N * 2 + N * 4),
    )(x, w, b)
    return out[:M] if Mp != M else out


# ---------------------------------------------------------------------------
# Kernel 2: fused Fire module (squeeze 1x1 + expand1x1 + expand3x3 + concat).
#   Grid over B (one depth-slice image per step, "parallel" for megacore).
#   The squeeze output s lives only in VMEM.  expand3x3 (pad=1) is computed as
#   9 shifted matmuls against a zero-padded, row-flattened copy of s held in a
#   VMEM scratch; horizontal wrap rows are masked via a column-index input.
# ---------------------------------------------------------------------------

def _fire_kernel(x_ref, col_ref, wsq_ref, bsq_ref, w1_ref, b1_ref, w3_ref, b3_ref,
                 o_ref, spad_ref, *, H, W, PAD0):
    HW = H * W
    E3 = w3_ref.shape[-1]
    xm = x_ref[0]                                            # (HW, Cin_p) bf16

    # squeeze 1x1 + ReLU (f32 MXU accumulation); never written to HBM.
    s = jnp.dot(xm, wsq_ref[...], preferred_element_type=jnp.float32)
    s = jnp.maximum(s + bsq_ref[...], 0.0).astype(jnp.bfloat16)   # (HW, SQ)

    # expand1x1 + ReLU
    e1 = jnp.maximum(
        jnp.dot(s, w1_ref[...], preferred_element_type=jnp.float32) + b1_ref[...],
        0.0)

    # expand3x3 (kernel 3x3, pad 1) + ReLU as implicit GEMM:
    #   spad = [PAD0 zero rows | s (row-flattened) | W+1 zero rows]
    #   tap (di, dj) reads rows [PAD0 + (di-1)*W + (dj-1), +HW) of spad;
    #   vertical out-of-bounds falls into the zero pads, horizontal wrap rows
    #   are masked using the column index j = f % W.
    spad_ref[...] = jnp.zeros(spad_ref.shape, spad_ref.dtype)
    spad_ref[PAD0:PAD0 + HW, :] = s
    col = col_ref[...]                                       # (HW, 1) int32
    acc = jnp.zeros((HW, E3), jnp.float32)
    for di in range(3):
        if H == 1 and di != 1:
            continue                                         # rows are all zero pad
        for dj in range(3):
            if W == 1 and dj != 1:
                continue                                     # fully masked out
            start = PAD0 + (di - 1) * W + (dj - 1)
            sw = spad_ref[start:start + HW, :]               # (HW, SQ) bf16
            if dj == 0:
                sw = jnp.where(col >= 1, sw, 0).astype(jnp.bfloat16)
            elif dj == 2:
                sw = jnp.where(col <= W - 2, sw, 0).astype(jnp.bfloat16)
            acc = acc + jnp.dot(sw, w3_ref[di * 3 + dj],
                                preferred_element_type=jnp.float32)
    e3 = jnp.maximum(acc + b3_ref[...], 0.0)

    # torch.cat([e1, e3], dim=1): in-register lane concat -> one lane-dense store.
    o_ref[0] = jnp.concatenate([e1, e3], axis=-1).astype(o_ref.dtype)


def fire_forward(x, fp):
    """x: (B, H, W, Cin_p) bf16, channels already padded to a multiple of 128."""
    B, H, W, Cin_p = x.shape
    HW = H * W
    wsq, bsq = fp["wsq"], fp["bsq"]
    w1, b1 = fp["w1"], fp["b1"]
    w3, b3 = fp["w3"], fp["b3"]
    SQ, E1, E3 = wsq.shape[1], w1.shape[1], w3.shape[2]
    Cout = E1 + E3
    PAD0 = _round_up(W + 1, 8)                 # 8-aligned interior store offset
    spad_rows = PAD0 + HW + W + 1

    xf = x.reshape(B, HW, Cin_p)               # free HBM-level reshape
    col = (jnp.arange(HW, dtype=jnp.int32) % W).reshape(HW, 1)

    flops = 2 * B * HW * SQ * (Cin_p + E1 + 9 * E3)
    bytes_accessed = (B * HW * (Cin_p + Cout)) * 2 \
        + (Cin_p * SQ + SQ * E1 + 9 * SQ * E3) * 2 + (SQ + E1 + E3) * 4

    out = pl.pallas_call(
        functools.partial(_fire_kernel, H=H, W=W, PAD0=PAD0),
        out_shape=jax.ShapeDtypeStruct((B, HW, Cout), jnp.bfloat16),
        grid=(B,),
        in_specs=[
            pl.BlockSpec((1, HW, Cin_p), lambda b: (b, 0, 0)),
            pl.BlockSpec((HW, 1), lambda b: (0, 0)),
            pl.BlockSpec((Cin_p, SQ), lambda b: (0, 0)),
            pl.BlockSpec((1, SQ), lambda b: (0, 0)),
            pl.BlockSpec((SQ, E1), lambda b: (0, 0)),
            pl.BlockSpec((1, E1), lambda b: (0, 0)),
            pl.BlockSpec((9, SQ, E3), lambda b: (0, 0, 0)),
            pl.BlockSpec((1, E3), lambda b: (0, 0)),
        ],
        out_specs=pl.BlockSpec((1, HW, Cout), lambda b: (b, 0, 0)),
        scratch_shapes=[pltpu.VMEM((spad_rows, SQ), jnp.bfloat16)],
        compiler_params=pltpu.CompilerParams(
            dimension_semantics=("parallel",),
            vmem_limit_bytes=_VMEM_LIMIT),
        cost_estimate=pl.CostEstimate(
            flops=flops, transcendentals=0, bytes_accessed=bytes_accessed),
    )(xf, col, wsq, bsq, w1, b1, w3, b3)
    return out.reshape(B, H, W, Cout)


# ---------------------------------------------------------------------------
# Layer wrappers (glue)
# ---------------------------------------------------------------------------

def conv1_forward(x, w, *, stride=2):
    """Conv3d(3->64, k=(1,3,3), s=(1,2,2), p=0, bias=False) + ReLU, depth folded
    into B.  im2col (Cin=3 -> K=27, negligible bytes) + gridded Pallas matmul.
    Output channels are zero-padded to 128 so downstream stays 128-lane aligned."""
    # TODO(synk): conv1 could also use an in-kernel implicit GEMM (like the Fire
    # expand3x3) to avoid even this small im2col materialization.
    B, H, W, Cin = x.shape
    Cout, _, kh, kw = w.shape
    Ho = (H - kh) // stride + 1
    Wo = (W - kw) // stride + 1
    cols = []
    for i in range(kh):
        for j in range(kw):
            cols.append(lax.slice(
                x, (0, i, j, 0),
                (B, i + (Ho - 1) * stride + 1, j + (Wo - 1) * stride + 1, Cin),
                (1, stride, stride, 1)))
    patches = jnp.concatenate(cols, axis=-1).reshape(B * Ho * Wo, kh * kw * Cin)
    Np = _round_up(Cout, 128)
    wm = jnp.transpose(w, (2, 3, 1, 0)).reshape(kh * kw * Cin, Cout)
    wm = jnp.pad(wm, ((0, 0), (0, Np - Cout))).astype(jnp.bfloat16)
    bias = jnp.zeros((1, Np), jnp.float32)       # converted Conv3d has bias=False
    out = matmul_bias_relu(patches, wm, bias)
    return out.reshape(B, Ho, Wo, Np)


def maxpool2d_3x3_s2(x):
    """MaxPool3d(kernel=(1,3,3), stride=(1,2,2), pad=0, ceil_mode=False) with the
    depth dim already folded into B; runs directly on (B,H,W,C) -- no 9x stack."""
    return lax.reduce_window(
        x, jnp.array(-jnp.inf, x.dtype), lax.max,
        window_dimensions=(1, 3, 3, 1),
        window_strides=(1, 2, 2, 1),
        padding="VALID")


# ---------------------------------------------------------------------------
# Parameters (deterministic, mirrors PyTorch default Conv init; pretrained=False)
# ---------------------------------------------------------------------------

def init_conv(key, cout, cin, kh, kw, bias=True):
    k1, k2 = jax.random.split(key)
    fan_in = cin * kh * kw
    bound = 1.0 / (fan_in ** 0.5)
    w = jax.random.uniform(k1, (cout, cin, kh, kw), jnp.float32, -bound, bound)
    b = jax.random.uniform(k2, (cout,), jnp.float32, -bound, bound) if bias else None
    return w, b


# squeezenet1_1 feature config: (inplanes, squeeze, expand1x1, expand3x3)
_FIRE_CFG = [
    (64, 16, 64, 64),
    (128, 16, 64, 64),
    (128, 32, 128, 128),
    (256, 32, 128, 128),
    (256, 48, 192, 192),
    (384, 48, 192, 192),
    (384, 64, 256, 256),
    (512, 64, 256, 256),
]


def build_params(key):
    keys = iter(jax.random.split(key, 1 + 3 * len(_FIRE_CFG)))
    params = {"conv1": init_conv(next(keys), 64, 3, 3, 3, bias=False)}
    fires = []
    for (cin, sq, e1, e3) in _FIRE_CFG:
        fires.append({
            "squeeze": init_conv(next(keys), sq, cin, 1, 1, bias=True),
            "expand1x1": init_conv(next(keys), e1, sq, 1, 1, bias=True),
            "expand3x3": init_conv(next(keys), e3, sq, 3, 3, bias=True),
        })
    params["fires"] = fires
    return params


def _pack_fire(fp, cin_p):
    """PyTorch-layout Fire weights -> MXU-ready packed matrices (bf16 weights,
    f32 biases, input channels zero-padded to cin_p, a multiple of 128)."""
    wsq, bsq = fp["squeeze"]            # (SQ, Cin, 1, 1)
    w1, b1 = fp["expand1x1"]            # (E1, SQ, 1, 1)
    w3, b3 = fp["expand3x3"]            # (E3, SQ, 3, 3)
    sq, cin = wsq.shape[:2]
    wsq_m = jnp.pad(wsq.reshape(sq, cin).T, ((0, cin_p - cin), (0, 0)))
    w1_m = w1.reshape(w1.shape[0], sq).T
    w3_m = jnp.transpose(w3, (2, 3, 1, 0)).reshape(9, sq, w3.shape[0])
    return {
        "wsq": wsq_m.astype(jnp.bfloat16), "bsq": bsq.reshape(1, -1),
        "w1": w1_m.astype(jnp.bfloat16), "b1": b1.reshape(1, -1),
        "w3": w3_m.astype(jnp.bfloat16), "b3": b3.reshape(1, -1),
    }


# ---------------------------------------------------------------------------
# Forward pass (SqueezeNet3D('squeezenet1_1').features)
# ---------------------------------------------------------------------------

def squeezenet3d_forward(params, x_ncdhw):
    N, C, D, H, W = x_ncdhw.shape
    # Depth kernels/strides are all 1 with no depth padding -> fold D into batch,
    # channels-last so C maps to TPU lanes; bf16 activations, f32 accumulation.
    x = jnp.transpose(x_ncdhw, (0, 2, 3, 4, 1)).reshape(N * D, H, W, C)
    x = x.astype(jnp.bfloat16)

    w1, _ = params["conv1"]
    x = conv1_forward(x, w1)            # Conv(3->64, 3x3, s2) + ReLU, padded to 128 ch
    x = maxpool2d_3x3_s2(x)

    packed = [_pack_fire(fp, _round_up(cfg[0], 128))
              for cfg, fp in zip(_FIRE_CFG, params["fires"])]

    x = fire_forward(x, packed[0])
    x = fire_forward(x, packed[1])
    x = maxpool2d_3x3_s2(x)
    x = fire_forward(x, packed[2])
    x = fire_forward(x, packed[3])
    x = maxpool2d_3x3_s2(x)
    x = fire_forward(x, packed[4])
    x = fire_forward(x, packed[5])
    x = fire_forward(x, packed[6])
    x = fire_forward(x, packed[7])

    B2, Ho, Wo, Cout = x.shape          # Cout == 512 exactly (no padding to strip)
    out = x.reshape(N, D, Ho, Wo, Cout).transpose(0, 4, 1, 2, 3)
    return out.astype(jnp.float32)      # back to NCDHW


if __name__ == "__main__":
    key = jax.random.PRNGKey(0)
    kp, kx = jax.random.split(key)
    params = build_params(kp)

    # small input: N=1, C=3 (RGB), D=2 depth slices, H=W=33 (minimum-ish spatial
    # size surviving the three stride-2 conv/pool stages)
    x = jax.random.normal(kx, (1, 3, 2, 33, 33), dtype=jnp.float32)

    fwd = jax.jit(squeezenet3d_forward)
    out = jax.block_until_ready(fwd(params, x))

    assert out.shape == (1, 512, 2, 1, 1), out.shape
    assert bool(jnp.all(jnp.isfinite(out)))
    print("KERNEL_OK")
</pallas_src>

<mosaic_0001>
module attributes {stable_mosaic.version = 11 : i64} {
  func.func @_matmul_bias_relu_kernel(%arg0: i32, %arg1: memref<512x27xbf16, #tpu.memory_space<vmem>>, %arg2: memref<27x128xbf16, #tpu.memory_space<vmem>>, %arg3: memref<1x128xf32, #tpu.memory_space<vmem>>, %arg4: memref<512x128xbf16, #tpu.memory_space<vmem>>) attributes {dimension_semantics = [#tpu.dimension_semantics<parallel>], iteration_bounds = array<i64: 1>, scalar_prefetch = 0 : i64, scratch_operands = 0 : i64, tpu.core_type = #tpu.core_type<tc>, window_params = [{transform_indices = @transform_0, window_bounds = array<i64: 512, 27>}, {pipeline_mode = #tpu.pipeline_mode<synchronous>, transform_indices = @transform_1, window_bounds = array<i64: 27, 128>}, {pipeline_mode = #tpu.pipeline_mode<synchronous>, transform_indices = @transform_2, window_bounds = array<i64: 1, 128>}, {transform_indices = @transform_3, window_bounds = array<i64: 512, 128>}]} {
    %c0 = arith.constant 0 : index
    %c0_0 = arith.constant 0 : index
    %0 = vector.load %arg1[%c0, %c0_0] : memref<512x27xbf16, #tpu.memory_space<vmem>>, vector<512x27xbf16>
    %c0_1 = arith.constant 0 : index
    %c0_2 = arith.constant 0 : index
    %1 = vector.load %arg2[%c0_1, %c0_2] : memref<27x128xbf16, #tpu.memory_space<vmem>>, vector<27x128xbf16>
    %cst = arith.constant dense<0.000000e+00> : vector<512x128xf32>
    %2 = tpu.matmul %0, %1, %cst {dimension_numbers = #tpu.dot_dimension_numbers<[1], [0], [0], [1], [0, 0, 1, 1], [], []>} : vector<512x27xbf16>, vector<27x128xbf16>, vector<512x128xf32> -> vector<512x128xf32>
    %c0_3 = arith.constant 0 : index
    %c0_4 = arith.constant 0 : index
    %3 = vector.load %arg3[%c0_3, %c0_4] : memref<1x128xf32, #tpu.memory_space<vmem>>, vector<1x128xf32>
    %4 = vector.broadcast %3 : vector<1x128xf32> to vector<512x128xf32>
    %5 = arith.addf %2, %4 : vector<512x128xf32>
    %cst_5 = arith.constant 0.000000e+00 : f32
    %6 = vector.broadcast %cst_5 : f32 to vector<512x128xf32>
    %7 = arith.maximumf %5, %6 : vector<512x128xf32>
    %8 = arith.truncf %7 : vector<512x128xf32> to vector<512x128xbf16>
    %c0_6 = arith.constant 0 : index
    %c0_7 = arith.constant 0 : index
    %9 = vector.load %arg4[%c0_6, %c0_7] : memref<512x128xbf16, #tpu.memory_space<vmem>>, vector<512x128xbf16>
    tpu.vector_store %arg4[%c0_6, %c0_7], %8 {strides = array<i32>} : memref<512x128xbf16, #tpu.memory_space<vmem>>, vector<512x128xbf16>,
    return
  }
  func.func @transform_0(%arg0: i32) -> (i32, i32) {
    %c0_i32 = arith.constant 0 : i32
    %c0_i32_0 = arith.constant 0 : i32
    return %arg0, %c0_i32 : i32, i32
  }
  func.func @transform_1(%arg0: i32) -> (i32, i32) {
    %c0_i32 = arith.constant 0 : i32
    %c0_i32_0 = arith.constant 0 : i32
    %c0_i32_1 = arith.constant 0 : i32
    return %c0_i32, %c0_i32_0 : i32, i32
  }
  func.func @transform_2(%arg0: i32) -> (i32, i32) {
    %c0_i32 = arith.constant 0 : i32
    %c0_i32_0 = arith.constant 0 : i32
    %c0_i32_1 = arith.constant 0 : i32
    return %c0_i32, %c0_i32_0 : i32, i32
  }
  func.func @transform_3(%arg0: i32) -> (i32, i32) {
    %c0_i32 = arith.constant 0 : i32
    %c0_i32_0 = arith.constant 0 : i32
    return %arg0, %c0_i32 : i32, i32
  }
}

module attributes {stable_mosaic.version = 11 : i64} {
  func.func @_fire_kernel(%arg0: i32, %arg1: memref<1x49x128xbf16, #tpu.memory_space<vmem>>, %arg2: memref<49x1xi32, #tpu.memory_space<vmem>>, %arg3: memref<128x16xbf16, #tpu.memory_space<vmem>>, %arg4: memref<1x16xf32, #tpu.memory_space<vmem>>, %arg5: memref<16x64xbf16, #tpu.memory_space<vmem>>, %arg6: memref<1x64xf32, #tpu.memory_space<vmem>>, %arg7: memref<9x16x64xbf16, #tpu.memory_space<vmem>>, %arg8: memref<1x64xf32, #tpu.memory_space<vmem>>, %arg9: memref<1x49x128xbf16, #tpu.memory_space<vmem>>, %arg10: memref<65x16xbf16, #tpu.memory_space<vmem>>) attributes {dimension_semantics = [#tpu.dimension_semantics<parallel>], iteration_bounds = array<i64: 2>, scalar_prefetch = 0 : i64, scratch_operands = 1 : i64, tpu.core_type = #tpu.core_type<tc>, window_params = [{transform_indices = @transform_0, window_bounds = array<i64: 1, 49, 128>}, {pipeline_mode = #tpu.pipeline_mode<synchronous>, transform_indices = @transform_1, window_bounds = array<i64: 49, 1>}, {pipeline_mode = #tpu.pipeline_mode<synchronous>, transform_indices = @transform_2, window_bounds = array<i64: 128, 16>}, {pipeline_mode = #tpu.pipeline_mode<synchronous>, transform_indices = @transform_3, window_bounds = array<i64: 1, 16>}, {pipeline_mode = #tpu.pipeline_mode<synchronous>, transform_indices = @transform_4, window_bounds = array<i64: 16, 64>}, {pipeline_mode = #tpu.pipeline_mode<synchronous>, transform_indices = @transform_5, window_bounds = array<i64: 1, 64>}, {pipeline_mode = #tpu.pipeline_mode<synchronous>, transform_indices = @transform_6, window_bounds = array<i64: 9, 16, 64>}, {pipeline_mode = #tpu.pipeline_mode<synchronous>, transform_indices = @transform_7, window_bounds = array<i64: 1, 64>}, {transform_indices = @transform_8, window_bounds = array<i64: 1, 49, 128>}]} {
    %c0 = arith.constant 0 : index
    %c0_0 = arith.constant 0 : index
    %c0_1 = arith.constant 0 : index
    %0 = vector.load %arg1[%c0, %c0_0, %c0_1] : memref<1x49x128xbf16, #tpu.memory_space<vmem>>, vector<1x49x128xbf16>
    %1 = vector.shape_cast %0 : vector<1x49x128xbf16> to vector<49x128xbf16>
    %c0_2 = arith.constant 0 : index
    %c0_3 = arith.constant 0 : index
    %2 = vector.load %arg3[%c0_2, %c0_3] : memref<128x16xbf16, #tpu.memory_space<vmem>>, vector<128x16xbf16>
    %cst = arith.constant dense<0.000000e+00> : vector<49x16xf32>
    %3 = tpu.matmul %1, %2, %cst {dimension_numbers = #tpu.dot_dimension_numbers<[1], [0], [0], [1], [0, 0, 1, 1], [], []>} : vector<49x128xbf16>, vector<128x16xbf16>, vector<49x16xf32> -> vector<49x16xf32>
    %c0_4 = arith.constant 0 : index
    %c0_5 = arith.constant 0 : index
    %4 = vector.load %arg4[%c0_4, %c0_5] : memref<1x16xf32, #tpu.memory_space<vmem>>, vector<1x16xf32>
    %5 = vector.broadcast %4 : vector<1x16xf32> to vector<49x16xf32>
    %6 = arith.addf %3, %5 : vector<49x16xf32>
    %cst_6 = arith.constant 0.000000e+00 : f32
    %7 = vector.broadcast %cst_6 : f32 to vector<49x16xf32>
    %8 = arith.maximumf %6, %7 : vector<49x16xf32>
    %9 = arith.truncf %8 : vector<49x16xf32> to vector<49x16xbf16>
    %c0_7 = arith.constant 0 : index
    %c0_8 = arith.constant 0 : index
    %10 = vector.load %arg5[%c0_7, %c0_8] : memref<16x64xbf16, #tpu.memory_space<vmem>>, vector<16x64xbf16>
    %cst_9 = arith.constant dense<0.000000e+00> : vector<49x64xf32>
    %11 = tpu.matmul %9, %10, %cst_9 {dimension_numbers = #tpu.dot_dimension_numbers<[1], [0], [0], [1], [0, 0, 1, 1], [], []>} : vector<49x16xbf16>, vector<16x64xbf16>, vector<49x64xf32> -> vector<49x64xf32>
    %c0_10 = arith.constant 0 : index
    %c0_11 = arith.constant 0 : index
    %12 = vector.load %arg6[%c0_10, %c0_11] : memref<1x64xf32, #tpu.memory_space<vmem>>, vector<1x64xf32>
    %13 = vector.broadcast %12 : vector<1x64xf32> to vector<49x64xf32>
    %14 = arith.addf %11, %13 : vector<49x64xf32>
    %cst_12 = arith.constant 0.000000e+00 : f32
    %15 = vector.broadcast %cst_12 : f32 to vector<49x64xf32>
    %16 = arith.maximumf %14, %15 : vector<49x64xf32>
    %cst_13 = arith.constant 0.000000e+00 : bf16
    %17 = vector.broadcast %cst_13 : bf16 to vector<65x16xbf16>
    %c0_14 = arith.constant 0 : index
    %c0_15 = arith.constant 0 : index
    %18 = vector.load %arg10[%c0_14, %c0_15] : memref<65x16xbf16, #tpu.memory_space<vmem>>, vector<65x16xbf16>
    tpu.vector_store %arg10[%c0_14, %c0_15], %17 {strides = array<i32>} : memref<65x16xbf16, #tpu.memory_space<vmem>>, vector<65x16xbf16>,
    %c8 = arith.constant 8 : index
    %c0_16 = arith.constant 0 : index
    %19 = vector.load %arg10[%c8, %c0_16] : memref<65x16xbf16, #tpu.memory_space<vmem>>, vector<49x16xbf16>
    tpu.vector_store %arg10[%c8, %c0_16], %9 {strides = array<i32>} : memref<65x16xbf16, #tpu.memory_space<vmem>>, vector<49x16xbf16>,
    %c0_17 = arith.constant 0 : index
    %c0_18 = arith.constant 0 : index
    %20 = vector.load %arg2[%c0_17, %c0_18] : memref<49x1xi32, #tpu.memory_space<vmem>>, vector<49x1xi32>
    %cst_19 = arith.constant 0.000000e+00 : f32
    %21 = vector.broadcast %cst_19 : f32 to vector<49x64xf32>
    %c0_20 = arith.constant 0 : index
    %c0_21 = arith.constant 0 : index
    %22 = vector.load %arg10[%c0_20, %c0_21] : memref<65x16xbf16, #tpu.memory_space<vmem>>, vector<49x16xbf16>
    %c1_i32 = arith.constant 1 : i32
    %23 = vector.broadcast %c1_i32 : i32 to vector<49x1xi32>
    %24 = arith.cmpi sge, %20, %23 : vector<49x1xi32>
    %c0_i32 = arith.constant 0 : i32
    %25 = arith.sitofp %c0_i32 : i32 to bf16
    %26 = vector.shape_cast %24 : vector<49x1xi1> to vector<49x1xi1>
    %27 = vector.broadcast %26 : vector<49x1xi1> to vector<49x16xi1>
    %28 = vector.broadcast %25 : bf16 to vector<49x16xbf16>
    %29 = arith.select %27, %22, %28 : vector<49x16xi1>, vector<49x16xbf16>
    %c0_22 = arith.constant 0 : index
    %c0_23 = arith.constant 0 : index
    %c0_24 = arith.constant 0 : index
    %30 = vector.load %arg7[%c0_22, %c0_23, %c0_24] : memref<9x16x64xbf16, #tpu.memory_space<vmem>>, vector<1x16x64xbf16>
    %31 = vector.shape_cast %30 : vector<1x16x64xbf16> to vector<16x64xbf16>
    %cst_25 = arith.constant dense<0.000000e+00> : vector<49x64xf32>
    %32 = tpu.matmul %29, %31, %cst_25 {dimension_numbers = #tpu.dot_dimension_numbers<[1], [0], [0], [1], [0, 0, 1, 1], [], []>} : vector<49x16xbf16>, vector<16x64xbf16>, vector<49x64xf32> -> vector<49x64xf32>
    %33 = arith.addf %21, %32 : vector<49x64xf32>
    %c1 = arith.constant 1 : index
    %c0_26 = arith.constant 0 : index
    %34 = vector.load %arg10[%c1, %c0_26] : memref<65x16xbf16, #tpu.memory_space<vmem>>, vector<49x16xbf16>
    %c1_27 = arith.constant 1 : index
    %c0_28 = arith.constant 0 : index
    %c0_29 = arith.constant 0 : index
    %35 = vector.load %arg7[%c1_27, %c0_28, %c0_29] : memref<9x16x64xbf16, #tpu.memory_space<vmem>>, vector<1x16x64xbf16>
    %36 = vector.shape_cast %35 : vector<1x16x64xbf16> to vector<16x64xbf16>
    %cst_30 = arith.constant dense<0.000000e+00> : vector<49x64xf32>
    %37 = tpu.matmul %34, %36, %cst_30 {dimension_numbers = #tpu.dot_dimension_numbers<[1], [0], [0], [1], [0, 0, 1, 1], [], []>} : vector<49x16xbf16>, vector<16x64xbf16>, vector<49x64xf32> -> vector<49x64xf32>
    %38 = arith.addf %33, %37 : vector<49x64xf32>
    %c2 = arith.constant 2 : index
    %c0_31 = arith.constant 0 : index
    %39 = vector.load %arg10[%c2, %c0_31] : memref<65x16xbf16, #tpu.memory_space<vmem>>, vector<49x16xbf16>
    %c5_i32 = arith.constant 5 : i32
    %40 = vector.broadcast %c5_i32 : i32 to vector<49x1xi32>
    %41 = arith.cmpi sle, %20, %40 : vector<49x1xi32>
    %c0_i32_32 = arith.constant 0 : i32
    %42 = arith.sitofp %c0_i32_32 : i32 to bf16
    %43 = vector.shape_cast %41 : vector<49x1xi1> to vector<49x1xi1>
    %44 = vector.broadcast %43 : vector<49x1xi1> to vector<49x16xi1>
    %45 = vector.broadcast %42 : bf16 to vector<49x16xbf16>
    %46 = arith.select %44, %39, %45 : vector<49x16xi1>, vector<49x16xbf16>
    %c2_33 = arith.constant 2 : index
    %c0_34 = arith.constant 0 : index
    %c0_35 = arith.constant 0 : index
    %47 = vector.load %arg7[%c2_33, %c0_34, %c0_35] : memref<9x16x64xbf16, #tpu.memory_space<vmem>>, vector<1x16x64xbf16>
    %48 = vector.shape_cast %47 : vector<1x16x64xbf16> to vector<16x64xbf16>
    %cst_36 = arith.constant dense<0.000000e+00> : vector<49x64xf32>
    %49 = tpu.matmul %46, %48, %cst_36 {dimension_numbers = #tpu.dot_dimension_numbers<[1], [0], [0], [1], [0, 0, 1, 1], [], []>} : vector<49x16xbf16>, vector<16x64xbf16>, vector<49x64xf32> -> vector<49x64xf32>
    %50 = arith.addf %38, %49 : vector<49x64xf32>
    %c7 = arith.constant 7 : index
    %c0_37 = arith.constant 0 : index
    %51 = vector.load %arg10[%c7, %c0_37] : memref<65x16xbf16, #tpu.memory_space<vmem>>, vector<49x16xbf16>
    %c1_i32_38 = arith.constant 1 : i32
    %52 = vector.broadcast %c1_i32_38 : i32 to vector<49x1xi32>
    %53 = arith.cmpi sge, %20, %52 : vector<49x1xi32>
    %c0_i32_39 = arith.constant 0 : i32
    %54 = arith.sitofp %c0_i32_39 : i32 to bf16
    %55 = vector.shape_cast %53 : vector<49x1xi1> to vector<49x1xi1>
    %56 = vector.broadcast %55 : vector<49x1xi1> to vector<49x16xi1>
    %57 = vector.broadcast %54 : bf16 to vector<49x16xbf16>
    %58 = arith.select %56, %51, %57 : vector<49x16xi1>, vector<49x16xbf16>
    %c3 = arith.constant 3 : index
    %c0_40 = arith.constant 0 : index
    %c0_41 = arith.constant 0 : index
    %59 = vector.load %arg7[%c3, %c0_40, %c0_41] : memref<9x16x64xbf16, #tpu.memory_space<vmem>>, vector<1x16x64xbf16>
    %60 = vector.shape_cast %59 : vector<1x16x64xbf16> to vector<16x64xbf16>
    %cst_42 = arith.constant dense<0.000000e+00> : vector<49x64xf32>
    %61 = tpu.matmul %58, %60, %cst_42 {dimension_numbers = #tpu.dot_dimension_numbers<[1], [0], [0], [1], [0, 0, 1, 1], [], []>} : vector<49x16xbf16>, vector<16x64xbf16>, vector<49x64xf32> -> vector<49x64xf32>
    %62 = arith.addf %50, %61 : vector<49x64xf32>
    %c8_43 = arith.constant 8 : index
    %c0_44 = arith.constant 0 : index
    %63 = vector.load %arg10[%c8_43, %c0_44] : memref<65x16xbf16, #tpu.memory_space<vmem>>, vector<49x16xbf16>
    %c4 = arith.constant 4 : index
    %c0_45 = arith.constant 0 : index
    %c0_46 = arith.constant 0 : index
    %64 = vector.load %arg7[%c4, %c0_45, %c0_46] : memref<9x16x64xbf16, #tpu.memory_space<vmem>>, vector<1x16x64xbf16>
    %65 = vector.shape_cast %64 : vector<1x16x64xbf16> to vector<16x64xbf16>
    %cst_47 = arith.constant dense<0.000000e+00> : vector<49x64xf32>
    %66 = tpu.matmul %63, %65, %cst_47 {dimension_numbers = #tpu.dot_dimension_numbers<[1], [0], [0], [1], [0, 0, 1, 1], [], []>} : vector<49x16xbf16>, vector<16x64xbf16>, vector<49x64xf32> -> vector<49x64xf32>
    %67 = arith.addf %62, %66 : vector<49x64xf32>
    %c9 = arith.constant 9 : index
    %c0_48 = arith.constant 0 : index
    %68 = vector.load %arg10[%c9, %c0_48] : memref<65x16xbf16, #tpu.memory_space<vmem>>, vector<49x16xbf16>
    %c5_i32_49 = arith.constant 5 : i32
    %69 = vector.broadcast %c5_i32_49 : i32 to vector<49x1xi32>
    %70 = arith.cmpi sle, %20, %69 : vector<49x1xi32>
    %c0_i32_50 = arith.constant 0 : i32
    %71 = arith.sitofp %c0_i32_50 : i32 to bf16
    %72 = vector.shape_cast %70 : vector<49x1xi1> to vector<49x1xi1>
    %73 = vector.broadcast %72 : vector<49x1xi1> to vector<49x16xi1>
    %74 = vector.broadcast %71 : bf16 to vector<49x16xbf16>
    %75 = arith.select %73, %68, %74 : vector<49x16xi1>, vector<49x16xbf16>
    %c5 = arith.constant 5 : index
    %c0_51 = arith.constant 0 : index
    %c0_52 = arith.constant 0 : index
    %76 = vector.load %arg7[%c5, %c0_51, %c0_52] : memref<9x16x64xbf16, #tpu.memory_space<vmem>>, vector<1x16x64xbf16>
    %77 = vector.shape_cast %76 : vector<1x16x64xbf16> to vector<16x64xbf16>
    %cst_53 = arith.constant dense<0.000000e+00> : vector<49x64xf32>
    %78 = tpu.matmul %75, %77, %cst_53 {dimension_numbers = #tpu.dot_dimension_numbers<[1], [0], [0], [1], [0, 0, 1, 1], [], []>} : vector<49x16xbf16>, vector<16x64xbf16>, vector<49x64xf32> -> vector<49x64xf32>
    %79 = arith.addf %67, %78 : vector<49x64xf32>
    %c14 = arith.constant 14 : index
    %c0_54 = arith.constant 0 : index
    %80 = vector.load %arg10[%c14, %c0_54] : memref<65x16xbf16, #tpu.memory_space<vmem>>, vector<49x16xbf16>
    %c1_i32_55 = arith.constant 1 : i32
    %81 = vector.broadcast %c1_i32_55 : i32 to vector<49x1xi32>
    %82 = arith.cmpi sge, %20, %81 : vector<49x1xi32>
    %c0_i32_56 = arith.constant 0 : i32
    %83 = arith.sitofp %c0_i32_56 : i32 to bf16
    %84 = vector.shape_cast %82 : vector<49x1xi1> to vector<49x1xi1>
    %85 = vector.broadcast %84 : vector<49x1xi1> to vector<49x16xi1>
    %86 = vector.broadcast %83 : bf16 to vector<49x16xbf16>
    %87 = arith.select %85, %80, %86 : vector<49x16xi1>, vector<49x16xbf16>
    %c6 = arith.constant 6 : index
    %c0_57 = arith.constant 0 : index
    %c0_58 = arith.constant 0 : index
    %88 = vector.load %arg7[%c6, %c0_57, %c0_58] : memref<9x16x64xbf16, #tpu.memory_space<vmem>>, vector<1x16x64xbf16>
    %89 = vector.shape_cast %88 : vector<1x16x64xbf16> to vector<16x64xbf16>
    %cst_59 = arith.constant dense<0.000000e+00> : vector<49x64xf32>
    %90 = tpu.matmul %87, %89, %cst_59 {dimension_numbers = #tpu.dot_dimension_numbers<[1], [0], [0], [1], [0, 0, 1, 1], [], []>} : vector<49x16xbf16>, vector<16x64xbf16>, vector<49x64xf32> -> vector<49x64xf32>
    %91 = arith.addf %79, %90 : vector<49x64xf32>
    %c15 = arith.constant 15 : index
    %c0_60 = arith.constant 0 : index
    %92 = vector.load %arg10[%c15, %c0_60] : memref<65x16xbf16, #tpu.memory_space<vmem>>, vector<49x16xbf16>
    %c7_61 = arith.constant 7 : index
    %c0_62 = arith.constant 0 : index
    %c0_63 = arith.constant 0 : index
    %93 = vector.load %arg7[%c7_61, %c0_62, %c0_63] : memref<9x16x64xbf16, #tpu.memory_space<vmem>>, vector<1x16x64xbf16>
    %94 = vector.shape_cast %93 : vector<1x16x64xbf16> to vector<16x64xbf16>
    %cst_64 = arith.constant dense<0.000000e+00> : vector<49x64xf32>
    %95 = tpu.matmul %92, %94, %cst_64 {dimension_numbers = #tpu.dot_dimension_numbers<[1], [0], [0], [1], [0, 0, 1, 1], [], []>} : vector<49x16xbf16>, vector<16x64xbf16>, vector<49x64xf32> -> vector<49x64xf32>
    %96 = arith.addf %91, %95 : vector<49x64xf32>
    %c16 = arith.constant 16 : index
    %c0_65 = arith.constant 0 : index
    %97 = vector.load %arg10[%c16, %c0_65] : memref<65x16xbf16, #tpu.memory_space<vmem>>, vector<49x16xbf16>
    %c5_i32_66 = arith.constant 5 : i32
    %98 = vector.broadcast %c5_i32_66 : i32 to vector<49x1xi32>
    %99 = arith.cmpi sle, %20, %98 : vector<49x1xi32>
    %c0_i32_67 = arith.constant 0 : i32
    %100 = arith.sitofp %c0_i32_67 : i32 to bf16
    %101 = vector.shape_cast %99 : vector<49x1xi1> to vector<49x1xi1>
    %102 = vector.broadcast %101 : vector<49x1xi1> to vector<49x16xi1>
    %103 = vector.broadcast %100 : bf16 to vector<49x16xbf16>
    %104 = arith.select %102, %97, %103 : vector<49x16xi1>, vector<49x16xbf16>
    %c8_68 = arith.constant 8 : index
    %c0_69 = arith.constant 0 : index
    %c0_70 = arith.constant 0 : index
    %105 = vector.load %arg7[%c8_68, %c0_69, %c0_70] : memref<9x16x64xbf16, #tpu.memory_space<vmem>>, vector<1x16x64xbf16>
    %106 = vector.shape_cast %105 : vector<1x16x64xbf16> to vector<16x64xbf16>
    %cst_71 = arith.constant dense<0.000000e+00> : vector<49x64xf32>
    %107 = tpu.matmul %104, %106, %cst_71 {dimension_numbers = #tpu.dot_dimension_numbers<[1], [0], [0], [1], [0, 0, 1, 1], [], []>} : vector<49x16xbf16>, vector<16x64xbf16>, vector<49x64xf32> -> vector<49x64xf32>
    %108 = arith.addf %96, %107 : vector<49x64xf32>
    %c0_72 = arith.constant 0 : index
    %c0_73 = arith.constant 0 : index
    %109 = vector.load %arg8[%c0_72, %c0_73] : memref<1x64xf32, #tpu.memory_space<vmem>>, vector<1x64xf32>
    %110 = vector.broadcast %109 : vector<1x64xf32> to vector<49x64xf32>
    %111 = arith.addf %108, %110 : vector<49x64xf32>
    %cst_74 = arith.constant 0.000000e+00 : f32
    %112 = vector.broadcast %cst_74 : f32 to vector<49x64xf32>
    %113 = arith.maximumf %111, %112 : vector<49x64xf32>
    %114 = tpu.concatenate %16, %113 in 1 : vector<49x64xf32>, vector<49x64xf32> -> vector<49x128xf32>
    %115 = arith.truncf %114 : vector<49x128xf32> to vector<49x128xbf16>
    %c0_75 = arith.constant 0 : index
    %c0_76 = arith.constant 0 : index
    %c0_77 = arith.constant 0 : index
    %116 = vector.load %arg9[%c0_75, %c0_76, %c0_77] : memref<1x49x128xbf16, #tpu.memory_space<vmem>>, vector<1x49x128xbf16>
    %117 = vector.shape_cast %116 : vector<1x49x128xbf16> to vector<49x128xbf16>
    %118 = vector.shape_cast %115 : vector<49x128xbf16> to vector<1x49x128xbf16>
    tpu.vector_store %arg9[%c0_75, %c0_76, %c0_77], %118 {strides = array<i32>} : memref<1x49x128xbf16, #tpu.memory_space<vmem>>, vector<1x49x128xbf16>,
    return
  }
  func.func @transform_0(%arg0: i32) -> (i32, i32, i32) {
    %c0_i32 = arith.constant 0 : i32
    %c0_i32_0 = arith.constant 0 : i32
    %c0_i32_1 = arith.constant 0 : i32
    return %arg0, %c0_i32, %c0_i32_0 : i32, i32, i32
  }
  func.func @transform_1(%arg0: i32) -> (i32, i32) {
    %c0_i32 = arith.constant 0 : i32
    %c0_i32_0 = arith.constant 0 : i32
    %c0_i32_1 = arith.constant 0 : i32
    return %c0_i32, %c0_i32_0 : i32, i32
  }
  func.func @transform_2(%arg0: i32) -> (i32, i32) {
    %c0_i32 = arith.constant 0 : i32
    %c0_i32_0 = arith.constant 0 : i32
    %c0_i32_1 = arith.constant 0 : i32
    return %c0_i32, %c0_i32_0 : i32, i32
  }
  func.func @transform_3(%arg0: i32) -> (i32, i32) {
    %c0_i32 = arith.constant 0 : i32
    %c0_i32_0 = arith.constant 0 : i32
    %c0_i32_1 = arith.constant 0 : i32
    return %c0_i32, %c0_i32_0 : i32, i32
  }
  func.func @transform_4(%arg0: i32) -> (i32, i32) {
    %c0_i32 = arith.constant 0 : i32
    %c0_i32_0 = arith.constant 0 : i32
    %c0_i32_1 = arith.constant 0 : i32
    return %c0_i32, %c0_i32_0 : i32, i32
  }
  func.func @transform_5(%arg0: i32) -> (i32, i32) {
    %c0_i32 = arith.constant 0 : i32
    %c0_i32_0 = arith.constant 0 : i32
    %c0_i32_1 = arith.constant 0 : i32
    return %c0_i32, %c0_i32_0 : i32, i32
  }
  func.func @transform_6(%arg0: i32) -> (i32, i32, i32) {
    %c0_i32 = arith.constant 0 : i32
    %c0_i32_0 = arith.constant 0 : i32
    %c0_i32_1 = arith.constant 0 : i32
    %c0_i32_2 = arith.constant 0 : i32
    return %c0_i32, %c0_i32_0, %c0_i32_1 : i32, i32, i32
  }
  func.func @transform_7(%arg0: i32) -> (i32, i32) {
    %c0_i32 = arith.constant 0 : i32
    %c0_i32_0 = arith.constant 0 : i32
    %c0_i32_1 = arith.constant 0 : i32
    return %c0_i32, %c0_i32_0 : i32, i32
  }
  func.func @transform_8(%arg0: i32) -> (i32, i32, i32) {
    %c0_i32 = arith.constant 0 : i32
    %c0_i32_0 = arith.constant 0 : i32
    %c0_i32_1 = arith.constant 0 : i32
    return %arg0, %c0_i32, %c0_i32_0 : i32, i32, i32
  }
}

module attributes {stable_mosaic.version = 11 : i64} {
  func.func @_fire_kernel(%arg0: i32, %arg1: memref<1x9x128xbf16, #tpu.memory_space<vmem>>, %arg2: memref<9x1xi32, #tpu.memory_space<vmem>>, %arg3: memref<128x32xbf16, #tpu.memory_space<vmem>>, %arg4: memref<1x32xf32, #tpu.memory_space<vmem>>, %arg5: memref<32x128xbf16, #tpu.memory_space<vmem>>, %arg6: memref<1x128xf32, #tpu.memory_space<vmem>>, %arg7: memref<9x32x128xbf16, #tpu.memory_space<vmem>>, %arg8: memref<1x128xf32, #tpu.memory_space<vmem>>, %arg9: memref<1x9x256xbf16, #tpu.memory_space<vmem>>, %arg10: memref<21x32xbf16, #tpu.memory_space<vmem>>) attributes {dimension_semantics = [#tpu.dimension_semantics<parallel>], iteration_bounds = array<i64: 2>, scalar_prefetch = 0 : i64, scratch_operands = 1 : i64, tpu.core_type = #tpu.core_type<tc>, window_params = [{transform_indices = @transform_0, window_bounds = array<i64: 1, 9, 128>}, {pipeline_mode = #tpu.pipeline_mode<synchronous>, transform_indices = @transform_1, window_bounds = array<i64: 9, 1>}, {pipeline_mode = #tpu.pipeline_mode<synchronous>, transform_indices = @transform_2, window_bounds = array<i64: 128, 32>}, {pipeline_mode = #tpu.pipeline_mode<synchronous>, transform_indices = @transform_3, window_bounds = array<i64: 1, 32>}, {pipeline_mode = #tpu.pipeline_mode<synchronous>, transform_indices = @transform_4, window_bounds = array<i64: 32, 128>}, {pipeline_mode = #tpu.pipeline_mode<synchronous>, transform_indices = @transform_5, window_bounds = array<i64: 1, 128>}, {pipeline_mode = #tpu.pipeline_mode<synchronous>, transform_indices = @transform_6, window_bounds = array<i64: 9, 32, 128>}, {pipeline_mode = #tpu.pipeline_mode<synchronous>, transform_indices = @transform_7, window_bounds = array<i64: 1, 128>}, {transform_indices = @transform_8, window_bounds = array<i64: 1, 9, 256>}]} {
    %c0 = arith.constant 0 : index
    %c0_0 = arith.constant 0 : index
    %c0_1 = arith.constant 0 : index
    %0 = vector.load %arg1[%c0, %c0_0, %c0_1] : memref<1x9x128xbf16, #tpu.memory_space<vmem>>, vector<1x9x128xbf16>
    %1 = vector.shape_cast %0 : vector<1x9x128xbf16> to vector<9x128xbf16>
    %c0_2 = arith.constant 0 : index
    %c0_3 = arith.constant 0 : index
    %2 = vector.load %arg3[%c0_2, %c0_3] : memref<128x32xbf16, #tpu.memory_space<vmem>>, vector<128x32xbf16>
    %cst = arith.constant dense<0.000000e+00> : vector<9x32xf32>
    %3 = tpu.matmul %1, %2, %cst {dimension_numbers = #tpu.dot_dimension_numbers<[1], [0], [0], [1], [0, 0, 1, 1], [], []>} : vector<9x128xbf16>, vector<128x32xbf16>, vector<9x32xf32> -> vector<9x32xf32>
    %c0_4 = arith.constant 0 : index
    %c0_5 = arith.constant 0 : index
    %4 = vector.load %arg4[%c0_4, %c0_5] : memref<1x32xf32, #tpu.memory_space<vmem>>, vector<1x32xf32>
    %5 = vector.broadcast %4 : vector<1x32xf32> to vector<9x32xf32>
    %6 = arith.addf %3, %5 : vector<9x32xf32>
    %cst_6 = arith.constant 0.000000e+00 : f32
    %7 = vector.broadcast %cst_6 : f32 to vector<9x32xf32>
    %8 = arith.maximumf %6, %7 : vector<9x32xf32>
    %9 = arith.truncf %8 : vector<9x32xf32> to vector<9x32xbf16>
    %c0_7 = arith.constant 0 : index
    %c0_8 = arith.constant 0 : index
    %10 = vector.load %arg5[%c0_7, %c0_8] : memref<32x128xbf16, #tpu.memory_space<vmem>>, vector<32x128xbf16>
    %cst_9 = arith.constant dense<0.000000e+00> : vector<9x128xf32>
    %11 = tpu.matmul %9, %10, %cst_9 {dimension_numbers = #tpu.dot_dimension_numbers<[1], [0], [0], [1], [0, 0, 1, 1], [], []>} : vector<9x32xbf16>, vector<32x128xbf16>, vector<9x128xf32> -> vector<9x128xf32>
    %c0_10 = arith.constant 0 : index
    %c0_11 = arith.constant 0 : index
    %12 = vector.load %arg6[%c0_10, %c0_11] : memref<1x128xf32, #tpu.memory_space<vmem>>, vector<1x128xf32>
    %13 = vector.broadcast %12 : vector<1x128xf32> to vector<9x128xf32>
    %14 = arith.addf %11, %13 : vector<9x128xf32>
    %cst_12 = arith.constant 0.000000e+00 : f32
    %15 = vector.broadcast %cst_12 : f32 to vector<9x128xf32>
    %16 = arith.maximumf %14, %15 : vector<9x128xf32>
    %cst_13 = arith.constant 0.000000e+00 : bf16
    %17 = vector.broadcast %cst_13 : bf16 to vector<21x32xbf16>
    %c0_14 = arith.constant 0 : index
    %c0_15 = arith.constant 0 : index
    %18 = vector.load %arg10[%c0_14, %c0_15] : memref<21x32xbf16, #tpu.memory_space<vmem>>, vector<21x32xbf16>
    tpu.vector_store %arg10[%c0_14, %c0_15], %17 {strides = array<i32>} : memref<21x32xbf16, #tpu.memory_space<vmem>>, vector<21x32xbf16>,
    %c8 = arith.constant 8 : index
    %c0_16 = arith.constant 0 : index
    %19 = vector.load %arg10[%c8, %c0_16] : memref<21x32xbf16, #tpu.memory_space<vmem>>, vector<9x32xbf16>
    tpu.vector_store %arg10[%c8, %c0_16], %9 {strides = array<i32>} : memref<21x32xbf16, #tpu.memory_space<vmem>>, vector<9x32xbf16>,
    %c0_17 = arith.constant 0 : index
    %c0_18 = arith.constant 0 : index
    %20 = vector.load %arg2[%c0_17, %c0_18] : memref<9x1xi32, #tpu.memory_space<vmem>>, vector<9x1xi32>
    %cst_19 = arith.constant 0.000000e+00 : f32
    %21 = vector.broadcast %cst_19 : f32 to vector<9x128xf32>
    %c4 = arith.constant 4 : index
    %c0_20 = arith.constant 0 : index
    %22 = vector.load %arg10[%c4, %c0_20] : memref<21x32xbf16, #tpu.memory_space<vmem>>, vector<9x32xbf16>
    %c1_i32 = arith.constant 1 : i32
    %23 = vector.broadcast %c1_i32 : i32 to vector<9x1xi32>
    %24 = arith.cmpi sge, %20, %23 : vector<9x1xi32>
    %c0_i32 = arith.constant 0 : i32
    %25 = arith.sitofp %c0_i32 : i32 to bf16
    %26 = vector.shape_cast %24 : vector<9x1xi1> to vector<9x1xi1>
    %27 = vector.broadcast %26 : vector<9x1xi1> to vector<9x32xi1>
    %28 = vector.broadcast %25 : bf16 to vector<9x32xbf16>
    %29 = arith.select %27, %22, %28 : vector<9x32xi1>, vector<9x32xbf16>
    %c0_21 = arith.constant 0 : index
    %c0_22 = arith.constant 0 : index
    %c0_23 = arith.constant 0 : index
    %30 = vector.load %arg7[%c0_21, %c0_22, %c0_23] : memref<9x32x128xbf16, #tpu.memory_space<vmem>>, vector<1x32x128xbf16>
    %31 = vector.shape_cast %30 : vector<1x32x128xbf16> to vector<32x128xbf16>
    %cst_24 = arith.constant dense<0.000000e+00> : vector<9x128xf32>
    %32 = tpu.matmul %29, %31, %cst_24 {dimension_numbers = #tpu.dot_dimension_numbers<[1], [0], [0], [1], [0, 0, 1, 1], [], []>} : vector<9x32xbf16>, vector<32x128xbf16>, vector<9x128xf32> -> vector<9x128xf32>
    %33 = arith.addf %21, %32 : vector<9x128xf32>
    %c5 = arith.constant 5 : index
    %c0_25 = arith.constant 0 : index
    %34 = vector.load %arg10[%c5, %c0_25] : memref<21x32xbf16, #tpu.memory_space<vmem>>, vector<9x32xbf16>
    %c1 = arith.constant 1 : index
    %c0_26 = arith.constant 0 : index
    %c0_27 = arith.constant 0 : index
    %35 = vector.load %arg7[%c1, %c0_26, %c0_27] : memref<9x32x128xbf16, #tpu.memory_space<vmem>>, vector<1x32x128xbf16>
    %36 = vector.shape_cast %35 : vector<1x32x128xbf16> to vector<32x128xbf16>
    %cst_28 = arith.constant dense<0.000000e+00> : vector<9x128xf32>
    %37 = tpu.matmul %34, %36, %cst_28 {dimension_numbers = #tpu.dot_dimension_numbers<[1], [0], [0], [1], [0, 0, 1, 1], [], []>} : vector<9x32xbf16>, vector<32x128xbf16>, vector<9x128xf32> -> vector<9x128xf32>
    %38 = arith.addf %33, %37 : vector<9x128xf32>
    %c6 = arith.constant 6 : index
    %c0_29 = arith.constant 0 : index
    %39 = vector.load %arg10[%c6, %c0_29] : memref<21x32xbf16, #tpu.memory_space<vmem>>, vector<9x32xbf16>
    %c1_i32_30 = arith.constant 1 : i32
    %40 = vector.broadcast %c1_i32_30 : i32 to vector<9x1xi32>
    %41 = arith.cmpi sle, %20, %40 : vector<9x1xi32>
    %c0_i32_31 = arith.constant 0 : i32
    %42 = arith.sitofp %c0_i32_31 : i32 to bf16
    %43 = vector.shape_cast %41 : vector<9x1xi1> to vector<9x1xi1>
    %44 = vector.broadcast %43 : vector<9x1xi1> to vector<9x32xi1>
    %45 = vector.broadcast %42 : bf16 to vector<9x32xbf16>
    %46 = arith.select %44, %39, %45 : vector<9x32xi1>, vector<9x32xbf16>
    %c2 = arith.constant 2 : index
    %c0_32 = arith.constant 0 : index
    %c0_33 = arith.constant 0 : index
    %47 = vector.load %arg7[%c2, %c0_32, %c0_33] : memref<9x32x128xbf16, #tpu.memory_space<vmem>>, vector<1x32x128xbf16>
    %48 = vector.shape_cast %47 : vector<1x32x128xbf16> to vector<32x128xbf16>
    %cst_34 = arith.constant dense<0.000000e+00> : vector<9x128xf32>
    %49 = tpu.matmul %46, %48, %cst_34 {dimension_numbers = #tpu.dot_dimension_numbers<[1], [0], [0], [1], [0, 0, 1, 1], [], []>} : vector<9x32xbf16>, vector<32x128xbf16>, vector<9x128xf32> -> vector<9x128xf32>
    %50 = arith.addf %38, %49 : vector<9x128xf32>
    %c7 = arith.constant 7 : index
    %c0_35 = arith.constant 0 : index
    %51 = vector.load %arg10[%c7, %c0_35] : memref<21x32xbf16, #tpu.memory_space<vmem>>, vector<9x32xbf16>
    %c1_i32_36 = arith.constant 1 : i32
    %52 = vector.broadcast %c1_i32_36 : i32 to vector<9x1xi32>
    %53 = arith.cmpi sge, %20, %52 : vector<9x1xi32>
    %c0_i32_37 = arith.constant 0 : i32
    %54 = arith.sitofp %c0_i32_37 : i32 to bf16
    %55 = vector.shape_cast %53 : vector<9x1xi1> to vector<9x1xi1>
    %56 = vector.broadcast %55 : vector<9x1xi1> to vector<9x32xi1>
    %57 = vector.broadcast %54 : bf16 to vector<9x32xbf16>
    %58 = arith.select %56, %51, %57 : vector<9x32xi1>, vector<9x32xbf16>
    %c3 = arith.constant 3 : index
    %c0_38 = arith.constant 0 : index
    %c0_39 = arith.constant 0 : index
    %59 = vector.load %arg7[%c3, %c0_38, %c0_39] : memref<9x32x128xbf16, #tpu.memory_space<vmem>>, vector<1x32x128xbf16>
    %60 = vector.shape_cast %59 : vector<1x32x128xbf16> to vector<32x128xbf16>
    %cst_40 = arith.constant dense<0.000000e+00> : vector<9x128xf32>
    %61 = tpu.matmul %58, %60, %cst_40 {dimension_numbers = #tpu.dot_dimension_numbers<[1], [0], [0], [1], [0, 0, 1, 1], [], []>} : vector<9x32xbf16>, vector<32x128xbf16>, vector<9x128xf32> -> vector<9x128xf32>
    %62 = arith.addf %50, %61 : vector<9x128xf32>
    %c8_41 = arith.constant 8 : index
    %c0_42 = arith.constant 0 : index
    %63 = vector.load %arg10[%c8_41, %c0_42] : memref<21x32xbf16, #tpu.memory_space<vmem>>, vector<9x32xbf16>
    %c4_43 = arith.constant 4 : index
    %c0_44 = arith.constant 0 : index
    %c0_45 = arith.constant 0 : index
    %64 = vector.load %arg7[%c4_43, %c0_44, %c0_45] : memref<9x32x128xbf16, #tpu.memory_space<vmem>>, vector<1x32x128xbf16>
    %65 = vector.shape_cast %64 : vector<1x32x128xbf16> to vector<32x128xbf16>
    %cst_46 = arith.constant dense<0.000000e+00> : vector<9x128xf32>
    %66 = tpu.matmul %63, %65, %cst_46 {dimension_numbers = #tpu.dot_dimension_numbers<[1], [0], [0], [1], [0, 0, 1, 1], [], []>} : vector<9x32xbf16>, vector<32x128xbf16>, vector<9x128xf32> -> vector<9x128xf32>
    %67 = arith.addf %62, %66 : vector<9x128xf32>
    %c9 = arith.constant 9 : index
    %c0_47 = arith.constant 0 : index
    %68 = vector.load %arg10[%c9, %c0_47] : memref<21x32xbf16, #tpu.memory_space<vmem>>, vector<9x32xbf16>
    %c1_i32_48 = arith.constant 1 : i32
    %69 = vector.broadcast %c1_i32_48 : i32 to vector<9x1xi32>
    %70 = arith.cmpi sle, %20, %69 : vector<9x1xi32>
    %c0_i32_49 = arith.constant 0 : i32
    %71 = arith.sitofp %c0_i32_49 : i32 to bf16
    %72 = vector.shape_cast %70 : vector<9x1xi1> to vector<9x1xi1>
    %73 = vector.broadcast %72 : vector<9x1xi1> to vector<9x32xi1>
    %74 = vector.broadcast %71 : bf16 to vector<9x32xbf16>
    %75 = arith.select %73, %68, %74 : vector<9x32xi1>, vector<9x32xbf16>
    %c5_50 = arith.constant 5 : index
    %c0_51 = arith.constant 0 : index
    %c0_52 = arith.constant 0 : index
    %76 = vector.load %arg7[%c5_50, %c0_51, %c0_52] : memref<9x32x128xbf16, #tpu.memory_space<vmem>>, vector<1x32x128xbf16>
    %77 = vector.shape_cast %76 : vector<1x32x128xbf16> to vector<32x128xbf16>
    %cst_53 = arith.constant dense<0.000000e+00> : vector<9x128xf32>
    %78 = tpu.matmul %75, %77, %cst_53 {dimension_numbers = #tpu.dot_dimension_numbers<[1], [0], [0], [1], [0, 0, 1, 1], [], []>} : vector<9x32xbf16>, vector<32x128xbf16>, vector<9x128xf32> -> vector<9x128xf32>
    %79 = arith.addf %67, %78 : vector<9x128xf32>
    %c10 = arith.constant 10 : index
    %c0_54 = arith.constant 0 : index
    %80 = vector.load %arg10[%c10, %c0_54] : memref<21x32xbf16, #tpu.memory_space<vmem>>, vector<9x32xbf16>
    %c1_i32_55 = arith.constant 1 : i32
    %81 = vector.broadcast %c1_i32_55 : i32 to vector<9x1xi32>
    %82 = arith.cmpi sge, %20, %81 : vector<9x1xi32>
    %c0_i32_56 = arith.constant 0 : i32
    %83 = arith.sitofp %c0_i32_56 : i32 to bf16
    %84 = vector.shape_cast %82 : vector<9x1xi1> to vector<9x1xi1>
    %85 = vector.broadcast %84 : vector<9x1xi1> to vector<9x32xi1>
    %86 = vector.broadcast %83 : bf16 to vector<9x32xbf16>
    %87 = arith.select %85, %80, %86 : vector<9x32xi1>, vector<9x32xbf16>
    %c6_57 = arith.constant 6 : index
    %c0_58 = arith.constant 0 : index
    %c0_59 = arith.constant 0 : index
    %88 = vector.load %arg7[%c6_57, %c0_58, %c0_59] : memref<9x32x128xbf16, #tpu.memory_space<vmem>>, vector<1x32x128xbf16>
    %89 = vector.shape_cast %88 : vector<1x32x128xbf16> to vector<32x128xbf16>
    %cst_60 = arith.constant dense<0.000000e+00> : vector<9x128xf32>
    %90 = tpu.matmul %87, %89, %cst_60 {dimension_numbers = #tpu.dot_dimension_numbers<[1], [0], [0], [1], [0, 0, 1, 1], [], []>} : vector<9x32xbf16>, vector<32x128xbf16>, vector<9x128xf32> -> vector<9x128xf32>
    %91 = arith.addf %79, %90 : vector<9x128xf32>
    %c11 = arith.constant 11 : index
    %c0_61 = arith.constant 0 : index
    %92 = vector.load %arg10[%c11, %c0_61] : memref<21x32xbf16, #tpu.memory_space<vmem>>, vector<9x32xbf16>
    %c7_62 = arith.constant 7 : index
    %c0_63 = arith.constant 0 : index
    %c0_64 = arith.constant 0 : index
    %93 = vector.load %arg7[%c7_62, %c0_63, %c0_64] : memref<9x32x128xbf16, #tpu.memory_space<vmem>>, vector<1x32x128xbf16>
    %94 = vector.shape_cast %93 : vector<1x32x128xbf16> to vector<32x128xbf16>
    %cst_65 = arith.constant dense<0.000000e+00> : vector<9x128xf32>
    %95 = tpu.matmul %92, %94, %cst_65 {dimension_numbers = #tpu.dot_dimension_numbers<[1], [0], [0], [1], [0, 0, 1, 1], [], []>} : vector<9x32xbf16>, vector<32x128xbf16>, vector<9x128xf32> -> vector<9x128xf32>
    %96 = arith.addf %91, %95 : vector<9x128xf32>
    %c12 = arith.constant 12 : index
    %c0_66 = arith.constant 0 : index
    %97 = vector.load %arg10[%c12, %c0_66] : memref<21x32xbf16, #tpu.memory_space<vmem>>, vector<9x32xbf16>
    %c1_i32_67 = arith.constant 1 : i32
    %98 = vector.broadcast %c1_i32_67 : i32 to vector<9x1xi32>
    %99 = arith.cmpi sle, %20, %98 : vector<9x1xi32>
    %c0_i32_68 = arith.constant 0 : i32
    %100 = arith.sitofp %c0_i32_68 : i32 to bf16
    %101 = vector.shape_cast %99 : vector<9x1xi1> to vector<9x1xi1>
    %102 = vector.broadcast %101 : vector<9x1xi1> to vector<9x32xi1>
    %103 = vector.broadcast %100 : bf16 to vector<9x32xbf16>
    %104 = arith.select %102, %97, %103 : vector<9x32xi1>, vector<9x32xbf16>
    %c8_69 = arith.constant 8 : index
    %c0_70 = arith.constant 0 : index
    %c0_71 = arith.constant 0 : index
    %105 = vector.load %arg7[%c8_69, %c0_70, %c0_71] : memref<9x32x128xbf16, #tpu.memory_space<vmem>>, vector<1x32x128xbf16>
    %106 = vector.shape_cast %105 : vector<1x32x128xbf16> to vector<32x128xbf16>
    %cst_72 = arith.constant dense<0.000000e+00> : vector<9x128xf32>
    %107 = tpu.matmul %104, %106, %cst_72 {dimension_numbers = #tpu.dot_dimension_numbers<[1], [0], [0], [1], [0, 0, 1, 1], [], []>} : vector<9x32xbf16>, vector<32x128xbf16>, vector<9x128xf32> -> vector<9x128xf32>
    %108 = arith.addf %96, %107 : vector<9x128xf32>
    %c0_73 = arith.constant 0 : index
    %c0_74 = arith.constant 0 : index
    %109 = vector.load %arg8[%c0_73, %c0_74] : memref<1x128xf32, #tpu.memory_space<vmem>>, vector<1x128xf32>
    %110 = vector.broadcast %109 : vector<1x128xf32> to vector<9x128xf32>
    %111 = arith.addf %108, %110 : vector<9x128xf32>
    %cst_75 = arith.constant 0.000000e+00 : f32
    %112 = vector.broadcast %cst_75 : f32 to vector<9x128xf32>
    %113 = arith.maximumf %111, %112 : vector<9x128xf32>
    %114 = tpu.concatenate %16, %113 in 1 : vector<9x128xf32>, vector<9x128xf32> -> vector<9x256xf32>
    %115 = arith.truncf %114 : vector<9x256xf32> to vector<9x256xbf16>
    %c0_76 = arith.constant 0 : index
    %c0_77 = arith.constant 0 : index
    %c0_78 = arith.constant 0 : index
    %116 = vector.load %arg9[%c0_76, %c0_77, %c0_78] : memref<1x9x256xbf16, #tpu.memory_space<vmem>>, vector<1x9x256xbf16>
    %117 = vector.shape_cast %116 : vector<1x9x256xbf16> to vector<9x256xbf16>
    %118 = vector.shape_cast %115 : vector<9x256xbf16> to vector<1x9x256xbf16>
    tpu.vector_store %arg9[%c0_76, %c0_77, %c0_78], %118 {strides = array<i32>} : memref<1x9x256xbf16, #tpu.memory_space<vmem>>, vector<1x9x256xbf16>,
    return
  }
  func.func @transform_0(%arg0: i32) -> (i32, i32, i32) {
    %c0_i32 = arith.constant 0 : i32
    %c0_i32_0 = arith.constant 0 : i32
    %c0_i32_1 = arith.constant 0 : i32
    return %arg0, %c0_i32, %c0_i32_0 : i32, i32, i32
  }
  func.func @transform_1(%arg0: i32) -> (i32, i32) {
    %c0_i32 = arith.constant 0 : i32
    %c0_i32_0 = arith.constant 0 : i32
    %c0_i32_1 = arith.constant 0 : i32
    return %c0_i32, %c0_i32_0 : i32, i32
  }
  func.func @transform_2(%arg0: i32) -> (i32, i32) {
    %c0_i32 = arith.constant 0 : i32
    %c0_i32_0 = arith.constant 0 : i32
    %c0_i32_1 = arith.constant 0 : i32
    return %c0_i32, %c0_i32_0 : i32, i32
  }
  func.func @transform_3(%arg0: i32) -> (i32, i32) {
    %c0_i32 = arith.constant 0 : i32
    %c0_i32_0 = arith.constant 0 : i32
    %c0_i32_1 = arith.constant 0 : i32
    return %c0_i32, %c0_i32_0 : i32, i32
  }
  func.func @transform_4(%arg0: i32) -> (i32, i32) {
    %c0_i32 = arith.constant 0 : i32
    %c0_i32_0 = arith.constant 0 : i32
    %c0_i32_1 = arith.constant 0 : i32
    return %c0_i32, %c0_i32_0 : i32, i32
  }
  func.func @transform_5(%arg0: i32) -> (i32, i32) {
    %c0_i32 = arith.constant 0 : i32
    %c0_i32_0 = arith.constant 0 : i32
    %c0_i32_1 = arith.constant 0 : i32
    return %c0_i32, %c0_i32_0 : i32, i32
  }
  func.func @transform_6(%arg0: i32) -> (i32, i32, i32) {
    %c0_i32 = arith.constant 0 : i32
    %c0_i32_0 = arith.constant 0 : i32
    %c0_i32_1 = arith.constant 0 : i32
    %c0_i32_2 = arith.constant 0 : i32
    return %c0_i32, %c0_i32_0, %c0_i32_1 : i32, i32, i32
  }
  func.func @transform_7(%arg0: i32) -> (i32, i32) {
    %c0_i32 = arith.constant 0 : i32
    %c0_i32_0 = arith.constant 0 : i32
    %c0_i32_1 = arith.constant 0 : i32
    return %c0_i32, %c0_i32_0 : i32, i32
  }
  func.func @transform_8(%arg0: i32) -> (i32, i32, i32) {
    %c0_i32 = arith.constant 0 : i32
    %c0_i32_0 = arith.constant 0 : i32
    %c0_i32_1 = arith.constant 0 : i32
    return %arg0, %c0_i32, %c0_i32_0 : i32, i32, i32
  }
}

module attributes {stable_mosaic.version = 11 : i64} {
  func.func @_fire_kernel(%arg0: i32, %arg1: memref<1x9x256xbf16, #tpu.memory_space<vmem>>, %arg2: memref<9x1xi32, #tpu.memory_space<vmem>>, %arg3: memref<256x32xbf16, #tpu.memory_space<vmem>>, %arg4: memref<1x32xf32, #tpu.memory_space<vmem>>, %arg5: memref<32x128xbf16, #tpu.memory_space<vmem>>, %arg6: memref<1x128xf32, #tpu.memory_space<vmem>>, %arg7: memref<9x32x128xbf16, #tpu.memory_space<vmem>>, %arg8: memref<1x128xf32, #tpu.memory_space<vmem>>, %arg9: memref<1x9x256xbf16, #tpu.memory_space<vmem>>, %arg10: memref<21x32xbf16, #tpu.memory_space<vmem>>) attributes {dimension_semantics = [#tpu.dimension_semantics<parallel>], iteration_bounds = array<i64: 2>, scalar_prefetch = 0 : i64, scratch_operands = 1 : i64, tpu.core_type = #tpu.core_type<tc>, window_params = [{transform_indices = @transform_0, window_bounds = array<i64: 1, 9, 256>}, {pipeline_mode = #tpu.pipeline_mode<synchronous>, transform_indices = @transform_1, window_bounds = array<i64: 9, 1>}, {pipeline_mode = #tpu.pipeline_mode<synchronous>, transform_indices = @transform_2, window_bounds = array<i64: 256, 32>}, {pipeline_mode = #tpu.pipeline_mode<synchronous>, transform_indices = @transform_3, window_bounds = array<i64: 1, 32>}, {pipeline_mode = #tpu.pipeline_mode<synchronous>, transform_indices = @transform_4, window_bounds = array<i64: 32, 128>}, {pipeline_mode = #tpu.pipeline_mode<synchronous>, transform_indices = @transform_5, window_bounds = array<i64: 1, 128>}, {pipeline_mode = #tpu.pipeline_mode<synchronous>, transform_indices = @transform_6, window_bounds = array<i64: 9, 32, 128>}, {pipeline_mode = #tpu.pipeline_mode<synchronous>, transform_indices = @transform_7, window_bounds = array<i64: 1, 128>}, {transform_indices = @transform_8, window_bounds = array<i64: 1, 9, 256>}]} {
    %c0 = arith.constant 0 : index
    %c0_0 = arith.constant 0 : index
    %c0_1 = arith.constant 0 : index
    %0 = vector.load %arg1[%c0, %c0_0, %c0_1] : memref<1x9x256xbf16, #tpu.memory_space<vmem>>, vector<1x9x256xbf16>
    %1 = vector.shape_cast %0 : vector<1x9x256xbf16> to vector<9x256xbf16>
    %c0_2 = arith.constant 0 : index
    %c0_3 = arith.constant 0 : index
    %2 = vector.load %arg3[%c0_2, %c0_3] : memref<256x32xbf16, #tpu.memory_space<vmem>>, vector<256x32xbf16>
    %cst = arith.constant dense<0.000000e+00> : vector<9x32xf32>
    %3 = tpu.matmul %1, %2, %cst {dimension_numbers = #tpu.dot_dimension_numbers<[1], [0], [0], [1], [0, 0, 1, 1], [], []>} : vector<9x256xbf16>, vector<256x32xbf16>, vector<9x32xf32> -> vector<9x32xf32>
    %c0_4 = arith.constant 0 : index
    %c0_5 = arith.constant 0 : index
    %4 = vector.load %arg4[%c0_4, %c0_5] : memref<1x32xf32, #tpu.memory_space<vmem>>, vector<1x32xf32>
    %5 = vector.broadcast %4 : vector<1x32xf32> to vector<9x32xf32>
    %6 = arith.addf %3, %5 : vector<9x32xf32>
    %cst_6 = arith.constant 0.000000e+00 : f32
    %7 = vector.broadcast %cst_6 : f32 to vector<9x32xf32>
    %8 = arith.maximumf %6, %7 : vector<9x32xf32>
    %9 = arith.truncf %8 : vector<9x32xf32> to vector<9x32xbf16>
    %c0_7 = arith.constant 0 : index
    %c0_8 = arith.constant 0 : index
    %10 = vector.load %arg5[%c0_7, %c0_8] : memref<32x128xbf16, #tpu.memory_space<vmem>>, vector<32x128xbf16>
    %cst_9 = arith.constant dense<0.000000e+00> : vector<9x128xf32>
    %11 = tpu.matmul %9, %10, %cst_9 {dimension_numbers = #tpu.dot_dimension_numbers<[1], [0], [0], [1], [0, 0, 1, 1], [], []>} : vector<9x32xbf16>, vector<32x128xbf16>, vector<9x128xf32> -> vector<9x128xf32>
    %c0_10 = arith.constant 0 : index
    %c0_11 = arith.constant 0 : index
    %12 = vector.load %arg6[%c0_10, %c0_11] : memref<1x128xf32, #tpu.memory_space<vmem>>, vector<1x128xf32>
    %13 = vector.broadcast %12 : vector<1x128xf32> to vector<9x128xf32>
    %14 = arith.addf %11, %13 : vector<9x128xf32>
    %cst_12 = arith.constant 0.000000e+00 : f32
    %15 = vector.broadcast %cst_12 : f32 to vector<9x128xf32>
    %16 = arith.maximumf %14, %15 : vector<9x128xf32>
    %cst_13 = arith.constant 0.000000e+00 : bf16
    %17 = vector.broadcast %cst_13 : bf16 to vector<21x32xbf16>
    %c0_14 = arith.constant 0 : index
    %c0_15 = arith.constant 0 : index
    %18 = vector.load %arg10[%c0_14, %c0_15] : memref<21x32xbf16, #tpu.memory_space<vmem>>, vector<21x32xbf16>
    tpu.vector_store %arg10[%c0_14, %c0_15], %17 {strides = array<i32>} : memref<21x32xbf16, #tpu.memory_space<vmem>>, vector<21x32xbf16>,
    %c8 = arith.constant 8 : index
    %c0_16 = arith.constant 0 : index
    %19 = vector.load %arg10[%c8, %c0_16] : memref<21x32xbf16, #tpu.memory_space<vmem>>, vector<9x32xbf16>
    tpu.vector_store %arg10[%c8, %c0_16], %9 {strides = array<i32>} : memref<21x32xbf16, #tpu.memory_space<vmem>>, vector<9x32xbf16>,
    %c0_17 = arith.constant 0 : index
    %c0_18 = arith.constant 0 : index
    %20 = vector.load %arg2[%c0_17, %c0_18] : memref<9x1xi32, #tpu.memory_space<vmem>>, vector<9x1xi32>
    %cst_19 = arith.constant 0.000000e+00 : f32
    %21 = vector.broadcast %cst_19 : f32 to vector<9x128xf32>
    %c4 = arith.constant 4 : index
    %c0_20 = arith.constant 0 : index
    %22 = vector.load %arg10[%c4, %c0_20] : memref<21x32xbf16, #tpu.memory_space<vmem>>, vector<9x32xbf16>
    %c1_i32 = arith.constant 1 : i32
    %23 = vector.broadcast %c1_i32 : i32 to vector<9x1xi32>
    %24 = arith.cmpi sge, %20, %23 : vector<9x1xi32>
    %c0_i32 = arith.constant 0 : i32
    %25 = arith.sitofp %c0_i32 : i32 to bf16
    %26 = vector.shape_cast %24 : vector<9x1xi1> to vector<9x1xi1>
    %27 = vector.broadcast %26 : vector<9x1xi1> to vector<9x32xi1>
    %28 = vector.broadcast %25 : bf16 to vector<9x32xbf16>
    %29 = arith.select %27, %22, %28 : vector<9x32xi1>, vector<9x32xbf16>
    %c0_21 = arith.constant 0 : index
    %c0_22 = arith.constant 0 : index
    %c0_23 = arith.constant 0 : index
    %30 = vector.load %arg7[%c0_21, %c0_22, %c0_23] : memref<9x32x128xbf16, #tpu.memory_space<vmem>>, vector<1x32x128xbf16>
    %31 = vector.shape_cast %30 : vector<1x32x128xbf16> to vector<32x128xbf16>
    %cst_24 = arith.constant dense<0.000000e+00> : vector<9x128xf32>
    %32 = tpu.matmul %29, %31, %cst_24 {dimension_numbers = #tpu.dot_dimension_numbers<[1], [0], [0], [1], [0, 0, 1, 1], [], []>} : vector<9x32xbf16>, vector<32x128xbf16>, vector<9x128xf32> -> vector<9x128xf32>
    %33 = arith.addf %21, %32 : vector<9x128xf32>
    %c5 = arith.constant 5 : index
    %c0_25 = arith.constant 0 : index
    %34 = vector.load %arg10[%c5, %c0_25] : memref<21x32xbf16, #tpu.memory_space<vmem>>, vector<9x32xbf16>
    %c1 = arith.constant 1 : index
    %c0_26 = arith.constant 0 : index
    %c0_27 = arith.constant 0 : index
    %35 = vector.load %arg7[%c1, %c0_26, %c0_27] : memref<9x32x128xbf16, #tpu.memory_space<vmem>>, vector<1x32x128xbf16>
    %36 = vector.shape_cast %35 : vector<1x32x128xbf16> to vector<32x128xbf16>
    %cst_28 = arith.constant dense<0.000000e+00> : vector<9x128xf32>
    %37 = tpu.matmul %34, %36, %cst_28 {dimension_numbers = #tpu.dot_dimension_numbers<[1], [0], [0], [1], [0, 0, 1, 1], [], []>} : vector<9x32xbf16>, vector<32x128xbf16>, vector<9x128xf32> -> vector<9x128xf32>
    %38 = arith.addf %33, %37 : vector<9x128xf32>
    %c6 = arith.constant 6 : index
    %c0_29 = arith.constant 0 : index
    %39 = vector.load %arg10[%c6, %c0_29] : memref<21x32xbf16, #tpu.memory_space<vmem>>, vector<9x32xbf16>
    %c1_i32_30 = arith.constant 1 : i32
    %40 = vector.broadcast %c1_i32_30 : i32 to vector<9x1xi32>
    %41 = arith.cmpi sle, %20, %40 : vector<9x1xi32>
    %c0_i32_31 = arith.constant 0 : i32
    %42 = arith.sitofp %c0_i32_31 : i32 to bf16
    %43 = vector.shape_cast %41 : vector<9x1xi1> to vector<9x1xi1>
    %44 = vector.broadcast %43 : vector<9x1xi1> to vector<9x32xi1>
    %45 = vector.broadcast %42 : bf16 to vector<9x32xbf16>
    %46 = arith.select %44, %39, %45 : vector<9x32xi1>, vector<9x32xbf16>
    %c2 = arith.constant 2 : index
    %c0_32 = arith.constant 0 : index
    %c0_33 = arith.constant 0 : index
    %47 = vector.load %arg7[%c2, %c0_32, %c0_33] : memref<9x32x128xbf16, #tpu.memory_space<vmem>>, vector<1x32x128xbf16>
    %48 = vector.shape_cast %47 : vector<1x32x128xbf16> to vector<32x128xbf16>
    %cst_34 = arith.constant dense<0.000000e+00> : vector<9x128xf32>
    %49 = tpu.matmul %46, %48, %cst_34 {dimension_numbers = #tpu.dot_dimension_numbers<[1], [0], [0], [1], [0, 0, 1, 1], [], []>} : vector<9x32xbf16>, vector<32x128xbf16>, vector<9x128xf32> -> vector<9x128xf32>
    %50 = arith.addf %38, %49 : vector<9x128xf32>
    %c7 = arith.constant 7 : index
    %c0_35 = arith.constant 0 : index
    %51 = vector.load %arg10[%c7, %c0_35] : memref<21x32xbf16, #tpu.memory_space<vmem>>, vector<9x32xbf16>
    %c1_i32_36 = arith.constant 1 : i32
    %52 = vector.broadcast %c1_i32_36 : i32 to vector<9x1xi32>
    %53 = arith.cmpi sge, %20, %52 : vector<9x1xi32>
    %c0_i32_37 = arith.constant 0 : i32
    %54 = arith.sitofp %c0_i32_37 : i32 to bf16
    %55 = vector.shape_cast %53 : vector<9x1xi1> to vector<9x1xi1>
    %56 = vector.broadcast %55 : vector<9x1xi1> to vector<9x32xi1>
    %57 = vector.broadcast %54 : bf16 to vector<9x32xbf16>
    %58 = arith.select %56, %51, %57 : vector<9x32xi1>, vector<9x32xbf16>
    %c3 = arith.constant 3 : index
    %c0_38 = arith.constant 0 : index
    %c0_39 = arith.constant 0 : index
    %59 = vector.load %arg7[%c3, %c0_38, %c0_39] : memref<9x32x128xbf16, #tpu.memory_space<vmem>>, vector<1x32x128xbf16>
    %60 = vector.shape_cast %59 : vector<1x32x128xbf16> to vector<32x128xbf16>
    %cst_40 = arith.constant dense<0.000000e+00> : vector<9x128xf32>
    %61 = tpu.matmul %58, %60, %cst_40 {dimension_numbers = #tpu.dot_dimension_numbers<[1], [0], [0], [1], [0, 0, 1, 1], [], []>} : vector<9x32xbf16>, vector<32x128xbf16>, vector<9x128xf32> -> vector<9x128xf32>
    %62 = arith.addf %50, %61 : vector<9x128xf32>
    %c8_41 = arith.constant 8 : index
    %c0_42 = arith.constant 0 : index
    %63 = vector.load %arg10[%c8_41, %c0_42] : memref<21x32xbf16, #tpu.memory_space<vmem>>, vector<9x32xbf16>
    %c4_43 = arith.constant 4 : index
    %c0_44 = arith.constant 0 : index
    %c0_45 = arith.constant 0 : index
    %64 = vector.load %arg7[%c4_43, %c0_44, %c0_45] : memref<9x32x128xbf16, #tpu.memory_space<vmem>>, vector<1x32x128xbf16>
    %65 = vector.shape_cast %64 : vector<1x32x128xbf16> to vector<32x128xbf16>
    %cst_46 = arith.constant dense<0.000000e+00> : vector<9x128xf32>
    %66 = tpu.matmul %63, %65, %cst_46 {dimension_numbers = #tpu.dot_dimension_numbers<[1], [0], [0], [1], [0, 0, 1, 1], [], []>} : vector<9x32xbf16>, vector<32x128xbf16>, vector<9x128xf32> -> vector<9x128xf32>
    %67 = arith.addf %62, %66 : vector<9x128xf32>
    %c9 = arith.constant 9 : index
    %c0_47 = arith.constant 0 : index
    %68 = vector.load %arg10[%c9, %c0_47] : memref<21x32xbf16, #tpu.memory_space<vmem>>, vector<9x32xbf16>
    %c1_i32_48 = arith.constant 1 : i32
    %69 = vector.broadcast %c1_i32_48 : i32 to vector<9x1xi32>
    %70 = arith.cmpi sle, %20, %69 : vector<9x1xi32>
    %c0_i32_49 = arith.constant 0 : i32
    %71 = arith.sitofp %c0_i32_49 : i32 to bf16
    %72 = vector.shape_cast %70 : vector<9x1xi1> to vector<9x1xi1>
    %73 = vector.broadcast %72 : vector<9x1xi1> to vector<9x32xi1>
    %74 = vector.broadcast %71 : bf16 to vector<9x32xbf16>
    %75 = arith.select %73, %68, %74 : vector<9x32xi1>, vector<9x32xbf16>
    %c5_50 = arith.constant 5 : index
    %c0_51 = arith.constant 0 : index
    %c0_52 = arith.constant 0 : index
    %76 = vector.load %arg7[%c5_50, %c0_51, %c0_52] : memref<9x32x128xbf16, #tpu.memory_space<vmem>>, vector<1x32x128xbf16>
    %77 = vector.shape_cast %76 : vector<1x32x128xbf16> to vector<32x128xbf16>
    %cst_53 = arith.constant dense<0.000000e+00> : vector<9x128xf32>
    %78 = tpu.matmul %75, %77, %cst_53 {dimension_numbers = #tpu.dot_dimension_numbers<[1], [0], [0], [1], [0, 0, 1, 1], [], []>} : vector<9x32xbf16>, vector<32x128xbf16>, vector<9x128xf32> -> vector<9x128xf32>
    %79 = arith.addf %67, %78 : vector<9x128xf32>
    %c10 = arith.constant 10 : index
    %c0_54 = arith.constant 0 : index
    %80 = vector.load %arg10[%c10, %c0_54] : memref<21x32xbf16, #tpu.memory_space<vmem>>, vector<9x32xbf16>
    %c1_i32_55 = arith.constant 1 : i32
    %81 = vector.broadcast %c1_i32_55 : i32 to vector<9x1xi32>
    %82 = arith.cmpi sge, %20, %81 : vector<9x1xi32>
    %c0_i32_56 = arith.constant 0 : i32
    %83 = arith.sitofp %c0_i32_56 : i32 to bf16
    %84 = vector.shape_cast %82 : vector<9x1xi1> to vector<9x1xi1>
    %85 = vector.broadcast %84 : vector<9x1xi1> to vector<9x32xi1>
    %86 = vector.broadcast %83 : bf16 to vector<9x32xbf16>
    %87 = arith.select %85, %80, %86 : vector<9x32xi1>, vector<9x32xbf16>
    %c6_57 = arith.constant 6 : index
    %c0_58 = arith.constant 0 : index
    %c0_59 = arith.constant 0 : index
    %88 = vector.load %arg7[%c6_57, %c0_58, %c0_59] : memref<9x32x128xbf16, #tpu.memory_space<vmem>>, vector<1x32x128xbf16>
    %89 = vector.shape_cast %88 : vector<1x32x128xbf16> to vector<32x128xbf16>
    %cst_60 = arith.constant dense<0.000000e+00> : vector<9x128xf32>
    %90 = tpu.matmul %87, %89, %cst_60 {dimension_numbers = #tpu.dot_dimension_numbers<[1], [0], [0], [1], [0, 0, 1, 1], [], []>} : vector<9x32xbf16>, vector<32x128xbf16>, vector<9x128xf32> -> vector<9x128xf32>
    %91 = arith.addf %79, %90 : vector<9x128xf32>
    %c11 = arith.constant 11 : index
    %c0_61 = arith.constant 0 : index
    %92 = vector.load %arg10[%c11, %c0_61] : memref<21x32xbf16, #tpu.memory_space<vmem>>, vector<9x32xbf16>
    %c7_62 = arith.constant 7 : index
    %c0_63 = arith.constant 0 : index
    %c0_64 = arith.constant 0 : index
    %93 = vector.load %arg7[%c7_62, %c0_63, %c0_64] : memref<9x32x128xbf16, #tpu.memory_space<vmem>>, vector<1x32x128xbf16>
    %94 = vector.shape_cast %93 : vector<1x32x128xbf16> to vector<32x128xbf16>
    %cst_65 = arith.constant dense<0.000000e+00> : vector<9x128xf32>
    %95 = tpu.matmul %92, %94, %cst_65 {dimension_numbers = #tpu.dot_dimension_numbers<[1], [0], [0], [1], [0, 0, 1, 1], [], []>} : vector<9x32xbf16>, vector<32x128xbf16>, vector<9x128xf32> -> vector<9x128xf32>
    %96 = arith.addf %91, %95 : vector<9x128xf32>
    %c12 = arith.constant 12 : index
    %c0_66 = arith.constant 0 : index
    %97 = vector.load %arg10[%c12, %c0_66] : memref<21x32xbf16, #tpu.memory_space<vmem>>, vector<9x32xbf16>
    %c1_i32_67 = arith.constant 1 : i32
    %98 = vector.broadcast %c1_i32_67 : i32 to vector<9x1xi32>
    %99 = arith.cmpi sle, %20, %98 : vector<9x1xi32>
    %c0_i32_68 = arith.constant 0 : i32
    %100 = arith.sitofp %c0_i32_68 : i32 to bf16
    %101 = vector.shape_cast %99 : vector<9x1xi1> to vector<9x1xi1>
    %102 = vector.broadcast %101 : vector<9x1xi1> to vector<9x32xi1>
    %103 = vector.broadcast %100 : bf16 to vector<9x32xbf16>
    %104 = arith.select %102, %97, %103 : vector<9x32xi1>, vector<9x32xbf16>
    %c8_69 = arith.constant 8 : index
    %c0_70 = arith.constant 0 : index
    %c0_71 = arith.constant 0 : index
    %105 = vector.load %arg7[%c8_69, %c0_70, %c0_71] : memref<9x32x128xbf16, #tpu.memory_space<vmem>>, vector<1x32x128xbf16>
    %106 = vector.shape_cast %105 : vector<1x32x128xbf16> to vector<32x128xbf16>
    %cst_72 = arith.constant dense<0.000000e+00> : vector<9x128xf32>
    %107 = tpu.matmul %104, %106, %cst_72 {dimension_numbers = #tpu.dot_dimension_numbers<[1], [0], [0], [1], [0, 0, 1, 1], [], []>} : vector<9x32xbf16>, vector<32x128xbf16>, vector<9x128xf32> -> vector<9x128xf32>
    %108 = arith.addf %96, %107 : vector<9x128xf32>
    %c0_73 = arith.constant 0 : index
    %c0_74 = arith.constant 0 : index
    %109 = vector.load %arg8[%c0_73, %c0_74] : memref<1x128xf32, #tpu.memory_space<vmem>>, vector<1x128xf32>
    %110 = vector.broadcast %109 : vector<1x128xf32> to vector<9x128xf32>
    %111 = arith.addf %108, %110 : vector<9x128xf32>
    %cst_75 = arith.constant 0.000000e+00 : f32
    %112 = vector.broadcast %cst_75 : f32 to vector<9x128xf32>
    %113 = arith.maximumf %111, %112 : vector<9x128xf32>
    %114 = tpu.concatenate %16, %113 in 1 : vector<9x128xf32>, vector<9x128xf32> -> vector<9x256xf32>
    %115 = arith.truncf %114 : vector<9x256xf32> to vector<9x256xbf16>
    %c0_76 = arith.constant 0 : index
    %c0_77 = arith.constant 0 : index
    %c0_78 = arith.constant 0 : index
    %116 = vector.load %arg9[%c0_76, %c0_77, %c0_78] : memref<1x9x256xbf16, #tpu.memory_space<vmem>>, vector<1x9x256xbf16>
    %117 = vector.shape_cast %116 : vector<1x9x256xbf16> to vector<9x256xbf16>
    %118 = vector.shape_cast %115 : vector<9x256xbf16> to vector<1x9x256xbf16>
    tpu.vector_store %arg9[%c0_76, %c0_77, %c0_78], %118 {strides = array<i32>} : memref<1x9x256xbf16, #tpu.memory_space<vmem>>, vector<1x9x256xbf16>,
    return
  }
  func.func @transform_0(%arg0: i32) -> (i32, i32, i32) {
    %c0_i32 = arith.constant 0 : i32
    %c0_i32_0 = arith.constant 0 : i32
    %c0_i32_1 = arith.constant 0 : i32
    return %arg0, %c0_i32, %c0_i32_0 : i32, i32, i32
  }
  func.func @transform_1(%arg0: i32) -> (i32, i32) {
    %c0_i32 = arith.constant 0 : i32
    %c0_i32_0 = arith.constant 0 : i32
    %c0_i32_1 = arith.constant 0 : i32
    return %c0_i32, %c0_i32_0 : i32, i32
  }
  func.func @transform_2(%arg0: i32) -> (i32, i32) {
    %c0_i32 = arith.constant 0 : i32
    %c0_i32_0 = arith.constant 0 : i32
    %c0_i32_1 = arith.constant 0 : i32
    return %c0_i32, %c0_i32_0 : i32, i32
  }
  func.func @transform_3(%arg0: i32) -> (i32, i32) {
    %c0_i32 = arith.constant 0 : i32
    %c0_i32_0 = arith.constant 0 : i32
    %c0_i32_1 = arith.constant 0 : i32
    return %c0_i32, %c0_i32_0 : i32, i32
  }
  func.func @transform_4(%arg0: i32) -> (i32, i32) {
    %c0_i32 = arith.constant 0 : i32
    %c0_i32_0 = arith.constant 0 : i32
    %c0_i32_1 = arith.constant 0 : i32
    return %c0_i32, %c0_i32_0 : i32, i32
  }
  func.func @transform_5(%arg0: i32) -> (i32, i32) {
    %c0_i32 = arith.constant 0 : i32
    %c0_i32_0 = arith.constant 0 : i32
    %c0_i32_1 = arith.constant 0 : i32
    return %c0_i32, %c0_i32_0 : i32, i32
  }
  func.func @transform_6(%arg0: i32) -> (i32, i32, i32) {
    %c0_i32 = arith.constant 0 : i32
    %c0_i32_0 = arith.constant 0 : i32
    %c0_i32_1 = arith.constant 0 : i32
    %c0_i32_2 = arith.constant 0 : i32
    return %c0_i32, %c0_i32_0, %c0_i32_1 : i32, i32, i32
  }
  func.func @transform_7(%arg0: i32) -> (i32, i32) {
    %c0_i32 = arith.constant 0 : i32
    %c0_i32_0 = arith.constant 0 : i32
    %c0_i32_1 = arith.constant 0 : i32
    return %c0_i32, %c0_i32_0 : i32, i32
  }
  func.func @transform_8(%arg0: i32) -> (i32, i32, i32) {
    %c0_i32 = arith.constant 0 : i32
    %c0_i32_0 = arith.constant 0 : i32
    %c0_i32_1 = arith.constant 0 : i32
    return %arg0, %c0_i32, %c0_i32_0 : i32, i32, i32
  }
}

module attributes {stable_mosaic.version = 11 : i64} {
  func.func @_fire_kernel(%arg0: i32, %arg1: memref<1x1x256xbf16, #tpu.memory_space<vmem>>, %arg2: memref<1x1xi32, #tpu.memory_space<vmem>>, %arg3: memref<256x48xbf16, #tpu.memory_space<vmem>>, %arg4: memref<1x48xf32, #tpu.memory_space<vmem>>, %arg5: memref<48x192xbf16, #tpu.memory_space<vmem>>, %arg6: memref<1x192xf32, #tpu.memory_space<vmem>>, %arg7: memref<9x48x192xbf16, #tpu.memory_space<vmem>>, %arg8: memref<1x192xf32, #tpu.memory_space<vmem>>, %arg9: memref<1x1x384xbf16, #tpu.memory_space<vmem>>, %arg10: memref<11x48xbf16, #tpu.memory_space<vmem>>) attributes {dimension_semantics = [#tpu.dimension_semantics<parallel>], iteration_bounds = array<i64: 2>, scalar_prefetch = 0 : i64, scratch_operands = 1 : i64, tpu.core_type = #tpu.core_type<tc>, window_params = [{transform_indices = @transform_0, window_bounds = array<i64: 1, 1, 256>}, {pipeline_mode = #tpu.pipeline_mode<synchronous>, transform_indices = @transform_1, window_bounds = array<i64: 1, 1>}, {pipeline_mode = #tpu.pipeline_mode<synchronous>, transform_indices = @transform_2, window_bounds = array<i64: 256, 48>}, {pipeline_mode = #tpu.pipeline_mode<synchronous>, transform_indices = @transform_3, window_bounds = array<i64: 1, 48>}, {pipeline_mode = #tpu.pipeline_mode<synchronous>, transform_indices = @transform_4, window_bounds = array<i64: 48, 192>}, {pipeline_mode = #tpu.pipeline_mode<synchronous>, transform_indices = @transform_5, window_bounds = array<i64: 1, 192>}, {pipeline_mode = #tpu.pipeline_mode<synchronous>, transform_indices = @transform_6, window_bounds = array<i64: 9, 48, 192>}, {pipeline_mode = #tpu.pipeline_mode<synchronous>, transform_indices = @transform_7, window_bounds = array<i64: 1, 192>}, {transform_indices = @transform_8, window_bounds = array<i64: 1, 1, 384>}]} {
    %c0 = arith.constant 0 : index
    %c0_0 = arith.constant 0 : index
    %c0_1 = arith.constant 0 : index
    %0 = vector.load %arg1[%c0, %c0_0, %c0_1] : memref<1x1x256xbf16, #tpu.memory_space<vmem>>, vector<1x1x256xbf16>
    %1 = vector.shape_cast %0 : vector<1x1x256xbf16> to vector<1x256xbf16>
    %c0_2 = arith.constant 0 : index
    %c0_3 = arith.constant 0 : index
    %2 = vector.load %arg3[%c0_2, %c0_3] : memref<256x48xbf16, #tpu.memory_space<vmem>>, vector<256x48xbf16>
    %cst = arith.constant dense<0.000000e+00> : vector<1x48xf32>
    %3 = tpu.matmul %1, %2, %cst {dimension_numbers = #tpu.dot_dimension_numbers<[1], [0], [0], [1], [0, 0, 1, 1], [], []>} : vector<1x256xbf16>, vector<256x48xbf16>, vector<1x48xf32> -> vector<1x48xf32>
    %c0_4 = arith.constant 0 : index
    %c0_5 = arith.constant 0 : index
    %4 = vector.load %arg4[%c0_4, %c0_5] : memref<1x48xf32, #tpu.memory_space<vmem>>, vector<1x48xf32>
    %5 = arith.addf %3, %4 : vector<1x48xf32>
    %cst_6 = arith.constant 0.000000e+00 : f32
    %6 = vector.broadcast %cst_6 : f32 to vector<1x48xf32>
    %7 = arith.maximumf %5, %6 : vector<1x48xf32>
    %8 = arith.truncf %7 : vector<1x48xf32> to vector<1x48xbf16>
    %c0_7 = arith.constant 0 : index
    %c0_8 = arith.constant 0 : index
    %9 = vector.load %arg5[%c0_7, %c0_8] : memref<48x192xbf16, #tpu.memory_space<vmem>>, vector<48x192xbf16>
    %cst_9 = arith.constant dense<0.000000e+00> : vector<1x192xf32>
    %10 = tpu.matmul %8, %9, %cst_9 {dimension_numbers = #tpu.dot_dimension_numbers<[1], [0], [0], [1], [0, 0, 1, 1], [], []>} : vector<1x48xbf16>, vector<48x192xbf16>, vector<1x192xf32> -> vector<1x192xf32>
    %c0_10 = arith.constant 0 : index
    %c0_11 = arith.constant 0 : index
    %11 = vector.load %arg6[%c0_10, %c0_11] : memref<1x192xf32, #tpu.memory_space<vmem>>, vector<1x192xf32>
    %12 = arith.addf %10, %11 : vector<1x192xf32>
    %cst_12 = arith.constant 0.000000e+00 : f32
    %13 = vector.broadcast %cst_12 : f32 to vector<1x192xf32>
    %14 = arith.maximumf %12, %13 : vector<1x192xf32>
    %cst_13 = arith.constant 0.000000e+00 : bf16
    %15 = vector.broadcast %cst_13 : bf16 to vector<11x48xbf16>
    %c0_14 = arith.constant 0 : index
    %c0_15 = arith.constant 0 : index
    %16 = vector.load %arg10[%c0_14, %c0_15] : memref<11x48xbf16, #tpu.memory_space<vmem>>, vector<11x48xbf16>
    tpu.vector_store %arg10[%c0_14, %c0_15], %15 {strides = array<i32>} : memref<11x48xbf16, #tpu.memory_space<vmem>>, vector<11x48xbf16>,
    %c8 = arith.constant 8 : index
    %c0_16 = arith.constant 0 : index
    %17 = vector.load %arg10[%c8, %c0_16] : memref<11x48xbf16, #tpu.memory_space<vmem>>, vector<1x48xbf16>
    tpu.vector_store %arg10[%c8, %c0_16], %8 {strides = array<i32>} : memref<11x48xbf16, #tpu.memory_space<vmem>>, vector<1x48xbf16>,
    %cst_17 = arith.constant 0.000000e+00 : f32
    %18 = vector.broadcast %cst_17 : f32 to vector<1x192xf32>
    %c8_18 = arith.constant 8 : index
    %c0_19 = arith.constant 0 : index
    %19 = vector.load %arg10[%c8_18, %c0_19] : memref<11x48xbf16, #tpu.memory_space<vmem>>, vector<1x48xbf16>
    %c4 = arith.constant 4 : index
    %c0_20 = arith.constant 0 : index
    %c0_21 = arith.constant 0 : index
    %20 = vector.load %arg7[%c4, %c0_20, %c0_21] : memref<9x48x192xbf16, #tpu.memory_space<vmem>>, vector<1x48x192xbf16>
    %21 = vector.shape_cast %20 : vector<1x48x192xbf16> to vector<48x192xbf16>
    %cst_22 = arith.constant dense<0.000000e+00> : vector<1x192xf32>
    %22 = tpu.matmul %19, %21, %cst_22 {dimension_numbers = #tpu.dot_dimension_numbers<[1], [0], [0], [1], [0, 0, 1, 1], [], []>} : vector<1x48xbf16>, vector<48x192xbf16>, vector<1x192xf32> -> vector<1x192xf32>
    %23 = arith.addf %18, %22 : vector<1x192xf32>
    %c0_23 = arith.constant 0 : index
    %c0_24 = arith.constant 0 : index
    %24 = vector.load %arg8[%c0_23, %c0_24] : memref<1x192xf32, #tpu.memory_space<vmem>>, vector<1x192xf32>
    %25 = arith.addf %23, %24 : vector<1x192xf32>
    %cst_25 = arith.constant 0.000000e+00 : f32
    %26 = vector.broadcast %cst_25 : f32 to vector<1x192xf32>
    %27 = arith.maximumf %25, %26 : vector<1x192xf32>
    %28 = tpu.concatenate %14, %27 in 1 : vector<1x192xf32>, vector<1x192xf32> -> vector<1x384xf32>
    %29 = arith.truncf %28 : vector<1x384xf32> to vector<1x384xbf16>
    %c0_26 = arith.constant 0 : index
    %c0_27 = arith.constant 0 : index
    %c0_28 = arith.constant 0 : index
    %30 = vector.load %arg9[%c0_26, %c0_27, %c0_28] : memref<1x1x384xbf16, #tpu.memory_space<vmem>>, vector<1x1x384xbf16>
    %31 = vector.shape_cast %30 : vector<1x1x384xbf16> to vector<1x384xbf16>
    %32 = vector.shape_cast %29 : vector<1x384xbf16> to vector<1x1x384xbf16>
    tpu.vector_store %arg9[%c0_26, %c0_27, %c0_28], %32 {strides = array<i32>} : memref<1x1x384xbf16, #tpu.memory_space<vmem>>, vector<1x1x384xbf16>,
    return
  }
  func.func @transform_0(%arg0: i32) -> (i32, i32, i32) {
    %c0_i32 = arith.constant 0 : i32
    %c0_i32_0 = arith.constant 0 : i32
    %c0_i32_1 = arith.constant 0 : i32
    return %arg0, %c0_i32, %c0_i32_0 : i32, i32, i32
  }
  func.func @transform_1(%arg0: i32) -> (i32, i32) {
    %c0_i32 = arith.constant 0 : i32
    %c0_i32_0 = arith.constant 0 : i32
    %c0_i32_1 = arith.constant 0 : i32
    return %c0_i32, %c0_i32_0 : i32, i32
  }
  func.func @transform_2(%arg0: i32) -> (i32, i32) {
    %c0_i32 = arith.constant 0 : i32
    %c0_i32_0 = arith.constant 0 : i32
    %c0_i32_1 = arith.constant 0 : i32
    return %c0_i32, %c0_i32_0 : i32, i32
  }
  func.func @transform_3(%arg0: i32) -> (i32, i32) {
    %c0_i32 = arith.constant 0 : i32
    %c0_i32_0 = arith.constant 0 : i32
    %c0_i32_1 = arith.constant 0 : i32
    return %c0_i32, %c0_i32_0 : i32, i32
  }
  func.func @transform_4(%arg0: i32) -> (i32, i32) {
    %c0_i32 = arith.constant 0 : i32
    %c0_i32_0 = arith.constant 0 : i32
    %c0_i32_1 = arith.constant 0 : i32
    return %c0_i32, %c0_i32_0 : i32, i32
  }
  func.func @transform_5(%arg0: i32) -> (i32, i32) {
    %c0_i32 = arith.constant 0 : i32
    %c0_i32_0 = arith.constant 0 : i32
    %c0_i32_1 = arith.constant 0 : i32
    return %c0_i32, %c0_i32_0 : i32, i32
  }
  func.func @transform_6(%arg0: i32) -> (i32, i32, i32) {
    %c0_i32 = arith.constant 0 : i32
    %c0_i32_0 = arith.constant 0 : i32
    %c0_i32_1 = arith.constant 0 : i32
    %c0_i32_2 = arith.constant 0 : i32
    return %c0_i32, %c0_i32_0, %c0_i32_1 : i32, i32, i32
  }
  func.func @transform_7(%arg0: i32) -> (i32, i32) {
    %c0_i32 = arith.constant 0 : i32
    %c0_i32_0 = arith.constant 0 : i32
    %c0_i32_1 = arith.constant 0 : i32
    return %c0_i32, %c0_i32_0 : i32, i32
  }
  func.func @transform_8(%arg0: i32) -> (i32, i32, i32) {
    %c0_i32 = arith.constant 0 : i32
    %c0_i32_0 = arith.constant 0 : i32
    %c0_i32_1 = arith.constant 0 : i32
    return %arg0, %c0_i32, %c0_i32_0 : i32, i32, i32
  }
}

module attributes {stable_mosaic.version = 11 : i64} {
  func.func @_fire_kernel(%arg0: i32, %arg1: memref<1x1x384xbf16, #tpu.memory_space<vmem>>, %arg2: memref<1x1xi32, #tpu.memory_space<vmem>>, %arg3: memref<384x48xbf16, #tpu.memory_space<vmem>>, %arg4: memref<1x48xf32, #tpu.memory_space<vmem>>, %arg5: memref<48x192xbf16, #tpu.memory_space<vmem>>, %arg6: memref<1x192xf32, #tpu.memory_space<vmem>>, %arg7: memref<9x48x192xbf16, #tpu.memory_space<vmem>>, %arg8: memref<1x192xf32, #tpu.memory_space<vmem>>, %arg9: memref<1x1x384xbf16, #tpu.memory_space<vmem>>, %arg10: memref<11x48xbf16, #tpu.memory_space<vmem>>) attributes {dimension_semantics = [#tpu.dimension_semantics<parallel>], iteration_bounds = array<i64: 2>, scalar_prefetch = 0 : i64, scratch_operands = 1 : i64, tpu.core_type = #tpu.core_type<tc>, window_params = [{transform_indices = @transform_0, window_bounds = array<i64: 1, 1, 384>}, {pipeline_mode = #tpu.pipeline_mode<synchronous>, transform_indices = @transform_1, window_bounds = array<i64: 1, 1>}, {pipeline_mode = #tpu.pipeline_mode<synchronous>, transform_indices = @transform_2, window_bounds = array<i64: 384, 48>}, {pipeline_mode = #tpu.pipeline_mode<synchronous>, transform_indices = @transform_3, window_bounds = array<i64: 1, 48>}, {pipeline_mode = #tpu.pipeline_mode<synchronous>, transform_indices = @transform_4, window_bounds = array<i64: 48, 192>}, {pipeline_mode = #tpu.pipeline_mode<synchronous>, transform_indices = @transform_5, window_bounds = array<i64: 1, 192>}, {pipeline_mode = #tpu.pipeline_mode<synchronous>, transform_indices = @transform_6, window_bounds = array<i64: 9, 48, 192>}, {pipeline_mode = #tpu.pipeline_mode<synchronous>, transform_indices = @transform_7, window_bounds = array<i64: 1, 192>}, {transform_indices = @transform_8, window_bounds = array<i64: 1, 1, 384>}]} {
    %c0 = arith.constant 0 : index
    %c0_0 = arith.constant 0 : index
    %c0_1 = arith.constant 0 : index
    %0 = vector.load %arg1[%c0, %c0_0, %c0_1] : memref<1x1x384xbf16, #tpu.memory_space<vmem>>, vector<1x1x384xbf16>
    %1 = vector.shape_cast %0 : vector<1x1x384xbf16> to vector<1x384xbf16>
    %c0_2 = arith.constant 0 : index
    %c0_3 = arith.constant 0 : index
    %2 = vector.load %arg3[%c0_2, %c0_3] : memref<384x48xbf16, #tpu.memory_space<vmem>>, vector<384x48xbf16>
    %cst = arith.constant dense<0.000000e+00> : vector<1x48xf32>
    %3 = tpu.matmul %1, %2, %cst {dimension_numbers = #tpu.dot_dimension_numbers<[1], [0], [0], [1], [0, 0, 1, 1], [], []>} : vector<1x384xbf16>, vector<384x48xbf16>, vector<1x48xf32> -> vector<1x48xf32>
    %c0_4 = arith.constant 0 : index
    %c0_5 = arith.constant 0 : index
    %4 = vector.load %arg4[%c0_4, %c0_5] : memref<1x48xf32, #tpu.memory_space<vmem>>, vector<1x48xf32>
    %5 = arith.addf %3, %4 : vector<1x48xf32>
    %cst_6 = arith.constant 0.000000e+00 : f32
    %6 = vector.broadcast %cst_6 : f32 to vector<1x48xf32>
    %7 = arith.maximumf %5, %6 : vector<1x48xf32>
    %8 = arith.truncf %7 : vector<1x48xf32> to vector<1x48xbf16>
    %c0_7 = arith.constant 0 : index
    %c0_8 = arith.constant 0 : index
    %9 = vector.load %arg5[%c0_7, %c0_8] : memref<48x192xbf16, #tpu.memory_space<vmem>>, vector<48x192xbf16>
    %cst_9 = arith.constant dense<0.000000e+00> : vector<1x192xf32>
    %10 = tpu.matmul %8, %9, %cst_9 {dimension_numbers = #tpu.dot_dimension_numbers<[1], [0], [0], [1], [0, 0, 1, 1], [], []>} : vector<1x48xbf16>, vector<48x192xbf16>, vector<1x192xf32> -> vector<1x192xf32>
    %c0_10 = arith.constant 0 : index
    %c0_11 = arith.constant 0 : index
    %11 = vector.load %arg6[%c0_10, %c0_11] : memref<1x192xf32, #tpu.memory_space<vmem>>, vector<1x192xf32>
    %12 = arith.addf %10, %11 : vector<1x192xf32>
    %cst_12 = arith.constant 0.000000e+00 : f32
    %13 = vector.broadcast %cst_12 : f32 to vector<1x192xf32>
    %14 = arith.maximumf %12, %13 : vector<1x192xf32>
    %cst_13 = arith.constant 0.000000e+00 : bf16
    %15 = vector.broadcast %cst_13 : bf16 to vector<11x48xbf16>
    %c0_14 = arith.constant 0 : index
    %c0_15 = arith.constant 0 : index
    %16 = vector.load %arg10[%c0_14, %c0_15] : memref<11x48xbf16, #tpu.memory_space<vmem>>, vector<11x48xbf16>
    tpu.vector_store %arg10[%c0_14, %c0_15], %15 {strides = array<i32>} : memref<11x48xbf16, #tpu.memory_space<vmem>>, vector<11x48xbf16>,
    %c8 = arith.constant 8 : index
    %c0_16 = arith.constant 0 : index
    %17 = vector.load %arg10[%c8, %c0_16] : memref<11x48xbf16, #tpu.memory_space<vmem>>, vector<1x48xbf16>
    tpu.vector_store %arg10[%c8, %c0_16], %8 {strides = array<i32>} : memref<11x48xbf16, #tpu.memory_space<vmem>>, vector<1x48xbf16>,
    %cst_17 = arith.constant 0.000000e+00 : f32
    %18 = vector.broadcast %cst_17 : f32 to vector<1x192xf32>
    %c8_18 = arith.constant 8 : index
    %c0_19 = arith.constant 0 : index
    %19 = vector.load %arg10[%c8_18, %c0_19] : memref<11x48xbf16, #tpu.memory_space<vmem>>, vector<1x48xbf16>
    %c4 = arith.constant 4 : index
    %c0_20 = arith.constant 0 : index
    %c0_21 = arith.constant 0 : index
    %20 = vector.load %arg7[%c4, %c0_20, %c0_21] : memref<9x48x192xbf16, #tpu.memory_space<vmem>>, vector<1x48x192xbf16>
    %21 = vector.shape_cast %20 : vector<1x48x192xbf16> to vector<48x192xbf16>
    %cst_22 = arith.constant dense<0.000000e+00> : vector<1x192xf32>
    %22 = tpu.matmul %19, %21, %cst_22 {dimension_numbers = #tpu.dot_dimension_numbers<[1], [0], [0], [1], [0, 0, 1, 1], [], []>} : vector<1x48xbf16>, vector<48x192xbf16>, vector<1x192xf32> -> vector<1x192xf32>
    %23 = arith.addf %18, %22 : vector<1x192xf32>
    %c0_23 = arith.constant 0 : index
    %c0_24 = arith.constant 0 : index
    %24 = vector.load %arg8[%c0_23, %c0_24] : memref<1x192xf32, #tpu.memory_space<vmem>>, vector<1x192xf32>
    %25 = arith.addf %23, %24 : vector<1x192xf32>
    %cst_25 = arith.constant 0.000000e+00 : f32
    %26 = vector.broadcast %cst_25 : f32 to vector<1x192xf32>
    %27 = arith.maximumf %25, %26 : vector<1x192xf32>
    %28 = tpu.concatenate %14, %27 in 1 : vector<1x192xf32>, vector<1x192xf32> -> vector<1x384xf32>
    %29 = arith.truncf %28 : vector<1x384xf32> to vector<1x384xbf16>
    %c0_26 = arith.constant 0 : index
    %c0_27 = arith.constant 0 : index
    %c0_28 = arith.constant 0 : index
    %30 = vector.load %arg9[%c0_26, %c0_27, %c0_28] : memref<1x1x384xbf16, #tpu.memory_space<vmem>>, vector<1x1x384xbf16>
    %31 = vector.shape_cast %30 : vector<1x1x384xbf16> to vector<1x384xbf16>
    %32 = vector.shape_cast %29 : vector<1x384xbf16> to vector<1x1x384xbf16>
    tpu.vector_store %arg9[%c0_26, %c0_27, %c0_28], %32 {strides = array<i32>} : memref<1x1x384xbf16, #tpu.memory_space<vmem>>, vector<1x1x384xbf16>,
    return
  }
  func.func @transform_0(%arg0: i32) -> (i32, i32, i32) {
    %c0_i32 = arith.constant 0 : i32
    %c0_i32_0 = arith.constant 0 : i32
    %c0_i32_1 = arith.constant 0 : i32
    return %arg0, %c0_i32, %c0_i32_0 : i32, i32, i32
  }
  func.func @transform_1(%arg0: i32) -> (i32, i32) {
    %c0_i32 = arith.constant 0 : i32
    %c0_i32_0 = arith.constant 0 : i32
    %c0_i32_1 = arith.constant 0 : i32
    return %c0_i32, %c0_i32_0 : i32, i32
  }
  func.func @transform_2(%arg0: i32) -> (i32, i32) {
    %c0_i32 = arith.constant 0 : i32
    %c0_i32_0 = arith.constant 0 : i32
    %c0_i32_1 = arith.constant 0 : i32
    return %c0_i32, %c0_i32_0 : i32, i32
  }
  func.func @transform_3(%arg0: i32) -> (i32, i32) {
    %c0_i32 = arith.constant 0 : i32
    %c0_i32_0 = arith.constant 0 : i32
    %c0_i32_1 = arith.constant 0 : i32
    return %c0_i32, %c0_i32_0 : i32, i32
  }
  func.func @transform_4(%arg0: i32) -> (i32, i32) {
    %c0_i32 = arith.constant 0 : i32
    %c0_i32_0 = arith.constant 0 : i32
    %c0_i32_1 = arith.constant 0 : i32
    return %c0_i32, %c0_i32_0 : i32, i32
  }
  func.func @transform_5(%arg0: i32) -> (i32, i32) {
    %c0_i32 = arith.constant 0 : i32
    %c0_i32_0 = arith.constant 0 : i32
    %c0_i32_1 = arith.constant 0 : i32
    return %c0_i32, %c0_i32_0 : i32, i32
  }
  func.func @transform_6(%arg0: i32) -> (i32, i32, i32) {
    %c0_i32 = arith.constant 0 : i32
    %c0_i32_0 = arith.constant 0 : i32
    %c0_i32_1 = arith.constant 0 : i32
    %c0_i32_2 = arith.constant 0 : i32
    return %c0_i32, %c0_i32_0, %c0_i32_1 : i32, i32, i32
  }
  func.func @transform_7(%arg0: i32) -> (i32, i32) {
    %c0_i32 = arith.constant 0 : i32
    %c0_i32_0 = arith.constant 0 : i32
    %c0_i32_1 = arith.constant 0 : i32
    return %c0_i32, %c0_i32_0 : i32, i32
  }
  func.func @transform_8(%arg0: i32) -> (i32, i32, i32) {
    %c0_i32 = arith.constant 0 : i32
    %c0_i32_0 = arith.constant 0 : i32
    %c0_i32_1 = arith.constant 0 : i32
    return %arg0, %c0_i32, %c0_i32_0 : i32, i32, i32
  }
}

module attributes {stable_mosaic.version = 11 : i64} {
  func.func @_fire_kernel(%arg0: i32, %arg1: memref<1x1x384xbf16, #tpu.memory_space<vmem>>, %arg2: memref<1x1xi32, #tpu.memory_space<vmem>>, %arg3: memref<384x64xbf16, #tpu.memory_space<vmem>>, %arg4: memref<1x64xf32, #tpu.memory_space<vmem>>, %arg5: memref<64x256xbf16, #tpu.memory_space<vmem>>, %arg6: memref<1x256xf32, #tpu.memory_space<vmem>>, %arg7: memref<9x64x256xbf16, #tpu.memory_space<vmem>>, %arg8: memref<1x256xf32, #tpu.memory_space<vmem>>, %arg9: memref<1x1x512xbf16, #tpu.memory_space<vmem>>, %arg10: memref<11x64xbf16, #tpu.memory_space<vmem>>) attributes {dimension_semantics = [#tpu.dimension_semantics<parallel>], iteration_bounds = array<i64: 2>, scalar_prefetch = 0 : i64, scratch_operands = 1 : i64, tpu.core_type = #tpu.core_type<tc>, window_params = [{transform_indices = @transform_0, window_bounds = array<i64: 1, 1, 384>}, {pipeline_mode = #tpu.pipeline_mode<synchronous>, transform_indices = @transform_1, window_bounds = array<i64: 1, 1>}, {pipeline_mode = #tpu.pipeline_mode<synchronous>, transform_indices = @transform_2, window_bounds = array<i64: 384, 64>}, {pipeline_mode = #tpu.pipeline_mode<synchronous>, transform_indices = @transform_3, window_bounds = array<i64: 1, 64>}, {pipeline_mode = #tpu.pipeline_mode<synchronous>, transform_indices = @transform_4, window_bounds = array<i64: 64, 256>}, {pipeline_mode = #tpu.pipeline_mode<synchronous>, transform_indices = @transform_5, window_bounds = array<i64: 1, 256>}, {pipeline_mode = #tpu.pipeline_mode<synchronous>, transform_indices = @transform_6, window_bounds = array<i64: 9, 64, 256>}, {pipeline_mode = #tpu.pipeline_mode<synchronous>, transform_indices = @transform_7, window_bounds = array<i64: 1, 256>}, {transform_indices = @transform_8, window_bounds = array<i64: 1, 1, 512>}]} {
    %c0 = arith.constant 0 : index
    %c0_0 = arith.constant 0 : index
    %c0_1 = arith.constant 0 : index
    %0 = vector.load %arg1[%c0, %c0_0, %c0_1] : memref<1x1x384xbf16, #tpu.memory_space<vmem>>, vector<1x1x384xbf16>
    %1 = vector.shape_cast %0 : vector<1x1x384xbf16> to vector<1x384xbf16>
    %c0_2 = arith.constant 0 : index
    %c0_3 = arith.constant 0 : index
    %2 = vector.load %arg3[%c0_2, %c0_3] : memref<384x64xbf16, #tpu.memory_space<vmem>>, vector<384x64xbf16>
    %cst = arith.constant dense<0.000000e+00> : vector<1x64xf32>
    %3 = tpu.matmul %1, %2, %cst {dimension_numbers = #tpu.dot_dimension_numbers<[1], [0], [0], [1], [0, 0, 1, 1], [], []>} : vector<1x384xbf16>, vector<384x64xbf16>, vector<1x64xf32> -> vector<1x64xf32>
    %c0_4 = arith.constant 0 : index
    %c0_5 = arith.constant 0 : index
    %4 = vector.load %arg4[%c0_4, %c0_5] : memref<1x64xf32, #tpu.memory_space<vmem>>, vector<1x64xf32>
    %5 = arith.addf %3, %4 : vector<1x64xf32>
    %cst_6 = arith.constant 0.000000e+00 : f32
    %6 = vector.broadcast %cst_6 : f32 to vector<1x64xf32>
    %7 = arith.maximumf %5, %6 : vector<1x64xf32>
    %8 = arith.truncf %7 : vector<1x64xf32> to vector<1x64xbf16>
    %c0_7 = arith.constant 0 : index
    %c0_8 = arith.constant 0 : index
    %9 = vector.load %arg5[%c0_7, %c0_8] : memref<64x256xbf16, #tpu.memory_space<vmem>>, vector<64x256xbf16>
    %cst_9 = arith.constant dense<0.000000e+00> : vector<1x256xf32>
    %10 = tpu.matmul %8, %9, %cst_9 {dimension_numbers = #tpu.dot_dimension_numbers<[1], [0], [0], [1], [0, 0, 1, 1], [], []>} : vector<1x64xbf16>, vector<64x256xbf16>, vector<1x256xf32> -> vector<1x256xf32>
    %c0_10 = arith.constant 0 : index
    %c0_11 = arith.constant 0 : index
    %11 = vector.load %arg6[%c0_10, %c0_11] : memref<1x256xf32, #tpu.memory_space<vmem>>, vector<1x256xf32>
    %12 = arith.addf %10, %11 : vector<1x256xf32>
    %cst_12 = arith.constant 0.000000e+00 : f32
    %13 = vector.broadcast %cst_12 : f32 to vector<1x256xf32>
    %14 = arith.maximumf %12, %13 : vector<1x256xf32>
    %cst_13 = arith.constant 0.000000e+00 : bf16
    %15 = vector.broadcast %cst_13 : bf16 to vector<11x64xbf16>
    %c0_14 = arith.constant 0 : index
    %c0_15 = arith.constant 0 : index
    %16 = vector.load %arg10[%c0_14, %c0_15] : memref<11x64xbf16, #tpu.memory_space<vmem>>, vector<11x64xbf16>
    tpu.vector_store %arg10[%c0_14, %c0_15], %15 {strides = array<i32>} : memref<11x64xbf16, #tpu.memory_space<vmem>>, vector<11x64xbf16>,
    %c8 = arith.constant 8 : index
    %c0_16 = arith.constant 0 : index
    %17 = vector.load %arg10[%c8, %c0_16] : memref<11x64xbf16, #tpu.memory_space<vmem>>, vector<1x64xbf16>
    tpu.vector_store %arg10[%c8, %c0_16], %8 {strides = array<i32>} : memref<11x64xbf16, #tpu.memory_space<vmem>>, vector<1x64xbf16>,
    %cst_17 = arith.constant 0.000000e+00 : f32
    %18 = vector.broadcast %cst_17 : f32 to vector<1x256xf32>
    %c8_18 = arith.constant 8 : index
    %c0_19 = arith.constant 0 : index
    %19 = vector.load %arg10[%c8_18, %c0_19] : memref<11x64xbf16, #tpu.memory_space<vmem>>, vector<1x64xbf16>
    %c4 = arith.constant 4 : index
    %c0_20 = arith.constant 0 : index
    %c0_21 = arith.constant 0 : index
    %20 = vector.load %arg7[%c4, %c0_20, %c0_21] : memref<9x64x256xbf16, #tpu.memory_space<vmem>>, vector<1x64x256xbf16>
    %21 = vector.shape_cast %20 : vector<1x64x256xbf16> to vector<64x256xbf16>
    %cst_22 = arith.constant dense<0.000000e+00> : vector<1x256xf32>
    %22 = tpu.matmul %19, %21, %cst_22 {dimension_numbers = #tpu.dot_dimension_numbers<[1], [0], [0], [1], [0, 0, 1, 1], [], []>} : vector<1x64xbf16>, vector<64x256xbf16>, vector<1x256xf32> -> vector<1x256xf32>
    %23 = arith.addf %18, %22 : vector<1x256xf32>
    %c0_23 = arith.constant 0 : index
    %c0_24 = arith.constant 0 : index
    %24 = vector.load %arg8[%c0_23, %c0_24] : memref<1x256xf32, #tpu.memory_space<vmem>>, vector<1x256xf32>
    %25 = arith.addf %23, %24 : vector<1x256xf32>
    %cst_25 = arith.constant 0.000000e+00 : f32
    %26 = vector.broadcast %cst_25 : f32 to vector<1x256xf32>
    %27 = arith.maximumf %25, %26 : vector<1x256xf32>
    %28 = tpu.concatenate %14, %27 in 1 : vector<1x256xf32>, vector<1x256xf32> -> vector<1x512xf32>
    %29 = arith.truncf %28 : vector<1x512xf32> to vector<1x512xbf16>
    %c0_26 = arith.constant 0 : index
    %c0_27 = arith.constant 0 : index
    %c0_28 = arith.constant 0 : index
    %30 = vector.load %arg9[%c0_26, %c0_27, %c0_28] : memref<1x1x512xbf16, #tpu.memory_space<vmem>>, vector<1x1x512xbf16>
    %31 = vector.shape_cast %30 : vector<1x1x512xbf16> to vector<1x512xbf16>
    %32 = vector.shape_cast %29 : vector<1x512xbf16> to vector<1x1x512xbf16>
    tpu.vector_store %arg9[%c0_26, %c0_27, %c0_28], %32 {strides = array<i32>} : memref<1x1x512xbf16, #tpu.memory_space<vmem>>, vector<1x1x512xbf16>,
    return
  }
  func.func @transform_0(%arg0: i32) -> (i32, i32, i32) {
    %c0_i32 = arith.constant 0 : i32
    %c0_i32_0 = arith.constant 0 : i32
    %c0_i32_1 = arith.constant 0 : i32
    return %arg0, %c0_i32, %c0_i32_0 : i32, i32, i32
  }
  func.func @transform_1(%arg0: i32) -> (i32, i32) {
    %c0_i32 = arith.constant 0 : i32
    %c0_i32_0 = arith.constant 0 : i32
    %c0_i32_1 = arith.constant 0 : i32
    return %c0_i32, %c0_i32_0 : i32, i32
  }
  func.func @transform_2(%arg0: i32) -> (i32, i32) {
    %c0_i32 = arith.constant 0 : i32
    %c0_i32_0 = arith.constant 0 : i32
    %c0_i32_1 = arith.constant 0 : i32
    return %c0_i32, %c0_i32_0 : i32, i32
  }
  func.func @transform_3(%arg0: i32) -> (i32, i32) {
    %c0_i32 = arith.constant 0 : i32
    %c0_i32_0 = arith.constant 0 : i32
    %c0_i32_1 = arith.constant 0 : i32
    return %c0_i32, %c0_i32_0 : i32, i32
  }
  func.func @transform_4(%arg0: i32) -> (i32, i32) {
    %c0_i32 = arith.constant 0 : i32
    %c0_i32_0 = arith.constant 0 : i32
    %c0_i32_1 = arith.constant 0 : i32
    return %c0_i32, %c0_i32_0 : i32, i32
  }
  func.func @transform_5(%arg0: i32) -> (i32, i32) {
    %c0_i32 = arith.constant 0 : i32
    %c0_i32_0 = arith.constant 0 : i32
    %c0_i32_1 = arith.constant 0 : i32
    return %c0_i32, %c0_i32_0 : i32, i32
  }
  func.func @transform_6(%arg0: i32) -> (i32, i32, i32) {
    %c0_i32 = arith.constant 0 : i32
    %c0_i32_0 = arith.constant 0 : i32
    %c0_i32_1 = arith.constant 0 : i32
    %c0_i32_2 = arith.constant 0 : i32
    return %c0_i32, %c0_i32_0, %c0_i32_1 : i32, i32, i32
  }
  func.func @transform_7(%arg0: i32) -> (i32, i32) {
    %c0_i32 = arith.constant 0 : i32
    %c0_i32_0 = arith.constant 0 : i32
    %c0_i32_1 = arith.constant 0 : i32
    return %c0_i32, %c0_i32_0 : i32, i32
  }
  func.func @transform_8(%arg0: i32) -> (i32, i32, i32) {
    %c0_i32 = arith.constant 0 : i32
    %c0_i32_0 = arith.constant 0 : i32
    %c0_i32_1 = arith.constant 0 : i32
    return %arg0, %c0_i32, %c0_i32_0 : i32, i32, i32
  }
}

module attributes {stable_mosaic.version = 11 : i64} {
  func.func @_fire_kernel(%arg0: i32, %arg1: memref<1x1x512xbf16, #tpu.memory_space<vmem>>, %arg2: memref<1x1xi32, #tpu.memory_space<vmem>>, %arg3: memref<512x64xbf16, #tpu.memory_space<vmem>>, %arg4: memref<1x64xf32, #tpu.memory_space<vmem>>, %arg5: memref<64x256xbf16, #tpu.memory_space<vmem>>, %arg6: memref<1x256xf32, #tpu.memory_space<vmem>>, %arg7: memref<9x64x256xbf16, #tpu.memory_space<vmem>>, %arg8: memref<1x256xf32, #tpu.memory_space<vmem>>, %arg9: memref<1x1x512xbf16, #tpu.memory_space<vmem>>, %arg10: memref<11x64xbf16, #tpu.memory_space<vmem>>) attributes {dimension_semantics = [#tpu.dimension_semantics<parallel>], iteration_bounds = array<i64: 2>, scalar_prefetch = 0 : i64, scratch_operands = 1 : i64, tpu.core_type = #tpu.core_type<tc>, window_params = [{transform_indices = @transform_0, window_bounds = array<i64: 1, 1, 512>}, {pipeline_mode = #tpu.pipeline_mode<synchronous>, transform_indices = @transform_1, window_bounds = array<i64: 1, 1>}, {pipeline_mode = #tpu.pipeline_mode<synchronous>, transform_indices = @transform_2, window_bounds = array<i64: 512, 64>}, {pipeline_mode = #tpu.pipeline_mode<synchronous>, transform_indices = @transform_3, window_bounds = array<i64: 1, 64>}, {pipeline_mode = #tpu.pipeline_mode<synchronous>, transform_indices = @transform_4, window_bounds = array<i64: 64, 256>}, {pipeline_mode = #tpu.pipeline_mode<synchronous>, transform_indices = @transform_5, window_bounds = array<i64: 1, 256>}, {pipeline_mode = #tpu.pipeline_mode<synchronous>, transform_indices = @transform_6, window_bounds = array<i64: 9, 64, 256>}, {pipeline_mode = #tpu.pipeline_mode<synchronous>, transform_indices = @transform_7, window_bounds = array<i64: 1, 256>}, {transform_indices = @transform_8, window_bounds = array<i64: 1, 1, 512>}]} {
    %c0 = arith.constant 0 : index
    %c0_0 = arith.constant 0 : index
    %c0_1 = arith.constant 0 : index
    %0 = vector.load %arg1[%c0, %c0_0, %c0_1] : memref<1x1x512xbf16, #tpu.memory_space<vmem>>, vector<1x1x512xbf16>
    %1 = vector.shape_cast %0 : vector<1x1x512xbf16> to vector<1x512xbf16>
    %c0_2 = arith.constant 0 : index
    %c0_3 = arith.constant 0 : index
    %2 = vector.load %arg3[%c0_2, %c0_3] : memref<512x64xbf16, #tpu.memory_space<vmem>>, vector<512x64xbf16>
    %cst = arith.constant dense<0.000000e+00> : vector<1x64xf32>
    %3 = tpu.matmul %1, %2, %cst {dimension_numbers = #tpu.dot_dimension_numbers<[1], [0], [0], [1], [0, 0, 1, 1], [], []>} : vector<1x512xbf16>, vector<512x64xbf16>, vector<1x64xf32> -> vector<1x64xf32>
    %c0_4 = arith.constant 0 : index
    %c0_5 = arith.constant 0 : index
    %4 = vector.load %arg4[%c0_4, %c0_5] : memref<1x64xf32, #tpu.memory_space<vmem>>, vector<1x64xf32>
    %5 = arith.addf %3, %4 : vector<1x64xf32>
    %cst_6 = arith.constant 0.000000e+00 : f32
    %6 = vector.broadcast %cst_6 : f32 to vector<1x64xf32>
    %7 = arith.maximumf %5, %6 : vector<1x64xf32>
    %8 = arith.truncf %7 : vector<1x64xf32> to vector<1x64xbf16>
    %c0_7 = arith.constant 0 : index
    %c0_8 = arith.constant 0 : index
    %9 = vector.load %arg5[%c0_7, %c0_8] : memref<64x256xbf16, #tpu.memory_space<vmem>>, vector<64x256xbf16>
    %cst_9 = arith.constant dense<0.000000e+00> : vector<1x256xf32>
    %10 = tpu.matmul %8, %9, %cst_9 {dimension_numbers = #tpu.dot_dimension_numbers<[1], [0], [0], [1], [0, 0, 1, 1], [], []>} : vector<1x64xbf16>, vector<64x256xbf16>, vector<1x256xf32> -> vector<1x256xf32>
    %c0_10 = arith.constant 0 : index
    %c0_11 = arith.constant 0 : index
    %11 = vector.load %arg6[%c0_10, %c0_11] : memref<1x256xf32, #tpu.memory_space<vmem>>, vector<1x256xf32>
    %12 = arith.addf %10, %11 : vector<1x256xf32>
    %cst_12 = arith.constant 0.000000e+00 : f32
    %13 = vector.broadcast %cst_12 : f32 to vector<1x256xf32>
    %14 = arith.maximumf %12, %13 : vector<1x256xf32>
    %cst_13 = arith.constant 0.000000e+00 : bf16
    %15 = vector.broadcast %cst_13 : bf16 to vector<11x64xbf16>
    %c0_14 = arith.constant 0 : index
    %c0_15 = arith.constant 0 : index
    %16 = vector.load %arg10[%c0_14, %c0_15] : memref<11x64xbf16, #tpu.memory_space<vmem>>, vector<11x64xbf16>
    tpu.vector_store %arg10[%c0_14, %c0_15], %15 {strides = array<i32>} : memref<11x64xbf16, #tpu.memory_space<vmem>>, vector<11x64xbf16>,
    %c8 = arith.constant 8 : index
    %c0_16 = arith.constant 0 : index
    %17 = vector.load %arg10[%c8, %c0_16] : memref<11x64xbf16, #tpu.memory_space<vmem>>, vector<1x64xbf16>
    tpu.vector_store %arg10[%c8, %c0_16], %8 {strides = array<i32>} : memref<11x64xbf16, #tpu.memory_space<vmem>>, vector<1x64xbf16>,
    %cst_17 = arith.constant 0.000000e+00 : f32
    %18 = vector.broadcast %cst_17 : f32 to vector<1x256xf32>
    %c8_18 = arith.constant 8 : index
    %c0_19 = arith.constant 0 : index
    %19 = vector.load %arg10[%c8_18, %c0_19] : memref<11x64xbf16, #tpu.memory_space<vmem>>, vector<1x64xbf16>
    %c4 = arith.constant 4 : index
    %c0_20 = arith.constant 0 : index
    %c0_21 = arith.constant 0 : index
    %20 = vector.load %arg7[%c4, %c0_20, %c0_21] : memref<9x64x256xbf16, #tpu.memory_space<vmem>>, vector<1x64x256xbf16>
    %21 = vector.shape_cast %20 : vector<1x64x256xbf16> to vector<64x256xbf16>
    %cst_22 = arith.constant dense<0.000000e+00> : vector<1x256xf32>
    %22 = tpu.matmul %19, %21, %cst_22 {dimension_numbers = #tpu.dot_dimension_numbers<[1], [0], [0], [1], [0, 0, 1, 1], [], []>} : vector<1x64xbf16>, vector<64x256xbf16>, vector<1x256xf32> -> vector<1x256xf32>
    %23 = arith.addf %18, %22 : vector<1x256xf32>
    %c0_23 = arith.constant 0 : index
    %c0_24 = arith.constant 0 : index
    %24 = vector.load %arg8[%c0_23, %c0_24] : memref<1x256xf32, #tpu.memory_space<vmem>>, vector<1x256xf32>
    %25 = arith.addf %23, %24 : vector<1x256xf32>
    %cst_25 = arith.constant 0.000000e+00 : f32
    %26 = vector.broadcast %cst_25 : f32 to vector<1x256xf32>
    %27 = arith.maximumf %25, %26 : vector<1x256xf32>
    %28 = tpu.concatenate %14, %27 in 1 : vector<1x256xf32>, vector<1x256xf32> -> vector<1x512xf32>
    %29 = arith.truncf %28 : vector<1x512xf32> to vector<1x512xbf16>
    %c0_26 = arith.constant 0 : index
    %c0_27 = arith.constant 0 : index
    %c0_28 = arith.constant 0 : index
    %30 = vector.load %arg9[%c0_26, %c0_27, %c0_28] : memref<1x1x512xbf16, #tpu.memory_space<vmem>>, vector<1x1x512xbf16>
    %31 = vector.shape_cast %30 : vector<1x1x512xbf16> to vector<1x512xbf16>
    %32 = vector.shape_cast %29 : vector<1x512xbf16> to vector<1x1x512xbf16>
    tpu.vector_store %arg9[%c0_26, %c0_27, %c0_28], %32 {strides = array<i32>} : memref<1x1x512xbf16, #tpu.memory_space<vmem>>, vector<1x1x512xbf16>,
    return
  }
  func.func @transform_0(%arg0: i32) -> (i32, i32, i32) {
    %c0_i32 = arith.constant 0 : i32
    %c0_i32_0 = arith.constant 0 : i32
    %c0_i32_1 = arith.constant 0 : i32
    return %arg0, %c0_i32, %c0_i32_0 : i32, i32, i32
  }
  func.func @transform_1(%arg0: i32) -> (i32, i32) {
    %c0_i32 = arith.constant 0 : i32
    %c0_i32_0 = arith.constant 0 : i32
    %c0_i32_1 = arith.constant 0 : i32
    return %c0_i32, %c0_i32_0 : i32, i32
  }
  func.func @transform_2(%arg0: i32) -> (i32, i32) {
    %c0_i32 = arith.constant 0 : i32
    %c0_i32_0 = arith.constant 0 : i32
    %c0_i32_1 = arith.constant 0 : i32
    return %c0_i32, %c0_i32_0 : i32, i32
  }
  func.func @transform_3(%arg0: i32) -> (i32, i32) {
    %c0_i32 = arith.constant 0 : i32
    %c0_i32_0 = arith.constant 0 : i32
    %c0_i32_1 = arith.constant 0 : i32
    return %c0_i32, %c0_i32_0 : i32, i32
  }
  func.func @transform_4(%arg0: i32) -> (i32, i32) {
    %c0_i32 = arith.constant 0 : i32
    %c0_i32_0 = arith.constant 0 : i32
    %c0_i32_1 = arith.constant 0 : i32
    return %c0_i32, %c0_i32_0 : i32, i32
  }
  func.func @transform_5(%arg0: i32) -> (i32, i32) {
    %c0_i32 = arith.constant 0 : i32
    %c0_i32_0 = arith.constant 0 : i32
    %c0_i32_1 = arith.constant 0 : i32
    return %c0_i32, %c0_i32_0 : i32, i32
  }
  func.func @transform_6(%arg0: i32) -> (i32, i32, i32) {
    %c0_i32 = arith.constant 0 : i32
    %c0_i32_0 = arith.constant 0 : i32
    %c0_i32_1 = arith.constant 0 : i32
    %c0_i32_2 = arith.constant 0 : i32
    return %c0_i32, %c0_i32_0, %c0_i32_1 : i32, i32, i32
  }
  func.func @transform_7(%arg0: i32) -> (i32, i32) {
    %c0_i32 = arith.constant 0 : i32
    %c0_i32_0 = arith.constant 0 : i32
    %c0_i32_1 = arith.constant 0 : i32
    return %c0_i32, %c0_i32_0 : i32, i32
  }
  func.func @transform_8(%arg0: i32) -> (i32, i32, i32) {
    %c0_i32 = arith.constant 0 : i32
    %c0_i32_0 = arith.constant 0 : i32
    %c0_i32_1 = arith.constant 0 : i32
    return %arg0, %c0_i32, %c0_i32_0 : i32, i32, i32
  }
}

</mosaic_0001>

<llo_original>
// kernel: squeezenet3d_forward.9
$region0: #{squeezenet3d_forward.9}
  #allocation0 [shape = 'u32[]', space=smem, size = 0x4, offset = 0x4, fixed_abs, tag = 'smem constant byte address 0x4 - core index']
  #allocation1 [shape = 'u32[144,128]{1,0:T(1,128)}', space=vmem, size = 0x12000, scoped, tag = 'internal scratch']
  %s0 = inlined_call_operand.vmem [shape: bf16[512,27], index: 0, kind: input, shape index: {}]
  %s1 = inlined_call_operand.vmem [shape: bf16[27,128], index: 1, kind: input, shape index: {}]
  %s2 = inlined_call_operand.vmem [shape: f32[1,128], index: 2, kind: input, shape index: {}]
  %s3 = inlined_call_operand.vmem [shape: bf16[512,128], index: 3, kind: output, shape index: {}]
  %s4 = sld [smem:[#allocation0]]
  $region22: #{squeezenet3d_forward.9} parent=0
    _
  %s6 = ssub.s32 1, %s4
  %s7 = scalar_select 0, %s6, %s4
  // Predicated region
  $region2: #{squeezenet3d_forward.9} parent=0 // pred_check
    _
  $region3: #{squeezenet3d_forward.9} parent=0 // pred_check_branch
    %9 = sbr.rel (0) target = $region5
  $region4: #{squeezenet3d_forward.9} parent=0 // pred_region
    _
  $region5: #{squeezenet3d_forward.9} parent=0 // pred_fallthru
    _
  // Predicated region
  $region6: #{squeezenet3d_forward.9} parent=0 // pred_check
    _
  $region7: #{squeezenet3d_forward.9} parent=0 // pred_check_branch
    %11 = sbr.rel (0) target = $region9
  $region8: #{squeezenet3d_forward.9} parent=0 // pred_region
    _
  $region9: #{squeezenet3d_forward.9} parent=0 // pred_fallthru
    _
  // Predicated region
  $region10: #{squeezenet3d_forward.9} parent=0 // pred_check
    _
  $region11: #{squeezenet3d_forward.9} parent=0 // pred_check_branch
    %13 = sbr.rel (0) target = $region13
  $region12: #{squeezenet3d_forward.9} parent=0 // pred_region
    _
  $region13: #{squeezenet3d_forward.9} parent=0 // pred_fallthru
    _
  %v15 = vld [vmem:[%s0] sm:$0xf]
  %v16 = vld [vmem:[%s0 + $0x4] sm:$0xf]
  %v17 = vld [vmem:[%s0 + $0x8] sm:$0xf]
  %v18 = vld [vmem:[%s0 + $0xc] sm:$0xf]
  %v19 = vld [vmem:[%s0 + $0x10] sm:$0xf]
  %v20 = vld [vmem:[%s0 + $0x14] sm:$0xf]
  %v21 = vld [vmem:[%s0 + $0x18] sm:$0xf]
  %v22 = vld [vmem:[%s0 + $0x1c] sm:$0xf]
  %v23 = vld [vmem:[%s0 + $0x20] sm:$0xf]
  %v24 = vld [vmem:[%s0 + $0x24] sm:$0xf]
  %v25 = vld [vmem:[%s0 + $0x28] sm:$0xf]
  %v26 = vld [vmem:[%s0 + $0x2c] sm:$0xf]
  %v27 = vld [vmem:[%s0 + $0x30] sm:$0xf]
  %v28 = vld [vmem:[%s0 + $0x34] sm:$0xf]
  %v29 = vld [vmem:[%s0 + $0x38] sm:$0xf]
  %v30 = vld [vmem:[%s0 + $0x3c] sm:$0xf]
  %v31 = vld [vmem:[%s0 + $0x40] sm:$0xf]
  %v32 = vld [vmem:[%s0 + $0x44] sm:$0xf]
  %v33 = vld [vmem:[%s0 + $0x48] sm:$0xf]
  %v34 = vld [vmem:[%s0 + $0x4c] sm:$0xf]
  %v35 = vld [vmem:[%s0 + $0x50] sm:$0xf]
  %v36 = vld [vmem:[%s0 + $0x54] sm:$0xf]
  %v37 = vld [vmem:[%s0 + $0x58] sm:$0xf]
  %v38 = vld [vmem:[%s0 + $0x5c] sm:$0xf]
  %v39 = vld [vmem:[%s0 + $0x60] sm:$0xf]
  %v40 = vld [vmem:[%s0 + $0x64] sm:$0xf]
  %v41 = vld [vmem:[%s0 + $0x68] sm:$0xf]
  %v42 = vld [vmem:[%s0 + $0x6c] sm:$0xf]
  %v43 = vld [vmem:[%s0 + $0x70] sm:$0xf]
  %v44 = vld [vmem:[%s0 + $0x74] sm:$0xf]
  %v45 = vld [vmem:[%s0 + $0x78] sm:$0xf]
  %v46 = vld [vmem:[%s0 + $0x7c] sm:$0xf]
  %v47 = vld [vmem:[%s0 + $0x80] sm:$0xf]
  %v48 = vld [vmem:[%s0 + $0x84] sm:$0xf]
  %v49 = vld [vmem:[%s0 + $0x88] sm:$0xf]
  %v50 = vld [vmem:[%s0 + $0x8c] sm:$0xf]
  %v51 = vld [vmem:[%s0 + $0x90] sm:$0xf]
  %v52 = vld [vmem:[%s0 + $0x94] sm:$0xf]
  %v53 = vld [vmem:[%s0 + $0x98] sm:$0xf]
  %v54 = vld [vmem:[%s0 + $0x9c] sm:$0xf]
  %v55 = vld [vmem:[%s0 + $0xa0] sm:$0xf]
  %v56 = vld [vmem:[%s0 + $0xa4] sm:$0xf]
  %v57 = vld [vmem:[%s0 + $0xa8] sm:$0xf]
  %v58 = vld [vmem:[%s0 + $0xac] sm:$0xf]
  %v59 = vld [vmem:[%s0 + $0xb0] sm:$0xf]
  %v60 = vld [vmem:[%s0 + $0xb4] sm:$0xf]
  %v61 = vld [vmem:[%s0 + $0xb8] sm:$0xf]
  %v62 = vld [vmem:[%s0 + $0xbc] sm:$0xf]
  %v63 = vld [vmem:[%s0 + $0xc0] sm:$0xf]
  %v64 = vld [vmem:[%s0 + $0xc4] sm:$0xf]
  %v65 = vld [vmem:[%s0 + $0xc8] sm:$0xf]
  %v66 = vld [vmem:[%s0 + $0xcc] sm:$0xf]
  %v67 = vld [vmem:[%s0 + $0xd0] sm:$0xf]
  %v68 = vld [vmem:[%s0 + $0xd4] sm:$0xf]
  %v69 = vld [vmem:[%s0 + $0xd8] sm:$0xf]
  %v70 = vld [vmem:[%s0 + $0xdc] sm:$0xf]
  %v71 = vld [vmem:[%s0 + $0xe0] sm:$0xf]
  %v72 = vld [vmem:[%s0 + $0xe4] sm:$0xf]
  %v73 = vld [vmem:[%s0 + $0xe8] sm:$0xf]
  %v74 = vld [vmem:[%s0 + $0xec] sm:$0xf]
  %v75 = vld [vmem:[%s0 + $0xf0] sm:$0xf]
  %v76 = vld [vmem:[%s0 + $0xf4] sm:$0xf]
  %v77 = vld [vmem:[%s0 + $0xf8] sm:$0xf]
  %v78 = vld [vmem:[%s0 + $0xfc] sm:$0xf]
  %v79 = vld [vmem:[%s1] sm:$0xf]
  %v80 = vld [vmem:[%s1 + $0x4] sm:$0xf]
  %v81 = vld [vmem:[%s1 + $0x8] sm:$0xf]
  %v82 = vld [vmem:[%s1 + $0xc] sm:$0x3]
  %v83 = vld [vmem:[%s2] sm:$0x1]
  %v85 = vlaneseq
  %v86 = vshrl.u32 %v85, 7
  %v87 = vsub.s32 0, %v86
  %v88 = vrot.slane %v83, %v87
  %v154 = vunpack.c.l.b16 %v15
  %v155 = vunpack.c.l.b16 %v16
  %v156 = vunpack.c.l.b16 %v17
  %v157 = vunpack.c.l.b16 %v18
  %v158 = vunpack.c.l.b16 %v19
  %v159 = vunpack.c.l.b16 %v20
  %v160 = vunpack.c.l.b16 %v21
  %v161 = vunpack.c.l.b16 %v22
  %v162 = vunpack.c.l.b16 %v23
  %v163 = vunpack.c.l.b16 %v24
  %v164 = vunpack.c.l.b16 %v25
  %v165 = vunpack.c.l.b16 %v26
  %v166 = vunpack.c.l.b16 %v27
  %v167 = vunpack.c.l.b16 %v28
  %v168 = vunpack.c.l.b16 %v29
  %v169 = vunpack.c.l.b16 %v30
  %v170 = vunpack.c.l.b16 %v31
  %v171 = vunpack.c.l.b16 %v32
  %v172 = vunpack.c.l.b16 %v33
  %v173 = vunpack.c.l.b16 %v34
  %v174 = vunpack.c.l.b16 %v35
  %v175 = vunpack.c.l.b16 %v36
  %v176 = vunpack.c.l.b16 %v37
  %v177 = vunpack.c.l.b16 %v38
  %v178 = vunpack.c.l.b16 %v39
  %v179 = vunpack.c.l.b16 %v40
  %v180 = vunpack.c.l.b16 %v41
  %v181 = vunpack.c.l.b16 %v42
  %v182 = vunpack.c.l.b16 %v43
  %v183 = vunpack.c.l.b16 %v44
  %v184 = vunpack.c.l.b16 %v45
  %v185 = vunpack.c.l.b16 %v46
  %v186 = vunpack.c.l.b16 %v47
  %v187 = vunpack.c.l.b16 %v48
  %v188 = vunpack.c.l.b16 %v49
  %v189 = vunpack.c.l.b16 %v50
  %v190 = vunpack.c.l.b16 %v51
  %v191 = vunpack.c.l.b16 %v52
  %v192 = vunpack.c.l.b16 %v53
  %v193 = vunpack.c.l.b16 %v54
  %v194 = vunpack.c.l.b16 %v55
  %v195 = vunpack.c.l.b16 %v56
  %v196 = vunpack.c.l.b16 %v57
  %v197 = vunpack.c.l.b16 %v58
  %v198 = vunpack.c.l.b16 %v59
  %v199 = vunpack.c.l.b16 %v60
  %v200 = vunpack.c.l.b16 %v61
  %v201 = vunpack.c.l.b16 %v62
  %v202 = vunpack.c.l.b16 %v63
  %v203 = vunpack.c.l.b16 %v64
  %v204 = vunpack.c.l.b16 %v65
  %v205 = vunpack.c.l.b16 %v66
  %v206 = vunpack.c.l.b16 %v67
  %v207 = vunpack.c.l.b16 %v68
  %v208 = vunpack.c.l.b16 %v69
  %v209 = vunpack.c.l.b16 %v70
  %v210 = vunpack.c.l.b16 %v71
  %v211 = vunpack.c.l.b16 %v72
  %v212 = vunpack.c.l.b16 %v73
  %v213 = vunpack.c.l.b16 %v74
  %v214 = vunpack.c.l.b16 %v75
  %v215 = vunpack.c.l.b16 %v76
  %v216 = vunpack.c.l.b16 %v77
  %v217 = vunpack.c.l.b16 %v78
  %v218 = vpack.c.b16 %v155, %v154
  %v219 = vpack.c.b16 %v157, %v156
  %v220 = vpack.c.b16 %v159, %v158
  %v221 = vpack.c.b16 %v161, %v160
  %v222 = vpack.c.b16 %v163, %v162
  %v223 = vpack.c.b16 %v165, %v164
  %v224 = vpack.c.b16 %v167, %v166
  %v225 = vpack.c.b16 %v169, %v168
  %v226 = vpack.c.b16 %v171, %v170
  %v227 = vpack.c.b16 %v173, %v172
  %v228 = vpack.c.b16 %v175, %v174
  %v229 = vpack.c.b16 %v177, %v176
  %v230 = vpack.c.b16 %v179, %v178
  %v231 = vpack.c.b16 %v181, %v180
  %v232 = vpack.c.b16 %v183, %v182
  %v233 = vpack.c.b16 %v185, %v184
  %v234 = vpack.c.b16 %v187, %v186
  %v235 = vpack.c.b16 %v189, %v188
  %v236 = vpack.c.b16 %v191, %v190
  %v237 = vpack.c.b16 %v193, %v192
  %v238 = vpack.c.b16 %v195, %v194
  %v239 = vpack.c.b16 %v197, %v196
  %v240 = vpack.c.b16 %v199, %v198
  %v241 = vpack.c.b16 %v201, %v200
  %v242 = vpack.c.b16 %v203, %v202
  %v243 = vpack.c.b16 %v205, %v204
  %v244 = vpack.c.b16 %v207, %v206
  %v245 = vpack.c.b16 %v209, %v208
  %v246 = vpack.c.b16 %v211, %v210
  %v247 = vpack.c.b16 %v213, %v212
  %v248 = vpack.c.b16 %v215, %v214
  %v249 = vpack.c.b16 %v217, %v216
  %v254 = vunpack.c.l.b16 %v79
  %v255 = vunpack.c.l.b16 %v80
  %v256 = vunpack.c.l.b16 %v81
  %v257 = vunpack.c.l.b16 %v82
  %v258 = vpack.c.b16 %v255, %v254
  %v259 = vpack.c.b16 %v257, %v256
  %vm261 = vcmask 220160
  %v263 = vsel %vm261, %v218, 0
  %v266 = vsel %vm261, %v219, 0
  %v269 = vsel %vm261, %v220, 0
  %v272 = vsel %vm261, %v221, 0
  %v275 = vsel %vm261, %v222, 0
  %v278 = vsel %vm261, %v223, 0
  %v281 = vsel %vm261, %v224, 0
  %v284 = vsel %vm261, %v225, 0
  %v287 = vsel %vm261, %v226, 0
  %v290 = vsel %vm261, %v227, 0
  %v293 = vsel %vm261, %v228, 0
  %v296 = vsel %vm261, %v229, 0
  %v299 = vsel %vm261, %v230, 0
  %v302 = vsel %vm261, %v231, 0
  %v305 = vsel %vm261, %v232, 0
  %v308 = vsel %vm261, %v233, 0
  %v311 = vsel %vm261, %v234, 0
  %v314 = vsel %vm261, %v235, 0
  %v317 = vsel %vm261, %v236, 0
  %v320 = vsel %vm261, %v237, 0
  %v323 = vsel %vm261, %v238, 0
  %v326 = vsel %vm261, %v239, 0
  %v329 = vsel %vm261, %v240, 0
  %v332 = vsel %vm261, %v241, 0
  %v335 = vsel %vm261, %v242, 0
  %v338 = vsel %vm261, %v243, 0
  %v341 = vsel %vm261, %v244, 0
  %v344 = vsel %vm261, %v245, 0
  %v347 = vsel %vm261, %v246, 0
  %v350 = vsel %vm261, %v247, 0
  %v353 = vsel %vm261, %v248, 0
  %v356 = vsel %vm261, %v249, 0
  %vm358 = vcmask 1044480
  %vm359 = vcmask 1045504
  %v360 = vsel %vm358, 4294967295, 65535
  %v361 = vsel %vm359, %v360, 0
  %v363 = vand.u32 %v259, %v361
  %365 = vmatprep.subr.bf16.mxu0 0
  %366 = vmatpush1.bf16.msra.mxu0 %v258
  %367 = vmatprep.subr.bf16.mxu0 0
  %368 = vmatpush1.bf16.msra.mxu0 %v363
  %369 = vmatprep.subr.bf16.mxu0 0
  %370 = vmatpush1.bf16.msra.mxu0 0
  %371 = vmatprep.subr.bf16.mxu0 0
  %372 = vmatpush1.bf16.msra.mxu0 0
  %373 = vmatprep.subr.bf16.mxu0 0
  %374 = vmatpush1.bf16.msra.mxu0 0
  %375 = vmatprep.subr.bf16.mxu0 0
  %376 = vmatpush1.bf16.msra.mxu0 0
  %377 = vmatprep.subr.bf16.mxu0 0
  %378 = vmatpush1.bf16.msra.mxu0 0
  %379 = vmatprep.subr.bf16.mxu0 0
  %380 = vmatpush1.bf16.msra.mxu0 0
  %381 = vmatprep.subr.bf16.mxu0 0
  %382 = vmatpush1.bf16.msra.mxu0 0
  %383 = vmatprep.subr.bf16.mxu0 0
  %384 = vmatpush1.bf16.msra.mxu0 0
  %385 = vmatprep.subr.bf16.mxu0 0
  %386 = vmatpush1.bf16.msra.mxu0 0
  %387 = vmatprep.subr.bf16.mxu0 0
  %388 = vmatpush1.bf16.msra.mxu0 0
  %389 = vmatprep.subr.bf16.mxu0 0
  %390 = vmatpush1.bf16.msra.mxu0 0
  %391 = vmatprep.subr.bf16.mxu0 0
  %392 = vmatpush1.bf16.msra.mxu0 0
  %393 = vmatprep.subr.bf16.mxu0 0
  %394 = vmatpush1.bf16.msra.mxu0 0
  %395 = vmatprep.subr.bf16.mxu0 0
  %396 = vmatpush1.bf16.msra.mxu0 0
  %397 = vmatprep.mubr.bf16.mxu0 0
  %398 = vmatmul.mubr.bf16.gmra.mrb[0].mxu0 %v263
  %v399 = vpop.f32.mrb[0].mxu0
  %v400 = vadd.f32 %v88, %v399
  %v401 = vpop.f32.mrb[0].mxu0
  %v402 = vpop.f32.mrb[0].mxu0
  %v403 = vadd.f32 %v88, %v402
  %v404 = vpop.f32.mrb[0].mxu0
  %405 = vmatprep.mubr.bf16.mxu0 0
  %406 = vmatmul.mubr.bf16.gmra.mrb[0].mxu0 %v266
  %v407 = vpop.f32.mrb[0].mxu0
  %v408 = vadd.f32 %v88, %v407
  %v409 = vpop.f32.mrb[0].mxu0
  %v410 = vpop.f32.mrb[0].mxu0
  %v411 = vadd.f32 %v88, %v410
  %v412 = vpop.f32.mrb[0].mxu0
  %413 = vmatprep.mubr.bf16.mxu0 0
  %414 = vmatmul.mubr.bf16.gmra.mrb[0].mxu0 %v269
  %v415 = vpop.f32.mrb[0].mxu0
  %v416 = vadd.f32 %v88, %v415
  %v417 = vpop.f32.mrb[0].mxu0
  %v418 = vpop.f32.mrb[0].mxu0
  %v419 = vadd.f32 %v88, %v418
  %v420 = vpop.f32.mrb[0].mxu0
  %421 = vmatprep.mubr.bf16.mxu0 0
  %422 = vmatmul.mubr.bf16.gmra.mrb[0].mxu0 %v272
  %v423 = vpop.f32.mrb[0].mxu0
  %v424 = vadd.f32 %v88, %v423
  %v425 = vpop.f32.mrb[0].mxu0
  %v426 = vpop.f32.mrb[0].mxu0
  %v427 = vadd.f32 %v88, %v426
  %v428 = vpop.f32.mrb[0].mxu0
  %429 = vmatprep.mubr.bf16.mxu0 0
  %430 = vmatmul.mubr.bf16.gmra.mrb[0].mxu0 %v275
  %v431 = vpop.f32.mrb[0].mxu0
  %v432 = vadd.f32 %v88, %v431
  %v433 = vpop.f32.mrb[0].mxu0
  %v434 = vpop.f32.mrb[0].mxu0
  %v435 = vadd.f32 %v88, %v434
  %v436 = vpop.f32.mrb[0].mxu0
  %437 = vmatprep.mubr.bf16.mxu0 0
  %438 = vmatmul.mubr.bf16.gmra.mrb[0].mxu0 %v278
  %v439 = vpop.f32.mrb[0].mxu0
  %v440 = vadd.f32 %v88, %v439
  %v441 = vpop.f32.mrb[0].mxu0
  %v442 = vpop.f32.mrb[0].mxu0
  %v443 = vadd.f32 %v88, %v442
  %v444 = vpop.f32.mrb[0].mxu0
  %445 = vmatprep.mubr.bf16.mxu0 0
  %446 = vmatmul.mubr.bf16.gmra.mrb[0].mxu0 %v281
  %v447 = vpop.f32.mrb[0].mxu0
  %v448 = vadd.f32 %v88, %v447
  %v449 = vpop.f32.mrb[0].mxu0
  %v450 = vpop.f32.mrb[0].mxu0
  %v451 = vadd.f32 %v88, %v450
  %v452 = vpop.f32.mrb[0].mxu0
  %453 = vmatprep.mubr.bf16.mxu0 0
  %454 = vmatmul.mubr.bf16.gmra.mrb[0].mxu0 %v284
  %v455 = vpop.f32.mrb[0].mxu0
  %v456 = vadd.f32 %v88, %v455
  %v457 = vpop.f32.mrb[0].mxu0
  %v458 = vpop.f32.mrb[0].mxu0
  %v459 = vadd.f32 %v88, %v458
  %v460 = vpop.f32.mrb[0].mxu0
  %461 = vmatprep.mubr.bf16.mxu0 0
  %462 = vmatmul.mubr.bf16.gmra.mrb[0].mxu0 %v287
  %v463 = vpop.f32.mrb[0].mxu0
  %v464 = vadd.f32 %v88, %v463
  %v465 = vpop.f32.mrb[0].mxu0
  %v466 = vpop.f32.mrb[0].mxu0
  %v467 = vadd.f32 %v88, %v466
  %v468 = vpop.f32.mrb[0].mxu0
  %469 = vmatprep.mubr.bf16.mxu0 0
  %470 = vmatmul.mubr.bf16.gmra.mrb[0].mxu0 %v290
  %v471 = vpop.f32.mrb[0].mxu0
  %v472 = vadd.f32 %v88, %v471
  %v473 = vpop.f32.mrb[0].mxu0
  %v474 = vpop.f32.mrb[0].mxu0
  %v475 = vadd.f32 %v88, %v474
  %v476 = vpop.f32.mrb[0].mxu0
  %477 = vmatprep.mubr.bf16.mxu0 0
  %478 = vmatmul.mubr.bf16.gmra.mrb[0].mxu0 %v293
  %v479 = vpop.f32.mrb[0].mxu0
  %v480 = vadd.f32 %v88, %v479
  %v481 = vpop.f32.mrb[0].mxu0
  %v482 = vpop.f32.mrb[0].mxu0
  %v483 = vadd.f32 %v88, %v482
  %v484 = vpop.f32.mrb[0].mxu0
  %485 = vmatprep.mubr.bf16.mxu0 0
  %486 = vmatmul.mubr.bf16.gmra.mrb[0].mxu0 %v296
  %v487 = vpop.f32.mrb[0].mxu0
  %v488 = vadd.f32 %v88, %v487
  %v489 = vpop.f32.mrb[0].mxu0
  %v490 = vpop.f32.mrb[0].mxu0
  %v491 = vadd.f32 %v88, %v490
  %v492 = vpop.f32.mrb[0].mxu0
  %493 = vmatprep.mubr.bf16.mxu0 0
  %494 = vmatmul.mubr.bf16.gmra.mrb[0].mxu0 %v299
  %v495 = vpop.f32.mrb[0].mxu0
  %v496 = vadd.f32 %v88, %v495
  %v497 = vpop.f32.mrb[0].mxu0
  %v498 = vpop.f32.mrb[0].mxu0
  %v499 = vadd.f32 %v88, %v498
  %v500 = vpop.f32.mrb[0].mxu0
  %501 = vmatprep.mubr.bf16.mxu0 0
  %502 = vmatmul.mubr.bf16.gmra.mrb[0].mxu0 %v302
  %v503 = vpop.f32.mrb[0].mxu0
  %v504 = vadd.f32 %v88, %v503
  %v505 = vpop.f32.mrb[0].mxu0
  %v506 = vpop.f32.mrb[0].mxu0
  %v507 = vadd.f32 %v88, %v506
  %v508 = vpop.f32.mrb[0].mxu0
  %509 = vmatprep.mubr.bf16.mxu0 0
  %510 = vmatmul.mubr.bf16.gmra.mrb[0].mxu0 %v305
  %v511 = vpop.f32.mrb[0].mxu0
  %v512 = vadd.f32 %v88, %v511
  %v513 = vpop.f32.mrb[0].mxu0
  %v514 = vpop.f32.mrb[0].mxu0
  %v515 = vadd.f32 %v88, %v514
  %v516 = vpop.f32.mrb[0].mxu0
  %517 = vmatprep.mubr.bf16.mxu0 0
  %518 = vmatmul.mubr.bf16.gmra.mrb[0].mxu0 %v308
  %v519 = vpop.f32.mrb[0].mxu0
  %v520 = vadd.f32 %v88, %v519
  %v521 = vpop.f32.mrb[0].mxu0
  %v522 = vpop.f32.mrb[0].mxu0
  %v523 = vadd.f32 %v88, %v522
  %v524 = vpop.f32.mrb[0].mxu0
  %525 = vmatprep.mubr.bf16.mxu0 0
  %526 = vmatmul.mubr.bf16.gmra.mrb[0].mxu0 %v311
  %v527 = vpop.f32.mrb[0].mxu0
  %v528 = vadd.f32 %v88, %v527
  %v529 = vpop.f32.mrb[0].mxu0
  %v530 = vpop.f32.mrb[0].mxu0
  %v531 = vadd.f32 %v88, %v530
  %v532 = vpop.f32.mrb[0].mxu0
  %533 = vmatprep.mubr.bf16.mxu0 0
  %534 = vmatmul.mubr.bf16.gmra.mrb[0].mxu0 %v314
  %v535 = vpop.f32.mrb[0].mxu0
  %v536 = vadd.f32 %v88, %v535
  %v537 = vpop.f32.mrb[0].mxu0
  %v538 = vpop.f32.mrb[0].mxu0
  %v539 = vadd.f32 %v88, %v538
  %v540 = vpop.f32.mrb[0].mxu0
  %541 = vmatprep.mubr.bf16.mxu0 0
  %542 = vmatmul.mubr.bf16.gmra.mrb[0].mxu0 %v317
  %v543 = vpop.f32.mrb[0].mxu0
  %v544 = vadd.f32 %v88, %v543
  %v545 = vpop.f32.mrb[0].mxu0
  %v546 = vpop.f32.mrb[0].mxu0
  %v547 = vadd.f32 %v88, %v546
  %v548 = vpop.f32.mrb[0].mxu0
  %549 = vmatprep.mubr.bf16.mxu0 0
  %550 = vmatmul.mubr.bf16.gmra.mrb[0].mxu0 %v320
  %v551 = vpop.f32.mrb[0].mxu0
  %v552 = vadd.f32 %v88, %v551
  %v553 = vpop.f32.mrb[0].mxu0
  %v554 = vpop.f32.mrb[0].mxu0
  %v555 = vadd.f32 %v88, %v554
  %v556 = vpop.f32.mrb[0].mxu0
  %557 = vmatprep.mubr.bf16.mxu0 0
  %558 = vmatmul.mubr.bf16.gmra.mrb[0].mxu0 %v323
  %v559 = vpop.f32.mrb[0].mxu0
  %v560 = vadd.f32 %v88, %v559
  %v561 = vpop.f32.mrb[0].mxu0
  %v562 = vpop.f32.mrb[0].mxu0
  %v563 = vadd.f32 %v88, %v562
  %v564 = vpop.f32.mrb[0].mxu0
  %565 = vmatprep.mubr.bf16.mxu0 0
  %566 = vmatmul.mubr.bf16.gmra.mrb[0].mxu0 %v326
  %v567 = vpop.f32.mrb[0].mxu0
  %v568 = vadd.f32 %v88, %v567
  %v569 = vpop.f32.mrb[0].mxu0
  %v570 = vpop.f32.mrb[0].mxu0
  %v571 = vadd.f32 %v88, %v570
  %v572 = vpop.f32.mrb[0].mxu0
  %573 = vmatprep.mubr.bf16.mxu0 0
  %574 = vmatmul.mubr.bf16.gmra.mrb[0].mxu0 %v329
  %v575 = vpop.f32.mrb[0].mxu0
  %v576 = vadd.f32 %v88, %v575
  %v577 = vpop.f32.mrb[0].mxu0
  %v578 = vpop.f32.mrb[0].mxu0
  %v579 = vadd.f32 %v88, %v578
  %v580 = vpop.f32.mrb[0].mxu0
  %581 = vmatprep.mubr.bf16.mxu0 0
  %582 = vmatmul.mubr.bf16.gmra.mrb[0].mxu0 %v332
  %v583 = vpop.f32.mrb[0].mxu0
  %v584 = vadd.f32 %v88, %v583
  %v585 = vpop.f32.mrb[0].mxu0
  %v586 = vpop.f32.mrb[0].mxu0
  %v587 = vadd.f32 %v88, %v586
  %v588 = vpop.f32.mrb[0].mxu0
  %589 = vmatprep.mubr.bf16.mxu0 0
  %590 = vmatmul.mubr.bf16.gmra.mrb[0].mxu0 %v335
  %v591 = vpop.f32.mrb[0].mxu0
  %v592 = vadd.f32 %v88, %v591
  %v593 = vpop.f32.mrb[0].mxu0
  %v594 = vpop.f32.mrb[0].mxu0
  %v595 = vadd.f32 %v88, %v594
  %v596 = vpop.f32.mrb[0].mxu0
  %597 = vmatprep.mubr.bf16.mxu0 0
  %598 = vmatmul.mubr.bf16.gmra.mrb[0].mxu0 %v338
  %v599 = vpop.f32.mrb[0].mxu0
  %v600 = vadd.f32 %v88, %v599
  %v601 = vpop.f32.mrb[0].mxu0
  %v602 = vpop.f32.mrb[0].mxu0
  %v603 = vadd.f32 %v88, %v602
  %v604 = vpop.f32.mrb[0].mxu0
  %605 = vmatprep.mubr.bf16.mxu0 0
  %606 = vmatmul.mubr.bf16.gmra.mrb[0].mxu0 %v341
  %v607 = vpop.f32.mrb[0].mxu0
  %v608 = vadd.f32 %v88, %v607
  %v609 = vpop.f32.mrb[0].mxu0
  %v610 = vpop.f32.mrb[0].mxu0
  %v611 = vadd.f32 %v88, %v610
  %v612 = vpop.f32.mrb[0].mxu0
  %613 = vmatprep.mubr.bf16.mxu0 0
  %614 = vmatmul.mubr.bf16.gmra.mrb[0].mxu0 %v344
  %v615 = vpop.f32.mrb[0].mxu0
  %v616 = vadd.f32 %v88, %v615
  %v617 = vpop.f32.mrb[0].mxu0
  %v618 = vpop.f32.mrb[0].mxu0
  %v619 = vadd.f32 %v88, %v618
  %v620 = vpop.f32.mrb[0].mxu0
  %621 = vmatprep.mubr.bf16.mxu0 0
  %622 = vmatmul.mubr.bf16.gmra.mrb[0].mxu0 %v347
  %v623 = vpop.f32.mrb[0].mxu0
  %v624 = vadd.f32 %v88, %v623
  %v625 = vpop.f32.mrb[0].mxu0
  %v626 = vpop.f32.mrb[0].mxu0
  %v627 = vadd.f32 %v88, %v626
  %v628 = vpop.f32.mrb[0].mxu0
  %629 = vmatprep.mubr.bf16.mxu0 0
  %630 = vmatmul.mubr.bf16.gmra.mrb[0].mxu0 %v350
  %v631 = vpop.f32.mrb[0].mxu0
  %v632 = vadd.f32 %v88, %v631
  %v633 = vpop.f32.mrb[0].mxu0
  %v634 = vpop.f32.mrb[0].mxu0
  %v635 = vadd.f32 %v88, %v634
  %v636 = vpop.f32.mrb[0].mxu0
  %637 = vmatprep.mubr.bf16.mxu0 0
  %638 = vmatmul.mubr.bf16.gmra.mrb[0].mxu0 %v353
  %v639 = vpop.f32.mrb[0].mxu0
  %v640 = vadd.f32 %v88, %v639
  %v641 = vpop.f32.mrb[0].mxu0
  %v642 = vpop.f32.mrb[0].mxu0
  %v643 = vadd.f32 %v88, %v642
  %v644 = vpop.f32.mrb[0].mxu0
  %645 = vmatprep.mubr.bf16.mxu0 0
  %646 = vmatmul.mubr.bf16.gmra.mrb[0].mxu0 %v356
  %v647 = vpop.f32.mrb[0].mxu0
  %v648 = vadd.f32 %v88, %v647
  %v649 = vpop.f32.mrb[0].mxu0
  %v650 = vpop.f32.mrb[0].mxu0
  %v651 = vadd.f32 %v88, %v650
  %v652 = vpop.f32.mrb[0].mxu0
  %653 = vdwg.mxu0
  %v654 = vmax.f32 %v400, 0.0
  %v655 = vmax.f32 %v403, 0.0
  %v656 = vmax.f32 %v408, 0.0
  %v657 = vmax.f32 %v411, 0.0
  %v658 = vmax.f32 %v416, 0.0
  %v659 = vmax.f32 %v419, 0.0
  %v660 = vmax.f32 %v424, 0.0
  %v661 = vmax.f32 %v427, 0.0
  %v662 = vmax.f32 %v432, 0.0
  %v663 = vmax.f32 %v435, 0.0
  %v664 = vmax.f32 %v440, 0.0
  %v665 = vmax.f32 %v443, 0.0
  %v666 = vmax.f32 %v448, 0.0
  %v667 = vmax.f32 %v451, 0.0
  %v668 = vmax.f32 %v456, 0.0
  %v669 = vmax.f32 %v459, 0.0
  %v670 = vmax.f32 %v464, 0.0
  %v671 = vmax.f32 %v467, 0.0
  %v672 = vmax.f32 %v472, 0.0
  %v673 = vmax.f32 %v475, 0.0
  %v674 = vmax.f32 %v480, 0.0
  %v675 = vmax.f32 %v483, 0.0
  %v676 = vmax.f32 %v488, 0.0
  %v677 = vmax.f32 %v491, 0.0
  %v678 = vmax.f32 %v496, 0.0
  %v679 = vmax.f32 %v499, 0.0
  %v680 = vmax.f32 %v504, 0.0
  %v681 = vmax.f32 %v507, 0.0
  %v682 = vmax.f32 %v512, 0.0
  %v683 = vmax.f32 %v515, 0.0
  %v684 = vmax.f32 %v520, 0.0
  %v685 = vmax.f32 %v523, 0.0
  %v686 = vmax.f32 %v528, 0.0
  %v687 = vmax.f32 %v531, 0.0
  %v688 = vmax.f32 %v536, 0.0
  %v689 = vmax.f32 %v539, 0.0
  %v690 = vmax.f32 %v544, 0.0
  %v691 = vmax.f32 %v547, 0.0
  %v692 = vmax.f32 %v552, 0.0
  %v693 = vmax.f32 %v555, 0.0
  %v694 = vmax.f32 %v560, 0.0
  %v695 = vmax.f32 %v563, 0.0
  %v696 = vmax.f32 %v568, 0.0
  %v697 = vmax.f32 %v571, 0.0
  %v698 = vmax.f32 %v576, 0.0
  %v699 = vmax.f32 %v579, 0.0
  %v700 = vmax.f32 %v584, 0.0
  %v701 = vmax.f32 %v587, 0.0
  %v702 = vmax.f32 %v592, 0.0
  %v703 = vmax.f32 %v595, 0.0
  %v704 = vmax.f32 %v600, 0.0
  %v705 = vmax.f32 %v603, 0.0
  %v706 = vmax.f32 %v608, 0.0
  %v707 = vmax.f32 %v611, 0.0
  %v708 = vmax.f32 %v616, 0.0
  %v709 = vmax.f32 %v619, 0.0
  %v710 = vmax.f32 %v624, 0.0
  %v711 = vmax.f32 %v627, 0.0
  %v712 = vmax.f32 %v632, 0.0
  %v713 = vmax.f32 %v635, 0.0
  %v714 = vmax.f32 %v640, 0.0
  %v715 = vmax.f32 %v643, 0.0
  %v716 = vmax.f32 %v648, 0.0
  %v717 = vmax.f32 %v651, 0.0
  %v718 = vpack.c.bf16 %v655, %v654
  %v719 = vpack.c.bf16 %v657, %v656
  %v720 = vpack.c.bf16 %v659, %v658
  %v721 = vpack.c.bf16 %v661, %v660
  %v722 = vpack.c.bf16 %v663, %v662
  %v723 = vpack.c.bf16 %v665, %v664
  %v724 = vpack.c.bf16 %v667, %v666
  %v725 = vpack.c.bf16 %v669, %v668
  %v726 = vpack.c.bf16 %v671, %v670
  %v727 = vpack.c.bf16 %v673, %v672
  %v728 = vpack.c.bf16 %v675, %v674
  %v729 = vpack.c.bf16 %v677, %v676
  %v730 = vpack.c.bf16 %v679, %v678
  %v731 = vpack.c.bf16 %v681, %v680
  %v732 = vpack.c.bf16 %v683, %v682
  %v733 = vpack.c.bf16 %v685, %v684
  %v734 = vpack.c.bf16 %v687, %v686
  %v735 = vpack.c.bf16 %v689, %v688
  %v736 = vpack.c.bf16 %v691, %v690
  %v737 = vpack.c.bf16 %v693, %v692
  %v738 = vpack.c.bf16 %v695, %v694
  %v739 = vpack.c.bf16 %v697, %v696
  %v740 = vpack.c.bf16 %v699, %v698
  %v741 = vpack.c.bf16 %v701, %v700
  %v742 = vpack.c.bf16 %v703, %v702
  %v743 = vpack.c.bf16 %v705, %v704
  %v744 = vpack.c.bf16 %v707, %v706
  %v745 = vpack.c.bf16 %v709, %v708
  %v746 = vpack.c.bf16 %v711, %v710
  %v747 = vpack.c.bf16 %v713, %v712
  %v748 = vpack.c.bf16 %v715, %v714
  %v749 = vpack.c.bf16 %v717, %v716
  %v782 = vunpack.c.l.b16 %v718
  %v783 = vunpack.c.h.b16 %v718
  %v784 = vunpack.c.l.b16 %v719
  %v785 = vunpack.c.h.b16 %v719
  %v786 = vunpack.c.l.b16 %v720
  %v787 = vunpack.c.h.b16 %v720
  %v788 = vunpack.c.l.b16 %v721
  %v789 = vunpack.c.h.b16 %v721
  %v790 = vunpack.c.l.b16 %v722
  %v791 = vunpack.c.h.b16 %v722
  %v792 = vunpack.c.l.b16 %v723
  %v793 = vunpack.c.h.b16 %v723
  %v794 = vunpack.c.l.b16 %v724
  %v795 = vunpack.c.h.b16 %v724
  %v796 = vunpack.c.l.b16 %v725
  %v797 = vunpack.c.h.b16 %v725
  %v798 = vunpack.c.l.b16 %v726
  %v799 = vunpack.c.h.b16 %v726
  %v800 = vunpack.c.l.b16 %v727
  %v801 = vunpack.c.h.b16 %v727
  %v802 = vunpack.c.l.b16 %v728
  %v803 = vunpack.c.h.b16 %v728
  %v804 = vunpack.c.l.b16 %v729
  %v805 = vunpack.c.h.b16 %v729
  %v806 = vunpack.c.l.b16 %v730
  %v807 = vunpack.c.h.b16 %v730
  %v808 = vunpack.c.l.b16 %v731
  %v809 = vunpack.c.h.b16 %v731
  %v810 = vunpack.c.l.b16 %v732
  %v811 = vunpack.c.h.b16 %v732
  %v812 = vunpack.c.l.b16 %v733
  %v813 = vunpack.c.h.b16 %v733
  %v814 = vunpack.c.l.b16 %v734
  %v815 = vunpack.c.h.b16 %v734
  %v816 = vunpack.c.l.b16 %v735
  %v817 = vunpack.c.h.b16 %v735
  %v818 = vunpack.c.l.b16 %v736
  %v819 = vunpack.c.h.b16 %v736
  %v820 = vunpack.c.l.b16 %v737
  %v821 = vunpack.c.h.b16 %v737
  %v822 = vunpack.c.l.b16 %v738
  %v823 = vunpack.c.h.b16 %v738
  %v824 = vunpack.c.l.b16 %v739
  %v825 = vunpack.c.h.b16 %v739
  %v826 = vunpack.c.l.b16 %v740
  %v827 = vunpack.c.h.b16 %v740
  %v828 = vunpack.c.l.b16 %v741
  %v829 = vunpack.c.h.b16 %v741
  %v830 = vunpack.c.l.b16 %v742
  %v831 = vunpack.c.h.b16 %v742
  %v832 = vunpack.c.l.b16 %v743
  %v833 = vunpack.c.h.b16 %v743
  %v834 = vunpack.c.l.b16 %v744
  %v835 = vunpack.c.h.b16 %v744
  %v836 = vunpack.c.l.b16 %v745
  %v837 = vunpack.c.h.b16 %v745
  %v838 = vunpack.c.l.b16 %v746
  %v839 = vunpack.c.h.b16 %v746
  %v840 = vunpack.c.l.b16 %v747
  %v841 = vunpack.c.h.b16 %v747
  %v842 = vunpack.c.l.b16 %v748
  %v843 = vunpack.c.h.b16 %v748
  %v844 = vunpack.c.l.b16 %v749
  %v845 = vunpack.c.h.b16 %v749
  %v846 = vpack.c.b16 %v782, %v782
  %v847 = vpack.c.b16 %v783, %v783
  %v848 = vpack.c.b16 %v784, %v784
  %v849 = vpack.c.b16 %v785, %v785
  %v850 = vpack.c.b16 %v786, %v786
  %v851 = vpack.c.b16 %v787, %v787
  %v852 = vpack.c.b16 %v788, %v788
  %v853 = vpack.c.b16 %v789, %v789
  %v854 = vpack.c.b16 %v790, %v790
  %v855 = vpack.c.b16 %v791, %v791
  %v856 = vpack.c.b16 %v792, %v792
  %v857 = vpack.c.b16 %v793, %v793
  %v858 = vpack.c.b16 %v794, %v794
  %v859 = vpack.c.b16 %v795, %v795
  %v860 = vpack.c.b16 %v796, %v796
  %v861 = vpack.c.b16 %v797, %v797
  %v862 = vpack.c.b16 %v798, %v798
  %v863 = vpack.c.b16 %v799, %v799
  %v864 = vpack.c.b16 %v800, %v800
  %v865 = vpack.c.b16 %v801, %v801
  %v866 = vpack.c.b16 %v802, %v802
  %v867 = vpack.c.b16 %v803, %v803
  %v868 = vpack.c.b16 %v804, %v804
  %v869 = vpack.c.b16 %v805, %v805
  %v870 = vpack.c.b16 %v806, %v806
  %v871 = vpack.c.b16 %v807, %v807
  %v872 = vpack.c.b16 %v808, %v808
  %v873 = vpack.c.b16 %v809, %v809
  %v874 = vpack.c.b16 %v810, %v810
  %v875 = vpack.c.b16 %v811, %v811
  %v876 = vpack.c.b16 %v812, %v812
  %v877 = vpack.c.b16 %v813, %v813
  %v878 = vpack.c.b16 %v814, %v814
  %v879 = vpack.c.b16 %v815, %v815
  %v880 = vpack.c.b16 %v816, %v816
  %v881 = vpack.c.b16 %v817, %v817
  %v882 = vpack.c.b16 %v818, %v818
  %v883 = vpack.c.b16 %v819, %v819
  %v884 = vpack.c.b16 %v820, %v820
  %v885 = vpack.c.b16 %v821, %v821
  %v886 = vpack.c.b16 %v822, %v822
  %v887 = vpack.c.b16 %v823, %v823
  %v888 = vpack.c.b16 %v824, %v824
  %v889 = vpack.c.b16 %v825, %v825
  %v890 = vpack.c.b16 %v826, %v826
  %v891 = vpack.c.b16 %v827, %v827
  %v892 = vpack.c.b16 %v828, %v828
  %v893 = vpack.c.b16 %v829, %v829
  %v894 = vpack.c.b16 %v830, %v830
  %v895 = vpack.c.b16 %v831, %v831
  %v896 = vpack.c.b16 %v832, %v832
  %v897 = vpack.c.b16 %v833, %v833
  %v898 = vpack.c.b16 %v834, %v834
  %v899 = vpack.c.b16 %v835, %v835
  %v900 = vpack.c.b16 %v836, %v836
  %v901 = vpack.c.b16 %v837, %v837
  %v902 = vpack.c.b16 %v838, %v838
  %v903 = vpack.c.b16 %v839, %v839
  %v904 = vpack.c.b16 %v840, %v840
  %v905 = vpack.c.b16 %v841, %v841
  %v906 = vpack.c.b16 %v842, %v842
  %v907 = vpack.c.b16 %v843, %v843
  %v908 = vpack.c.b16 %v844, %v844
  %v909 = vpack.c.b16 %v845, %v845
  %974 = vst [vmem:[%s3] sm:$0xf] %v846
  %975 = vst [vmem:[%s3 + $0x4] sm:$0xf] %v847
  %976 = vst [vmem:[%s3 + $0x8] sm:$0xf] %v848
  %977 = vst [vmem:[%s3 + $0xc] sm:$0xf] %v849
  %978 = vst [vmem:[%s3 + $0x10] sm:$0xf] %v850
  %979 = vst [vmem:[%s3 + $0x14] sm:$0xf] %v851
  %980 = vst [vmem:[%s3 + $0x18] sm:$0xf] %v852
  %981 = vst [vmem:[%s3 + $0x1c] sm:$0xf] %v853
  %982 = vst [vmem:[%s3 + $0x20] sm:$0xf] %v854
  %983 = vst [vmem:[%s3 + $0x24] sm:$0xf] %v855
  %984 = vst [vmem:[%s3 + $0x28] sm:$0xf] %v856
  %985 = vst [vmem:[%s3 + $0x2c] sm:$0xf] %v857
  %986 = vst [vmem:[%s3 + $0x30] sm:$0xf] %v858
  %987 = vst [vmem:[%s3 + $0x34] sm:$0xf] %v859
  %988 = vst [vmem:[%s3 + $0x38] sm:$0xf] %v860
  %989 = vst [vmem:[%s3 + $0x3c] sm:$0xf] %v861
  %990 = vst [vmem:[%s3 + $0x40] sm:$0xf] %v862
  %991 = vst [vmem:[%s3 + $0x44] sm:$0xf] %v863
  %992 = vst [vmem:[%s3 + $0x48] sm:$0xf] %v864
  %993 = vst [vmem:[%s3 + $0x4c] sm:$0xf] %v865
  %994 = vst [vmem:[%s3 + $0x50] sm:$0xf] %v866
  %995 = vst [vmem:[%s3 + $0x54] sm:$0xf] %v867
  %996 = vst [vmem:[%s3 + $0x58] sm:$0xf] %v868
  %997 = vst [vmem:[%s3 + $0x5c] sm:$0xf] %v869
  %998 = vst [vmem:[%s3 + $0x60] sm:$0xf] %v870
  %999 = vst [vmem:[%s3 + $0x64] sm:$0xf] %v871
  %1000 = vst [vmem:[%s3 + $0x68] sm:$0xf] %v872
  %1001 = vst [vmem:[%s3 + $0x6c] sm:$0xf] %v873
  %1002 = vst [vmem:[%s3 + $0x70] sm:$0xf] %v874
  %1003 = vst [vmem:[%s3 + $0x74] sm:$0xf] %v875
  %1004 = vst [vmem:[%s3 + $0x78] sm:$0xf] %v876
  %1005 = vst [vmem:[%s3 + $0x7c] sm:$0xf] %v877
  %1006 = vst [vmem:[%s3 + $0x80] sm:$0xf] %v878
  %1007 = vst [vmem:[%s3 + $0x84] sm:$0xf] %v879
  %1008 = vst [vmem:[%s3 + $0x88] sm:$0xf] %v880
  %1009 = vst [vmem:[%s3 + $0x8c] sm:$0xf] %v881
  %1010 = vst [vmem:[%s3 + $0x90] sm:$0xf] %v882
  %1011 = vst [vmem:[%s3 + $0x94] sm:$0xf] %v883
  %1012 = vst [vmem:[%s3 + $0x98] sm:$0xf] %v884
  %1013 = vst [vmem:[%s3 + $0x9c] sm:$0xf] %v885
  %1014 = vst [vmem:[%s3 + $0xa0] sm:$0xf] %v886
  %1015 = vst [vmem:[%s3 + $0xa4] sm:$0xf] %v887
  %1016 = vst [vmem:[%s3 + $0xa8] sm:$0xf] %v888
  %1017 = vst [vmem:[%s3 + $0xac] sm:$0xf] %v889
  %1018 = vst [vmem:[%s3 + $0xb0] sm:$0xf] %v890
  %1019 = vst [vmem:[%s3 + $0xb4] sm:$0xf] %v891
  %1020 = vst [vmem:[%s3 + $0xb8] sm:$0xf] %v892
  %1021 = vst [vmem:[%s3 + $0xbc] sm:$0xf] %v893
  %1022 = vst [vmem:[%s3 + $0xc0] sm:$0xf] %v894
  %1023 = vst [vmem:[%s3 + $0xc4] sm:$0xf] %v895
  %1024 = vst [vmem:[%s3 + $0xc8] sm:$0xf] %v896
  %1025 = vst [vmem:[%s3 + $0xcc] sm:$0xf] %v897
  %1026 = vst [vmem:[%s3 + $0xd0] sm:$0xf] %v898
  %1027 = vst [vmem:[%s3 + $0xd4] sm:$0xf] %v899
  %1028 = vst [vmem:[%s3 + $0xd8] sm:$0xf] %v900
  %1029 = vst [vmem:[%s3 + $0xdc] sm:$0xf] %v901
  %1030 = vst [vmem:[%s3 + $0xe0] sm:$0xf] %v902
  %1031 = vst [vmem:[%s3 + $0xe4] sm:$0xf] %v903
  %1032 = vst [vmem:[%s3 + $0xe8] sm:$0xf] %v904
  %1033 = vst [vmem:[%s3 + $0xec] sm:$0xf] %v905
  %1034 = vst [vmem:[%s3 + $0xf0] sm:$0xf] %v906
  %1035 = vst [vmem:[%s3 + $0xf4] sm:$0xf] %v907
  %1036 = vst [vmem:[%s3 + $0xf8] sm:$0xf] %v908
  %1037 = vst [vmem:[%s3 + $0xfc] sm:$0xf] %v909
  // Predicated region
  $region14: #{squeezenet3d_forward.9} parent=0 // pred_check
    _
  $region15: #{squeezenet3d_forward.9} parent=0 // pred_check_branch
    %1039 = sbr.rel (0) target = $region17
  $region16: #{squeezenet3d_forward.9} parent=0 // pred_region
    _
  $region17: #{squeezenet3d_forward.9} parent=0 // pred_fallthru
    _
  // Predicated region
  $region18: #{squeezenet3d_forward.9} parent=0 // pred_check
    _
  $region19: #{squeezenet3d_forward.9} parent=0 // pred_check_branch
    %1041 = sbr.rel (0) target = $region21
  $region20: #{squeezenet3d_forward.9} parent=0 // pred_region
    _
  $region21: #{squeezenet3d_forward.9} parent=0 // pred_fallthru
    _

// kernel: squeezenet3d_forward.10
$region0: #{squeezenet3d_forward.10}
  #allocation0 [shape = 'u32[]', space=smem, size = 0x4, offset = 0x4, fixed_abs, tag = 'smem constant byte address 0x4 - core index']
  #allocation1 [shape = 'u32[144,128]{1,0:T(1,128)}', space=vmem, size = 0x12000, scoped, tag = 'internal scratch']
  #allocation2 [shape = 'bf16[65,16]{1,0:T(8,128)(2,1)}', space=vmem, size = 0x4800, scoped, tag = 'scratch operand']
  %s0 = inlined_call_operand.vmem [shape: bf16[2,49,128], index: 0, kind: input, shape index: {}]
  %s1 = inlined_call_operand.vmem [shape: s32[49,1], index: 1, kind: input, shape index: {}]
  %s2 = inlined_call_operand.vmem [shape: bf16[128,16], index: 2, kind: input, shape index: {}]
  %s3 = inlined_call_operand.vmem [shape: f32[1,16], index: 3, kind: input, shape index: {}]
  %s4 = inlined_call_operand.vmem [shape: bf16[16,64], index: 4, kind: input, shape index: {}]
  %s5 = inlined_call_operand.vmem [shape: f32[1,64], index: 5, kind: input, shape index: {}]
  %s6 = inlined_call_operand.vmem [shape: bf16[9,16,64], index: 6, kind: input, shape index: {}]
  %s7 = inlined_call_operand.vmem [shape: f32[1,64], index: 7, kind: input, shape index: {}]
  %s8 = inlined_call_operand.vmem [shape: bf16[2,49,128], index: 8, kind: output, shape index: {}]
  %s9 = sld [smem:[#allocation0]]
  $region65: #{squeezenet3d_forward.10} parent=0
    _
  %s11 = ssub.s32 1, %s9
  %s12 = scalar_select 0, %s11, %s9
  loop: start=0, step=1, limit=4
  $region2: #{squeezenet3d_forward.10} parent=0 // loop_pre_header
    _
  $region3: #{squeezenet3d_forward.10} parent=0 // loop_header
    %s14 = sphi 0, %s18
    %p15 = scmp.ge.s32.totalorder %s14, 4
    %s24 = sphi 0, %s26
    %s27 = sphi 0, %s24
    %s28 = sphi 0, %s27
    %s44 = sphi 0, %s28
    %s48 = sphi 0, %s48
    %s50 = sphi 0, %s48
    %s51 = sphi 0, %s50
    %s65 = sphi 0, %s51
    %s69 = sphi 0, %s69
    %s71 = sphi 0, %s69
    %s72 = sphi 0, %s71
    %s86 = sphi 0, %s72
    %s90 = sphi 0, %s90
    %s92 = sphi 0, %s90
    %s93 = sphi 0, %s92
    %s107 = sphi 0, %s93
    %s111 = sphi 0, %s111
    %s113 = sphi 0, %s111
    %s114 = sphi 0, %s113
    %s128 = sphi 0, %s114
    %s132 = sphi 0, %s132
    %s134 = sphi 0, %s132
    %s135 = sphi 0, %s134
    %s149 = sphi 0, %s135
    %s153 = sphi 0, %s153
    %s155 = sphi 0, %s153
    %s156 = sphi 0, %s155
    %s170 = sphi 0, %s156
    %s174 = sphi 0, %s174
    %s176 = sphi 0, %s174
    %s177 = sphi 0, %s176
    %s191 = sphi 0, %s177
    %s197 = sphi 0, %s199
    %s200 = sphi 0, %s197
    %s201 = sphi 0, %s200
    %s217 = sphi 0, %s201
  $region4: #{squeezenet3d_forward.10} parent=0 // loop_header_branch
    %17 = sbr.rel (%p15) target = $region8
  $region5: #{squeezenet3d_forward.10} parent=0 // loop_body
    %s19 = ssub.s32 %s14, 1
    %s20 = ssub.s32 %s14, 2
    %s21 = sadd.s32 %s14, 1
    %s22 = ssub.s32 %s14, %s21
    %p23 = scmp.eq.s32.totalorder %s22, 0
    %s25 = sadd.s32 %s24, 1
    %s26 = scalar_select %p23, %s24, %s25
    %p29 = pneg %p23
    %p30 = scmp.eq.s32.totalorder %s14, 1
    %p31 = por %p29, %p30
    %p32 = scmp.ne.s32.totalorder %s24, %s27
    %p33 = scmp.eq.s32.totalorder %s14, 0
    %p34 = por %p32, %p33
    %p35 = scmp.ne.s32.totalorder %s24, %s27
    %p36 = scmp.eq.s32.totalorder %s19, 1
    %p37 = por %p35, %p36
    %p38 = scmp.ne.s32.totalorder %s27, %s28
    %p39 = scmp.eq.s32.totalorder %s19, 0
    %p40 = por %p38, %p39
    %p41 = scmp.ne.s32.totalorder %s27, %s28
    %p42 = scmp.eq.s32.totalorder %s20, 1
    %p43 = por %p41, %p42
    %p45 = scmp.ne.s32.totalorder %s28, %s44
    %p46 = scmp.eq.s32.totalorder %s20, 0
    %p47 = por %p45, %p46
    %s49 = sadd.s32 %s48, 1
    %p52 = scmp.eq.s32.totalorder %s14, 1
    %p53 = scmp.ne.s32.totalorder %s48, %s50
    %p54 = scmp.eq.s32.totalorder %s14, 0
    %p55 = por %p53, %p54
    %p56 = scmp.ne.s32.totalorder %s48, %s50
    %p57 = scmp.eq.s32.totalorder %s19, 1
    %p58 = por %p56, %p57
    %p59 = scmp.ne.s32.totalorder %s50, %s51
    %p60 = scmp.eq.s32.totalorder %s19, 0
    %p61 = por %p59, %p60
    %p62 = scmp.ne.s32.totalorder %s50, %s51
    %p63 = scmp.eq.s32.totalorder %s20, 1
    %p64 = por %p62, %p63
    %p66 = scmp.ne.s32.totalorder %s51, %s65
    %p67 = scmp.eq.s32.totalorder %s20, 0
    %p68 = por %p66, %p67
    %s70 = sadd.s32 %s69, 1
    %p73 = scmp.eq.s32.totalorder %s14, 1
    %p74 = scmp.ne.s32.totalorder %s69, %s71
    %p75 = scmp.eq.s32.totalorder %s14, 0
    %p76 = por %p74, %p75
    %p77 = scmp.ne.s32.totalorder %s69, %s71
    %p78 = scmp.eq.s32.totalorder %s19, 1
    %p79 = por %p77, %p78
    %p80 = scmp.ne.s32.totalorder %s71, %s72
    %p81 = scmp.eq.s32.totalorder %s19, 0
    %p82 = por %p80, %p81
    %p83 = scmp.ne.s32.totalorder %s71, %s72
    %p84 = scmp.eq.s32.totalorder %s20, 1
    %p85 = por %p83, %p84
    %p87 = scmp.ne.s32.totalorder %s72, %s86
    %p88 = scmp.eq.s32.totalorder %s20, 0
    %p89 = por %p87, %p88
    %s91 = sadd.s32 %s90, 1
    %p94 = scmp.eq.s32.totalorder %s14, 1
    %p95 = scmp.ne.s32.totalorder %s90, %s92
    %p96 = scmp.eq.s32.totalorder %s14, 0
    %p97 = por %p95, %p96
    %p98 = scmp.ne.s32.totalorder %s90, %s92
    %p99 = scmp.eq.s32.totalorder %s19, 1
    %p100 = por %p98, %p99
    %p101 = scmp.ne.s32.totalorder %s92, %s93
    %p102 = scmp.eq.s32.totalorder %s19, 0
    %p103 = por %p101, %p102
    %p104 = scmp.ne.s32.totalorder %s92, %s93
    %p105 = scmp.eq.s32.totalorder %s20, 1
    %p106 = por %p104, %p105
    %p108 = scmp.ne.s32.totalorder %s93, %s107
    %p109 = scmp.eq.s32.totalorder %s20, 0
    %p110 = por %p108, %p109
    %s112 = sadd.s32 %s111, 1
    %p115 = scmp.eq.s32.totalorder %s14, 1
    %p116 = scmp.ne.s32.totalorder %s111, %s113
    %p117 = scmp.eq.s32.totalorder %s14, 0
    %p118 = por %p116, %p117
    %p119 = scmp.ne.s32.totalorder %s111, %s113
    %p120 = scmp.eq.s32.totalorder %s19, 1
    %p121 = por %p119, %p120
    %p122 = scmp.ne.s32.totalorder %s113, %s114
    %p123 = scmp.eq.s32.totalorder %s19, 0
    %p124 = por %p122, %p123
    %p125 = scmp.ne.s32.totalorder %s113, %s114
    %p126 = scmp.eq.s32.totalorder %s20, 1
    %p127 = por %p125, %p126
    %p129 = scmp.ne.s32.totalorder %s114, %s128
    %p130 = scmp.eq.s32.totalorder %s20, 0
    %p131 = por %p129, %p130
    %s133 = sadd.s32 %s132, 1
    %p136 = scmp.eq.s32.totalorder %s14, 1
    %p137 = scmp.ne.s32.totalorder %s132, %s134
    %p138 = scmp.eq.s32.totalorder %s14, 0
    %p139 = por %p137, %p138
    %p140 = scmp.ne.s32.totalorder %s132, %s134
    %p141 = scmp.eq.s32.totalorder %s19, 1
    %p142 = por %p140, %p141
    %p143 = scmp.ne.s32.totalorder %s134, %s135
    %p144 = scmp.eq.s32.totalorder %s19, 0
    %p145 = por %p143, %p144
    %p146 = scmp.ne.s32.totalorder %s134, %s135
    %p147 = scmp.eq.s32.totalorder %s20, 1
    %p148 = por %p146, %p147
    %p150 = scmp.ne.s32.totalorder %s135, %s149
    %p151 = scmp.eq.s32.totalorder %s20, 0
    %p152 = por %p150, %p151
    %s154 = sadd.s32 %s153, 1
    %p157 = scmp.eq.s32.totalorder %s14, 1
    %p158 = scmp.ne.s32.totalorder %s153, %s155
    %p159 = scmp.eq.s32.totalorder %s14, 0
    %p160 = por %p158, %p159
    %p161 = scmp.ne.s32.totalorder %s153, %s155
    %p162 = scmp.eq.s32.totalorder %s19, 1
    %p163 = por %p161, %p162
    %p164 = scmp.ne.s32.totalorder %s155, %s156
    %p165 = scmp.eq.s32.totalorder %s19, 0
    %p166 = por %p164, %p165
    %p167 = scmp.ne.s32.totalorder %s155, %s156
    %p168 = scmp.eq.s32.totalorder %s20, 1
    %p169 = por %p167, %p168
    %p171 = scmp.ne.s32.totalorder %s156, %s170
    %p172 = scmp.eq.s32.totalorder %s20, 0
    %p173 = por %p171, %p172
    %s175 = sadd.s32 %s174, 1
    %p178 = scmp.eq.s32.totalorder %s14, 1
    %p179 = scmp.ne.s32.totalorder %s174, %s176
    %p180 = scmp.eq.s32.totalorder %s14, 0
    %p181 = por %p179, %p180
    %p182 = scmp.ne.s32.totalorder %s174, %s176
    %p183 = scmp.eq.s32.totalorder %s19, 1
    %p184 = por %p182, %p183
    %p185 = scmp.ne.s32.totalorder %s176, %s177
    %p186 = scmp.eq.s32.totalorder %s19, 0
    %p187 = por %p185, %p186
    %p188 = scmp.ne.s32.totalorder %s176, %s177
    %p189 = scmp.eq.s32.totalorder %s20, 1
    %p190 = por %p188, %p189
    %p192 = scmp.ne.s32.totalorder %s177, %s191
    %p193 = scmp.eq.s32.totalorder %s20, 0
    %p194 = por %p192, %p193
    %s195 = ssub.s32 %s14, %s21
    %p196 = scmp.eq.s32.totalorder %s195, 0
    %s198 = sadd.s32 %s197, 1
    %s199 = scalar_select %p196, %s197, %s198
    %p202 = pneg %p196
    %p203 = scmp.eq.s32.totalorder %s14, 1
    %p204 = por %p202, %p203
    %p205 = scmp.ne.s32.totalorder %s197, %s200
    %p206 = scmp.eq.s32.totalorder %s14, 0
    %p207 = por %p205, %p206
    %p208 = scmp.ne.s32.totalorder %s197, %s200
    %p209 = scmp.eq.s32.totalorder %s19, 1
    %p210 = por %p208, %p209
    %p211 = scmp.ne.s32.totalorder %s200, %s201
    %p212 = scmp.eq.s32.totalorder %s19, 0
    %p213 = por %p211, %p212
    %p214 = scmp.ne.s32.totalorder %s200, %s201
    %p215 = scmp.eq.s32.totalorder %s20, 1
    %p216 = por %p214, %p215
    %p218 = scmp.ne.s32.totalorder %s201, %s217
    %p219 = scmp.eq.s32.totalorder %s20, 0
    %p220 = por %p218, %p219
    %p221 = scmp.le.s32.totalorder 1, %s14
    %p222 = scmp.lt.s32.totalorder %s14, 3
    %p223 = pnand %p221, %p222
    %p224 = pneg %p223
    // Predicated region
    $region9: #{squeezenet3d_forward.10} parent=5 // pred_check
      _
    $region10: #{squeezenet3d_forward.10} parent=5 // pred_check_branch
      %226 = sbr.rel (%p223) target = $region12
    $region11: #{squeezenet3d_forward.10} parent=5 // pred_region
      %s227 = ssub.s32 %s14, 1
      // Predicated region
      $region13: #{squeezenet3d_forward.10} parent=11 // pred_check
        %p228 = pneg %p61
      $region14: #{squeezenet3d_forward.10} parent=11 // pred_check_branch
        %230 = sbr.rel (%p228) target = $region16
      $region15: #{squeezenet3d_forward.10} parent=11 // pred_region
        _
      $region16: #{squeezenet3d_forward.10} parent=11 // pred_fallthru
        _
      // Predicated region
      $region17: #{squeezenet3d_forward.10} parent=11 // pred_check
        %p231 = pneg %p82
      $region18: #{squeezenet3d_forward.10} parent=11 // pred_check_branch
        %233 = sbr.rel (%p231) target = $region20
      $region19: #{squeezenet3d_forward.10} parent=11 // pred_region
        _
      $region20: #{squeezenet3d_forward.10} parent=11 // pred_fallthru
        _
      // Predicated region
      $region21: #{squeezenet3d_forward.10} parent=11 // pred_check
        %p234 = pneg %p103
      $region22: #{squeezenet3d_forward.10} parent=11 // pred_check_branch
        %236 = sbr.rel (%p234) target = $region24
      $region23: #{squeezenet3d_forward.10} parent=11 // pred_region
        _
      $region24: #{squeezenet3d_forward.10} parent=11 // pred_fallthru
        _
      // Predicated region
      $region25: #{squeezenet3d_forward.10} parent=11 // pred_check
        %p237 = pneg %p124
      $region26: #{squeezenet3d_forward.10} parent=11 // pred_check_branch
        %239 = sbr.rel (%p237) target = $region28
      $region27: #{squeezenet3d_forward.10} parent=11 // pred_region
        _
      $region28: #{squeezenet3d_forward.10} parent=11 // pred_fallthru
        _
      // Predicated region
      $region29: #{squeezenet3d_forward.10} parent=11 // pred_check
        %p240 = pneg %p145
      $region30: #{squeezenet3d_forward.10} parent=11 // pred_check_branch
        %242 = sbr.rel (%p240) target = $region32
      $region31: #{squeezenet3d_forward.10} parent=11 // pred_region
        _
      $region32: #{squeezenet3d_forward.10} parent=11 // pred_fallthru
        _
      // Predicated region
      $region33: #{squeezenet3d_forward.10} parent=11 // pred_check
        %p243 = pneg %p166
      $region34: #{squeezenet3d_forward.10} parent=11 // pred_check_branch
        %245 = sbr.rel (%p243) target = $region36
      $region35: #{squeezenet3d_forward.10} parent=11 // pred_region
        _
      $region36: #{squeezenet3d_forward.10} parent=11 // pred_fallthru
        _
      // Predicated region
      $region37: #{squeezenet3d_forward.10} parent=11 // pred_check
        %p246 = pneg %p187
      $region38: #{squeezenet3d_forward.10} parent=11 // pred_check_branch
        %248 = sbr.rel (%p246) target = $region40
      $region39: #{squeezenet3d_forward.10} parent=11 // pred_region
        _
      $region40: #{squeezenet3d_forward.10} parent=11 // pred_fallthru
        _
    $region12: #{squeezenet3d_forward.10} parent=5 // pred_fallthru
      _
    %p249 = scmp.lt.s32.totalorder %s14, 2
    // Predicated region
    $region41: #{squeezenet3d_forward.10} parent=5 // pred_check
      %p250 = pneg %p249
    $region42: #{squeezenet3d_forward.10} parent=5 // pred_check_branch
      %252 = sbr.rel (%p250) target = $region44
    $region43: #{squeezenet3d_forward.10} parent=5 // pred_region
      // Predicated region
      $region45: #{squeezenet3d_forward.10} parent=43 // pred_check
        %p253 = pneg %p34
      $region46: #{squeezenet3d_forward.10} parent=43 // pred_check_branch
        %255 = sbr.rel (%p253) target = $region48
      $region47: #{squeezenet3d_forward.10} parent=43 // pred_region
        %p256 = scmp.lt.s32.totalorder %s14, 1
        %s257 = scalar_select %p256, %s14, 1
        %s258 = smul.addr %s257, 7
        %s259 = smul.addr %s258, 4
        %s260 = scalar_lea.vmem %s0, %s259
      $region48: #{squeezenet3d_forward.10} parent=43 // pred_fallthru
        _
    $region44: #{squeezenet3d_forward.10} parent=5 // pred_fallthru
      _
    %p261 = scmp.le.s32.totalorder 1, %s14
    %p262 = scmp.lt.s32.totalorder %s14, 3
    %p263 = pnand %p261, %p262
    %p264 = pneg %p263
    // Predicated region
    $region49: #{squeezenet3d_forward.10} parent=5 // pred_check
      _
    $region50: #{squeezenet3d_forward.10} parent=5 // pred_check_branch
      %266 = sbr.rel (%p263) target = $region52
    $region51: #{squeezenet3d_forward.10} parent=5 // pred_region
      %s267 = ssub.s32 %s14, 1
      %p268 = scmp.lt.s32.totalorder %s19, 1
      %s269 = scalar_select %p268, %s19, 1
      %s270 = smul.addr %s269, 7
      %s271 = smul.addr %s270, 4
      %s272 = scalar_lea.vmem %s0, %s271
      %p273 = pneg %p40
      %p274 = pneg %p37
      %p275 = pneg %p61
      %p276 = pneg %p58
      %p277 = pneg %p82
      %p278 = pneg %p79
      %p279 = pneg %p103
      %p280 = pneg %p100
      %p281 = pneg %p124
      %p282 = pneg %p121
      %p283 = pneg %p145
      %p284 = pneg %p142
      %p285 = pneg %p166
      %p286 = pneg %p163
      %p287 = pneg %p187
      %p288 = pneg %p184
      %p289 = pneg %p213
      %p290 = pneg %p210
      %p291 = scmp.lt.s32.totalorder %s19, 1
      %s292 = scalar_select %p291, %s19, 1
      %s293 = smul.addr %s292, 7
      %s294 = smul.addr %s293, 4
      %s295 = scalar_lea.vmem %s8, %s294
      %p296 = scmp.lt.s32.totalorder %s19, 1
      %s297 = scalar_select %p296, %s19, 1
      %s298 = smul.addr %s297, 7
      %s299 = smul.addr %s298, 4
      %s300 = scalar_lea.vmem %s0, %s299
      %p301 = scmp.lt.s32.totalorder %s19, 1
      %s302 = scalar_select %p301, %s19, 1
      %s303 = smul.addr %s302, 7
      %s304 = smul.addr %s303, 4
      %s305 = scalar_lea.vmem %s8, %s304
      %v309 = vld [vmem:[%s300] sm:$0xf]
      %v310 = vld [vmem:[%s300 + $0x4] sm:$0xf]
      %v311 = vld [vmem:[%s300 + $0x8] sm:$0xf]
      %v312 = vld [vmem:[%s300 + $0xc] sm:$0xf]
      %v313 = vld [vmem:[%s300 + $0x10] sm:$0xf]
      %v314 = vld [vmem:[%s300 + $0x14] sm:$0xf]
      %v315 = vld [vmem:[%s300 + $0x18] sm:$0x1]
      %v316 = vld [vmem:[%s2] sm:$0xf]
      %v317 = vld [vmem:[%s2 + $0x4] sm:$0xf]
      %v318 = vld [vmem:[%s2 + $0x8] sm:$0xf]
      %v319 = vld [vmem:[%s2 + $0xc] sm:$0xf]
      %v320 = vld [vmem:[%s2 + $0x10] sm:$0xf]
      %v321 = vld [vmem:[%s2 + $0x14] sm:$0xf]
      %v322 = vld [vmem:[%s2 + $0x18] sm:$0xf]
      %v323 = vld [vmem:[%s2 + $0x1c] sm:$0xf]
      %v324 = vld [vmem:[%s2 + $0x20] sm:$0xf]
      %v325 = vld [vmem:[%s2 + $0x24] sm:$0xf]
      %v326 = vld [vmem:[%s2 + $0x28] sm:$0xf]
      %v327 = vld [vmem:[%s2 + $0x2c] sm:$0xf]
      %v328 = vld [vmem:[%s2 + $0x30] sm:$0xf]
      %v329 = vld [vmem:[%s2 + $0x34] sm:$0xf]
      %v330 = vld [vmem:[%s2 + $0x38] sm:$0xf]
      %v331 = vld [vmem:[%s2 + $0x3c] sm:$0xf]
      %v332 = vld [vmem:[%s3] sm:$0x1]
      %v334 = vlaneseq
      %v335 = vshrl.u32 %v334, 7
      %v336 = vsub.s32 0, %v335
      %v337 = vrot.slane %v332, %v336
      %v346 = vunpack.c.l.b16 %v309
      %v347 = vunpack.c.l.b16 %v310
      %v348 = vunpack.c.l.b16 %v311
      %v349 = vunpack.c.l.b16 %v312
      %v350 = vunpack.c.l.b16 %v313
      %v351 = vunpack.c.l.b16 %v314
      %v352 = vunpack.c.l.b16 %v315
      %v353 = vpack.c.b16 %v347, %v346
      %v354 = vpack.c.b16 %v349, %v348
      %v355 = vpack.c.b16 %v351, %v350
      %v356 = vpack.c.b16 %v352, %v352
      %v377 = vunpack.c.l.b16 %v316
      %v378 = vunpack.c.l.b16 %v317
      %v379 = vunpack.c.l.b16 %v318
      %v380 = vunpack.c.l.b16 %v319
      %v381 = vunpack.c.l.b16 %v320
      %v382 = vunpack.c.l.b16 %v321
      %v383 = vunpack.c.l.b16 %v322
      %v384 = vunpack.c.l.b16 %v323
      %v385 = vunpack.c.l.b16 %v324
      %v386 = vunpack.c.l.b16 %v325
      %v387 = vunpack.c.l.b16 %v326
      %v388 = vunpack.c.l.b16 %v327
      %v389 = vunpack.c.l.b16 %v328
      %v390 = vunpack.c.l.b16 %v329
      %v391 = vunpack.c.l.b16 %v330
      %v392 = vunpack.c.l.b16 %v331
      %v393 = vpack.c.b16 %v378, %v377
      %v394 = vpack.c.b16 %v380, %v379
      %v395 = vpack.c.b16 %v382, %v381
      %v396 = vpack.c.b16 %v384, %v383
      %v397 = vpack.c.b16 %v386, %v385
      %v398 = vpack.c.b16 %v388, %v387
      %v399 = vpack.c.b16 %v390, %v389
      %v400 = vpack.c.b16 %v392, %v391
      %409 = vmatprep.subr.bf16.mxu0 0
      %410 = vmatpush1.bf16.msra.mxu0 %v393
      %411 = vmatprep.subr.bf16.mxu0 0
      %412 = vmatpush1.bf16.msra.mxu0 %v394
      %413 = vmatprep.subr.bf16.mxu0 0
      %414 = vmatpush1.bf16.msra.mxu0 %v395
      %415 = vmatprep.subr.bf16.mxu0 0
      %416 = vmatpush1.bf16.msra.mxu0 %v396
      %417 = vmatprep.subr.bf16.mxu0 0
      %418 = vmatpush1.bf16.msra.mxu0 %v397
      %419 = vmatprep.subr.bf16.mxu0 0
      %420 = vmatpush1.bf16.msra.mxu0 %v398
      %421 = vmatprep.subr.bf16.mxu0 0
      %422 = vmatpush1.bf16.msra.mxu0 %v399
      %423 = vmatprep.subr.bf16.mxu0 0
      %424 = vmatpush1.bf16.msra.mxu0 %v400
      %425 = vmatprep.subr.bf16.mxu0 0
      %426 = vmatpush1.bf16.msra.mxu0 0
      %427 = vmatprep.subr.bf16.mxu0 0
      %428 = vmatpush1.bf16.msra.mxu0 0
      %429 = vmatprep.subr.bf16.mxu0 0
      %430 = vmatpush1.bf16.msra.mxu0 0
      %431 = vmatprep.subr.bf16.mxu0 0
      %432 = vmatpush1.bf16.msra.mxu0 0
      %433 = vmatprep.subr.bf16.mxu0 0
      %434 = vmatpush1.bf16.msra.mxu0 0
      %435 = vmatprep.subr.bf16.mxu0 0
      %436 = vmatpush1.bf16.msra.mxu0 0
      %437 = vmatprep.subr.bf16.mxu0 0
      %438 = vmatpush1.bf16.msra.mxu0 0
      %439 = vmatprep.subr.bf16.mxu0 0
      %440 = vmatpush1.bf16.msra.mxu0 0
      %441 = vmatprep.mubr.bf16.mxu0 0
      %442 = vmatmul.mubr.bf16.gmra.mrb[0].mxu0 %v353
      %v443 = vpop.f32.mrb[0].mxu0
      %v444 = vadd.f32 %v337, %v443
      %v445 = vpop.f32.mrb[0].mxu0
      %v446 = vpop.f32.mrb[0].mxu0
      %v447 = vadd.f32 %v337, %v446
      %v448 = vpop.f32.mrb[0].mxu0
      %449 = vmatprep.mubr.bf16.mxu0 0
      %450 = vmatmul.mubr.bf16.gmra.mrb[0].mxu0 %v354
      %v451 = vpop.f32.mrb[0].mxu0
      %v452 = vadd.f32 %v337, %v451
      %v453 = vpop.f32.mrb[0].mxu0
      %v454 = vpop.f32.mrb[0].mxu0
      %v455 = vadd.f32 %v337, %v454
      %v456 = vpop.f32.mrb[0].mxu0
      %457 = vmatprep.mubr.bf16.mxu0 0
      %458 = vmatmul.mubr.bf16.gmra.mrb[0].mxu0 %v355
      %v459 = vpop.f32.mrb[0].mxu0
      %v460 = vadd.f32 %v337, %v459
      %v461 = vpop.f32.mrb[0].mxu0
      %v462 = vpop.f32.mrb[0].mxu0
      %v463 = vadd.f32 %v337, %v462
      %v464 = vpop.f32.mrb[0].mxu0
      %465 = vmatprep.mubr.bf16.mxu0 0
      %466 = vmatmul.mubr.bf16.gmra.mrb[0].mxu0 %v356
      %v467 = vpop.f32.mrb[0].mxu0
      %v468 = vadd.f32 %v337, %v467
      %v469 = vpop.f32.mrb[0].mxu0
      %v470 = vpop.f32.mrb[0].mxu0
      %v471 = vpop.f32.mrb[0].mxu0
      %472 = vdwg.mxu0
      %v473 = vmax.f32 %v444, 0.0
      %v474 = vmax.f32 %v447, 0.0
      %v475 = vmax.f32 %v452, 0.0
      %v476 = vmax.f32 %v455, 0.0
      %v477 = vmax.f32 %v460, 0.0
      %v478 = vmax.f32 %v463, 0.0
      %v479 = vmax.f32 %v468, 0.0
      %v480 = vpack.c.bf16 %v474, %v473
      %v481 = vpack.c.bf16 %v476, %v475
      %v482 = vpack.c.bf16 %v478, %v477
      %v483 = vpack.c.bf16 %v479, %v479
      %v484 = vld [vmem:[%s4] sm:$0xf]
      %v485 = vld [vmem:[%s4 + $0x4] sm:$0xf]
      %v486 = vld [vmem:[%s5] sm:$0x1]
      %v488 = vlaneseq
      %v489 = vshrl.u32 %v488, 7
      %v490 = vsub.s32 0, %v489
      %v491 = vrot.slane %v486, %v490
      %v495 = vunpack.c.l.b16 %v484
      %v496 = vunpack.c.l.b16 %v485
      %v497 = vpack.c.b16 %v496, %v495
      %vm499 = vcmask 130048
      %v501 = vsel %vm499, %v480, 0
      %v504 = vsel %vm499, %v481, 0
      %v507 = vsel %vm499, %v482, 0
      %v510 = vsel %vm499, %v483, 0
      %512 = vmatprep.subr.bf16.mxu0 0
      %513 = vmatpush1.bf16.msra.mxu0 %v497
      %514 = vmatprep.subr.bf16.mxu0 0
      %515 = vmatpush1.bf16.msra.mxu0 0
      %516 = vmatprep.subr.bf16.mxu0 0
      %517 = vmatpush1.bf16.msra.mxu0 0
      %518 = vmatprep.subr.bf16.mxu0 0
      %519 = vmatpush1.bf16.msra.mxu0 0
      %520 = vmatprep.subr.bf16.mxu0 0
      %521 = vmatpush1.bf16.msra.mxu0 0
      %522 = vmatprep.subr.bf16.mxu0 0
      %523 = vmatpush1.bf16.msra.mxu0 0
      %524 = vmatprep.subr.bf16.mxu0 0
      %525 = vmatpush1.bf16.msra.mxu0 0
      %526 = vmatprep.subr.bf16.mxu0 0
      %527 = vmatpush1.bf16.msra.mxu0 0
      %528 = vmatprep.subr.bf16.mxu0 0
      %529 = vmatpush1.bf16.msra.mxu0 0
      %530 = vmatprep.subr.bf16.mxu0 0
      %531 = vmatpush1.bf16.msra.mxu0 0
      %532 = vmatprep.subr.bf16.mxu0 0
      %533 = vmatpush1.bf16.msra.mxu0 0
      %534 = vmatprep.subr.bf16.mxu0 0
      %535 = vmatpush1.bf16.msra.mxu0 0
      %536 = vmatprep.subr.bf16.mxu0 0
      %537 = vmatpush1.bf16.msra.mxu0 0
      %538 = vmatprep.subr.bf16.mxu0 0
      %539 = vmatpush1.bf16.msra.mxu0 0
      %540 = vmatprep.subr.bf16.mxu0 0
      %541 = vmatpush1.bf16.msra.mxu0 0
      %542 = vmatprep.subr.bf16.mxu0 0
      %543 = vmatpush1.bf16.msra.mxu0 0
      %544 = vmatprep.mubr.bf16.mxu0 0
      %545 = vmatmul.mubr.bf16.gmra.mrb[0].mxu0 %v501
      %v546 = vpop.f32.mrb[0].mxu0
      %v547 = vadd.f32 %v491, %v546
      %v548 = vpop.f32.mrb[0].mxu0
      %v549 = vpop.f32.mrb[0].mxu0
      %v550 = vadd.f32 %v491, %v549
      %v551 = vpop.f32.mrb[0].mxu0
      %552 = vmatprep.mubr.bf16.mxu0 0
      %553 = vmatmul.mubr.bf16.gmra.mrb[0].mxu0 %v504
      %v554 = vpop.f32.mrb[0].mxu0
      %v555 = vadd.f32 %v491, %v554
      %v556 = vpop.f32.mrb[0].mxu0
      %v557 = vpop.f32.mrb[0].mxu0
      %v558 = vadd.f32 %v491, %v557
      %v559 = vpop.f32.mrb[0].mxu0
      %560 = vmatprep.mubr.bf16.mxu0 0
      %561 = vmatmul.mubr.bf16.gmra.mrb[0].mxu0 %v507
      %v562 = vpop.f32.mrb[0].mxu0
      %v563 = vadd.f32 %v491, %v562
      %v564 = vpop.f32.mrb[0].mxu0
      %v565 = vpop.f32.mrb[0].mxu0
      %v566 = vadd.f32 %v491, %v565
      %v567 = vpop.f32.mrb[0].mxu0
      %568 = vmatprep.mubr.bf16.mxu0 0
      %569 = vmatmul.mubr.bf16.gmra.mrb[0].mxu0 %v510
      %v570 = vpop.f32.mrb[0].mxu0
      %v571 = vadd.f32 %v491, %v570
      %v572 = vpop.f32.mrb[0].mxu0
      %v573 = vpop.f32.mrb[0].mxu0
      %v574 = vpop.f32.mrb[0].mxu0
      %575 = vdwg.mxu0
      %v576 = vmax.f32 %v547, 0.0
      %v577 = vmax.f32 %v550, 0.0
      %v578 = vmax.f32 %v555, 0.0
      %v579 = vmax.f32 %v558, 0.0
      %v580 = vmax.f32 %v563, 0.0
      %v581 = vmax.f32 %v566, 0.0
      %v582 = vmax.f32 %v571, 0.0
      %vm583 = vcmask 125952
      %584 = vst.msk [vmem:[#allocation2] sm:$0xf] %vm583, 0
      %585 = vst.msk [vmem:[#allocation2 + $0x4] sm:$0xf] %vm583, 0
      %586 = vst.msk [vmem:[#allocation2 + $0x8] sm:$0xf] %vm583, 0
      %587 = vst.msk [vmem:[#allocation2 + $0xc] sm:$0xf] %vm583, 0
      %588 = vst.msk [vmem:[#allocation2 + $0x10] sm:$0xf] %vm583, 0
      %589 = vst.msk [vmem:[#allocation2 + $0x14] sm:$0xf] %vm583, 0
      %590 = vst.msk [vmem:[#allocation2 + $0x18] sm:$0xf] %vm583, 0
      %591 = vst.msk [vmem:[#allocation2 + $0x1c] sm:$0xf] %vm583, 0
      %vm592 = vcmask 122880
      %vm593 = vsmask.f32 256
      %vm594 = vmand %vm592, %vm593
      %v595 = vld [vmem:[#allocation2 + $0x20] sm:$0x1]
      %v596 = vsel %vm594, 0, %v595
      %597 = vst [vmem:[#allocation2 + $0x20] sm:$0x1] %v596
      %v602 = vunpack.c.l.b16 %v480
      %v603 = vunpack.c.h.b16 %v480
      %v604 = vunpack.c.l.b16 %v481
      %v605 = vunpack.c.h.b16 %v481
      %v606 = vunpack.c.l.b16 %v482
      %v607 = vunpack.c.h.b16 %v482
      %v608 = vunpack.c.l.b16 %v483
      %v609 = vpack.c.b16 %v602, %v602
      %v610 = vpack.c.b16 %v603, %v603
      %v611 = vpack.c.b16 %v604, %v604
      %v612 = vpack.c.b16 %v605, %v605
      %v613 = vpack.c.b16 %v606, %v606
      %v614 = vpack.c.b16 %v607, %v607
      %v615 = vpack.c.b16 %v608, %v608
      %623 = vst.msk [vmem:[#allocation2 + $0x4] sm:$0xf] %vm583, %v609
      %624 = vst.msk [vmem:[#allocation2 + $0x8] sm:$0xf] %vm583, %v610
      %625 = vst.msk [vmem:[#allocation2 + $0xc] sm:$0xf] %vm583, %v611
      %626 = vst.msk [vmem:[#allocation2 + $0x10] sm:$0xf] %vm583, %v612
      %627 = vst.msk [vmem:[#allocation2 + $0x14] sm:$0xf] %vm583, %v613
      %628 = vst.msk [vmem:[#allocation2 + $0x18] sm:$0xf] %vm583, %v614
      %v629 = vld [vmem:[#allocation2 + $0x1c] sm:$0x1]
      %v630 = vsel %vm594, %v615, %v629
      %631 = vst [vmem:[#allocation2 + $0x1c] sm:$0x1] %v630
      %v632 = vld [vmem:[%s1] sm:$0xff]
      %v633 = vld [vmem:[%s1 + $0x8] sm:$0xff]
      %v634 = vld [vmem:[%s1 + $0x10] sm:$0xff]
      %v635 = vld [vmem:[%s1 + $0x18] sm:$0xff]
      %v636 = vld [vmem:[%s1 + $0x20] sm:$0xff]
      %v637 = vld [vmem:[%s1 + $0x28] sm:$0xff]
      %v638 = vld [vmem:[%s1 + $0x30] sm:$0x1]
      %v639 = vld [vmem:[#allocation2] sm:$0xf]
      %v640 = vld [vmem:[#allocation2 + $0x4] sm:$0xf]
      %v641 = vld [vmem:[#allocation2 + $0x8] sm:$0xf]
      %v642 = vld [vmem:[#allocation2 + $0xc] sm:$0xf]
      %v643 = vld [vmem:[#allocation2 + $0x10] sm:$0xf]
      %v644 = vld [vmem:[#allocation2 + $0x14] sm:$0xf]
      %v645 = vld [vmem:[#allocation2 + $0x18] sm:$0x1]
      %vm646 = vcmp.ge.s32.totalorder %v632, 1
      %vm647 = vcmp.ge.s32.totalorder %v633, 1
      %vm648 = vcmp.ge.s32.totalorder %v634, 1
      %vm649 = vcmp.ge.s32.totalorder %v635, 1
      %vm650 = vcmp.ge.s32.totalorder %v636, 1
      %vm651 = vcmp.ge.s32.totalorder %v637, 1
      %vm652 = vcmp.ge.s32.totalorder %v638, 1
      %v653 = vsel %vm646, 1, 0
      %v654 = vsel %vm647, 1, 0
      %v655 = vsel %vm648, 1, 0
      %v656 = vsel %vm649, 1, 0
      %v657 = vsel %vm650, 1, 0
      %v658 = vsel %vm651, 1, 0
      %v659 = vsel %vm652, 1, 0
      %660 = vset.pattern.permute.xlu0 0
      %661 = vperm.xlu0 %660, %v653
      %v662 = vpop.permute.xlu0 %661
      %663 = vset.pattern.permute.xlu0 0
      %664 = vperm.xlu0 %663, %v654
      %v665 = vpop.permute.xlu0 %664
      %666 = vset.pattern.permute.xlu0 0
      %667 = vperm.xlu0 %666, %v655
      %v668 = vpop.permute.xlu0 %667
      %669 = vset.pattern.permute.xlu0 0
      %670 = vperm.xlu0 %669, %v656
      %v671 = vpop.permute.xlu0 %670
      %672 = vset.pattern.permute.xlu0 0
      %673 = vperm.xlu0 %672, %v657
      %v674 = vpop.permute.xlu0 %673
      %675 = vset.pattern.permute.xlu0 0
      %676 = vperm.xlu0 %675, %v658
      %v677 = vpop.permute.xlu0 %676
      %678 = vset.pattern.permute.xlu0 0
      %679 = vperm.xlu0 %678, %v659
      %v680 = vpop.permute.xlu0 %679
      %vm681 = vcmp.eq.s32.totalorder %v662, 1
      %vm682 = vcmp.eq.s32.totalorder %v665, 1
      %vm683 = vcmp.eq.s32.totalorder %v668, 1
      %vm684 = vcmp.eq.s32.totalorder %v671, 1
      %vm685 = vcmp.eq.s32.totalorder %v674, 1
      %vm686 = vcmp.eq.s32.totalorder %v677, 1
      %vm687 = vcmp.eq.s32.totalorder %v680, 1
      %vm688 = vmpackc.low %vm681, %vm681
      %vm689 = vmpackc.low %vm682, %vm682
      %vm690 = vmpackc.low %vm683, %vm683
      %vm691 = vmpackc.low %vm684, %vm684
      %vm692 = vmpackc.low %vm685, %vm685
      %vm693 = vmpackc.low %vm686, %vm686
      %vm694 = vmpackc.low %vm687, %vm687
      %v695 = vsel %vm688, %v639, 0
      %v696 = vsel %vm689, %v640, 0
      %v697 = vsel %vm690, %v641, 0
      %v698 = vsel %vm691, %v642, 0
      %v699 = vsel %vm692, %v643, 0
      %v700 = vsel %vm693, %v644, 0
      %v701 = vsel %vm694, %v645, 0
      %v702 = vld [vmem:[%s6] sm:$0xf]
      %v703 = vld [vmem:[%s6 + $0x4] sm:$0xf]
      %s704 = scalar_lea.vmem %s6, 8
      %v705 = vld [vmem:[%s704] sm:$0xf]
      %v706 = vld [vmem:[%s704 + $0x4] sm:$0xf]
      %v714 = vunpack.c.l.b16 %v639
      %v715 = vunpack.c.l.b16 %v640
      %v716 = vunpack.c.l.b16 %v641
      %v717 = vunpack.c.l.b16 %v642
      %v718 = vunpack.c.l.b16 %v643
      %v719 = vunpack.c.l.b16 %v644
      %v720 = vunpack.c.l.b16 %v645
      %v721 = vpack.c.b16 %v715, %v714
      %v722 = vpack.c.b16 %v717, %v716
      %v723 = vpack.c.b16 %v719, %v718
      %v724 = vpack.c.b16 %v720, %v720
      %vm725 = vsmask.f32 7424
      %v727 = vshrl.u32 %v721, 16
      %v729 = vshll.u32 %v721, 16
      %v731 = vrot.slane %v729, 1
      %v732 = vor.u32 %v727, %v731
      %v734 = vshll.u32 %v722, 16
      %v736 = vrot.slane %v734, 1
      %v737 = vsel %vm725, %v732, %v736
      %v738 = vshrl.u32 %v722, 16
      %v740 = vor.u32 %v738, %v736
      %v742 = vshll.u32 %v723, 16
      %v744 = vrot.slane %v742, 1
      %v745 = vsel %vm725, %v740, %v744
      %v746 = vshrl.u32 %v723, 16
      %v748 = vor.u32 %v746, %v744
      %v750 = vshll.u32 %v724, 16
      %v752 = vrot.slane %v750, 1
      %v753 = vsel %vm725, %v748, %v752
      %v754 = vshrl.u32 %v724, 16
      %v758 = vunpack.c.l.b16 %v705
      %v759 = vunpack.c.l.b16 %v706
      %v760 = vpack.c.b16 %v759, %v758
      %v763 = vsel %vm499, %v737, 0
      %v766 = vsel %vm499, %v745, 0
      %v769 = vsel %vm499, %v753, 0
      %v772 = vsel %vm499, %v754, 0
      %774 = vmatprep.subr.bf16.mxu0 0
      %775 = vmatpush1.bf16.msra.mxu0 %v760
      %776 = vmatprep.subr.bf16.mxu0 0
      %777 = vmatpush1.bf16.msra.mxu0 0
      %778 = vmatprep.subr.bf16.mxu0 0
      %779 = vmatpush1.bf16.msra.mxu0 0
      %780 = vmatprep.subr.bf16.mxu0 0
      %781 = vmatpush1.bf16.msra.mxu0 0
      %782 = vmatprep.subr.bf16.mxu0 0
      %783 = vmatpush1.bf16.msra.mxu0 0
      %784 = vmatprep.subr.bf16.mxu0 0
      %785 = vmatpush1.bf16.msra.mxu0 0
      %786 = vmatprep.subr.bf16.mxu0 0
      %787 = vmatpush1.bf16.msra.mxu0 0
      %788 = vmatprep.subr.bf16.mxu0 0
      %789 = vmatpush1.bf16.msra.mxu0 0
      %790 = vmatprep.subr.bf16.mxu0 0
      %791 = vmatpush1.bf16.msra.mxu0 0
      %792 = vmatprep.subr.bf16.mxu0 0
      %793 = vmatpush1.bf16.msra.mxu0 0
      %794 = vmatprep.subr.bf16.mxu0 0
      %795 = vmatpush1.bf16.msra.mxu0 0
      %796 = vmatprep.subr.bf16.mxu0 0
      %797 = vmatpush1.bf16.msra.mxu0 0
      %798 = vmatprep.subr.bf16.mxu0 0
      %799 = vmatpush1.bf16.msra.mxu0 0
      %800 = vmatprep.subr.bf16.mxu0 0
      %801 = vmatpush1.bf16.msra.mxu0 0
      %802 = vmatprep.subr.bf16.mxu0 0
      %803 = vmatpush1.bf16.msra.mxu0 0
      %804 = vmatprep.subr.bf16.mxu0 0
      %805 = vmatpush1.bf16.msra.mxu0 0
      %806 = vmatprep.mubr.bf16.mxu0 0
      %807 = vmatmul.mubr.bf16.gmra.mrb[0].mxu0 %v763
      %v808 = vpop.f32.mrb[0].mxu0
      %v809 = vadd.f32 0.0, %v808
      %v810 = vpop.f32.mrb[0].mxu0
      %v811 = vpop.f32.mrb[0].mxu0
      %v812 = vadd.f32 0.0, %v811
      %v813 = vpop.f32.mrb[0].mxu0
      %814 = vmatprep.mubr.bf16.mxu0 0
      %815 = vmatmul.mubr.bf16.gmra.mrb[0].mxu0 %v766
      %v816 = vpop.f32.mrb[0].mxu0
      %v817 = vadd.f32 0.0, %v816
      %v818 = vpop.f32.mrb[0].mxu0
      %v819 = vpop.f32.mrb[0].mxu0
      %v820 = vadd.f32 0.0, %v819
      %v821 = vpop.f32.mrb[0].mxu0
      %822 = vmatprep.mubr.bf16.mxu0 0
      %823 = vmatmul.mubr.bf16.gmra.mrb[0].mxu0 %v769
      %v824 = vpop.f32.mrb[0].mxu0
      %v825 = vadd.f32 0.0, %v824
      %v826 = vpop.f32.mrb[0].mxu0
      %v827 = vpop.f32.mrb[0].mxu0
      %v828 = vadd.f32 0.0, %v827
      %v829 = vpop.f32.mrb[0].mxu0
      %830 = vmatprep.mubr.bf16.mxu0 0
      %831 = vmatmul.mubr.bf16.gmra.mrb[0].mxu0 %v772
      %v832 = vpop.f32.mrb[0].mxu0
      %v833 = vadd.f32 0.0, %v832
      %v834 = vpop.f32.mrb[0].mxu0
      %v835 = vpop.f32.mrb[0].mxu0
      %v836 = vpop.f32.mrb[0].mxu0
      %837 = vdwg.mxu0
      %v845 = vunpack.c.l.b16 %v695
      %v846 = vunpack.c.l.b16 %v696
      %v847 = vunpack.c.l.b16 %v697
      %v848 = vunpack.c.l.b16 %v698
      %v849 = vunpack.c.l.b16 %v699
      %v850 = vunpack.c.l.b16 %v700
      %v851 = vunpack.c.l.b16 %v701
      %v852 = vpack.c.b16 %v846, %v845
      %v853 = vpack.c.b16 %v848, %v847
      %v854 = vpack.c.b16 %v850, %v849
      %v855 = vpack.c.b16 %v851, %v851
      %v858 = vunpack.c.l.b16 %v702
      %v859 = vunpack.c.l.b16 %v703
      %v860 = vpack.c.b16 %v859, %v858
      %v863 = vsel %vm499, %v852, 0
      %v866 = vsel %vm499, %v853, 0
      %v869 = vsel %vm499, %v854, 0
      %v872 = vsel %vm499, %v855, 0
      %874 = vmatprep.subr.bf16.mxu0 0
      %875 = vmatpush1.bf16.msra.mxu0 %v860
      %876 = vmatprep.subr.bf16.mxu0 0
      %877 = vmatpush1.bf16.msra.mxu0 0
      %878 = vmatprep.subr.bf16.mxu0 0
      %879 = vmatpush1.bf16.msra.mxu0 0
      %880 = vmatprep.subr.bf16.mxu0 0
      %881 = vmatpush1.bf16.msra.mxu0 0
      %882 = vmatprep.subr.bf16.mxu0 0
      %883 = vmatpush1.bf16.msra.mxu0 0
      %884 = vmatprep.subr.bf16.mxu0 0
      %885 = vmatpush1.bf16.msra.mxu0 0
      %886 = vmatprep.subr.bf16.mxu0 0
      %887 = vmatpush1.bf16.msra.mxu0 0
      %888 = vmatprep.subr.bf16.mxu0 0
      %889 = vmatpush1.bf16.msra.mxu0 0
      %890 = vmatprep.subr.bf16.mxu0 0
      %891 = vmatpush1.bf16.msra.mxu0 0
      %892 = vmatprep.subr.bf16.mxu0 0
      %893 = vmatpush1.bf16.msra.mxu0 0
      %894 = vmatprep.subr.bf16.mxu0 0
      %895 = vmatpush1.bf16.msra.mxu0 0
      %896 = vmatprep.subr.bf16.mxu0 0
      %897 = vmatpush1.bf16.msra.mxu0 0
      %898 = vmatprep.subr.bf16.mxu0 0
      %899 = vmatpush1.bf16.msra.mxu0 0
      %900 = vmatprep.subr.bf16.mxu0 0
      %901 = vmatpush1.bf16.msra.mxu0 0
      %902 = vmatprep.subr.bf16.mxu0 0
      %903 = vmatpush1.bf16.msra.mxu0 0
      %904 = vmatprep.subr.bf16.mxu0 0
      %905 = vmatpush1.bf16.msra.mxu0 0
      %906 = vmatprep.mubr.bf16.mxu0 0
      %907 = vmatmul.mubr.bf16.gmra.mrb[0].mxu0 %v863
      %v908 = vpop.f32.mrb[0].mxu0
      %v909 = vadd.f32 %v809, %v908
      %v910 = vpop.f32.mrb[0].mxu0
      %v911 = vpop.f32.mrb[0].mxu0
      %v912 = vadd.f32 %v812, %v911
      %v913 = vpop.f32.mrb[0].mxu0
      %914 = vmatprep.mubr.bf16.mxu0 0
      %915 = vmatmul.mubr.bf16.gmra.mrb[0].mxu0 %v866
      %v916 = vpop.f32.mrb[0].mxu0
      %v917 = vadd.f32 %v817, %v916
      %v918 = vpop.f32.mrb[0].mxu0
      %v919 = vpop.f32.mrb[0].mxu0
      %v920 = vadd.f32 %v820, %v919
      %v921 = vpop.f32.mrb[0].mxu0
      %922 = vmatprep.mubr.bf16.mxu0 0
      %923 = vmatmul.mubr.bf16.gmra.mrb[0].mxu0 %v869
      %v924 = vpop.f32.mrb[0].mxu0
      %v925 = vadd.f32 %v825, %v924
      %v926 = vpop.f32.mrb[0].mxu0
      %v927 = vpop.f32.mrb[0].mxu0
      %v928 = vadd.f32 %v828, %v927
      %v929 = vpop.f32.mrb[0].mxu0
      %930 = vmatprep.mubr.bf16.mxu0 0
      %931 = vmatmul.mubr.bf16.gmra.mrb[0].mxu0 %v872
      %v932 = vpop.f32.mrb[0].mxu0
      %v933 = vadd.f32 %v833, %v932
      %v934 = vpop.f32.mrb[0].mxu0
      %v935 = vpop.f32.mrb[0].mxu0
      %v936 = vpop.f32.mrb[0].mxu0
      %937 = vdwg.mxu0
      %v938 = vld [vmem:[#allocation2] sm:$0xe]
      %v939 = vld [vmem:[#allocation2 + $0x18] sm:$0x3]
      %vm940 = vcmp.le.s32.totalorder %v632, 5
      %vm941 = vcmp.le.s32.totalorder %v633, 5
      %vm942 = vcmp.le.s32.totalorder %v634, 5
      %vm943 = vcmp.le.s32.totalorder %v635, 5
      %vm944 = vcmp.le.s32.totalorder %v636, 5
      %vm945 = vcmp.le.s32.totalorder %v637, 5
      %vm946 = vcmp.le.s32.totalorder %v638, 5
      %v947 = vsel %vm940, 1, 0
      %v948 = vsel %vm941, 1, 0
      %v949 = vsel %vm942, 1, 0
      %v950 = vsel %vm943, 1, 0
      %v951 = vsel %vm944, 1, 0
      %v952 = vsel %vm945, 1, 0
      %v953 = vsel %vm946, 1, 0
      %954 = vset.pattern.permute.xlu0 0
      %955 = vperm.xlu0 %954, %v947
      %v956 = vpop.permute.xlu0 %955
      %957 = vset.pattern.permute.xlu0 0
      %958 = vperm.xlu0 %957, %v948
      %v959 = vpop.permute.xlu0 %958
      %960 = vset.pattern.permute.xlu0 0
      %961 = vperm.xlu0 %960, %v949
      %v962 = vpop.permute.xlu0 %961
      %963 = vset.pattern.permute.xlu0 0
      %964 = vperm.xlu0 %963, %v950
      %v965 = vpop.permute.xlu0 %964
      %966 = vset.pattern.permute.xlu0 0
      %967 = vperm.xlu0 %966, %v951
      %v968 = vpop.permute.xlu0 %967
      %969 = vset.pattern.permute.xlu0 0
      %970 = vperm.xlu0 %969, %v952
      %v971 = vpop.permute.xlu0 %970
      %972 = vset.pattern.permute.xlu0 0
      %973 = vperm.xlu0 %972, %v953
      %v974 = vpop.permute.xlu0 %973
      %vm975 = vcmp.eq.s32.totalorder %v956, 1
      %vm976 = vcmp.eq.s32.totalorder %v959, 1
      %vm977 = vcmp.eq.s32.totalorder %v962, 1
      %vm978 = vcmp.eq.s32.totalorder %v965, 1
      %vm979 = vcmp.eq.s32.totalorder %v968, 1
      %vm980 = vcmp.eq.s32.totalorder %v971, 1
      %vm981 = vcmp.eq.s32.totalorder %v974, 1
      %vm982 = vmpackc.low %vm975, %vm975
      %vm983 = vmpackc.low %vm976, %vm976
      %vm984 = vmpackc.low %vm977, %vm977
      %vm985 = vmpackc.low %vm978, %vm978
      %vm986 = vmpackc.low %vm979, %vm979
      %vm987 = vmpackc.low %vm980, %vm980
      %vm988 = vmpackc.low %vm981, %vm981
      %v989 = vsel %vm982, 65537, 0
      %v990 = vsel %vm983, 65537, 0
      %v991 = vsel %vm984, 65537, 0
      %v992 = vsel %vm985, 65537, 0
      %v993 = vsel %vm986, 65537, 0
      %v994 = vsel %vm987, 65537, 0
      %v995 = vsel %vm988, 65537, 0
      %vm996 = vcmask 1040384
      %vm997 = vcmask 1044484
      %vm998 = vmor %vm996, %vm997
      %v999 = vrot.slane %v989, 7
      %v1000 = vrot.slane %v999, 4
      %v1001 = vrot.slane %v990, 7
      %v1002 = vsel %vm998, %v1000, %v1001
      %v1003 = vrot.slane %v1001, 4
      %v1004 = vrot.slane %v991, 7
      %v1005 = vsel %vm998, %v1003, %v1004
      %v1006 = vrot.slane %v1004, 4
      %v1007 = vrot.slane %v992, 7
      %v1008 = vsel %vm998, %v1006, %v1007
      %v1009 = vrot.slane %v1007, 4
      %v1010 = vrot.slane %v993, 7
      %v1011 = vsel %vm998, %v1009, %v1010
      %v1012 = vrot.slane %v1010, 4
      %v1013 = vrot.slane %v994, 7
      %v1014 = vsel %vm998, %v1012, %v1013
      %v1015 = vrot.slane %v1013, 4
      %v1016 = vrot.slane %v995, 7
      %v1017 = vsel %vm998, %v1015, %v1016
      %vm1018 = vcmp.ne.s16.totalorder %v999, 0
      %vm1019 = vcmp.ne.s16.totalorder %v1002, 0
      %vm1020 = vcmp.ne.s16.totalorder %v1005, 0
      %vm1021 = vcmp.ne.s16.totalorder %v1008, 0
      %vm1022 = vcmp.ne.s16.totalorder %v1011, 0
      %vm1023 = vcmp.ne.s16.totalorder %v1014, 0
      %vm1024 = vcmp.ne.s16.totalorder %v1017, 0
      %v1025 = vsel %vm1018, %v938, 0
      %v1026 = vsel %vm1019, %v640, 0
      %v1027 = vsel %vm1020, %v641, 0
      %v1028 = vsel %vm1021, %v642, 0
      %v1029 = vsel %vm1022, %v643, 0
      %v1030 = vsel %vm1023, %v644, 0
      %v1031 = vsel %vm1024, %v939, 0
      %s1032 = scalar_lea.vmem %s6, 16
      %v1033 = vld [vmem:[%s1032] sm:$0xf]
      %v1034 = vld [vmem:[%s1032 + $0x4] sm:$0xf]
      %v1042 = vunpack.c.l.b16 %v1025
      %v1043 = vunpack.c.l.b16 %v1026
      %v1044 = vunpack.c.l.b16 %v1027
      %v1045 = vunpack.c.l.b16 %v1028
      %v1046 = vunpack.c.l.b16 %v1029
      %v1047 = vunpack.c.l.b16 %v1030
      %v1048 = vunpack.c.l.b16 %v1031
      %v1049 = vpack.c.b16 %v1043, %v1042
      %v1050 = vpack.c.b16 %v1045, %v1044
      %v1051 = vpack.c.b16 %v1047, %v1046
      %v1052 = vpack.c.b16 %v1048, %v1048
      %vm1053 = vcmask 1046528
      %v1054 = vrot.slane %v1049, 1
      %v1055 = vrot.slane %v1050, 1
      %v1056 = vsel %vm1053, %v1054, %v1055
      %v1057 = vrot.slane %v1051, 1
      %v1058 = vsel %vm1053, %v1055, %v1057
      %v1059 = vrot.slane %v1052, 1
      %v1060 = vsel %vm1053, %v1057, %v1059
      %v1063 = vunpack.c.l.b16 %v1033
      %v1064 = vunpack.c.l.b16 %v1034
      %v1065 = vpack.c.b16 %v1064, %v1063
      %v1068 = vsel %vm499, %v1056, 0
      %v1071 = vsel %vm499, %v1058, 0
      %v1074 = vsel %vm499, %v1060, 0
      %v1077 = vsel %vm499, %v1059, 0
      %1079 = vmatprep.subr.bf16.mxu0 0
      %1080 = vmatpush1.bf16.msra.mxu0 %v1065
      %1081 = vmatprep.subr.bf16.mxu0 0
      %1082 = vmatpush1.bf16.msra.mxu0 0
      %1083 = vmatprep.subr.bf16.mxu0 0
      %1084 = vmatpush1.bf16.msra.mxu0 0
      %1085 = vmatprep.subr.bf16.mxu0 0
      %1086 = vmatpush1.bf16.msra.mxu0 0
      %1087 = vmatprep.subr.bf16.mxu0 0
      %1088 = vmatpush1.bf16.msra.mxu0 0
      %1089 = vmatprep.subr.bf16.mxu0 0
      %1090 = vmatpush1.bf16.msra.mxu0 0
      %1091 = vmatprep.subr.bf16.mxu0 0
      %1092 = vmatpush1.bf16.msra.mxu0 0
      %1093 = vmatprep.subr.bf16.mxu0 0
      %1094 = vmatpush1.bf16.msra.mxu0 0
      %1095 = vmatprep.subr.bf16.mxu0 0
      %1096 = vmatpush1.bf16.msra.mxu0 0
      %1097 = vmatprep.subr.bf16.mxu0 0
      %1098 = vmatpush1.bf16.msra.mxu0 0
      %1099 = vmatprep.subr.bf16.mxu0 0
      %1100 = vmatpush1.bf16.msra.mxu0 0
      %1101 = vmatprep.subr.bf16.mxu0 0
      %1102 = vmatpush1.bf16.msra.mxu0 0
      %1103 = vmatprep.subr.bf16.mxu0 0
      %1104 = vmatpush1.bf16.msra.mxu0 0
      %1105 = vmatprep.subr.bf16.mxu0 0
      %1106 = vmatpush1.bf16.msra.mxu0 0
      %1107 = vmatprep.subr.bf16.mxu0 0
      %1108 = vmatpush1.bf16.msra.mxu0 0
      %1109 = vmatprep.subr.bf16.mxu0 0
      %1110 = vmatpush1.bf16.msra.mxu0 0
      %1111 = vmatprep.mubr.bf16.mxu0 0
      %1112 = vmatmul.mubr.bf16.gmra.mrb[0].mxu0 %v1068
      %v1113 = vpop.f32.mrb[0].mxu0
      %v1114 = vadd.f32 0.0, %v1113
      %v1115 = vpop.f32.mrb[0].mxu0
      %v1116 = vpop.f32.mrb[0].mxu0
      %v1117 = vadd.f32 0.0, %v1116
      %v1118 = vpop.f32.mrb[0].mxu0
      %1119 = vmatprep.mubr.bf16.mxu0 0
      %1120 = vmatmul.mubr.bf16.gmra.mrb[0].mxu0 %v1071
      %v1121 = vpop.f32.mrb[0].mxu0
      %v1122 = vadd.f32 0.0, %v1121
      %v1123 = vpop.f32.mrb[0].mxu0
      %v1124 = vpop.f32.mrb[0].mxu0
      %v1125 = vadd.f32 0.0, %v1124
      %v1126 = vpop.f32.mrb[0].mxu0
      %1127 = vmatprep.mubr.bf16.mxu0 0
      %1128 = vmatmul.mubr.bf16.gmra.mrb[0].mxu0 %v1074
      %v1129 = vpop.f32.mrb[0].mxu0
      %v1130 = vadd.f32 0.0, %v1129
      %v1131 = vpop.f32.mrb[0].mxu0
      %v1132 = vpop.f32.mrb[0].mxu0
      %v1133 = vadd.f32 0.0, %v1132
      %v1134 = vpop.f32.mrb[0].mxu0
      %1135 = vmatprep.mubr.bf16.mxu0 0
      %1136 = vmatmul.mubr.bf16.gmra.mrb[0].mxu0 %v1077
      %v1137 = vpop.f32.mrb[0].mxu0
      %v1138 = vadd.f32 0.0, %v1137
      %v1139 = vpop.f32.mrb[0].mxu0
      %v1140 = vpop.f32.mrb[0].mxu0
      %v1141 = vpop.f32.mrb[0].mxu0
      %1142 = vdwg.mxu0
      %v1143 = vadd.f32 %v909, %v1114
      %v1144 = vadd.f32 %v912, %v1117
      %v1145 = vadd.f32 %v917, %v1122
      %v1146 = vadd.f32 %v920, %v1125
      %v1147 = vadd.f32 %v925, %v1130
      %v1148 = vadd.f32 %v928, %v1133
      %v1149 = vadd.f32 %v933, %v1138
      %v1150 = vld [vmem:[#allocation2] sm:$0x8]
      %v1151 = vld [vmem:[#allocation2 + $0x18] sm:$0xf]
      %v1152 = vsel %vm688, 65537, 0
      %v1153 = vsel %vm689, 65537, 0
      %v1154 = vsel %vm690, 65537, 0
      %v1155 = vsel %vm691, 65537, 0
      %v1156 = vsel %vm692, 65537, 0
      %v1157 = vsel %vm693, 65537, 0
      %v1158 = vsel %vm694, 65537, 0
      %vm1159 = vsmask.f32 3328
      %vm1160 = vsmask.f32 7440
      %vm1161 = vmor %vm1159, %vm1160
      %v1163 = vshll.u32 %v1152, 16
      %v1165 = vrot.slane %v1163, 5
      %v1166 = vshrl.u32 %v1152, 16
      %v1168 = vrot.slane %v1166, 4
      %v1169 = vor.u32 %v1168, %v1165
      %v1170 = vrot.slane %v1169, 4
      %v1172 = vshll.u32 %v1153, 16
      %v1174 = vrot.slane %v1172, 5
      %v1175 = vsel %vm1161, %v1170, %v1174
      %v1176 = vshrl.u32 %v1153, 16
      %v1178 = vrot.slane %v1176, 4
      %v1179 = vor.u32 %v1178, %v1174
      %v1180 = vrot.slane %v1179, 4
      %v1182 = vshll.u32 %v1154, 16
      %v1184 = vrot.slane %v1182, 5
      %v1185 = vsel %vm1161, %v1180, %v1184
      %v1186 = vshrl.u32 %v1154, 16
      %v1188 = vrot.slane %v1186, 4
      %v1189 = vor.u32 %v1188, %v1184
      %v1190 = vrot.slane %v1189, 4
      %v1192 = vshll.u32 %v1155, 16
      %v1194 = vrot.slane %v1192, 5
      %v1195 = vsel %vm1161, %v1190, %v1194
      %v1196 = vshrl.u32 %v1155, 16
      %v1198 = vrot.slane %v1196, 4
      %v1199 = vor.u32 %v1198, %v1194
      %v1200 = vrot.slane %v1199, 4
      %v1202 = vshll.u32 %v1156, 16
      %v1204 = vrot.slane %v1202, 5
      %v1205 = vsel %vm1161, %v1200, %v1204
      %v1206 = vshrl.u32 %v1156, 16
      %v1208 = vrot.slane %v1206, 4
      %v1209 = vor.u32 %v1208, %v1204
      %v1210 = vrot.slane %v1209, 4
      %v1212 = vshll.u32 %v1157, 16
      %v1214 = vrot.slane %v1212, 5
      %v1215 = vsel %vm1161, %v1210, %v1214
      %v1216 = vshrl.u32 %v1157, 16
      %v1218 = vrot.slane %v1216, 4
      %v1219 = vor.u32 %v1218, %v1214
      %v1220 = vrot.slane %v1219, 4
      %v1222 = vshll.u32 %v1158, 16
      %v1224 = vrot.slane %v1222, 5
      %v1225 = vsel %vm1161, %v1220, %v1224
      %vm1226 = vcmp.ne.s16.totalorder %v1165, 0
      %vm1227 = vcmp.ne.s16.totalorder %v1175, 0
      %vm1228 = vcmp.ne.s16.totalorder %v1185, 0
      %vm1229 = vcmp.ne.s16.totalorder %v1195, 0
      %vm1230 = vcmp.ne.s16.totalorder %v1205, 0
      %vm1231 = vcmp.ne.s16.totalorder %v1215, 0
      %vm1232 = vcmp.ne.s16.totalorder %v1225, 0
      %v1233 = vsel %vm1226, %v1150, 0
      %v1234 = vsel %vm1227, %v640, 0
      %v1235 = vsel %vm1228, %v641, 0
      %v1236 = vsel %vm1229, %v642, 0
      %v1237 = vsel %vm1230, %v643, 0
      %v1238 = vsel %vm1231, %v644, 0
      %v1239 = vsel %vm1232, %v1151, 0
      %s1240 = scalar_lea.vmem %s6, 24
      %v1241 = vld [vmem:[%s1240] sm:$0xf]
      %v1242 = vld [vmem:[%s1240 + $0x4] sm:$0xf]
      %v1250 = vunpack.c.l.b16 %v1233
      %v1251 = vunpack.c.l.b16 %v1234
      %v1252 = vunpack.c.l.b16 %v1235
      %v1253 = vunpack.c.l.b16 %v1236
      %v1254 = vunpack.c.l.b16 %v1237
      %v1255 = vunpack.c.l.b16 %v1238
      %v1256 = vunpack.c.l.b16 %v1239
      %v1257 = vpack.c.b16 %v1251, %v1250
      %v1258 = vpack.c.b16 %v1253, %v1252
      %v1259 = vpack.c.b16 %v1255, %v1254
      %v1260 = vpack.c.b16 %v1256, %v1256
      %vm1261 = vsmask.f32 4352
      %v1263 = vshrl.u32 %v1257, 16
      %v1265 = vrot.slane %v1263, 3
      %v1266 = vshll.u32 %v1257, 16
      %v1268 = vrot.slane %v1266, 4
      %v1269 = vor.u32 %v1265, %v1268
      %v1271 = vshrl.u32 %v1258, 16
      %v1273 = vrot.slane %v1271, 3
      %v1274 = vshll.u32 %v1258, 16
      %v1276 = vrot.slane %v1274, 4
      %v1277 = vor.u32 %v1273, %v1276
      %v1278 = vsel %vm1261, %v1269, %v1277
      %v1280 = vshrl.u32 %v1259, 16
      %v1282 = vrot.slane %v1280, 3
      %v1283 = vshll.u32 %v1259, 16
      %v1285 = vrot.slane %v1283, 4
      %v1286 = vor.u32 %v1282, %v1285
      %v1287 = vsel %vm1261, %v1277, %v1286
      %v1289 = vshrl.u32 %v1260, 16
      %v1291 = vrot.slane %v1289, 3
      %v1292 = vshll.u32 %v1260, 16
      %v1294 = vrot.slane %v1292, 4
      %v1295 = vor.u32 %v1291, %v1294
      %v1296 = vsel %vm1261, %v1286, %v1295
      %v1299 = vunpack.c.l.b16 %v1241
      %v1300 = vunpack.c.l.b16 %v1242
      %v1301 = vpack.c.b16 %v1300, %v1299
      %v1304 = vsel %vm499, %v1278, 0
      %v1307 = vsel %vm499, %v1287, 0
      %v1310 = vsel %vm499, %v1296, 0
      %v1313 = vsel %vm499, %v1291, 0
      %1315 = vmatprep.subr.bf16.mxu0 0
      %1316 = vmatpush1.bf16.msra.mxu0 %v1301
      %1317 = vmatprep.subr.bf16.mxu0 0
      %1318 = vmatpush1.bf16.msra.mxu0 0
      %1319 = vmatprep.subr.bf16.mxu0 0
      %1320 = vmatpush1.bf16.msra.mxu0 0
      %1321 = vmatprep.subr.bf16.mxu0 0
      %1322 = vmatpush1.bf16.msra.mxu0 0
      %1323 = vmatprep.subr.bf16.mxu0 0
      %1324 = vmatpush1.bf16.msra.mxu0 0
      %1325 = vmatprep.subr.bf16.mxu0 0
      %1326 = vmatpush1.bf16.msra.mxu0 0
      %1327 = vmatprep.subr.bf16.mxu0 0
      %1328 = vmatpush1.bf16.msra.mxu0 0
      %1329 = vmatprep.subr.bf16.mxu0 0
      %1330 = vmatpush1.bf16.msra.mxu0 0
      %1331 = vmatprep.subr.bf16.mxu0 0
      %1332 = vmatpush1.bf16.msra.mxu0 0
      %1333 = vmatprep.subr.bf16.mxu0 0
      %1334 = vmatpush1.bf16.msra.mxu0 0
      %1335 = vmatprep.subr.bf16.mxu0 0
      %1336 = vmatpush1.bf16.msra.mxu0 0
      %1337 = vmatprep.subr.bf16.mxu0 0
      %1338 = vmatpush1.bf16.msra.mxu0 0
      %1339 = vmatprep.subr.bf16.mxu0 0
      %1340 = vmatpush1.bf16.msra.mxu0 0
      %1341 = vmatprep.subr.bf16.mxu0 0
      %1342 = vmatpush1.bf16.msra.mxu0 0
      %1343 = vmatprep.subr.bf16.mxu0 0
      %1344 = vmatpush1.bf16.msra.mxu0 0
      %1345 = vmatprep.subr.bf16.mxu0 0
      %1346 = vmatpush1.bf16.msra.mxu0 0
      %1347 = vmatprep.mubr.bf16.mxu0 0
      %1348 = vmatmul.mubr.bf16.gmra.mrb[0].mxu0 %v1304
      %v1349 = vpop.f32.mrb[0].mxu0
      %v1350 = vadd.f32 0.0, %v1349
      %v1351 = vpop.f32.mrb[0].mxu0
      %v1352 = vpop.f32.mrb[0].mxu0
      %v1353 = vadd.f32 0.0, %v1352
      %v1354 = vpop.f32.mrb[0].mxu0
      %1355 = vmatprep.mubr.bf16.mxu0 0
      %1356 = vmatmul.mubr.bf16.gmra.mrb[0].mxu0 %v1307
      %v1357 = vpop.f32.mrb[0].mxu0
      %v1358 = vadd.f32 0.0, %v1357
      %v1359 = vpop.f32.mrb[0].mxu0
      %v1360 = vpop.f32.mrb[0].mxu0
      %v1361 = vadd.f32 0.0, %v1360
      %v1362 = vpop.f32.mrb[0].mxu0
      %1363 = vmatprep.mubr.bf16.mxu0 0
      %1364 = vmatmul.mubr.bf16.gmra.mrb[0].mxu0 %v1310
      %v1365 = vpop.f32.mrb[0].mxu0
      %v1366 = vadd.f32 0.0, %v1365
      %v1367 = vpop.f32.mrb[0].mxu0
      %v1368 = vpop.f32.mrb[0].mxu0
      %v1369 = vadd.f32 0.0, %v1368
      %v1370 = vpop.f32.mrb[0].mxu0
      %1371 = vmatprep.mubr.bf16.mxu0 0
      %1372 = vmatmul.mubr.bf16.gmra.mrb[0].mxu0 %v1313
      %v1373 = vpop.f32.mrb[0].mxu0
      %v1374 = vadd.f32 0.0, %v1373
      %v1375 = vpop.f32.mrb[0].mxu0
      %v1376 = vpop.f32.mrb[0].mxu0
      %v1377 = vpop.f32.mrb[0].mxu0
      %1378 = vdwg.mxu0
      %v1379 = vadd.f32 %v1143, %v1350
      %v1380 = vadd.f32 %v1144, %v1353
      %v1381 = vadd.f32 %v1145, %v1358
      %v1382 = vadd.f32 %v1146, %v1361
      %v1383 = vadd.f32 %v1147, %v1366
      %v1384 = vadd.f32 %v1148, %v1369
      %v1385 = vadd.f32 %v1149, %v1374
      %v1386 = vld [vmem:[#allocation2 + $0x4] sm:$0xf]
      %v1387 = vld [vmem:[#allocation2 + $0x8] sm:$0xf]
      %v1388 = vld [vmem:[#allocation2 + $0xc] sm:$0xf]
      %v1389 = vld [vmem:[#allocation2 + $0x10] sm:$0xf]
      %v1390 = vld [vmem:[#allocation2 + $0x14] sm:$0xf]
      %v1391 = vld [vmem:[#allocation2 + $0x18] sm:$0xf]
      %v1392 = vld [vmem:[#allocation2 + $0x1c] sm:$0x1]
      %s1393 = scalar_lea.vmem %s6, 32
      %v1394 = vld [vmem:[%s1393] sm:$0xf]
      %v1395 = vld [vmem:[%s1393 + $0x4] sm:$0xf]
      %v1403 = vunpack.c.l.b16 %v1386
      %v1404 = vunpack.c.l.b16 %v1387
      %v1405 = vunpack.c.l.b16 %v1388
      %v1406 = vunpack.c.l.b16 %v1389
      %v1407 = vunpack.c.l.b16 %v1390
      %v1408 = vunpack.c.l.b16 %v1391
      %v1409 = vunpack.c.l.b16 %v1392
      %v1410 = vpack.c.b16 %v1404, %v1403
      %v1411 = vpack.c.b16 %v1406, %v1405
      %v1412 = vpack.c.b16 %v1408, %v1407
      %v1413 = vpack.c.b16 %v1409, %v1409
      %v1416 = vunpack.c.l.b16 %v1394
      %v1417 = vunpack.c.l.b16 %v1395
      %v1418 = vpack.c.b16 %v1417, %v1416
      %v1421 = vsel %vm499, %v1410, 0
      %v1424 = vsel %vm499, %v1411, 0
      %v1427 = vsel %vm499, %v1412, 0
      %v1430 = vsel %vm499, %v1413, 0
      %1432 = vmatprep.subr.bf16.mxu0 0
      %1433 = vmatpush1.bf16.msra.mxu0 %v1418
      %1434 = vmatprep.subr.bf16.mxu0 0
      %1435 = vmatpush1.bf16.msra.mxu0 0
      %1436 = vmatprep.subr.bf16.mxu0 0
      %1437 = vmatpush1.bf16.msra.mxu0 0
      %1438 = vmatprep.subr.bf16.mxu0 0
      %1439 = vmatpush1.bf16.msra.mxu0 0
      %1440 = vmatprep.subr.bf16.mxu0 0
      %1441 = vmatpush1.bf16.msra.mxu0 0
      %1442 = vmatprep.subr.bf16.mxu0 0
      %1443 = vmatpush1.bf16.msra.mxu0 0
      %1444 = vmatprep.subr.bf16.mxu0 0
      %1445 = vmatpush1.bf16.msra.mxu0 0
      %1446 = vmatprep.subr.bf16.mxu0 0
      %1447 = vmatpush1.bf16.msra.mxu0 0
      %1448 = vmatprep.subr.bf16.mxu0 0
      %1449 = vmatpush1.bf16.msra.mxu0 0
      %1450 = vmatprep.subr.bf16.mxu0 0
      %1451 = vmatpush1.bf16.msra.mxu0 0
      %1452 = vmatprep.subr.bf16.mxu0 0
      %1453 = vmatpush1.bf16.msra.mxu0 0
      %1454 = vmatprep.subr.bf16.mxu0 0
      %1455 = vmatpush1.bf16.msra.mxu0 0
      %1456 = vmatprep.subr.bf16.mxu0 0
      %1457 = vmatpush1.bf16.msra.mxu0 0
      %1458 = vmatprep.subr.bf16.mxu0 0
      %1459 = vmatpush1.bf16.msra.mxu0 0
      %1460 = vmatprep.subr.bf16.mxu0 0
      %1461 = vmatpush1.bf16.msra.mxu0 0
      %1462 = vmatprep.subr.bf16.mxu0 0
      %1463 = vmatpush1.bf16.msra.mxu0 0
      %1464 = vmatprep.mubr.bf16.mxu0 0
      %1465 = vmatmul.mubr.bf16.gmra.mrb[0].mxu0 %v1421
      %v1466 = vpop.f32.mrb[0].mxu0
      %v1467 = vadd.f32 0.0, %v1466
      %v1468 = vpop.f32.mrb[0].mxu0
      %v1469 = vpop.f32.mrb[0].mxu0
      %v1470 = vadd.f32 0.0, %v1469
      %v1471 = vpop.f32.mrb[0].mxu0
      %1472 = vmatprep.mubr.bf16.mxu0 0
      %1473 = vmatmul.mubr.bf16.gmra.mrb[0].mxu0 %v1424
      %v1474 = vpop.f32.mrb[0].mxu0
      %v1475 = vadd.f32 0.0, %v1474
      %v1476 = vpop.f32.mrb[0].mxu0
      %v1477 = vpop.f32.mrb[0].mxu0
      %v1478 = vadd.f32 0.0, %v1477
      %v1479 = vpop.f32.mrb[0].mxu0
      %1480 = vmatprep.mubr.bf16.mxu0 0
      %1481 = vmatmul.mubr.bf16.gmra.mrb[0].mxu0 %v1427
      %v1482 = vpop.f32.mrb[0].mxu0
      %v1483 = vadd.f32 0.0, %v1482
      %v1484 = vpop.f32.mrb[0].mxu0
      %v1485 = vpop.f32.mrb[0].mxu0
      %v1486 = vadd.f32 0.0, %v1485
      %v1487 = vpop.f32.mrb[0].mxu0
      %1488 = vmatprep.mubr.bf16.mxu0 0
      %1489 = vmatmul.mubr.bf16.gmra.mrb[0].mxu0 %v1430
      %v1490 = vpop.f32.mrb[0].mxu0
      %v1491 = vadd.f32 0.0, %v1490
      %v1492 = vpop.f32.mrb[0].mxu0
      %v1493 = vpop.f32.mrb[0].mxu0
      %v1494 = vpop.f32.mrb[0].mxu0
      %1495 = vdwg.mxu0
      %v1496 = vadd.f32 %v1379, %v1467
      %v1497 = vadd.f32 %v1380, %v1470
      %v1498 = vadd.f32 %v1381, %v1475
      %v1499 = vadd.f32 %v1382, %v1478
      %v1500 = vadd.f32 %v1383, %v1483
      %v1501 = vadd.f32 %v1384, %v1486
      %v1502 = vadd.f32 %v1385, %v1491
      %vm1503 = vsmask.f32 4368
      %vm1504 = vmor %vm593, %vm1503
      %v1506 = vshrl.u32 %v989, 16
      %v1508 = vrot.slane %v1506, 7
      %v1509 = vshll.u32 %v989, 16
      %v1511 = vor.u32 %v1508, %v1509
      %v1512 = vrot.slane %v1508, 4
      %v1514 = vshrl.u32 %v990, 16
      %v1516 = vrot.slane %v1514, 7
      %v1517 = vshll.u32 %v990, 16
      %v1519 = vor.u32 %v1516, %v1517
      %v1520 = vsel %vm1504, %v1512, %v1519
      %v1521 = vrot.slane %v1516, 4
      %v1523 = vshrl.u32 %v991, 16
      %v1525 = vrot.slane %v1523, 7
      %v1526 = vshll.u32 %v991, 16
      %v1528 = vor.u32 %v1525, %v1526
      %v1529 = vsel %vm1504, %v1521, %v1528
      %v1530 = vrot.slane %v1525, 4
      %v1532 = vshrl.u32 %v992, 16
      %v1534 = vrot.slane %v1532, 7
      %v1535 = vshll.u32 %v992, 16
      %v1537 = vor.u32 %v1534, %v1535
      %v1538 = vsel %vm1504, %v1530, %v1537
      %v1539 = vrot.slane %v1534, 4
      %v1541 = vshrl.u32 %v993, 16
      %v1543 = vrot.slane %v1541, 7
      %v1544 = vshll.u32 %v993, 16
      %v1546 = vor.u32 %v1543, %v1544
      %v1547 = vsel %vm1504, %v1539, %v1546
      %v1548 = vrot.slane %v1543, 4
      %v1550 = vshrl.u32 %v994, 16
      %v1552 = vrot.slane %v1550, 7
      %v1553 = vshll.u32 %v994, 16
      %v1555 = vor.u32 %v1552, %v1553
      %v1556 = vsel %vm1504, %v1548, %v1555
      %v1557 = vrot.slane %v1552, 4
      %v1559 = vshll.u32 %v995, 16
      %v1561 = vsel %vm1504, %v1557, %v1559
      %vm1562 = vcmp.ne.s16.totalorder %v1511, 0
      %vm1563 = vcmp.ne.s16.totalorder %v1520, 0
      %vm1564 = vcmp.ne.s16.totalorder %v1529, 0
      %vm1565 = vcmp.ne.s16.totalorder %v1538, 0
      %vm1566 = vcmp.ne.s16.totalorder %v1547, 0
      %vm1567 = vcmp.ne.s16.totalorder %v1556, 0
      %vm1568 = vcmp.ne.s16.totalorder %v1561, 0
      %v1569 = vsel %vm1562, %v1386, 0
      %v1570 = vsel %vm1563, %v1387, 0
      %v1571 = vsel %vm1564, %v1388, 0
      %v1572 = vsel %vm1565, %v1389, 0
      %v1573 = vsel %vm1566, %v1390, 0
      %v1574 = vsel %vm1567, %v1391, 0
      %v1575 = vsel %vm1568, %v1392, 0
      %s1576 = scalar_lea.vmem %s6, 40
      %v1577 = vld [vmem:[%s1576] sm:$0xf]
      %v1578 = vld [vmem:[%s1576 + $0x4] sm:$0xf]
      %v1586 = vunpack.c.l.b16 %v1569
      %v1587 = vunpack.c.l.b16 %v1570
      %v1588 = vunpack.c.l.b16 %v1571
      %v1589 = vunpack.c.l.b16 %v1572
      %v1590 = vunpack.c.l.b16 %v1573
      %v1591 = vunpack.c.l.b16 %v1574
      %v1592 = vunpack.c.l.b16 %v1575
      %v1593 = vpack.c.b16 %v1587, %v1586
      %v1594 = vpack.c.b16 %v1589, %v1588
      %v1595 = vpack.c.b16 %v1591, %v1590
      %v1596 = vpack.c.b16 %v1592, %v1592
      %v1598 = vshrl.u32 %v1593, 16
      %v1600 = vshll.u32 %v1593, 16
      %v1602 = vrot.slane %v1600, 1
      %v1603 = vor.u32 %v1598, %v1602
      %v1605 = vshll.u32 %v1594, 16
      %v1607 = vrot.slane %v1605, 1
      %v1608 = vsel %vm725, %v1603, %v1607
      %v1609 = vshrl.u32 %v1594, 16
      %v1611 = vor.u32 %v1609, %v1607
      %v1613 = vshll.u32 %v1595, 16
      %v1615 = vrot.slane %v1613, 1
      %v1616 = vsel %vm725, %v1611, %v1615
      %v1617 = vshrl.u32 %v1595, 16
      %v1619 = vor.u32 %v1617, %v1615
      %v1621 = vshll.u32 %v1596, 16
      %v1623 = vrot.slane %v1621, 1
      %v1624 = vsel %vm725, %v1619, %v1623
      %v1625 = vshrl.u32 %v1596, 16
      %v1629 = vunpack.c.l.b16 %v1577
      %v1630 = vunpack.c.l.b16 %v1578
      %v1631 = vpack.c.b16 %v1630, %v1629
      %v1634 = vsel %vm499, %v1608, 0
      %v1637 = vsel %vm499, %v1616, 0
      %v1640 = vsel %vm499, %v1624, 0
      %v1643 = vsel %vm499, %v1625, 0
      %1645 = vmatprep.subr.bf16.mxu0 0
      %1646 = vmatpush1.bf16.msra.mxu0 %v1631
      %1647 = vmatprep.subr.bf16.mxu0 0
      %1648 = vmatpush1.bf16.msra.mxu0 0
      %1649 = vmatprep.subr.bf16.mxu0 0
      %1650 = vmatpush1.bf16.msra.mxu0 0
      %1651 = vmatprep.subr.bf16.mxu0 0
      %1652 = vmatpush1.bf16.msra.mxu0 0
      %1653 = vmatprep.subr.bf16.mxu0 0
      %1654 = vmatpush1.bf16.msra.mxu0 0
      %1655 = vmatprep.subr.bf16.mxu0 0
      %1656 = vmatpush1.bf16.msra.mxu0 0
      %1657 = vmatprep.subr.bf16.mxu0 0
      %1658 = vmatpush1.bf16.msra.mxu0 0
      %1659 = vmatprep.subr.bf16.mxu0 0
      %1660 = vmatpush1.bf16.msra.mxu0 0
      %1661 = vmatprep.subr.bf16.mxu0 0
      %1662 = vmatpush1.bf16.msra.mxu0 0
      %1663 = vmatprep.subr.bf16.mxu0 0
      %1664 = vmatpush1.bf16.msra.mxu0 0
      %1665 = vmatprep.subr.bf16.mxu0 0
      %1666 = vmatpush1.bf16.msra.mxu0 0
      %1667 = vmatprep.subr.bf16.mxu0 0
      %1668 = vmatpush1.bf16.msra.mxu0 0
      %1669 = vmatprep.subr.bf16.mxu0 0
      %1670 = vmatpush1.bf16.msra.mxu0 0
      %1671 = vmatprep.subr.bf16.mxu0 0
      %1672 = vmatpush1.bf16.msra.mxu0 0
      %1673 = vmatprep.subr.bf16.mxu0 0
      %1674 = vmatpush1.bf16.msra.mxu0 0
      %1675 = vmatprep.subr.bf16.mxu0 0
      %1676 = vmatpush1.bf16.msra.mxu0 0
      %1677 = vmatprep.mubr.bf16.mxu0 0
      %1678 = vmatmul.mubr.bf16.gmra.mrb[0].mxu0 %v1634
      %v1679 = vpop.f32.mrb[0].mxu0
      %v1680 = vadd.f32 0.0, %v1679
      %v1681 = vpop.f32.mrb[0].mxu0
      %v1682 = vpop.f32.mrb[0].mxu0
      %v1683 = vadd.f32 0.0, %v1682
      %v1684 = vpop.f32.mrb[0].mxu0
      %1685 = vmatprep.mubr.bf16.mxu0 0
      %1686 = vmatmul.mubr.bf16.gmra.mrb[0].mxu0 %v1637
      %v1687 = vpop.f32.mrb[0].mxu0
      %v1688 = vadd.f32 0.0, %v1687
      %v1689 = vpop.f32.mrb[0].mxu0
      %v1690 = vpop.f32.mrb[0].mxu0
      %v1691 = vadd.f32 0.0, %v1690
      %v1692 = vpop.f32.mrb[0].mxu0
      %1693 = vmatprep.mubr.bf16.mxu0 0
      %1694 = vmatmul.mubr.bf16.gmra.mrb[0].mxu0 %v1640
      %v1695 = vpop.f32.mrb[0].mxu0
      %v1696 = vadd.f32 0.0, %v1695
      %v1697 = vpop.f32.mrb[0].mxu0
      %v1698 = vpop.f32.mrb[0].mxu0
      %v1699 = vadd.f32 0.0, %v1698
      %v1700 = vpop.f32.mrb[0].mxu0
      %1701 = vmatprep.mubr.bf16.mxu0 0
      %1702 = vmatmul.mubr.bf16.gmra.mrb[0].mxu0 %v1643
      %v1703 = vpop.f32.mrb[0].mxu0
      %v1704 = vadd.f32 0.0, %v1703
      %v1705 = vpop.f32.mrb[0].mxu0
      %v1706 = vpop.f32.mrb[0].mxu0
      %v1707 = vpop.f32.mrb[0].mxu0
      %1708 = vdwg.mxu0
      %v1709 = vadd.f32 %v1496, %v1680
      %v1710 = vadd.f32 %v1497, %v1683
      %v1711 = vadd.f32 %v1498, %v1688
      %v1712 = vadd.f32 %v1499, %v1691
      %v1713 = vadd.f32 %v1500, %v1696
      %v1714 = vadd.f32 %v1501, %v1699
      %v1715 = vadd.f32 %v1502, %v1704
      %v1716 = vld [vmem:[#allocation2 + $0x4] sm:$0x8]
      %v1717 = vld [vmem:[#allocation2 + $0x1c] sm:$0xf]
      %vm1718 = vcmask 1042432
      %vm1719 = vcmask 1046532
      %vm1720 = vmor %vm1718, %vm1719
      %v1721 = vrot.slane %v1152, 5
      %v1722 = vrot.slane %v1721, 4
      %v1723 = vrot.slane %v1153, 5
      %v1724 = vsel %vm1720, %v1722, %v1723
      %v1725 = vrot.slane %v1723, 4
      %v1726 = vrot.slane %v1154, 5
      %v1727 = vsel %vm1720, %v1725, %v1726
      %v1728 = vrot.slane %v1726, 4
      %v1729 = vrot.slane %v1155, 5
      %v1730 = vsel %vm1720, %v1728, %v1729
      %v1731 = vrot.slane %v1729, 4
      %v1732 = vrot.slane %v1156, 5
      %v1733 = vsel %vm1720, %v1731, %v1732
      %v1734 = vrot.slane %v1732, 4
      %v1735 = vrot.slane %v1157, 5
      %v1736 = vsel %vm1720, %v1734, %v1735
      %v1737 = vrot.slane %v1735, 4
      %v1738 = vrot.slane %v1158, 5
      %v1739 = vsel %vm1720, %v1737, %v1738
      %vm1740 = vcmp.ne.s16.totalorder %v1721, 0
      %vm1741 = vcmp.ne.s16.totalorder %v1724, 0
      %vm1742 = vcmp.ne.s16.totalorder %v1727, 0
      %vm1743 = vcmp.ne.s16.totalorder %v1730, 0
      %vm1744 = vcmp.ne.s16.totalorder %v1733, 0
      %vm1745 = vcmp.ne.s16.totalorder %v1736, 0
      %vm1746 = vcmp.ne.s16.totalorder %v1739, 0
      %v1747 = vsel %vm1740, %v1716, 0
      %v1748 = vsel %vm1741, %v1387, 0
      %v1749 = vsel %vm1742, %v1388, 0
      %v1750 = vsel %vm1743, %v1389, 0
      %v1751 = vsel %vm1744, %v1390, 0
      %v1752 = vsel %vm1745, %v1391, 0
      %v1753 = vsel %vm1746, %v1717, 0
      %s1754 = scalar_lea.vmem %s6, 48
      %v1755 = vld [vmem:[%s1754] sm:$0xf]
      %v1756 = vld [vmem:[%s1754 + $0x4] sm:$0xf]
      %v1764 = vunpack.c.l.b16 %v1747
      %v1765 = vunpack.c.l.b16 %v1748
      %v1766 = vunpack.c.l.b16 %v1749
      %v1767 = vunpack.c.l.b16 %v1750
      %v1768 = vunpack.c.l.b16 %v1751
      %v1769 = vunpack.c.l.b16 %v1752
      %v1770 = vunpack.c.l.b16 %v1753
      %v1771 = vpack.c.b16 %v1765, %v1764
      %v1772 = vpack.c.b16 %v1767, %v1766
      %v1773 = vpack.c.b16 %v1769, %v1768
      %v1774 = vpack.c.b16 %v1770, %v1770
      %vm1775 = vcmask 1044480
      %v1776 = vrot.slane %v1771, 3
      %v1777 = vrot.slane %v1772, 3
      %v1778 = vsel %vm1775, %v1776, %v1777
      %v1779 = vrot.slane %v1773, 3
      %v1780 = vsel %vm1775, %v1777, %v1779
      %v1781 = vrot.slane %v1774, 3
      %v1782 = vsel %vm1775, %v1779, %v1781
      %v1785 = vunpack.c.l.b16 %v1755
      %v1786 = vunpack.c.l.b16 %v1756
      %v1787 = vpack.c.b16 %v1786, %v1785
      %v1790 = vsel %vm499, %v1778, 0
      %v1793 = vsel %vm499, %v1780, 0
      %v1796 = vsel %vm499, %v1782, 0
      %v1799 = vsel %vm499, %v1781, 0
      %1801 = vmatprep.subr.bf16.mxu0 0
      %1802 = vmatpush1.bf16.msra.mxu0 %v1787
      %1803 = vmatprep.subr.bf16.mxu0 0
      %1804 = vmatpush1.bf16.msra.mxu0 0
      %1805 = vmatprep.subr.bf16.mxu0 0
      %1806 = vmatpush1.bf16.msra.mxu0 0
      %1807 = vmatprep.subr.bf16.mxu0 0
      %1808 = vmatpush1.bf16.msra.mxu0 0
      %1809 = vmatprep.subr.bf16.mxu0 0
      %1810 = vmatpush1.bf16.msra.mxu0 0
      %1811 = vmatprep.subr.bf16.mxu0 0
      %1812 = vmatpush1.bf16.msra.mxu0 0
      %1813 = vmatprep.subr.bf16.mxu0 0
      %1814 = vmatpush1.bf16.msra.mxu0 0
      %1815 = vmatprep.subr.bf16.mxu0 0
      %1816 = vmatpush1.bf16.msra.mxu0 0
      %1817 = vmatprep.subr.bf16.mxu0 0
      %1818 = vmatpush1.bf16.msra.mxu0 0
      %1819 = vmatprep.subr.bf16.mxu0 0
      %1820 = vmatpush1.bf16.msra.mxu0 0
      %1821 = vmatprep.subr.bf16.mxu0 0
      %1822 = vmatpush1.bf16.msra.mxu0 0
      %1823 = vmatprep.subr.bf16.mxu0 0
      %1824 = vmatpush1.bf16.msra.mxu0 0
      %1825 = vmatprep.subr.bf16.mxu0 0
      %1826 = vmatpush1.bf16.msra.mxu0 0
      %1827 = vmatprep.subr.bf16.mxu0 0
      %1828 = vmatpush1.bf16.msra.mxu0 0
      %1829 = vmatprep.subr.bf16.mxu0 0
      %1830 = vmatpush1.bf16.msra.mxu0 0
      %1831 = vmatprep.subr.bf16.mxu0 0
      %1832 = vmatpush1.bf16.msra.mxu0 0
      %1833 = vmatprep.mubr.bf16.mxu0 0
      %1834 = vmatmul.mubr.bf16.gmra.mrb[0].mxu0 %v1790
      %v1835 = vpop.f32.mrb[0].mxu0
      %v1836 = vadd.f32 0.0, %v1835
      %v1837 = vpop.f32.mrb[0].mxu0
      %v1838 = vpop.f32.mrb[0].mxu0
      %v1839 = vadd.f32 0.0, %v1838
      %v1840 = vpop.f32.mrb[0].mxu0
      %1841 = vmatprep.mubr.bf16.mxu0 0
      %1842 = vmatmul.mubr.bf16.gmra.mrb[0].mxu0 %v1793
      %v1843 = vpop.f32.mrb[0].mxu0
      %v1844 = vadd.f32 0.0, %v1843
      %v1845 = vpop.f32.mrb[0].mxu0
      %v1846 = vpop.f32.mrb[0].mxu0
      %v1847 = vadd.f32 0.0, %v1846
      %v1848 = vpop.f32.mrb[0].mxu0
      %1849 = vmatprep.mubr.bf16.mxu0 0
      %1850 = vmatmul.mubr.bf16.gmra.mrb[0].mxu0 %v1796
      %v1851 = vpop.f32.mrb[0].mxu0
      %v1852 = vadd.f32 0.0, %v1851
      %v1853 = vpop.f32.mrb[0].mxu0
      %v1854 = vpop.f32.mrb[0].mxu0
      %v1855 = vadd.f32 0.0, %v1854
      %v1856 = vpop.f32.mrb[0].mxu0
      %1857 = vmatprep.mubr.bf16.mxu0 0
      %1858 = vmatmul.mubr.bf16.gmra.mrb[0].mxu0 %v1799
      %v1859 = vpop.f32.mrb[0].mxu0
      %v1860 = vadd.f32 0.0, %v1859
      %v1861 = vpop.f32.mrb[0].mxu0
      %v1862 = vpop.f32.mrb[0].mxu0
      %v1863 = vpop.f32.mrb[0].mxu0
      %1864 = vdwg.mxu0
      %v1865 = vadd.f32 %v1709, %v1836
      %v1866 = vadd.f32 %v1710, %v1839
      %v1867 = vadd.f32 %v1711, %v1844
      %v1868 = vadd.f32 %v1712, %v1847
      %v1869 = vadd.f32 %v1713, %v1852
      %v1870 = vadd.f32 %v1714, %v1855
      %v1871 = vadd.f32 %v1715, %v1860
      %s1872 = scalar_lea.vmem %s6, 56
      %v1873 = vld [vmem:[%s1872] sm:$0xf]
      %v1874 = vld [vmem:[%s1872 + $0x4] sm:$0xf]
      %v1877 = vunpack.c.l.b16 %v1716
      %v1878 = vunpack.c.l.b16 %v1717
      %v1879 = vpack.c.b16 %v1404, %v1877
      %v1880 = vpack.c.b16 %v1878, %v1878
      %v1882 = vshrl.u32 %v1879, 16
      %v1884 = vrot.slane %v1882, 3
      %v1885 = vshll.u32 %v1879, 16
      %v1887 = vrot.slane %v1885, 4
      %v1888 = vor.u32 %v1884, %v1887
      %v1889 = vshrl.u32 %v1411, 16
      %v1891 = vrot.slane %v1889, 3
      %v1892 = vshll.u32 %v1411, 16
      %v1894 = vrot.slane %v1892, 4
      %v1895 = vor.u32 %v1891, %v1894
      %v1896 = vsel %vm1261, %v1888, %v1895
      %v1897 = vshrl.u32 %v1412, 16
      %v1899 = vrot.slane %v1897, 3
      %v1900 = vshll.u32 %v1412, 16
      %v1902 = vrot.slane %v1900, 4
      %v1903 = vor.u32 %v1899, %v1902
      %v1904 = vsel %vm1261, %v1895, %v1903
      %v1906 = vshrl.u32 %v1880, 16
      %v1908 = vrot.slane %v1906, 3
      %v1909 = vshll.u32 %v1880, 16
      %v1911 = vrot.slane %v1909, 4
      %v1912 = vor.u32 %v1908, %v1911
      %v1913 = vsel %vm1261, %v1903, %v1912
      %v1916 = vunpack.c.l.b16 %v1873
      %v1917 = vunpack.c.l.b16 %v1874
      %v1918 = vpack.c.b16 %v1917, %v1916
      %v1921 = vsel %vm499, %v1896, 0
      %v1924 = vsel %vm499, %v1904, 0
      %v1927 = vsel %vm499, %v1913, 0
      %v1930 = vsel %vm499, %v1908, 0
      %1932 = vmatprep.subr.bf16.mxu0 0
      %1933 = vmatpush1.bf16.msra.mxu0 %v1918
      %1934 = vmatprep.subr.bf16.mxu0 0
      %1935 = vmatpush1.bf16.msra.mxu0 0
      %1936 = vmatprep.subr.bf16.mxu0 0
      %1937 = vmatpush1.bf16.msra.mxu0 0
      %1938 = vmatprep.subr.bf16.mxu0 0
      %1939 = vmatpush1.bf16.msra.mxu0 0
      %1940 = vmatprep.subr.bf16.mxu0 0
      %1941 = vmatpush1.bf16.msra.mxu0 0
      %1942 = vmatprep.subr.bf16.mxu0 0
      %1943 = vmatpush1.bf16.msra.mxu0 0
      %1944 = vmatprep.subr.bf16.mxu0 0
      %1945 = vmatpush1.bf16.msra.mxu0 0
      %1946 = vmatprep.subr.bf16.mxu0 0
      %1947 = vmatpush1.bf16.msra.mxu0 0
      %1948 = vmatprep.subr.bf16.mxu0 0
      %1949 = vmatpush1.bf16.msra.mxu0 0
      %1950 = vmatprep.subr.bf16.mxu0 0
      %1951 = vmatpush1.bf16.msra.mxu0 0
      %1952 = vmatprep.subr.bf16.mxu0 0
      %1953 = vmatpush1.bf16.msra.mxu0 0
      %1954 = vmatprep.subr.bf16.mxu0 0
      %1955 = vmatpush1.bf16.msra.mxu0 0
      %1956 = vmatprep.subr.bf16.mxu0 0
      %1957 = vmatpush1.bf16.msra.mxu0 0
      %1958 = vmatprep.subr.bf16.mxu0 0
      %1959 = vmatpush1.bf16.msra.mxu0 0
      %1960 = vmatprep.subr.bf16.mxu0 0
      %1961 = vmatpush1.bf16.msra.mxu0 0
      %1962 = vmatprep.subr.bf16.mxu0 0
      %1963 = vmatpush1.bf16.msra.mxu0 0
      %1964 = vmatprep.mubr.bf16.mxu0 0
      %1965 = vmatmul.mubr.bf16.gmra.mrb[0].mxu0 %v1921
      %v1966 = vpop.f32.mrb[0].mxu0
      %v1967 = vadd.f32 0.0, %v1966
      %v1968 = vpop.f32.mrb[0].mxu0
      %v1969 = vpop.f32.mrb[0].mxu0
      %v1970 = vadd.f32 0.0, %v1969
      %v1971 = vpop.f32.mrb[0].mxu0
      %1972 = vmatprep.mubr.bf16.mxu0 0
      %1973 = vmatmul.mubr.bf16.gmra.mrb[0].mxu0 %v1924
      %v1974 = vpop.f32.mrb[0].mxu0
      %v1975 = vadd.f32 0.0, %v1974
      %v1976 = vpop.f32.mrb[0].mxu0
      %v1977 = vpop.f32.mrb[0].mxu0
      %v1978 = vadd.f32 0.0, %v1977
      %v1979 = vpop.f32.mrb[0].mxu0
      %1980 = vmatprep.mubr.bf16.mxu0 0
      %1981 = vmatmul.mubr.bf16.gmra.mrb[0].mxu0 %v1927
      %v1982 = vpop.f32.mrb[0].mxu0
      %v1983 = vadd.f32 0.0, %v1982
      %v1984 = vpop.f32.mrb[0].mxu0
      %v1985 = vpop.f32.mrb[0].mxu0
      %v1986 = vadd.f32 0.0, %v1985
      %v1987 = vpop.f32.mrb[0].mxu0
      %1988 = vmatprep.mubr.bf16.mxu0 0
      %1989 = vmatmul.mubr.bf16.gmra.mrb[0].mxu0 %v1930
      %v1990 = vpop.f32.mrb[0].mxu0
      %v1991 = vadd.f32 0.0, %v1990
      %v1992 = vpop.f32.mrb[0].mxu0
      %v1993 = vpop.f32.mrb[0].mxu0
      %v1994 = vpop.f32.mrb[0].mxu0
      %1995 = vdwg.mxu0
      %v1996 = vadd.f32 %v1865, %v1967
      %v1997 = vadd.f32 %v1866, %v1970
      %v1998 = vadd.f32 %v1867, %v1975
      %v1999 = vadd.f32 %v1868, %v1978
      %v2000 = vadd.f32 %v1869, %v1983
      %v2001 = vadd.f32 %v1870, %v1986
      %v2002 = vadd.f32 %v1871, %v1991
      %v2003 = vld [vmem:[#allocation2 + $0x8] sm:$0xf]
      %v2004 = vld [vmem:[#allocation2 + $0xc] sm:$0xf]
      %v2005 = vld [vmem:[#allocation2 + $0x10] sm:$0xf]
      %v2006 = vld [vmem:[#allocation2 + $0x14] sm:$0xf]
      %v2007 = vld [vmem:[#allocation2 + $0x18] sm:$0xf]
      %v2008 = vld [vmem:[#allocation2 + $0x1c] sm:$0xf]
      %v2009 = vld [vmem:[#allocation2 + $0x20] sm:$0x1]
      %v2010 = vsel %vm982, %v2003, 0
      %v2011 = vsel %vm983, %v2004, 0
      %v2012 = vsel %vm984, %v2005, 0
      %v2013 = vsel %vm985, %v2006, 0
      %v2014 = vsel %vm986, %v2007, 0
      %v2015 = vsel %vm987, %v2008, 0
      %v2016 = vsel %vm988, %v2009, 0
      %s2017 = scalar_lea.vmem %s6, 64
      %v2018 = vld [vmem:[%s2017] sm:$0xf]
      %v2019 = vld [vmem:[%s2017 + $0x4] sm:$0xf]
      %v2027 = vunpack.c.l.b16 %v2010
      %v2028 = vunpack.c.l.b16 %v2011
      %v2029 = vunpack.c.l.b16 %v2012
      %v2030 = vunpack.c.l.b16 %v2013
      %v2031 = vunpack.c.l.b16 %v2014
      %v2032 = vunpack.c.l.b16 %v2015
      %v2033 = vunpack.c.l.b16 %v2016
      %v2034 = vpack.c.b16 %v2028, %v2027
      %v2035 = vpack.c.b16 %v2030, %v2029
      %v2036 = vpack.c.b16 %v2032, %v2031
      %v2037 = vpack.c.b16 %v2033, %v2033
      %v2040 = vunpack.c.l.b16 %v2018
      %v2041 = vunpack.c.l.b16 %v2019
      %v2042 = vpack.c.b16 %v2041, %v2040
      %v2045 = vsel %vm499, %v2034, 0
      %v2048 = vsel %vm499, %v2035, 0
      %v2051 = vsel %vm499, %v2036, 0
      %v2054 = vsel %vm499, %v2037, 0
      %2056 = vmatprep.subr.bf16.mxu0 0
      %2057 = vmatpush1.bf16.msra.mxu0 %v2042
      %2058 = vmatprep.subr.bf16.mxu0 0
      %2059 = vmatpush1.bf16.msra.mxu0 0
      %2060 = vmatprep.subr.bf16.mxu0 0
      %2061 = vmatpush1.bf16.msra.mxu0 0
      %2062 = vmatprep.subr.bf16.mxu0 0
      %2063 = vmatpush1.bf16.msra.mxu0 0
      %2064 = vmatprep.subr.bf16.mxu0 0
      %2065 = vmatpush1.bf16.msra.mxu0 0
      %2066 = vmatprep.subr.bf16.mxu0 0
      %2067 = vmatpush1.bf16.msra.mxu0 0
      %2068 = vmatprep.subr.bf16.mxu0 0
      %2069 = vmatpush1.bf16.msra.mxu0 0
      %2070 = vmatprep.subr.bf16.mxu0 0
      %2071 = vmatpush1.bf16.msra.mxu0 0
      %2072 = vmatprep.subr.bf16.mxu0 0
      %2073 = vmatpush1.bf16.msra.mxu0 0
      %2074 = vmatprep.subr.bf16.mxu0 0
      %2075 = vmatpush1.bf16.msra.mxu0 0
      %2076 = vmatprep.subr.bf16.mxu0 0
      %2077 = vmatpush1.bf16.msra.mxu0 0
      %2078 = vmatprep.subr.bf16.mxu0 0
      %2079 = vmatpush1.bf16.msra.mxu0 0
      %2080 = vmatprep.subr.bf16.mxu0 0
      %2081 = vmatpush1.bf16.msra.mxu0 0
      %2082 = vmatprep.subr.bf16.mxu0 0
      %2083 = vmatpush1.bf16.msra.mxu0 0
      %2084 = vmatprep.subr.bf16.mxu0 0
      %2085 = vmatpush1.bf16.msra.mxu0 0
      %2086 = vmatprep.subr.bf16.mxu0 0
      %2087 = vmatpush1.bf16.msra.mxu0 0
      %2088 = vmatprep.mubr.bf16.mxu0 0
      %2089 = vmatmul.mubr.bf16.gmra.mrb[0].mxu0 %v2045
      %v2090 = vpop.f32.mrb[0].mxu0
      %v2091 = vadd.f32 0.0, %v2090
      %v2092 = vpop.f32.mrb[0].mxu0
      %v2093 = vpop.f32.mrb[0].mxu0
      %v2094 = vadd.f32 0.0, %v2093
      %v2095 = vpop.f32.mrb[0].mxu0
      %2096 = vmatprep.mubr.bf16.mxu0 0
      %2097 = vmatmul.mubr.bf16.gmra.mrb[0].mxu0 %v2048
      %v2098 = vpop.f32.mrb[0].mxu0
      %v2099 = vadd.f32 0.0, %v2098
      %v2100 = vpop.f32.mrb[0].mxu0
      %v2101 = vpop.f32.mrb[0].mxu0
      %v2102 = vadd.f32 0.0, %v2101
      %v2103 = vpop.f32.mrb[0].mxu0
      %2104 = vmatprep.mubr.bf16.mxu0 0
      %2105 = vmatmul.mubr.bf16.gmra.mrb[0].mxu0 %v2051
      %v2106 = vpop.f32.mrb[0].mxu0
      %v2107 = vadd.f32 0.0, %v2106
      %v2108 = vpop.f32.mrb[0].mxu0
      %v2109 = vpop.f32.mrb[0].mxu0
      %v2110 = vadd.f32 0.0, %v2109
      %v2111 = vpop.f32.mrb[0].mxu0
      %2112 = vmatprep.mubr.bf16.mxu0 0
      %2113 = vmatmul.mubr.bf16.gmra.mrb[0].mxu0 %v2054
      %v2114 = vpop.f32.mrb[0].mxu0
      %v2115 = vadd.f32 0.0, %v2114
      %v2116 = vpop.f32.mrb[0].mxu0
      %v2117 = vpop.f32.mrb[0].mxu0
      %v2118 = vpop.f32.mrb[0].mxu0
      %2119 = vdwg.mxu0
      %v2120 = vadd.f32 %v1996, %v2091
      %v2121 = vadd.f32 %v1997, %v2094
      %v2122 = vadd.f32 %v1998, %v2099
      %v2123 = vadd.f32 %v1999, %v2102
      %v2124 = vadd.f32 %v2000, %v2107
      %v2125 = vadd.f32 %v2001, %v2110
      %v2126 = vadd.f32 %v2002, %v2115
      %v2127 = vld [vmem:[%s7] sm:$0x1]
      %v2129 = vlaneseq
      %v2130 = vshrl.u32 %v2129, 7
      %v2131 = vsub.s32 0, %v2130
      %v2132 = vrot.slane %v2127, %v2131
      %v2134 = vadd.f32 %v2120, %v2132
      %v2135 = vadd.f32 %v2121, %v2132
      %v2136 = vadd.f32 %v2122, %v2132
      %v2137 = vadd.f32 %v2123, %v2132
      %v2138 = vadd.f32 %v2124, %v2132
      %v2139 = vadd.f32 %v2125, %v2132
      %v2140 = vadd.f32 %v2126, %v2132
      %v2141 = vmax.f32 %v2134, 0.0
      %v2142 = vmax.f32 %v2135, 0.0
      %v2143 = vmax.f32 %v2136, 0.0
      %v2144 = vmax.f32 %v2137, 0.0
      %v2145 = vmax.f32 %v2138, 0.0
      %v2146 = vmax.f32 %v2139, 0.0
      %v2147 = vmax.f32 %v2140, 0.0
      %2155 = vrot.lane.b32.xlu0 %v2141, 64
      %v2156 = vpop.permute.xlu0 %2155
      %2157 = vrot.lane.b32.xlu0 %v2142, 64
      %v2158 = vpop.permute.xlu0 %2157
      %2159 = vrot.lane.b32.xlu0 %v2143, 64
      %v2160 = vpop.permute.xlu0 %2159
      %2161 = vrot.lane.b32.xlu0 %v2144, 64
      %v2162 = vpop.permute.xlu0 %2161
      %2163 = vrot.lane.b32.xlu0 %v2145, 64
      %v2164 = vpop.permute.xlu0 %2163
      %2165 = vrot.lane.b32.xlu0 %v2146, 64
      %v2166 = vpop.permute.xlu0 %2165
      %2167 = vrot.lane.b32.xlu0 %v2147, 64
      %v2168 = vpop.permute.xlu0 %2167
      %vm2176 = vcmask 523264
      %v2177 = vsel %vm2176, %v576, %v2156
      %v2178 = vsel %vm2176, %v577, %v2158
      %v2179 = vsel %vm2176, %v578, %v2160
      %v2180 = vsel %vm2176, %v579, %v2162
      %v2181 = vsel %vm2176, %v580, %v2164
      %v2182 = vsel %vm2176, %v581, %v2166
      %v2183 = vsel %vm2176, %v582, %v2168
      %v2184 = vpack.c.bf16 %v2178, %v2177
      %v2185 = vpack.c.bf16 %v2180, %v2179
      %v2186 = vpack.c.bf16 %v2182, %v2181
      %v2187 = vpack.c.bf16 %v2183, %v2183
      %v2192 = vunpack.c.l.b16 %v2184
      %v2193 = vunpack.c.h.b16 %v2184
      %v2194 = vunpack.c.l.b16 %v2185
      %v2195 = vunpack.c.h.b16 %v2185
      %v2196 = vunpack.c.l.b16 %v2186
      %v2197 = vunpack.c.h.b16 %v2186
      %v2198 = vunpack.c.l.b16 %v2187
      %v2199 = vpack.c.b16 %v2192, %v2192
      %v2200 = vpack.c.b16 %v2193, %v2193
      %v2201 = vpack.c.b16 %v2194, %v2194
      %v2202 = vpack.c.b16 %v2195, %v2195
      %v2203 = vpack.c.b16 %v2196, %v2196
      %v2204 = vpack.c.b16 %v2197, %v2197
      %v2205 = vpack.c.b16 %v2198, %v2198
      %2213 = vst [vmem:[%s305] sm:$0xf] %v2199
      %2214 = vst [vmem:[%s305 + $0x4] sm:$0xf] %v2200
      %2215 = vst [vmem:[%s305 + $0x8] sm:$0xf] %v2201
      %2216 = vst [vmem:[%s305 + $0xc] sm:$0xf] %v2202
      %2217 = vst [vmem:[%s305 + $0x10] sm:$0xf] %v2203
      %2218 = vst [vmem:[%s305 + $0x14] sm:$0xf] %v2204
      %vm2219 = vmand %vm996, %vm593
      %v2220 = vld [vmem:[%s305 + $0x18] sm:$0x1]
      %v2221 = vsel %vm2219, %v2205, %v2220
      %2222 = vst [vmem:[%s305 + $0x18] sm:$0x1] %v2221
      %p2223 = scmp.lt.s32.totalorder %s19, 1
      %s2224 = scalar_select %p2223, %s19, 1
      %s2225 = smul.addr %s2224, 7
      %s2226 = smul.addr %s2225, 4
      %s2227 = scalar_lea.vmem %s8, %s2226
      // Predicated region
      $region53: #{squeezenet3d_forward.10} parent=51 // pred_check
        %p2228 = pneg %p210
      $region54: #{squeezenet3d_forward.10} parent=51 // pred_check_branch
        %2230 = sbr.rel (%p2228) target = $region56
      $region55: #{squeezenet3d_forward.10} parent=51 // pred_region
        _
      $region56: #{squeezenet3d_forward.10} parent=51 // pred_fallthru
        _
    $region52: #{squeezenet3d_forward.10} parent=5 // pred_fallthru
      _
    %p2231 = scmp.le.s32.totalorder 2, %s14
    // Predicated region
    $region57: #{squeezenet3d_forward.10} parent=5 // pred_check
      %p2232 = pneg %p2231
    $region58: #{squeezenet3d_forward.10} parent=5 // pred_check_branch
      %2234 = sbr.rel (%p2232) target = $region60
    $region59: #{squeezenet3d_forward.10} parent=5 // pred_region
      %s2235 = ssub.s32 %s14, 2
      // Predicated region
      $region61: #{squeezenet3d_forward.10} parent=59 // pred_check
        %p2236 = pneg %p216
      $region62: #{squeezenet3d_forward.10} parent=59 // pred_check_branch
        %2238 = sbr.rel (%p2236) target = $region64
      $region63: #{squeezenet3d_forward.10} parent=59 // pred_region
        %p2239 = scmp.lt.s32.totalorder %s20, 1
        %s2240 = scalar_select %p2239, %s20, 1
        %s2241 = smul.addr %s2240, 7
        %s2242 = smul.addr %s2241, 4
        %s2243 = scalar_lea.vmem %s8, %s2242
      $region64: #{squeezenet3d_forward.10} parent=59 // pred_fallthru
        _
    $region60: #{squeezenet3d_forward.10} parent=5 // pred_fallthru
      _
  $region6: #{squeezenet3d_forward.10} parent=0 // loop_footer
    %s18 = sadd.s32 1, %s14
  $region7: #{squeezenet3d_forward.10} parent=0 // loop_footer_branch
    %13 = sbr.rel target = $region3
  $region8: #{squeezenet3d_forward.10} parent=0 // loop_exit
    _

// kernel: squeezenet3d_forward.12
$region0: #{squeezenet3d_forward.12}
  #allocation0 [shape = 'u32[]', space=smem, size = 0x4, offset = 0x4, fixed_abs, tag = 'smem constant byte address 0x4 - core index']
  #allocation1 [shape = 'u32[144,128]{1,0:T(1,128)}', space=vmem, size = 0x12000, scoped, tag = 'internal scratch']
  #allocation2 [shape = 'bf16[21,32]{1,0:T(8,128)(2,1)}', space=vmem, size = 0x1800, scoped, tag = 'scratch operand']
  %s0 = inlined_call_operand.vmem [shape: bf16[2,9,128], index: 0, kind: input, shape index: {}]
  %s1 = inlined_call_operand.vmem [shape: s32[9,1], index: 1, kind: input, shape index: {}]
  %s2 = inlined_call_operand.vmem [shape: bf16[128,32], index: 2, kind: input, shape index: {}]
  %s3 = inlined_call_operand.vmem [shape: f32[1,32], index: 3, kind: input, shape index: {}]
  %s4 = inlined_call_operand.vmem [shape: bf16[32,128], index: 4, kind: input, shape index: {}]
  %s5 = inlined_call_operand.vmem [shape: f32[1,128], index: 5, kind: input, shape index: {}]
  %s6 = inlined_call_operand.vmem [shape: bf16[9,32,128], index: 6, kind: input, shape index: {}]
  %s7 = inlined_call_operand.vmem [shape: f32[1,128], index: 7, kind: input, shape index: {}]
  %s8 = inlined_call_operand.vmem [shape: bf16[2,9,256], index: 8, kind: output, shape index: {}]
  %s9 = sld [smem:[#allocation0]]
  $region65: #{squeezenet3d_forward.12} parent=0
    _
  %s11 = ssub.s32 1, %s9
  %s12 = scalar_select 0, %s11, %s9
  loop: start=0, step=1, limit=4
  $region2: #{squeezenet3d_forward.12} parent=0 // loop_pre_header
    _
  $region3: #{squeezenet3d_forward.12} parent=0 // loop_header
    %s14 = sphi 0, %s18
    %p15 = scmp.ge.s32.totalorder %s14, 4
    %s24 = sphi 0, %s26
    %s27 = sphi 0, %s24
    %s28 = sphi 0, %s27
    %s44 = sphi 0, %s28
    %s48 = sphi 0, %s48
    %s50 = sphi 0, %s48
    %s51 = sphi 0, %s50
    %s65 = sphi 0, %s51
    %s69 = sphi 0, %s69
    %s71 = sphi 0, %s69
    %s72 = sphi 0, %s71
    %s86 = sphi 0, %s72
    %s90 = sphi 0, %s90
    %s92 = sphi 0, %s90
    %s93 = sphi 0, %s92
    %s107 = sphi 0, %s93
    %s111 = sphi 0, %s111
    %s113 = sphi 0, %s111
    %s114 = sphi 0, %s113
    %s128 = sphi 0, %s114
    %s132 = sphi 0, %s132
    %s134 = sphi 0, %s132
    %s135 = sphi 0, %s134
    %s149 = sphi 0, %s135
    %s153 = sphi 0, %s153
    %s155 = sphi 0, %s153
    %s156 = sphi 0, %s155
    %s170 = sphi 0, %s156
    %s174 = sphi 0, %s174
    %s176 = sphi 0, %s174
    %s177 = sphi 0, %s176
    %s191 = sphi 0, %s177
    %s197 = sphi 0, %s199
    %s200 = sphi 0, %s197
    %s201 = sphi 0, %s200
    %s217 = sphi 0, %s201
  $region4: #{squeezenet3d_forward.12} parent=0 // loop_header_branch
    %17 = sbr.rel (%p15) target = $region8
  $region5: #{squeezenet3d_forward.12} parent=0 // loop_body
    %s19 = ssub.s32 %s14, 1
    %s20 = ssub.s32 %s14, 2
    %s21 = sadd.s32 %s14, 1
    %s22 = ssub.s32 %s14, %s21
    %p23 = scmp.eq.s32.totalorder %s22, 0
    %s25 = sadd.s32 %s24, 1
    %s26 = scalar_select %p23, %s24, %s25
    %p29 = pneg %p23
    %p30 = scmp.eq.s32.totalorder %s14, 1
    %p31 = por %p29, %p30
    %p32 = scmp.ne.s32.totalorder %s24, %s27
    %p33 = scmp.eq.s32.totalorder %s14, 0
    %p34 = por %p32, %p33
    %p35 = scmp.ne.s32.totalorder %s24, %s27
    %p36 = scmp.eq.s32.totalorder %s19, 1
    %p37 = por %p35, %p36
    %p38 = scmp.ne.s32.totalorder %s27, %s28
    %p39 = scmp.eq.s32.totalorder %s19, 0
    %p40 = por %p38, %p39
    %p41 = scmp.ne.s32.totalorder %s27, %s28
    %p42 = scmp.eq.s32.totalorder %s20, 1
    %p43 = por %p41, %p42
    %p45 = scmp.ne.s32.totalorder %s28, %s44
    %p46 = scmp.eq.s32.totalorder %s20, 0
    %p47 = por %p45, %p46
    %s49 = sadd.s32 %s48, 1
    %p52 = scmp.eq.s32.totalorder %s14, 1
    %p53 = scmp.ne.s32.totalorder %s48, %s50
    %p54 = scmp.eq.s32.totalorder %s14, 0
    %p55 = por %p53, %p54
    %p56 = scmp.ne.s32.totalorder %s48, %s50
    %p57 = scmp.eq.s32.totalorder %s19, 1
    %p58 = por %p56, %p57
    %p59 = scmp.ne.s32.totalorder %s50, %s51
    %p60 = scmp.eq.s32.totalorder %s19, 0
    %p61 = por %p59, %p60
    %p62 = scmp.ne.s32.totalorder %s50, %s51
    %p63 = scmp.eq.s32.totalorder %s20, 1
    %p64 = por %p62, %p63
    %p66 = scmp.ne.s32.totalorder %s51, %s65
    %p67 = scmp.eq.s32.totalorder %s20, 0
    %p68 = por %p66, %p67
    %s70 = sadd.s32 %s69, 1
    %p73 = scmp.eq.s32.totalorder %s14, 1
    %p74 = scmp.ne.s32.totalorder %s69, %s71
    %p75 = scmp.eq.s32.totalorder %s14, 0
    %p76 = por %p74, %p75
    %p77 = scmp.ne.s32.totalorder %s69, %s71
    %p78 = scmp.eq.s32.totalorder %s19, 1
    %p79 = por %p77, %p78
    %p80 = scmp.ne.s32.totalorder %s71, %s72
    %p81 = scmp.eq.s32.totalorder %s19, 0
    %p82 = por %p80, %p81
    %p83 = scmp.ne.s32.totalorder %s71, %s72
    %p84 = scmp.eq.s32.totalorder %s20, 1
    %p85 = por %p83, %p84
    %p87 = scmp.ne.s32.totalorder %s72, %s86
    %p88 = scmp.eq.s32.totalorder %s20, 0
    %p89 = por %p87, %p88
    %s91 = sadd.s32 %s90, 1
    %p94 = scmp.eq.s32.totalorder %s14, 1
    %p95 = scmp.ne.s32.totalorder %s90, %s92
    %p96 = scmp.eq.s32.totalorder %s14, 0
    %p97 = por %p95, %p96
    %p98 = scmp.ne.s32.totalorder %s90, %s92
    %p99 = scmp.eq.s32.totalorder %s19, 1
    %p100 = por %p98, %p99
    %p101 = scmp.ne.s32.totalorder %s92, %s93
    %p102 = scmp.eq.s32.totalorder %s19, 0
    %p103 = por %p101, %p102
    %p104 = scmp.ne.s32.totalorder %s92, %s93
    %p105 = scmp.eq.s32.totalorder %s20, 1
    %p106 = por %p104, %p105
    %p108 = scmp.ne.s32.totalorder %s93, %s107
    %p109 = scmp.eq.s32.totalorder %s20, 0
    %p110 = por %p108, %p109
    %s112 = sadd.s32 %s111, 1
    %p115 = scmp.eq.s32.totalorder %s14, 1
    %p116 = scmp.ne.s32.totalorder %s111, %s113
    %p117 = scmp.eq.s32.totalorder %s14, 0
    %p118 = por %p116, %p117
    %p119 = scmp.ne.s32.totalorder %s111, %s113
    %p120 = scmp.eq.s32.totalorder %s19, 1
    %p121 = por %p119, %p120
    %p122 = scmp.ne.s32.totalorder %s113, %s114
    %p123 = scmp.eq.s32.totalorder %s19, 0
    %p124 = por %p122, %p123
    %p125 = scmp.ne.s32.totalorder %s113, %s114
    %p126 = scmp.eq.s32.totalorder %s20, 1
    %p127 = por %p125, %p126
    %p129 = scmp.ne.s32.totalorder %s114, %s128
    %p130 = scmp.eq.s32.totalorder %s20, 0
    %p131 = por %p129, %p130
    %s133 = sadd.s32 %s132, 1
    %p136 = scmp.eq.s32.totalorder %s14, 1
    %p137 = scmp.ne.s32.totalorder %s132, %s134
    %p138 = scmp.eq.s32.totalorder %s14, 0
    %p139 = por %p137, %p138
    %p140 = scmp.ne.s32.totalorder %s132, %s134
    %p141 = scmp.eq.s32.totalorder %s19, 1
    %p142 = por %p140, %p141
    %p143 = scmp.ne.s32.totalorder %s134, %s135
    %p144 = scmp.eq.s32.totalorder %s19, 0
    %p145 = por %p143, %p144
    %p146 = scmp.ne.s32.totalorder %s134, %s135
    %p147 = scmp.eq.s32.totalorder %s20, 1
    %p148 = por %p146, %p147
    %p150 = scmp.ne.s32.totalorder %s135, %s149
    %p151 = scmp.eq.s32.totalorder %s20, 0
    %p152 = por %p150, %p151
    %s154 = sadd.s32 %s153, 1
    %p157 = scmp.eq.s32.totalorder %s14, 1
    %p158 = scmp.ne.s32.totalorder %s153, %s155
    %p159 = scmp.eq.s32.totalorder %s14, 0
    %p160 = por %p158, %p159
    %p161 = scmp.ne.s32.totalorder %s153, %s155
    %p162 = scmp.eq.s32.totalorder %s19, 1
    %p163 = por %p161, %p162
    %p164 = scmp.ne.s32.totalorder %s155, %s156
    %p165 = scmp.eq.s32.totalorder %s19, 0
    %p166 = por %p164, %p165
    %p167 = scmp.ne.s32.totalorder %s155, %s156
    %p168 = scmp.eq.s32.totalorder %s20, 1
    %p169 = por %p167, %p168
    %p171 = scmp.ne.s32.totalorder %s156, %s170
    %p172 = scmp.eq.s32.totalorder %s20, 0
    %p173 = por %p171, %p172
    %s175 = sadd.s32 %s174, 1
    %p178 = scmp.eq.s32.totalorder %s14, 1
    %p179 = scmp.ne.s32.totalorder %s174, %s176
    %p180 = scmp.eq.s32.totalorder %s14, 0
    %p181 = por %p179, %p180
    %p182 = scmp.ne.s32.totalorder %s174, %s176
    %p183 = scmp.eq.s32.totalorder %s19, 1
    %p184 = por %p182, %p183
    %p185 = scmp.ne.s32.totalorder %s176, %s177
    %p186 = scmp.eq.s32.totalorder %s19, 0
    %p187 = por %p185, %p186
    %p188 = scmp.ne.s32.totalorder %s176, %s177
    %p189 = scmp.eq.s32.totalorder %s20, 1
    %p190 = por %p188, %p189
    %p192 = scmp.ne.s32.totalorder %s177, %s191
    %p193 = scmp.eq.s32.totalorder %s20, 0
    %p194 = por %p192, %p193
    %s195 = ssub.s32 %s14, %s21
    %p196 = scmp.eq.s32.totalorder %s195, 0
    %s198 = sadd.s32 %s197, 1
    %s199 = scalar_select %p196, %s197, %s198
    %p202 = pneg %p196
    %p203 = scmp.eq.s32.totalorder %s14, 1
    %p204 = por %p202, %p203
    %p205 = scmp.ne.s32.totalorder %s197, %s200
    %p206 = scmp.eq.s32.totalorder %s14, 0
    %p207 = por %p205, %p206
    %p208 = scmp.ne.s32.totalorder %s197, %s200
    %p209 = scmp.eq.s32.totalorder %s19, 1
    %p210 = por %p208, %p209
    %p211 = scmp.ne.s32.totalorder %s200, %s201
    %p212 = scmp.eq.s32.totalorder %s19, 0
    %p213 = por %p211, %p212
    %p214 = scmp.ne.s32.totalorder %s200, %s201
    %p215 = scmp.eq.s32.totalorder %s20, 1
    %p216 = por %p214, %p215
    %p218 = scmp.ne.s32.totalorder %s201, %s217
    %p219 = scmp.eq.s32.totalorder %s20, 0
    %p220 = por %p218, %p219
    %p221 = scmp.le.s32.totalorder 1, %s14
    %p222 = scmp.lt.s32.totalorder %s14, 3
    %p223 = pnand %p221, %p222
    %p224 = pneg %p223
    // Predicated region
    $region9: #{squeezenet3d_forward.12} parent=5 // pred_check
      _
    $region10: #{squeezenet3d_forward.12} parent=5 // pred_check_branch
      %226 = sbr.rel (%p223) target = $region12
    $region11: #{squeezenet3d_forward.12} parent=5 // pred_region
      %s227 = ssub.s32 %s14, 1
      // Predicated region
      $region13: #{squeezenet3d_forward.12} parent=11 // pred_check
        %p228 = pneg %p61
      $region14: #{squeezenet3d_forward.12} parent=11 // pred_check_branch
        %230 = sbr.rel (%p228) target = $region16
      $region15: #{squeezenet3d_forward.12} parent=11 // pred_region
        _
      $region16: #{squeezenet3d_forward.12} parent=11 // pred_fallthru
        _
      // Predicated region
      $region17: #{squeezenet3d_forward.12} parent=11 // pred_check
        %p231 = pneg %p82
      $region18: #{squeezenet3d_forward.12} parent=11 // pred_check_branch
        %233 = sbr.rel (%p231) target = $region20
      $region19: #{squeezenet3d_forward.12} parent=11 // pred_region
        _
      $region20: #{squeezenet3d_forward.12} parent=11 // pred_fallthru
        _
      // Predicated region
      $region21: #{squeezenet3d_forward.12} parent=11 // pred_check
        %p234 = pneg %p103
      $region22: #{squeezenet3d_forward.12} parent=11 // pred_check_branch
        %236 = sbr.rel (%p234) target = $region24
      $region23: #{squeezenet3d_forward.12} parent=11 // pred_region
        _
      $region24: #{squeezenet3d_forward.12} parent=11 // pred_fallthru
        _
      // Predicated region
      $region25: #{squeezenet3d_forward.12} parent=11 // pred_check
        %p237 = pneg %p124
      $region26: #{squeezenet3d_forward.12} parent=11 // pred_check_branch
        %239 = sbr.rel (%p237) target = $region28
      $region27: #{squeezenet3d_forward.12} parent=11 // pred_region
        _
      $region28: #{squeezenet3d_forward.12} parent=11 // pred_fallthru
        _
      // Predicated region
      $region29: #{squeezenet3d_forward.12} parent=11 // pred_check
        %p240 = pneg %p145
      $region30: #{squeezenet3d_forward.12} parent=11 // pred_check_branch
        %242 = sbr.rel (%p240) target = $region32
      $region31: #{squeezenet3d_forward.12} parent=11 // pred_region
        _
      $region32: #{squeezenet3d_forward.12} parent=11 // pred_fallthru
        _
      // Predicated region
      $region33: #{squeezenet3d_forward.12} parent=11 // pred_check
        %p243 = pneg %p166
      $region34: #{squeezenet3d_forward.12} parent=11 // pred_check_branch
        %245 = sbr.rel (%p243) target = $region36
      $region35: #{squeezenet3d_forward.12} parent=11 // pred_region
        _
      $region36: #{squeezenet3d_forward.12} parent=11 // pred_fallthru
        _
      // Predicated region
      $region37: #{squeezenet3d_forward.12} parent=11 // pred_check
        %p246 = pneg %p187
      $region38: #{squeezenet3d_forward.12} parent=11 // pred_check_branch
        %248 = sbr.rel (%p246) target = $region40
      $region39: #{squeezenet3d_forward.12} parent=11 // pred_region
        _
      $region40: #{squeezenet3d_forward.12} parent=11 // pred_fallthru
        _
    $region12: #{squeezenet3d_forward.12} parent=5 // pred_fallthru
      _
    %p249 = scmp.lt.s32.totalorder %s14, 2
    // Predicated region
    $region41: #{squeezenet3d_forward.12} parent=5 // pred_check
      %p250 = pneg %p249
    $region42: #{squeezenet3d_forward.12} parent=5 // pred_check_branch
      %252 = sbr.rel (%p250) target = $region44
    $region43: #{squeezenet3d_forward.12} parent=5 // pred_region
      // Predicated region
      $region45: #{squeezenet3d_forward.12} parent=43 // pred_check
        %p253 = pneg %p34
      $region46: #{squeezenet3d_forward.12} parent=43 // pred_check_branch
        %255 = sbr.rel (%p253) target = $region48
      $region47: #{squeezenet3d_forward.12} parent=43 // pred_region
        %p256 = scmp.lt.s32.totalorder %s14, 1
        %s257 = scalar_select %p256, %s14, 1
        %s258 = smul.addr %s257, 2
        %s259 = smul.addr %s258, 4
        %s260 = scalar_lea.vmem %s0, %s259
      $region48: #{squeezenet3d_forward.12} parent=43 // pred_fallthru
        _
    $region44: #{squeezenet3d_forward.12} parent=5 // pred_fallthru
      _
    %p261 = scmp.le.s32.totalorder 1, %s14
    %p262 = scmp.lt.s32.totalorder %s14, 3
    %p263 = pnand %p261, %p262
    %p264 = pneg %p263
    // Predicated region
    $region49: #{squeezenet3d_forward.12} parent=5 // pred_check
      _
    $region50: #{squeezenet3d_forward.12} parent=5 // pred_check_branch
      %266 = sbr.rel (%p263) target = $region52
    $region51: #{squeezenet3d_forward.12} parent=5 // pred_region
      %s267 = ssub.s32 %s14, 1
      %p268 = scmp.lt.s32.totalorder %s19, 1
      %s269 = scalar_select %p268, %s19, 1
      %s270 = smul.addr %s269, 2
      %s271 = smul.addr %s270, 4
      %s272 = scalar_lea.vmem %s0, %s271
      %p273 = pneg %p40
      %p274 = pneg %p37
      %p275 = pneg %p61
      %p276 = pneg %p58
      %p277 = pneg %p82
      %p278 = pneg %p79
      %p279 = pneg %p103
      %p280 = pneg %p100
      %p281 = pneg %p124
      %p282 = pneg %p121
      %p283 = pneg %p145
      %p284 = pneg %p142
      %p285 = pneg %p166
      %p286 = pneg %p163
      %p287 = pneg %p187
      %p288 = pneg %p184
      %p289 = pneg %p213
      %p290 = pneg %p210
      %p291 = scmp.lt.s32.totalorder %s19, 1
      %s292 = scalar_select %p291, %s19, 1
      %s293 = smul.addr %s292, 4
      %s294 = smul.addr %s293, 4
      %s295 = scalar_lea.vmem %s8, %s294
      %p296 = scmp.lt.s32.totalorder %s19, 1
      %s297 = scalar_select %p296, %s19, 1
      %s298 = smul.addr %s297, 2
      %s299 = smul.addr %s298, 4
      %s300 = scalar_lea.vmem %s0, %s299
      %p301 = scmp.lt.s32.totalorder %s19, 1
      %s302 = scalar_select %p301, %s19, 1
      %s303 = smul.addr %s302, 4
      %s304 = smul.addr %s303, 4
      %s305 = scalar_lea.vmem %s8, %s304
      %v309 = vld [vmem:[%s300] sm:$0xf]
      %v310 = vld [vmem:[%s300 + $0x4] sm:$0x1]
      %v311 = vld [vmem:[%s2] sm:$0xf]
      %v312 = vld [vmem:[%s2 + $0x4] sm:$0xf]
      %v313 = vld [vmem:[%s2 + $0x8] sm:$0xf]
      %v314 = vld [vmem:[%s2 + $0xc] sm:$0xf]
      %v315 = vld [vmem:[%s2 + $0x10] sm:$0xf]
      %v316 = vld [vmem:[%s2 + $0x14] sm:$0xf]
      %v317 = vld [vmem:[%s2 + $0x18] sm:$0xf]
      %v318 = vld [vmem:[%s2 + $0x1c] sm:$0xf]
      %v319 = vld [vmem:[%s2 + $0x20] sm:$0xf]
      %v320 = vld [vmem:[%s2 + $0x24] sm:$0xf]
      %v321 = vld [vmem:[%s2 + $0x28] sm:$0xf]
      %v322 = vld [vmem:[%s2 + $0x2c] sm:$0xf]
      %v323 = vld [vmem:[%s2 + $0x30] sm:$0xf]
      %v324 = vld [vmem:[%s2 + $0x34] sm:$0xf]
      %v325 = vld [vmem:[%s2 + $0x38] sm:$0xf]
      %v326 = vld [vmem:[%s2 + $0x3c] sm:$0xf]
      %v327 = vld [vmem:[%s3] sm:$0x1]
      %v329 = vlaneseq
      %v330 = vshrl.u32 %v329, 7
      %v331 = vsub.s32 0, %v330
      %v332 = vrot.slane %v327, %v331
      %v336 = vunpack.c.l.b16 %v309
      %v337 = vunpack.c.l.b16 %v310
      %v338 = vpack.c.b16 %v337, %v336
      %v356 = vunpack.c.l.b16 %v311
      %v357 = vunpack.c.l.b16 %v312
      %v358 = vunpack.c.l.b16 %v313
      %v359 = vunpack.c.l.b16 %v314
      %v360 = vunpack.c.l.b16 %v315
      %v361 = vunpack.c.l.b16 %v316
      %v362 = vunpack.c.l.b16 %v317
      %v363 = vunpack.c.l.b16 %v318
      %v364 = vunpack.c.l.b16 %v319
      %v365 = vunpack.c.l.b16 %v320
      %v366 = vunpack.c.l.b16 %v321
      %v367 = vunpack.c.l.b16 %v322
      %v368 = vunpack.c.l.b16 %v323
      %v369 = vunpack.c.l.b16 %v324
      %v370 = vunpack.c.l.b16 %v325
      %v371 = vunpack.c.l.b16 %v326
      %v372 = vpack.c.b16 %v357, %v356
      %v373 = vpack.c.b16 %v359, %v358
      %v374 = vpack.c.b16 %v361, %v360
      %v375 = vpack.c.b16 %v363, %v362
      %v376 = vpack.c.b16 %v365, %v364
      %v377 = vpack.c.b16 %v367, %v366
      %v378 = vpack.c.b16 %v369, %v368
      %v379 = vpack.c.b16 %v371, %v370
      %388 = vmatprep.subr.bf16.mxu0 0
      %389 = vmatpush1.bf16.msra.mxu0 %v372
      %390 = vmatprep.subr.bf16.mxu0 0
      %391 = vmatpush1.bf16.msra.mxu0 %v373
      %392 = vmatprep.subr.bf16.mxu0 0
      %393 = vmatpush1.bf16.msra.mxu0 %v374
      %394 = vmatprep.subr.bf16.mxu0 0
      %395 = vmatpush1.bf16.msra.mxu0 %v375
      %396 = vmatprep.subr.bf16.mxu0 0
      %397 = vmatpush1.bf16.msra.mxu0 %v376
      %398 = vmatprep.subr.bf16.mxu0 0
      %399 = vmatpush1.bf16.msra.mxu0 %v377
      %400 = vmatprep.subr.bf16.mxu0 0
      %401 = vmatpush1.bf16.msra.mxu0 %v378
      %402 = vmatprep.subr.bf16.mxu0 0
      %403 = vmatpush1.bf16.msra.mxu0 %v379
      %404 = vmatprep.subr.bf16.mxu0 0
      %405 = vmatpush1.bf16.msra.mxu0 0
      %406 = vmatprep.subr.bf16.mxu0 0
      %407 = vmatpush1.bf16.msra.mxu0 0
      %408 = vmatprep.subr.bf16.mxu0 0
      %409 = vmatpush1.bf16.msra.mxu0 0
      %410 = vmatprep.subr.bf16.mxu0 0
      %411 = vmatpush1.bf16.msra.mxu0 0
      %412 = vmatprep.subr.bf16.mxu0 0
      %413 = vmatpush1.bf16.msra.mxu0 0
      %414 = vmatprep.subr.bf16.mxu0 0
      %415 = vmatpush1.bf16.msra.mxu0 0
      %416 = vmatprep.subr.bf16.mxu0 0
      %417 = vmatpush1.bf16.msra.mxu0 0
      %418 = vmatprep.subr.bf16.mxu0 0
      %419 = vmatpush1.bf16.msra.mxu0 0
      %420 = vmatprep.mubr.bf16.mxu0 0
      %421 = vmatmul.mubr.bf16.gmra.mrb[0].mxu0 %v338
      %v422 = vpop.f32.mrb[0].mxu0
      %v423 = vadd.f32 %v332, %v422
      %v424 = vpop.f32.mrb[0].mxu0
      %v425 = vpop.f32.mrb[0].mxu0
      %v426 = vadd.f32 %v332, %v425
      %v427 = vpop.f32.mrb[0].mxu0
      %428 = vdwg.mxu0
      %v429 = vmax.f32 %v423, 0.0
      %v430 = vmax.f32 %v426, 0.0
      %v431 = vpack.c.bf16 %v430, %v429
      %v432 = vld [vmem:[%s4] sm:$0xf]
      %v433 = vld [vmem:[%s4 + $0x4] sm:$0xf]
      %v434 = vld [vmem:[%s4 + $0x8] sm:$0xf]
      %v435 = vld [vmem:[%s4 + $0xc] sm:$0xf]
      %v436 = vld [vmem:[%s5] sm:$0x1]
      %v438 = vlaneseq
      %v439 = vshrl.u32 %v438, 7
      %v440 = vsub.s32 0, %v439
      %v441 = vrot.slane %v436, %v440
      %v447 = vunpack.c.l.b16 %v432
      %v448 = vunpack.c.l.b16 %v433
      %v449 = vunpack.c.l.b16 %v434
      %v450 = vunpack.c.l.b16 %v435
      %v451 = vpack.c.b16 %v448, %v447
      %v452 = vpack.c.b16 %v450, %v449
      %vm455 = vcmask 261120
      %v457 = vsel %vm455, %v431, 0
      %459 = vmatprep.subr.bf16.mxu0 0
      %460 = vmatpush1.bf16.msra.mxu0 %v451
      %461 = vmatprep.subr.bf16.mxu0 0
      %462 = vmatpush1.bf16.msra.mxu0 %v452
      %463 = vmatprep.subr.bf16.mxu0 0
      %464 = vmatpush1.bf16.msra.mxu0 0
      %465 = vmatprep.subr.bf16.mxu0 0
      %466 = vmatpush1.bf16.msra.mxu0 0
      %467 = vmatprep.subr.bf16.mxu0 0
      %468 = vmatpush1.bf16.msra.mxu0 0
      %469 = vmatprep.subr.bf16.mxu0 0
      %470 = vmatpush1.bf16.msra.mxu0 0
      %471 = vmatprep.subr.bf16.mxu0 0
      %472 = vmatpush1.bf16.msra.mxu0 0
      %473 = vmatprep.subr.bf16.mxu0 0
      %474 = vmatpush1.bf16.msra.mxu0 0
      %475 = vmatprep.subr.bf16.mxu0 0
      %476 = vmatpush1.bf16.msra.mxu0 0
      %477 = vmatprep.subr.bf16.mxu0 0
      %478 = vmatpush1.bf16.msra.mxu0 0
      %479 = vmatprep.subr.bf16.mxu0 0
      %480 = vmatpush1.bf16.msra.mxu0 0
      %481 = vmatprep.subr.bf16.mxu0 0
      %482 = vmatpush1.bf16.msra.mxu0 0
      %483 = vmatprep.subr.bf16.mxu0 0
      %484 = vmatpush1.bf16.msra.mxu0 0
      %485 = vmatprep.subr.bf16.mxu0 0
      %486 = vmatpush1.bf16.msra.mxu0 0
      %487 = vmatprep.subr.bf16.mxu0 0
      %488 = vmatpush1.bf16.msra.mxu0 0
      %489 = vmatprep.subr.bf16.mxu0 0
      %490 = vmatpush1.bf16.msra.mxu0 0
      %491 = vmatprep.mubr.bf16.mxu0 0
      %492 = vmatmul.mubr.bf16.gmra.mrb[0].mxu0 %v457
      %v493 = vpop.f32.mrb[0].mxu0
      %v494 = vadd.f32 %v441, %v493
      %v495 = vpop.f32.mrb[0].mxu0
      %v496 = vpop.f32.mrb[0].mxu0
      %v497 = vadd.f32 %v441, %v496
      %v498 = vpop.f32.mrb[0].mxu0
      %499 = vdwg.mxu0
      %v500 = vmax.f32 %v494, 0.0
      %v501 = vmax.f32 %v497, 0.0
      %vm502 = vcmask 257024
      %503 = vst.msk [vmem:[#allocation2] sm:$0xf] %vm502, 0
      %504 = vst.msk [vmem:[#allocation2 + $0x4] sm:$0xf] %vm502, 0
      %vm505 = vcmask 256000
      %vm506 = vsmask.f32 2304
      %vm507 = vmand %vm505, %vm506
      %v508 = vld [vmem:[#allocation2 + $0x8] sm:$0x7]
      %v509 = vsel %vm507, 0, %v508
      %510 = vst [vmem:[#allocation2 + $0x8] sm:$0x7] %v509
      %v512 = vunpack.c.l.b16 %v431
      %v513 = vunpack.c.h.b16 %v431
      %v514 = vpack.c.b16 %v512, %v512
      %v515 = vpack.c.b16 %v513, %v513
      %518 = vst.msk [vmem:[#allocation2 + $0x4] sm:$0xf] %vm502, %v514
      %vm519 = vcmask 253952
      %vm520 = vsmask.f32 256
      %vm521 = vmand %vm519, %vm520
      %v522 = vld [vmem:[#allocation2 + $0x8] sm:$0x1]
      %v523 = vsel %vm521, %v515, %v522
      %524 = vst [vmem:[#allocation2 + $0x8] sm:$0x1] %v523
      %v525 = vld [vmem:[%s1] sm:$0xff]
      %v526 = vld [vmem:[%s1 + $0x8] sm:$0x1]
      %v527 = vld [vmem:[#allocation2] sm:$0xc]
      %v528 = vld [vmem:[#allocation2 + $0x4] sm:$0x7]
      %vm529 = vcmp.ge.s32.totalorder %v525, 1
      %vm530 = vcmp.ge.s32.totalorder %v526, 1
      %v531 = vsel %vm529, 1, 0
      %v532 = vsel %vm530, 1, 0
      %533 = vset.pattern.permute.xlu0 0
      %534 = vperm.xlu0 %533, %v531
      %v535 = vpop.permute.xlu0 %534
      %536 = vset.pattern.permute.xlu0 0
      %537 = vperm.xlu0 %536, %v532
      %v538 = vpop.permute.xlu0 %537
      %vm539 = vcmp.eq.s32.totalorder %v535, 1
      %vm540 = vcmp.eq.s32.totalorder %v538, 1
      %vm541 = vmpackc.low %vm539, %vm539
      %vm542 = vmpackc.low %vm540, %vm540
      %v543 = vsel %vm541, 65537, 0
      %v544 = vsel %vm542, 65537, 0
      %vm545 = vcmask 1041408
      %vm546 = vcmask 1045508
      %vm547 = vmor %vm545, %vm546
      %v548 = vrot.slane %v543, 6
      %v549 = vrot.slane %v548, 4
      %v550 = vrot.slane %v544, 6
      %v551 = vsel %vm547, %v549, %v550
      %vm552 = vcmp.ne.s16.totalorder %v548, 0
      %vm553 = vcmp.ne.s16.totalorder %v551, 0
      %v554 = vsel %vm552, %v527, 0
      %v555 = vsel %vm553, %v528, 0
      %v556 = vld [vmem:[%s6] sm:$0xf]
      %v557 = vld [vmem:[%s6 + $0x4] sm:$0xf]
      %v558 = vld [vmem:[%s6 + $0x8] sm:$0xf]
      %v559 = vld [vmem:[%s6 + $0xc] sm:$0xf]
      %s560 = scalar_lea.vmem %s6, 16
      %v561 = vld [vmem:[%s560] sm:$0xf]
      %v562 = vld [vmem:[%s560 + $0x4] sm:$0xf]
      %v563 = vld [vmem:[%s560 + $0x8] sm:$0xf]
      %v564 = vld [vmem:[%s560 + $0xc] sm:$0xf]
      %v567 = vunpack.c.l.b16 %v527
      %v568 = vunpack.c.l.b16 %v528
      %v569 = vpack.c.b16 %v568, %v567
      %v571 = vshrl.u32 %v569, 16
      %v573 = vrot.slane %v571, 2
      %v574 = vshll.u32 %v569, 16
      %v576 = vrot.slane %v574, 3
      %v577 = vor.u32 %v573, %v576
      %v582 = vunpack.c.l.b16 %v561
      %v583 = vunpack.c.l.b16 %v562
      %v584 = vunpack.c.l.b16 %v563
      %v585 = vunpack.c.l.b16 %v564
      %v586 = vpack.c.b16 %v583, %v582
      %v587 = vpack.c.b16 %v585, %v584
      %v591 = vsel %vm455, %v577, 0
      %593 = vmatprep.subr.bf16.mxu0 0
      %594 = vmatpush1.bf16.msra.mxu0 %v586
      %595 = vmatprep.subr.bf16.mxu0 0
      %596 = vmatpush1.bf16.msra.mxu0 %v587
      %597 = vmatprep.subr.bf16.mxu0 0
      %598 = vmatpush1.bf16.msra.mxu0 0
      %599 = vmatprep.subr.bf16.mxu0 0
      %600 = vmatpush1.bf16.msra.mxu0 0
      %601 = vmatprep.subr.bf16.mxu0 0
      %602 = vmatpush1.bf16.msra.mxu0 0
      %603 = vmatprep.subr.bf16.mxu0 0
      %604 = vmatpush1.bf16.msra.mxu0 0
      %605 = vmatprep.subr.bf16.mxu0 0
      %606 = vmatpush1.bf16.msra.mxu0 0
      %607 = vmatprep.subr.bf16.mxu0 0
      %608 = vmatpush1.bf16.msra.mxu0 0
      %609 = vmatprep.subr.bf16.mxu0 0
      %610 = vmatpush1.bf16.msra.mxu0 0
      %611 = vmatprep.subr.bf16.mxu0 0
      %612 = vmatpush1.bf16.msra.mxu0 0
      %613 = vmatprep.subr.bf16.mxu0 0
      %614 = vmatpush1.bf16.msra.mxu0 0
      %615 = vmatprep.subr.bf16.mxu0 0
      %616 = vmatpush1.bf16.msra.mxu0 0
      %617 = vmatprep.subr.bf16.mxu0 0
      %618 = vmatpush1.bf16.msra.mxu0 0
      %619 = vmatprep.subr.bf16.mxu0 0
      %620 = vmatpush1.bf16.msra.mxu0 0
      %621 = vmatprep.subr.bf16.mxu0 0
      %622 = vmatpush1.bf16.msra.mxu0 0
      %623 = vmatprep.subr.bf16.mxu0 0
      %624 = vmatpush1.bf16.msra.mxu0 0
      %625 = vmatprep.mubr.bf16.mxu0 0
      %626 = vmatmul.mubr.bf16.gmra.mrb[0].mxu0 %v591
      %v627 = vpop.f32.mrb[0].mxu0
      %v628 = vadd.f32 0.0, %v627
      %v629 = vpop.f32.mrb[0].mxu0
      %v630 = vpop.f32.mrb[0].mxu0
      %v631 = vadd.f32 0.0, %v630
      %v632 = vpop.f32.mrb[0].mxu0
      %633 = vdwg.mxu0
      %v636 = vunpack.c.l.b16 %v554
      %v637 = vunpack.c.l.b16 %v555
      %v638 = vpack.c.b16 %v637, %v636
      %v639 = vrot.slane %v638, 2
      %v644 = vunpack.c.l.b16 %v556
      %v645 = vunpack.c.l.b16 %v557
      %v646 = vunpack.c.l.b16 %v558
      %v647 = vunpack.c.l.b16 %v559
      %v648 = vpack.c.b16 %v645, %v644
      %v649 = vpack.c.b16 %v647, %v646
      %v653 = vsel %vm455, %v639, 0
      %655 = vmatprep.subr.bf16.mxu0 0
      %656 = vmatpush1.bf16.msra.mxu0 %v648
      %657 = vmatprep.subr.bf16.mxu0 0
      %658 = vmatpush1.bf16.msra.mxu0 %v649
      %659 = vmatprep.subr.bf16.mxu0 0
      %660 = vmatpush1.bf16.msra.mxu0 0
      %661 = vmatprep.subr.bf16.mxu0 0
      %662 = vmatpush1.bf16.msra.mxu0 0
      %663 = vmatprep.subr.bf16.mxu0 0
      %664 = vmatpush1.bf16.msra.mxu0 0
      %665 = vmatprep.subr.bf16.mxu0 0
      %666 = vmatpush1.bf16.msra.mxu0 0
      %667 = vmatprep.subr.bf16.mxu0 0
      %668 = vmatpush1.bf16.msra.mxu0 0
      %669 = vmatprep.subr.bf16.mxu0 0
      %670 = vmatpush1.bf16.msra.mxu0 0
      %671 = vmatprep.subr.bf16.mxu0 0
      %672 = vmatpush1.bf16.msra.mxu0 0
      %673 = vmatprep.subr.bf16.mxu0 0
      %674 = vmatpush1.bf16.msra.mxu0 0
      %675 = vmatprep.subr.bf16.mxu0 0
      %676 = vmatpush1.bf16.msra.mxu0 0
      %677 = vmatprep.subr.bf16.mxu0 0
      %678 = vmatpush1.bf16.msra.mxu0 0
      %679 = vmatprep.subr.bf16.mxu0 0
      %680 = vmatpush1.bf16.msra.mxu0 0
      %681 = vmatprep.subr.bf16.mxu0 0
      %682 = vmatpush1.bf16.msra.mxu0 0
      %683 = vmatprep.subr.bf16.mxu0 0
      %684 = vmatpush1.bf16.msra.mxu0 0
      %685 = vmatprep.subr.bf16.mxu0 0
      %686 = vmatpush1.bf16.msra.mxu0 0
      %687 = vmatprep.mubr.bf16.mxu0 0
      %688 = vmatmul.mubr.bf16.gmra.mrb[0].mxu0 %v653
      %v689 = vpop.f32.mrb[0].mxu0
      %v690 = vadd.f32 %v628, %v689
      %v691 = vpop.f32.mrb[0].mxu0
      %v692 = vpop.f32.mrb[0].mxu0
      %v693 = vadd.f32 %v631, %v692
      %v694 = vpop.f32.mrb[0].mxu0
      %695 = vdwg.mxu0
      %v696 = vld [vmem:[#allocation2] sm:$0x8]
      %v697 = vld [vmem:[#allocation2 + $0x4] sm:$0xf]
      %vm698 = vcmp.le.s32.totalorder %v525, 1
      %vm699 = vcmp.le.s32.totalorder %v526, 1
      %v700 = vsel %vm698, 1, 0
      %v701 = vsel %vm699, 1, 0
      %702 = vset.pattern.permute.xlu0 0
      %703 = vperm.xlu0 %702, %v700
      %v704 = vpop.permute.xlu0 %703
      %705 = vset.pattern.permute.xlu0 0
      %706 = vperm.xlu0 %705, %v701
      %v707 = vpop.permute.xlu0 %706
      %vm708 = vcmp.eq.s32.totalorder %v704, 1
      %vm709 = vcmp.eq.s32.totalorder %v707, 1
      %vm710 = vmpackc.low %vm708, %vm708
      %vm711 = vmpackc.low %vm709, %vm709
      %v712 = vsel %vm710, 65537, 0
      %v713 = vsel %vm711, 65537, 0
      %vm714 = vcmask 1042432
      %vm715 = vcmask 1046532
      %vm716 = vmor %vm714, %vm715
      %v717 = vrot.slane %v712, 5
      %v718 = vrot.slane %v717, 4
      %v719 = vrot.slane %v713, 5
      %v720 = vsel %vm716, %v718, %v719
      %vm721 = vcmp.ne.s16.totalorder %v717, 0
      %vm722 = vcmp.ne.s16.totalorder %v720, 0
      %v723 = vsel %vm721, %v696, 0
      %v724 = vsel %vm722, %v697, 0
      %s725 = scalar_lea.vmem %s6, 32
      %v726 = vld [vmem:[%s725] sm:$0xf]
      %v727 = vld [vmem:[%s725 + $0x4] sm:$0xf]
      %v728 = vld [vmem:[%s725 + $0x8] sm:$0xf]
      %v729 = vld [vmem:[%s725 + $0xc] sm:$0xf]
      %v732 = vunpack.c.l.b16 %v723
      %v733 = vunpack.c.l.b16 %v724
      %v734 = vpack.c.b16 %v733, %v732
      %v735 = vrot.slane %v734, 3
      %v740 = vunpack.c.l.b16 %v726
      %v741 = vunpack.c.l.b16 %v727
      %v742 = vunpack.c.l.b16 %v728
      %v743 = vunpack.c.l.b16 %v729
      %v744 = vpack.c.b16 %v741, %v740
      %v745 = vpack.c.b16 %v743, %v742
      %v749 = vsel %vm455, %v735, 0
      %751 = vmatprep.subr.bf16.mxu0 0
      %752 = vmatpush1.bf16.msra.mxu0 %v744
      %753 = vmatprep.subr.bf16.mxu0 0
      %754 = vmatpush1.bf16.msra.mxu0 %v745
      %755 = vmatprep.subr.bf16.mxu0 0
      %756 = vmatpush1.bf16.msra.mxu0 0
      %757 = vmatprep.subr.bf16.mxu0 0
      %758 = vmatpush1.bf16.msra.mxu0 0
      %759 = vmatprep.subr.bf16.mxu0 0
      %760 = vmatpush1.bf16.msra.mxu0 0
      %761 = vmatprep.subr.bf16.mxu0 0
      %762 = vmatpush1.bf16.msra.mxu0 0
      %763 = vmatprep.subr.bf16.mxu0 0
      %764 = vmatpush1.bf16.msra.mxu0 0
      %765 = vmatprep.subr.bf16.mxu0 0
      %766 = vmatpush1.bf16.msra.mxu0 0
      %767 = vmatprep.subr.bf16.mxu0 0
      %768 = vmatpush1.bf16.msra.mxu0 0
      %769 = vmatprep.subr.bf16.mxu0 0
      %770 = vmatpush1.bf16.msra.mxu0 0
      %771 = vmatprep.subr.bf16.mxu0 0
      %772 = vmatpush1.bf16.msra.mxu0 0
      %773 = vmatprep.subr.bf16.mxu0 0
      %774 = vmatpush1.bf16.msra.mxu0 0
      %775 = vmatprep.subr.bf16.mxu0 0
      %776 = vmatpush1.bf16.msra.mxu0 0
      %777 = vmatprep.subr.bf16.mxu0 0
      %778 = vmatpush1.bf16.msra.mxu0 0
      %779 = vmatprep.subr.bf16.mxu0 0
      %780 = vmatpush1.bf16.msra.mxu0 0
      %781 = vmatprep.subr.bf16.mxu0 0
      %782 = vmatpush1.bf16.msra.mxu0 0
      %783 = vmatprep.mubr.bf16.mxu0 0
      %784 = vmatmul.mubr.bf16.gmra.mrb[0].mxu0 %v749
      %v785 = vpop.f32.mrb[0].mxu0
      %v786 = vadd.f32 0.0, %v785
      %v787 = vpop.f32.mrb[0].mxu0
      %v788 = vpop.f32.mrb[0].mxu0
      %v789 = vadd.f32 0.0, %v788
      %v790 = vpop.f32.mrb[0].mxu0
      %791 = vdwg.mxu0
      %v792 = vadd.f32 %v690, %v786
      %v793 = vadd.f32 %v693, %v789
      %vm794 = vsmask.f32 3328
      %vm795 = vsmask.f32 7440
      %vm796 = vmor %vm794, %vm795
      %v798 = vshll.u32 %v543, 16
      %v800 = vrot.slane %v798, 5
      %v801 = vshrl.u32 %v543, 16
      %v803 = vrot.slane %v801, 4
      %v804 = vor.u32 %v803, %v800
      %v805 = vrot.slane %v804, 4
      %v807 = vshll.u32 %v544, 16
      %v809 = vrot.slane %v807, 5
      %v810 = vsel %vm796, %v805, %v809
      %vm811 = vcmp.ne.s16.totalorder %v800, 0
      %vm812 = vcmp.ne.s16.totalorder %v810, 0
      %v813 = vsel %vm811, %v696, 0
      %v814 = vsel %vm812, %v697, 0
      %s815 = scalar_lea.vmem %s6, 48
      %v816 = vld [vmem:[%s815] sm:$0xf]
      %v817 = vld [vmem:[%s815 + $0x4] sm:$0xf]
      %v818 = vld [vmem:[%s815 + $0x8] sm:$0xf]
      %v819 = vld [vmem:[%s815 + $0xc] sm:$0xf]
      %v822 = vunpack.c.l.b16 %v813
      %v823 = vunpack.c.l.b16 %v814
      %v824 = vpack.c.b16 %v823, %v822
      %v826 = vshrl.u32 %v824, 16
      %v828 = vrot.slane %v826, 3
      %v829 = vshll.u32 %v824, 16
      %v831 = vrot.slane %v829, 4
      %v832 = vor.u32 %v828, %v831
      %v837 = vunpack.c.l.b16 %v816
      %v838 = vunpack.c.l.b16 %v817
      %v839 = vunpack.c.l.b16 %v818
      %v840 = vunpack.c.l.b16 %v819
      %v841 = vpack.c.b16 %v838, %v837
      %v842 = vpack.c.b16 %v840, %v839
      %v846 = vsel %vm455, %v832, 0
      %848 = vmatprep.subr.bf16.mxu0 0
      %849 = vmatpush1.bf16.msra.mxu0 %v841
      %850 = vmatprep.subr.bf16.mxu0 0
      %851 = vmatpush1.bf16.msra.mxu0 %v842
      %852 = vmatprep.subr.bf16.mxu0 0
      %853 = vmatpush1.bf16.msra.mxu0 0
      %854 = vmatprep.subr.bf16.mxu0 0
      %855 = vmatpush1.bf16.msra.mxu0 0
      %856 = vmatprep.subr.bf16.mxu0 0
      %857 = vmatpush1.bf16.msra.mxu0 0
      %858 = vmatprep.subr.bf16.mxu0 0
      %859 = vmatpush1.bf16.msra.mxu0 0
      %860 = vmatprep.subr.bf16.mxu0 0
      %861 = vmatpush1.bf16.msra.mxu0 0
      %862 = vmatprep.subr.bf16.mxu0 0
      %863 = vmatpush1.bf16.msra.mxu0 0
      %864 = vmatprep.subr.bf16.mxu0 0
      %865 = vmatpush1.bf16.msra.mxu0 0
      %866 = vmatprep.subr.bf16.mxu0 0
      %867 = vmatpush1.bf16.msra.mxu0 0
      %868 = vmatprep.subr.bf16.mxu0 0
      %869 = vmatpush1.bf16.msra.mxu0 0
      %870 = vmatprep.subr.bf16.mxu0 0
      %871 = vmatpush1.bf16.msra.mxu0 0
      %872 = vmatprep.subr.bf16.mxu0 0
      %873 = vmatpush1.bf16.msra.mxu0 0
      %874 = vmatprep.subr.bf16.mxu0 0
      %875 = vmatpush1.bf16.msra.mxu0 0
      %876 = vmatprep.subr.bf16.mxu0 0
      %877 = vmatpush1.bf16.msra.mxu0 0
      %878 = vmatprep.subr.bf16.mxu0 0
      %879 = vmatpush1.bf16.msra.mxu0 0
      %880 = vmatprep.mubr.bf16.mxu0 0
      %881 = vmatmul.mubr.bf16.gmra.mrb[0].mxu0 %v846
      %v882 = vpop.f32.mrb[0].mxu0
      %v883 = vadd.f32 0.0, %v882
      %v884 = vpop.f32.mrb[0].mxu0
      %v885 = vpop.f32.mrb[0].mxu0
      %v886 = vadd.f32 0.0, %v885
      %v887 = vpop.f32.mrb[0].mxu0
      %888 = vdwg.mxu0
      %v889 = vadd.f32 %v792, %v883
      %v890 = vadd.f32 %v793, %v886
      %v891 = vld [vmem:[#allocation2 + $0x4] sm:$0xf]
      %v892 = vld [vmem:[#allocation2 + $0x8] sm:$0x1]
      %s893 = scalar_lea.vmem %s6, 64
      %v894 = vld [vmem:[%s893] sm:$0xf]
      %v895 = vld [vmem:[%s893 + $0x4] sm:$0xf]
      %v896 = vld [vmem:[%s893 + $0x8] sm:$0xf]
      %v897 = vld [vmem:[%s893 + $0xc] sm:$0xf]
      %v900 = vunpack.c.l.b16 %v891
      %v901 = vunpack.c.l.b16 %v892
      %v902 = vpack.c.b16 %v901, %v900
      %v907 = vunpack.c.l.b16 %v894
      %v908 = vunpack.c.l.b16 %v895
      %v909 = vunpack.c.l.b16 %v896
      %v910 = vunpack.c.l.b16 %v897
      %v911 = vpack.c.b16 %v908, %v907
      %v912 = vpack.c.b16 %v910, %v909
      %v916 = vsel %vm455, %v902, 0
      %918 = vmatprep.subr.bf16.mxu0 0
      %919 = vmatpush1.bf16.msra.mxu0 %v911
      %920 = vmatprep.subr.bf16.mxu0 0
      %921 = vmatpush1.bf16.msra.mxu0 %v912
      %922 = vmatprep.subr.bf16.mxu0 0
      %923 = vmatpush1.bf16.msra.mxu0 0
      %924 = vmatprep.subr.bf16.mxu0 0
      %925 = vmatpush1.bf16.msra.mxu0 0
      %926 = vmatprep.subr.bf16.mxu0 0
      %927 = vmatpush1.bf16.msra.mxu0 0
      %928 = vmatprep.subr.bf16.mxu0 0
      %929 = vmatpush1.bf16.msra.mxu0 0
      %930 = vmatprep.subr.bf16.mxu0 0
      %931 = vmatpush1.bf16.msra.mxu0 0
      %932 = vmatprep.subr.bf16.mxu0 0
      %933 = vmatpush1.bf16.msra.mxu0 0
      %934 = vmatprep.subr.bf16.mxu0 0
      %935 = vmatpush1.bf16.msra.mxu0 0
      %936 = vmatprep.subr.bf16.mxu0 0
      %937 = vmatpush1.bf16.msra.mxu0 0
      %938 = vmatprep.subr.bf16.mxu0 0
      %939 = vmatpush1.bf16.msra.mxu0 0
      %940 = vmatprep.subr.bf16.mxu0 0
      %941 = vmatpush1.bf16.msra.mxu0 0
      %942 = vmatprep.subr.bf16.mxu0 0
      %943 = vmatpush1.bf16.msra.mxu0 0
      %944 = vmatprep.subr.bf16.mxu0 0
      %945 = vmatpush1.bf16.msra.mxu0 0
      %946 = vmatprep.subr.bf16.mxu0 0
      %947 = vmatpush1.bf16.msra.mxu0 0
      %948 = vmatprep.subr.bf16.mxu0 0
      %949 = vmatpush1.bf16.msra.mxu0 0
      %950 = vmatprep.mubr.bf16.mxu0 0
      %951 = vmatmul.mubr.bf16.gmra.mrb[0].mxu0 %v916
      %v952 = vpop.f32.mrb[0].mxu0
      %v953 = vadd.f32 0.0, %v952
      %v954 = vpop.f32.mrb[0].mxu0
      %v955 = vpop.f32.mrb[0].mxu0
      %v956 = vadd.f32 0.0, %v955
      %v957 = vpop.f32.mrb[0].mxu0
      %958 = vdwg.mxu0
      %v959 = vadd.f32 %v889, %v953
      %v960 = vadd.f32 %v890, %v956
      %vm961 = vsmask.f32 4368
      %vm962 = vmor %vm520, %vm961
      %v964 = vshrl.u32 %v712, 16
      %v966 = vrot.slane %v964, 7
      %v967 = vshll.u32 %v712, 16
      %v969 = vor.u32 %v966, %v967
      %v970 = vrot.slane %v966, 4
      %v972 = vshll.u32 %v713, 16
      %v974 = vsel %vm962, %v970, %v972
      %vm975 = vcmp.ne.s16.totalorder %v969, 0
      %vm976 = vcmp.ne.s16.totalorder %v974, 0
      %v977 = vsel %vm975, %v891, 0
      %v978 = vsel %vm976, %v892, 0
      %s979 = scalar_lea.vmem %s6, 80
      %v980 = vld [vmem:[%s979] sm:$0xf]
      %v981 = vld [vmem:[%s979 + $0x4] sm:$0xf]
      %v982 = vld [vmem:[%s979 + $0x8] sm:$0xf]
      %v983 = vld [vmem:[%s979 + $0xc] sm:$0xf]
      %v986 = vunpack.c.l.b16 %v977
      %v987 = vunpack.c.l.b16 %v978
      %v988 = vpack.c.b16 %v987, %v986
      %v990 = vshrl.u32 %v988, 16
      %v992 = vshll.u32 %v988, 16
      %v994 = vrot.slane %v992, 1
      %v995 = vor.u32 %v990, %v994
      %v1000 = vunpack.c.l.b16 %v980
      %v1001 = vunpack.c.l.b16 %v981
      %v1002 = vunpack.c.l.b16 %v982
      %v1003 = vunpack.c.l.b16 %v983
      %v1004 = vpack.c.b16 %v1001, %v1000
      %v1005 = vpack.c.b16 %v1003, %v1002
      %v1009 = vsel %vm455, %v995, 0
      %1011 = vmatprep.subr.bf16.mxu0 0
      %1012 = vmatpush1.bf16.msra.mxu0 %v1004
      %1013 = vmatprep.subr.bf16.mxu0 0
      %1014 = vmatpush1.bf16.msra.mxu0 %v1005
      %1015 = vmatprep.subr.bf16.mxu0 0
      %1016 = vmatpush1.bf16.msra.mxu0 0
      %1017 = vmatprep.subr.bf16.mxu0 0
      %1018 = vmatpush1.bf16.msra.mxu0 0
      %1019 = vmatprep.subr.bf16.mxu0 0
      %1020 = vmatpush1.bf16.msra.mxu0 0
      %1021 = vmatprep.subr.bf16.mxu0 0
      %1022 = vmatpush1.bf16.msra.mxu0 0
      %1023 = vmatprep.subr.bf16.mxu0 0
      %1024 = vmatpush1.bf16.msra.mxu0 0
      %1025 = vmatprep.subr.bf16.mxu0 0
      %1026 = vmatpush1.bf16.msra.mxu0 0
      %1027 = vmatprep.subr.bf16.mxu0 0
      %1028 = vmatpush1.bf16.msra.mxu0 0
      %1029 = vmatprep.subr.bf16.mxu0 0
      %1030 = vmatpush1.bf16.msra.mxu0 0
      %1031 = vmatprep.subr.bf16.mxu0 0
      %1032 = vmatpush1.bf16.msra.mxu0 0
      %1033 = vmatprep.subr.bf16.mxu0 0
      %1034 = vmatpush1.bf16.msra.mxu0 0
      %1035 = vmatprep.subr.bf16.mxu0 0
      %1036 = vmatpush1.bf16.msra.mxu0 0
      %1037 = vmatprep.subr.bf16.mxu0 0
      %1038 = vmatpush1.bf16.msra.mxu0 0
      %1039 = vmatprep.subr.bf16.mxu0 0
      %1040 = vmatpush1.bf16.msra.mxu0 0
      %1041 = vmatprep.subr.bf16.mxu0 0
      %1042 = vmatpush1.bf16.msra.mxu0 0
      %1043 = vmatprep.mubr.bf16.mxu0 0
      %1044 = vmatmul.mubr.bf16.gmra.mrb[0].mxu0 %v1009
      %v1045 = vpop.f32.mrb[0].mxu0
      %v1046 = vadd.f32 0.0, %v1045
      %v1047 = vpop.f32.mrb[0].mxu0
      %v1048 = vpop.f32.mrb[0].mxu0
      %v1049 = vadd.f32 0.0, %v1048
      %v1050 = vpop.f32.mrb[0].mxu0
      %1051 = vdwg.mxu0
      %v1052 = vadd.f32 %v959, %v1046
      %v1053 = vadd.f32 %v960, %v1049
      %v1054 = vld [vmem:[#allocation2 + $0x4] sm:$0xe]
      %v1055 = vld [vmem:[#allocation2 + $0x8] sm:$0x3]
      %vm1056 = vcmask 1040384
      %vm1057 = vcmask 1044484
      %vm1058 = vmor %vm1056, %vm1057
      %v1059 = vrot.slane %v543, 7
      %v1060 = vrot.slane %v1059, 4
      %v1061 = vrot.slane %v544, 7
      %v1062 = vsel %vm1058, %v1060, %v1061
      %vm1063 = vcmp.ne.s16.totalorder %v1059, 0
      %vm1064 = vcmp.ne.s16.totalorder %v1062, 0
      %v1065 = vsel %vm1063, %v1054, 0
      %v1066 = vsel %vm1064, %v1055, 0
      %s1067 = scalar_lea.vmem %s6, 96
      %v1068 = vld [vmem:[%s1067] sm:$0xf]
      %v1069 = vld [vmem:[%s1067 + $0x4] sm:$0xf]
      %v1070 = vld [vmem:[%s1067 + $0x8] sm:$0xf]
      %v1071 = vld [vmem:[%s1067 + $0xc] sm:$0xf]
      %v1074 = vunpack.c.l.b16 %v1065
      %v1075 = vunpack.c.l.b16 %v1066
      %v1076 = vpack.c.b16 %v1075, %v1074
      %v1077 = vrot.slane %v1076, 1
      %v1082 = vunpack.c.l.b16 %v1068
      %v1083 = vunpack.c.l.b16 %v1069
      %v1084 = vunpack.c.l.b16 %v1070
      %v1085 = vunpack.c.l.b16 %v1071
      %v1086 = vpack.c.b16 %v1083, %v1082
      %v1087 = vpack.c.b16 %v1085, %v1084
      %v1091 = vsel %vm455, %v1077, 0
      %1093 = vmatprep.subr.bf16.mxu0 0
      %1094 = vmatpush1.bf16.msra.mxu0 %v1086
      %1095 = vmatprep.subr.bf16.mxu0 0
      %1096 = vmatpush1.bf16.msra.mxu0 %v1087
      %1097 = vmatprep.subr.bf16.mxu0 0
      %1098 = vmatpush1.bf16.msra.mxu0 0
      %1099 = vmatprep.subr.bf16.mxu0 0
      %1100 = vmatpush1.bf16.msra.mxu0 0
      %1101 = vmatprep.subr.bf16.mxu0 0
      %1102 = vmatpush1.bf16.msra.mxu0 0
      %1103 = vmatprep.subr.bf16.mxu0 0
      %1104 = vmatpush1.bf16.msra.mxu0 0
      %1105 = vmatprep.subr.bf16.mxu0 0
      %1106 = vmatpush1.bf16.msra.mxu0 0
      %1107 = vmatprep.subr.bf16.mxu0 0
      %1108 = vmatpush1.bf16.msra.mxu0 0
      %1109 = vmatprep.subr.bf16.mxu0 0
      %1110 = vmatpush1.bf16.msra.mxu0 0
      %1111 = vmatprep.subr.bf16.mxu0 0
      %1112 = vmatpush1.bf16.msra.mxu0 0
      %1113 = vmatprep.subr.bf16.mxu0 0
      %1114 = vmatpush1.bf16.msra.mxu0 0
      %1115 = vmatprep.subr.bf16.mxu0 0
      %1116 = vmatpush1.bf16.msra.mxu0 0
      %1117 = vmatprep.subr.bf16.mxu0 0
      %1118 = vmatpush1.bf16.msra.mxu0 0
      %1119 = vmatprep.subr.bf16.mxu0 0
      %1120 = vmatpush1.bf16.msra.mxu0 0
      %1121 = vmatprep.subr.bf16.mxu0 0
      %1122 = vmatpush1.bf16.msra.mxu0 0
      %1123 = vmatprep.subr.bf16.mxu0 0
      %1124 = vmatpush1.bf16.msra.mxu0 0
      %1125 = vmatprep.mubr.bf16.mxu0 0
      %1126 = vmatmul.mubr.bf16.gmra.mrb[0].mxu0 %v1091
      %v1127 = vpop.f32.mrb[0].mxu0
      %v1128 = vadd.f32 0.0, %v1127
      %v1129 = vpop.f32.mrb[0].mxu0
      %v1130 = vpop.f32.mrb[0].mxu0
      %v1131 = vadd.f32 0.0, %v1130
      %v1132 = vpop.f32.mrb[0].mxu0
      %1133 = vdwg.mxu0
      %v1134 = vadd.f32 %v1052, %v1128
      %v1135 = vadd.f32 %v1053, %v1131
      %s1136 = scalar_lea.vmem %s6, 112
      %v1137 = vld [vmem:[%s1136] sm:$0xf]
      %v1138 = vld [vmem:[%s1136 + $0x4] sm:$0xf]
      %v1139 = vld [vmem:[%s1136 + $0x8] sm:$0xf]
      %v1140 = vld [vmem:[%s1136 + $0xc] sm:$0xf]
      %v1143 = vunpack.c.l.b16 %v1054
      %v1144 = vunpack.c.l.b16 %v1055
      %v1145 = vpack.c.b16 %v1144, %v1143
      %v1147 = vshrl.u32 %v1145, 16
      %v1149 = vrot.slane %v1147, 1
      %v1150 = vshll.u32 %v1145, 16
      %v1152 = vrot.slane %v1150, 2
      %v1153 = vor.u32 %v1149, %v1152
      %v1158 = vunpack.c.l.b16 %v1137
      %v1159 = vunpack.c.l.b16 %v1138
      %v1160 = vunpack.c.l.b16 %v1139
      %v1161 = vunpack.c.l.b16 %v1140
      %v1162 = vpack.c.b16 %v1159, %v1158
      %v1163 = vpack.c.b16 %v1161, %v1160
      %v1167 = vsel %vm455, %v1153, 0
      %1169 = vmatprep.subr.bf16.mxu0 0
      %1170 = vmatpush1.bf16.msra.mxu0 %v1162
      %1171 = vmatprep.subr.bf16.mxu0 0
      %1172 = vmatpush1.bf16.msra.mxu0 %v1163
      %1173 = vmatprep.subr.bf16.mxu0 0
      %1174 = vmatpush1.bf16.msra.mxu0 0
      %1175 = vmatprep.subr.bf16.mxu0 0
      %1176 = vmatpush1.bf16.msra.mxu0 0
      %1177 = vmatprep.subr.bf16.mxu0 0
      %1178 = vmatpush1.bf16.msra.mxu0 0
      %1179 = vmatprep.subr.bf16.mxu0 0
      %1180 = vmatpush1.bf16.msra.mxu0 0
      %1181 = vmatprep.subr.bf16.mxu0 0
      %1182 = vmatpush1.bf16.msra.mxu0 0
      %1183 = vmatprep.subr.bf16.mxu0 0
      %1184 = vmatpush1.bf16.msra.mxu0 0
      %1185 = vmatprep.subr.bf16.mxu0 0
      %1186 = vmatpush1.bf16.msra.mxu0 0
      %1187 = vmatprep.subr.bf16.mxu0 0
      %1188 = vmatpush1.bf16.msra.mxu0 0
      %1189 = vmatprep.subr.bf16.mxu0 0
      %1190 = vmatpush1.bf16.msra.mxu0 0
      %1191 = vmatprep.subr.bf16.mxu0 0
      %1192 = vmatpush1.bf16.msra.mxu0 0
      %1193 = vmatprep.subr.bf16.mxu0 0
      %1194 = vmatpush1.bf16.msra.mxu0 0
      %1195 = vmatprep.subr.bf16.mxu0 0
      %1196 = vmatpush1.bf16.msra.mxu0 0
      %1197 = vmatprep.subr.bf16.mxu0 0
      %1198 = vmatpush1.bf16.msra.mxu0 0
      %1199 = vmatprep.subr.bf16.mxu0 0
      %1200 = vmatpush1.bf16.msra.mxu0 0
      %1201 = vmatprep.mubr.bf16.mxu0 0
      %1202 = vmatmul.mubr.bf16.gmra.mrb[0].mxu0 %v1167
      %v1203 = vpop.f32.mrb[0].mxu0
      %v1204 = vadd.f32 0.0, %v1203
      %v1205 = vpop.f32.mrb[0].mxu0
      %v1206 = vpop.f32.mrb[0].mxu0
      %v1207 = vadd.f32 0.0, %v1206
      %v1208 = vpop.f32.mrb[0].mxu0
      %1209 = vdwg.mxu0
      %v1210 = vadd.f32 %v1134, %v1204
      %v1211 = vadd.f32 %v1135, %v1207
      %v1212 = vld [vmem:[#allocation2 + $0x4] sm:$0xc]
      %v1213 = vld [vmem:[#allocation2 + $0x8] sm:$0x7]
      %v1214 = vrot.slane %v712, 6
      %v1215 = vrot.slane %v1214, 4
      %v1216 = vrot.slane %v713, 6
      %v1217 = vsel %vm547, %v1215, %v1216
      %vm1218 = vcmp.ne.s16.totalorder %v1214, 0
      %vm1219 = vcmp.ne.s16.totalorder %v1217, 0
      %v1220 = vsel %vm1218, %v1212, 0
      %v1221 = vsel %vm1219, %v1213, 0
      %s1222 = scalar_lea.vmem %s6, 128
      %v1223 = vld [vmem:[%s1222] sm:$0xf]
      %v1224 = vld [vmem:[%s1222 + $0x4] sm:$0xf]
      %v1225 = vld [vmem:[%s1222 + $0x8] sm:$0xf]
      %v1226 = vld [vmem:[%s1222 + $0xc] sm:$0xf]
      %v1229 = vunpack.c.l.b16 %v1220
      %v1230 = vunpack.c.l.b16 %v1221
      %v1231 = vpack.c.b16 %v1230, %v1229
      %v1232 = vrot.slane %v1231, 2
      %v1237 = vunpack.c.l.b16 %v1223
      %v1238 = vunpack.c.l.b16 %v1224
      %v1239 = vunpack.c.l.b16 %v1225
      %v1240 = vunpack.c.l.b16 %v1226
      %v1241 = vpack.c.b16 %v1238, %v1237
      %v1242 = vpack.c.b16 %v1240, %v1239
      %v1246 = vsel %vm455, %v1232, 0
      %1248 = vmatprep.subr.bf16.mxu0 0
      %1249 = vmatpush1.bf16.msra.mxu0 %v1241
      %1250 = vmatprep.subr.bf16.mxu0 0
      %1251 = vmatpush1.bf16.msra.mxu0 %v1242
      %1252 = vmatprep.subr.bf16.mxu0 0
      %1253 = vmatpush1.bf16.msra.mxu0 0
      %1254 = vmatprep.subr.bf16.mxu0 0
      %1255 = vmatpush1.bf16.msra.mxu0 0
      %1256 = vmatprep.subr.bf16.mxu0 0
      %1257 = vmatpush1.bf16.msra.mxu0 0
      %1258 = vmatprep.subr.bf16.mxu0 0
      %1259 = vmatpush1.bf16.msra.mxu0 0
      %1260 = vmatprep.subr.bf16.mxu0 0
      %1261 = vmatpush1.bf16.msra.mxu0 0
      %1262 = vmatprep.subr.bf16.mxu0 0
      %1263 = vmatpush1.bf16.msra.mxu0 0
      %1264 = vmatprep.subr.bf16.mxu0 0
      %1265 = vmatpush1.bf16.msra.mxu0 0
      %1266 = vmatprep.subr.bf16.mxu0 0
      %1267 = vmatpush1.bf16.msra.mxu0 0
      %1268 = vmatprep.subr.bf16.mxu0 0
      %1269 = vmatpush1.bf16.msra.mxu0 0
      %1270 = vmatprep.subr.bf16.mxu0 0
      %1271 = vmatpush1.bf16.msra.mxu0 0
      %1272 = vmatprep.subr.bf16.mxu0 0
      %1273 = vmatpush1.bf16.msra.mxu0 0
      %1274 = vmatprep.subr.bf16.mxu0 0
      %1275 = vmatpush1.bf16.msra.mxu0 0
      %1276 = vmatprep.subr.bf16.mxu0 0
      %1277 = vmatpush1.bf16.msra.mxu0 0
      %1278 = vmatprep.subr.bf16.mxu0 0
      %1279 = vmatpush1.bf16.msra.mxu0 0
      %1280 = vmatprep.mubr.bf16.mxu0 0
      %1281 = vmatmul.mubr.bf16.gmra.mrb[0].mxu0 %v1246
      %v1282 = vpop.f32.mrb[0].mxu0
      %v1283 = vadd.f32 0.0, %v1282
      %v1284 = vpop.f32.mrb[0].mxu0
      %v1285 = vpop.f32.mrb[0].mxu0
      %v1286 = vadd.f32 0.0, %v1285
      %v1287 = vpop.f32.mrb[0].mxu0
      %1288 = vdwg.mxu0
      %v1289 = vadd.f32 %v1210, %v1283
      %v1290 = vadd.f32 %v1211, %v1286
      %v1291 = vld [vmem:[%s7] sm:$0x1]
      %v1293 = vlaneseq
      %v1294 = vshrl.u32 %v1293, 7
      %v1295 = vsub.s32 0, %v1294
      %v1296 = vrot.slane %v1291, %v1295
      %v1298 = vadd.f32 %v1289, %v1296
      %v1299 = vadd.f32 %v1290, %v1296
      %v1300 = vmax.f32 %v1298, 0.0
      %v1301 = vmax.f32 %v1299, 0.0
      %v1302 = vpack.c.bf16 %v501, %v500
      %v1303 = vpack.c.bf16 %v1301, %v1300
      %v1306 = vunpack.c.l.b16 %v1302
      %v1307 = vunpack.c.l.b16 %v1303
      %v1308 = vunpack.c.h.b16 %v1302
      %v1309 = vunpack.c.h.b16 %v1303
      %v1310 = vpack.c.b16 %v1307, %v1306
      %v1311 = vpack.c.b16 %v1309, %v1308
      %1314 = vst [vmem:[%s305] sm:$0xff] %v1310
      %vm1315 = vmand %vm1056, %vm520
      %vm1316 = vsmask.f32 4352
      %vm1317 = vmand %vm1057, %vm1316
      %vm1318 = vmor %vm1317, %vm1315
      %v1319 = vld [vmem:[%s305 + $0x8] sm:$0x11]
      %v1320 = vsel %vm1318, %v1311, %v1319
      %1321 = vst [vmem:[%s305 + $0x8] sm:$0x11] %v1320
      %p1322 = scmp.lt.s32.totalorder %s19, 1
      %s1323 = scalar_select %p1322, %s19, 1
      %s1324 = smul.addr %s1323, 4
      %s1325 = smul.addr %s1324, 4
      %s1326 = scalar_lea.vmem %s8, %s1325
      // Predicated region
      $region53: #{squeezenet3d_forward.12} parent=51 // pred_check
        %p1327 = pneg %p210
      $region54: #{squeezenet3d_forward.12} parent=51 // pred_check_branch
        %1329 = sbr.rel (%p1327) target = $region56
      $region55: #{squeezenet3d_forward.12} parent=51 // pred_region
        _
      $region56: #{squeezenet3d_forward.12} parent=51 // pred_fallthru
        _
    $region52: #{squeezenet3d_forward.12} parent=5 // pred_fallthru
      _
    %p1330 = scmp.le.s32.totalorder 2, %s14
    // Predicated region
    $region57: #{squeezenet3d_forward.12} parent=5 // pred_check
      %p1331 = pneg %p1330
    $region58: #{squeezenet3d_forward.12} parent=5 // pred_check_branch
      %1333 = sbr.rel (%p1331) target = $region60
    $region59: #{squeezenet3d_forward.12} parent=5 // pred_region
      %s1334 = ssub.s32 %s14, 2
      // Predicated region
      $region61: #{squeezenet3d_forward.12} parent=59 // pred_check
        %p1335 = pneg %p216
      $region62: #{squeezenet3d_forward.12} parent=59 // pred_check_branch
        %1337 = sbr.rel (%p1335) target = $region64
      $region63: #{squeezenet3d_forward.12} parent=59 // pred_region
        %p1338 = scmp.lt.s32.totalorder %s20, 1
        %s1339 = scalar_select %p1338, %s20, 1
        %s1340 = smul.addr %s1339, 4
        %s1341 = smul.addr %s1340, 4
        %s1342 = scalar_lea.vmem %s8, %s1341
      $region64: #{squeezenet3d_forward.12} parent=59 // pred_fallthru
        _
    $region60: #{squeezenet3d_forward.12} parent=5 // pred_fallthru
      _
  $region6: #{squeezenet3d_forward.12} parent=0 // loop_footer
    %s18 = sadd.s32 1, %s14
  $region7: #{squeezenet3d_forward.12} parent=0 // loop_footer_branch
    %13 = sbr.rel target = $region3
  $region8: #{squeezenet3d_forward.12} parent=0 // loop_exit
    _

// kernel: squeezenet3d_forward.13
$region0: #{squeezenet3d_forward.13}
  #allocation0 [shape = 'u32[]', space=smem, size = 0x4, offset = 0x4, fixed_abs, tag = 'smem constant byte address 0x4 - core index']
  #allocation1 [shape = 'u32[144,128]{1,0:T(1,128)}', space=vmem, size = 0x12000, scoped, tag = 'internal scratch']
  #allocation2 [shape = 'bf16[21,32]{1,0:T(8,128)(2,1)}', space=vmem, size = 0x1800, scoped, tag = 'scratch operand']
  %s0 = inlined_call_operand.vmem [shape: bf16[2,9,256], index: 0, kind: input, shape index: {}]
  %s1 = inlined_call_operand.vmem [shape: s32[9,1], index: 1, kind: input, shape index: {}]
  %s2 = inlined_call_operand.vmem [shape: bf16[256,32], index: 2, kind: input, shape index: {}]
  %s3 = inlined_call_operand.vmem [shape: f32[1,32], index: 3, kind: input, shape index: {}]
  %s4 = inlined_call_operand.vmem [shape: bf16[32,128], index: 4, kind: input, shape index: {}]
  %s5 = inlined_call_operand.vmem [shape: f32[1,128], index: 5, kind: input, shape index: {}]
  %s6 = inlined_call_operand.vmem [shape: bf16[9,32,128], index: 6, kind: input, shape index: {}]
  %s7 = inlined_call_operand.vmem [shape: f32[1,128], index: 7, kind: input, shape index: {}]
  %s8 = inlined_call_operand.vmem [shape: bf16[2,9,256], index: 8, kind: output, shape index: {}]
  %s9 = sld [smem:[#allocation0]]
  $region65: #{squeezenet3d_forward.13} parent=0
    _
  %s11 = ssub.s32 1, %s9
  %s12 = scalar_select 0, %s11, %s9
  loop: start=0, step=1, limit=4
  $region2: #{squeezenet3d_forward.13} parent=0 // loop_pre_header
    _
  $region3: #{squeezenet3d_forward.13} parent=0 // loop_header
    %s14 = sphi 0, %s18
    %p15 = scmp.ge.s32.totalorder %s14, 4
    %s24 = sphi 0, %s26
    %s27 = sphi 0, %s24
    %s28 = sphi 0, %s27
    %s44 = sphi 0, %s28
    %s48 = sphi 0, %s48
    %s50 = sphi 0, %s48
    %s51 = sphi 0, %s50
    %s65 = sphi 0, %s51
    %s69 = sphi 0, %s69
    %s71 = sphi 0, %s69
    %s72 = sphi 0, %s71
    %s86 = sphi 0, %s72
    %s90 = sphi 0, %s90
    %s92 = sphi 0, %s90
    %s93 = sphi 0, %s92
    %s107 = sphi 0, %s93
    %s111 = sphi 0, %s111
    %s113 = sphi 0, %s111
    %s114 = sphi 0, %s113
    %s128 = sphi 0, %s114
    %s132 = sphi 0, %s132
    %s134 = sphi 0, %s132
    %s135 = sphi 0, %s134
    %s149 = sphi 0, %s135
    %s153 = sphi 0, %s153
    %s155 = sphi 0, %s153
    %s156 = sphi 0, %s155
    %s170 = sphi 0, %s156
    %s174 = sphi 0, %s174
    %s176 = sphi 0, %s174
    %s177 = sphi 0, %s176
    %s191 = sphi 0, %s177
    %s197 = sphi 0, %s199
    %s200 = sphi 0, %s197
    %s201 = sphi 0, %s200
    %s217 = sphi 0, %s201
  $region4: #{squeezenet3d_forward.13} parent=0 // loop_header_branch
    %17 = sbr.rel (%p15) target = $region8
  $region5: #{squeezenet3d_forward.13} parent=0 // loop_body
    %s19 = ssub.s32 %s14, 1
    %s20 = ssub.s32 %s14, 2
    %s21 = sadd.s32 %s14, 1
    %s22 = ssub.s32 %s14, %s21
    %p23 = scmp.eq.s32.totalorder %s22, 0
    %s25 = sadd.s32 %s24, 1
    %s26 = scalar_select %p23, %s24, %s25
    %p29 = pneg %p23
    %p30 = scmp.eq.s32.totalorder %s14, 1
    %p31 = por %p29, %p30
    %p32 = scmp.ne.s32.totalorder %s24, %s27
    %p33 = scmp.eq.s32.totalorder %s14, 0
    %p34 = por %p32, %p33
    %p35 = scmp.ne.s32.totalorder %s24, %s27
    %p36 = scmp.eq.s32.totalorder %s19, 1
    %p37 = por %p35, %p36
    %p38 = scmp.ne.s32.totalorder %s27, %s28
    %p39 = scmp.eq.s32.totalorder %s19, 0
    %p40 = por %p38, %p39
    %p41 = scmp.ne.s32.totalorder %s27, %s28
    %p42 = scmp.eq.s32.totalorder %s20, 1
    %p43 = por %p41, %p42
    %p45 = scmp.ne.s32.totalorder %s28, %s44
    %p46 = scmp.eq.s32.totalorder %s20, 0
    %p47 = por %p45, %p46
    %s49 = sadd.s32 %s48, 1
    %p52 = scmp.eq.s32.totalorder %s14, 1
    %p53 = scmp.ne.s32.totalorder %s48, %s50
    %p54 = scmp.eq.s32.totalorder %s14, 0
    %p55 = por %p53, %p54
    %p56 = scmp.ne.s32.totalorder %s48, %s50
    %p57 = scmp.eq.s32.totalorder %s19, 1
    %p58 = por %p56, %p57
    %p59 = scmp.ne.s32.totalorder %s50, %s51
    %p60 = scmp.eq.s32.totalorder %s19, 0
    %p61 = por %p59, %p60
    %p62 = scmp.ne.s32.totalorder %s50, %s51
    %p63 = scmp.eq.s32.totalorder %s20, 1
    %p64 = por %p62, %p63
    %p66 = scmp.ne.s32.totalorder %s51, %s65
    %p67 = scmp.eq.s32.totalorder %s20, 0
    %p68 = por %p66, %p67
    %s70 = sadd.s32 %s69, 1
    %p73 = scmp.eq.s32.totalorder %s14, 1
    %p74 = scmp.ne.s32.totalorder %s69, %s71
    %p75 = scmp.eq.s32.totalorder %s14, 0
    %p76 = por %p74, %p75
    %p77 = scmp.ne.s32.totalorder %s69, %s71
    %p78 = scmp.eq.s32.totalorder %s19, 1
    %p79 = por %p77, %p78
    %p80 = scmp.ne.s32.totalorder %s71, %s72
    %p81 = scmp.eq.s32.totalorder %s19, 0
    %p82 = por %p80, %p81
    %p83 = scmp.ne.s32.totalorder %s71, %s72
    %p84 = scmp.eq.s32.totalorder %s20, 1
    %p85 = por %p83, %p84
    %p87 = scmp.ne.s32.totalorder %s72, %s86
    %p88 = scmp.eq.s32.totalorder %s20, 0
    %p89 = por %p87, %p88
    %s91 = sadd.s32 %s90, 1
    %p94 = scmp.eq.s32.totalorder %s14, 1
    %p95 = scmp.ne.s32.totalorder %s90, %s92
    %p96 = scmp.eq.s32.totalorder %s14, 0
    %p97 = por %p95, %p96
    %p98 = scmp.ne.s32.totalorder %s90, %s92
    %p99 = scmp.eq.s32.totalorder %s19, 1
    %p100 = por %p98, %p99
    %p101 = scmp.ne.s32.totalorder %s92, %s93
    %p102 = scmp.eq.s32.totalorder %s19, 0
    %p103 = por %p101, %p102
    %p104 = scmp.ne.s32.totalorder %s92, %s93
    %p105 = scmp.eq.s32.totalorder %s20, 1
    %p106 = por %p104, %p105
    %p108 = scmp.ne.s32.totalorder %s93, %s107
    %p109 = scmp.eq.s32.totalorder %s20, 0
    %p110 = por %p108, %p109
    %s112 = sadd.s32 %s111, 1
    %p115 = scmp.eq.s32.totalorder %s14, 1
    %p116 = scmp.ne.s32.totalorder %s111, %s113
    %p117 = scmp.eq.s32.totalorder %s14, 0
    %p118 = por %p116, %p117
    %p119 = scmp.ne.s32.totalorder %s111, %s113
    %p120 = scmp.eq.s32.totalorder %s19, 1
    %p121 = por %p119, %p120
    %p122 = scmp.ne.s32.totalorder %s113, %s114
    %p123 = scmp.eq.s32.totalorder %s19, 0
    %p124 = por %p122, %p123
    %p125 = scmp.ne.s32.totalorder %s113, %s114
    %p126 = scmp.eq.s32.totalorder %s20, 1
    %p127 = por %p125, %p126
    %p129 = scmp.ne.s32.totalorder %s114, %s128
    %p130 = scmp.eq.s32.totalorder %s20, 0
    %p131 = por %p129, %p130
    %s133 = sadd.s32 %s132, 1
    %p136 = scmp.eq.s32.totalorder %s14, 1
    %p137 = scmp.ne.s32.totalorder %s132, %s134
    %p138 = scmp.eq.s32.totalorder %s14, 0
    %p139 = por %p137, %p138
    %p140 = scmp.ne.s32.totalorder %s132, %s134
    %p141 = scmp.eq.s32.totalorder %s19, 1
    %p142 = por %p140, %p141
    %p143 = scmp.ne.s32.totalorder %s134, %s135
    %p144 = scmp.eq.s32.totalorder %s19, 0
    %p145 = por %p143, %p144
    %p146 = scmp.ne.s32.totalorder %s134, %s135
    %p147 = scmp.eq.s32.totalorder %s20, 1
    %p148 = por %p146, %p147
    %p150 = scmp.ne.s32.totalorder %s135, %s149
    %p151 = scmp.eq.s32.totalorder %s20, 0
    %p152 = por %p150, %p151
    %s154 = sadd.s32 %s153, 1
    %p157 = scmp.eq.s32.totalorder %s14, 1
    %p158 = scmp.ne.s32.totalorder %s153, %s155
    %p159 = scmp.eq.s32.totalorder %s14, 0
    %p160 = por %p158, %p159
    %p161 = scmp.ne.s32.totalorder %s153, %s155
    %p162 = scmp.eq.s32.totalorder %s19, 1
    %p163 = por %p161, %p162
    %p164 = scmp.ne.s32.totalorder %s155, %s156
    %p165 = scmp.eq.s32.totalorder %s19, 0
    %p166 = por %p164, %p165
    %p167 = scmp.ne.s32.totalorder %s155, %s156
    %p168 = scmp.eq.s32.totalorder %s20, 1
    %p169 = por %p167, %p168
    %p171 = scmp.ne.s32.totalorder %s156, %s170
    %p172 = scmp.eq.s32.totalorder %s20, 0
    %p173 = por %p171, %p172
    %s175 = sadd.s32 %s174, 1
    %p178 = scmp.eq.s32.totalorder %s14, 1
    %p179 = scmp.ne.s32.totalorder %s174, %s176
    %p180 = scmp.eq.s32.totalorder %s14, 0
    %p181 = por %p179, %p180
    %p182 = scmp.ne.s32.totalorder %s174, %s176
    %p183 = scmp.eq.s32.totalorder %s19, 1
    %p184 = por %p182, %p183
    %p185 = scmp.ne.s32.totalorder %s176, %s177
    %p186 = scmp.eq.s32.totalorder %s19, 0
    %p187 = por %p185, %p186
    %p188 = scmp.ne.s32.totalorder %s176, %s177
    %p189 = scmp.eq.s32.totalorder %s20, 1
    %p190 = por %p188, %p189
    %p192 = scmp.ne.s32.totalorder %s177, %s191
    %p193 = scmp.eq.s32.totalorder %s20, 0
    %p194 = por %p192, %p193
    %s195 = ssub.s32 %s14, %s21
    %p196 = scmp.eq.s32.totalorder %s195, 0
    %s198 = sadd.s32 %s197, 1
    %s199 = scalar_select %p196, %s197, %s198
    %p202 = pneg %p196
    %p203 = scmp.eq.s32.totalorder %s14, 1
    %p204 = por %p202, %p203
    %p205 = scmp.ne.s32.totalorder %s197, %s200
    %p206 = scmp.eq.s32.totalorder %s14, 0
    %p207 = por %p205, %p206
    %p208 = scmp.ne.s32.totalorder %s197, %s200
    %p209 = scmp.eq.s32.totalorder %s19, 1
    %p210 = por %p208, %p209
    %p211 = scmp.ne.s32.totalorder %s200, %s201
    %p212 = scmp.eq.s32.totalorder %s19, 0
    %p213 = por %p211, %p212
    %p214 = scmp.ne.s32.totalorder %s200, %s201
    %p215 = scmp.eq.s32.totalorder %s20, 1
    %p216 = por %p214, %p215
    %p218 = scmp.ne.s32.totalorder %s201, %s217
    %p219 = scmp.eq.s32.totalorder %s20, 0
    %p220 = por %p218, %p219
    %p221 = scmp.le.s32.totalorder 1, %s14
    %p222 = scmp.lt.s32.totalorder %s14, 3
    %p223 = pnand %p221, %p222
    %p224 = pneg %p223
    // Predicated region
    $region9: #{squeezenet3d_forward.13} parent=5 // pred_check
      _
    $region10: #{squeezenet3d_forward.13} parent=5 // pred_check_branch
      %226 = sbr.rel (%p223) target = $region12
    $region11: #{squeezenet3d_forward.13} parent=5 // pred_region
      %s227 = ssub.s32 %s14, 1
      // Predicated region
      $region13: #{squeezenet3d_forward.13} parent=11 // pred_check
        %p228 = pneg %p61
      $region14: #{squeezenet3d_forward.13} parent=11 // pred_check_branch
        %230 = sbr.rel (%p228) target = $region16
      $region15: #{squeezenet3d_forward.13} parent=11 // pred_region
        _
      $region16: #{squeezenet3d_forward.13} parent=11 // pred_fallthru
        _
      // Predicated region
      $region17: #{squeezenet3d_forward.13} parent=11 // pred_check
        %p231 = pneg %p82
      $region18: #{squeezenet3d_forward.13} parent=11 // pred_check_branch
        %233 = sbr.rel (%p231) target = $region20
      $region19: #{squeezenet3d_forward.13} parent=11 // pred_region
        _
      $region20: #{squeezenet3d_forward.13} parent=11 // pred_fallthru
        _
      // Predicated region
      $region21: #{squeezenet3d_forward.13} parent=11 // pred_check
        %p234 = pneg %p103
      $region22: #{squeezenet3d_forward.13} parent=11 // pred_check_branch
        %236 = sbr.rel (%p234) target = $region24
      $region23: #{squeezenet3d_forward.13} parent=11 // pred_region
        _
      $region24: #{squeezenet3d_forward.13} parent=11 // pred_fallthru
        _
      // Predicated region
      $region25: #{squeezenet3d_forward.13} parent=11 // pred_check
        %p237 = pneg %p124
      $region26: #{squeezenet3d_forward.13} parent=11 // pred_check_branch
        %239 = sbr.rel (%p237) target = $region28
      $region27: #{squeezenet3d_forward.13} parent=11 // pred_region
        _
      $region28: #{squeezenet3d_forward.13} parent=11 // pred_fallthru
        _
      // Predicated region
      $region29: #{squeezenet3d_forward.13} parent=11 // pred_check
        %p240 = pneg %p145
      $region30: #{squeezenet3d_forward.13} parent=11 // pred_check_branch
        %242 = sbr.rel (%p240) target = $region32
      $region31: #{squeezenet3d_forward.13} parent=11 // pred_region
        _
      $region32: #{squeezenet3d_forward.13} parent=11 // pred_fallthru
        _
      // Predicated region
      $region33: #{squeezenet3d_forward.13} parent=11 // pred_check
        %p243 = pneg %p166
      $region34: #{squeezenet3d_forward.13} parent=11 // pred_check_branch
        %245 = sbr.rel (%p243) target = $region36
      $region35: #{squeezenet3d_forward.13} parent=11 // pred_region
        _
      $region36: #{squeezenet3d_forward.13} parent=11 // pred_fallthru
        _
      // Predicated region
      $region37: #{squeezenet3d_forward.13} parent=11 // pred_check
        %p246 = pneg %p187
      $region38: #{squeezenet3d_forward.13} parent=11 // pred_check_branch
        %248 = sbr.rel (%p246) target = $region40
      $region39: #{squeezenet3d_forward.13} parent=11 // pred_region
        _
      $region40: #{squeezenet3d_forward.13} parent=11 // pred_fallthru
        _
    $region12: #{squeezenet3d_forward.13} parent=5 // pred_fallthru
      _
    %p249 = scmp.lt.s32.totalorder %s14, 2
    // Predicated region
    $region41: #{squeezenet3d_forward.13} parent=5 // pred_check
      %p250 = pneg %p249
    $region42: #{squeezenet3d_forward.13} parent=5 // pred_check_branch
      %252 = sbr.rel (%p250) target = $region44
    $region43: #{squeezenet3d_forward.13} parent=5 // pred_region
      // Predicated region
      $region45: #{squeezenet3d_forward.13} parent=43 // pred_check
        %p253 = pneg %p34
      $region46: #{squeezenet3d_forward.13} parent=43 // pred_check_branch
        %255 = sbr.rel (%p253) target = $region48
      $region47: #{squeezenet3d_forward.13} parent=43 // pred_region
        %p256 = scmp.lt.s32.totalorder %s14, 1
        %s257 = scalar_select %p256, %s14, 1
        %s258 = smul.addr %s257, 4
        %s259 = smul.addr %s258, 4
        %s260 = scalar_lea.vmem %s0, %s259
      $region48: #{squeezenet3d_forward.13} parent=43 // pred_fallthru
        _
    $region44: #{squeezenet3d_forward.13} parent=5 // pred_fallthru
      _
    %p261 = scmp.le.s32.totalorder 1, %s14
    %p262 = scmp.lt.s32.totalorder %s14, 3
    %p263 = pnand %p261, %p262
    %p264 = pneg %p263
    // Predicated region
    $region49: #{squeezenet3d_forward.13} parent=5 // pred_check
      _
    $region50: #{squeezenet3d_forward.13} parent=5 // pred_check_branch
      %266 = sbr.rel (%p263) target = $region52
    $region51: #{squeezenet3d_forward.13} parent=5 // pred_region
      %s267 = ssub.s32 %s14, 1
      %p268 = scmp.lt.s32.totalorder %s19, 1
      %s269 = scalar_select %p268, %s19, 1
      %s270 = smul.addr %s269, 4
      %s271 = smul.addr %s270, 4
      %s272 = scalar_lea.vmem %s0, %s271
      %p273 = pneg %p40
      %p274 = pneg %p37
      %p275 = pneg %p61
      %p276 = pneg %p58
      %p277 = pneg %p82
      %p278 = pneg %p79
      %p279 = pneg %p103
      %p280 = pneg %p100
      %p281 = pneg %p124
      %p282 = pneg %p121
      %p283 = pneg %p145
      %p284 = pneg %p142
      %p285 = pneg %p166
      %p286 = pneg %p163
      %p287 = pneg %p187
      %p288 = pneg %p184
      %p289 = pneg %p213
      %p290 = pneg %p210
      %p291 = scmp.lt.s32.totalorder %s19, 1
      %s292 = scalar_select %p291, %s19, 1
      %s293 = smul.addr %s292, 4
      %s294 = smul.addr %s293, 4
      %s295 = scalar_lea.vmem %s8, %s294
      %p296 = scmp.lt.s32.totalorder %s19, 1
      %s297 = scalar_select %p296, %s19, 1
      %s298 = smul.addr %s297, 4
      %s299 = smul.addr %s298, 4
      %s300 = scalar_lea.vmem %s0, %s299
      %p301 = scmp.lt.s32.totalorder %s19, 1
      %s302 = scalar_select %p301, %s19, 1
      %s303 = smul.addr %s302, 4
      %s304 = smul.addr %s303, 4
      %s305 = scalar_lea.vmem %s8, %s304
      %v309 = vld [vmem:[%s300] sm:$0xff]
      %v310 = vld [vmem:[%s300 + $0x8] sm:$0x11]
      %v311 = vld [vmem:[%s2] sm:$0xf]
      %v312 = vld [vmem:[%s2 + $0x4] sm:$0xf]
      %v313 = vld [vmem:[%s2 + $0x8] sm:$0xf]
      %v314 = vld [vmem:[%s2 + $0xc] sm:$0xf]
      %v315 = vld [vmem:[%s2 + $0x10] sm:$0xf]
      %v316 = vld [vmem:[%s2 + $0x14] sm:$0xf]
      %v317 = vld [vmem:[%s2 + $0x18] sm:$0xf]
      %v318 = vld [vmem:[%s2 + $0x1c] sm:$0xf]
      %v319 = vld [vmem:[%s2 + $0x20] sm:$0xf]
      %v320 = vld [vmem:[%s2 + $0x24] sm:$0xf]
      %v321 = vld [vmem:[%s2 + $0x28] sm:$0xf]
      %v322 = vld [vmem:[%s2 + $0x2c] sm:$0xf]
      %v323 = vld [vmem:[%s2 + $0x30] sm:$0xf]
      %v324 = vld [vmem:[%s2 + $0x34] sm:$0xf]
      %v325 = vld [vmem:[%s2 + $0x38] sm:$0xf]
      %v326 = vld [vmem:[%s2 + $0x3c] sm:$0xf]
      %v327 = vld [vmem:[%s2 + $0x40] sm:$0xf]
      %v328 = vld [vmem:[%s2 + $0x44] sm:$0xf]
      %v329 = vld [vmem:[%s2 + $0x48] sm:$0xf]
      %v330 = vld [vmem:[%s2 + $0x4c] sm:$0xf]
      %v331 = vld [vmem:[%s2 + $0x50] sm:$0xf]
      %v332 = vld [vmem:[%s2 + $0x54] sm:$0xf]
      %v333 = vld [vmem:[%s2 + $0x58] sm:$0xf]
      %v334 = vld [vmem:[%s2 + $0x5c] sm:$0xf]
      %v335 = vld [vmem:[%s2 + $0x60] sm:$0xf]
      %v336 = vld [vmem:[%s2 + $0x64] sm:$0xf]
      %v337 = vld [vmem:[%s2 + $0x68] sm:$0xf]
      %v338 = vld [vmem:[%s2 + $0x6c] sm:$0xf]
      %v339 = vld [vmem:[%s2 + $0x70] sm:$0xf]
      %v340 = vld [vmem:[%s2 + $0x74] sm:$0xf]
      %v341 = vld [vmem:[%s2 + $0x78] sm:$0xf]
      %v342 = vld [vmem:[%s2 + $0x7c] sm:$0xf]
      %v343 = vld [vmem:[%s3] sm:$0x1]
      %v345 = vlaneseq
      %v346 = vshrl.u32 %v345, 7
      %v347 = vsub.s32 0, %v346
      %v348 = vrot.slane %v343, %v347
      %v352 = vunpack.c.l.b16 %v309
      %v353 = vunpack.c.h.b16 %v309
      %v354 = vunpack.c.l.b16 %v310
      %v355 = vunpack.c.h.b16 %v310
      %v356 = vpack.c.b16 %v354, %v352
      %v357 = vpack.c.b16 %v355, %v353
      %v392 = vunpack.c.l.b16 %v311
      %v393 = vunpack.c.l.b16 %v312
      %v394 = vunpack.c.l.b16 %v313
      %v395 = vunpack.c.l.b16 %v314
      %v396 = vunpack.c.l.b16 %v315
      %v397 = vunpack.c.l.b16 %v316
      %v398 = vunpack.c.l.b16 %v317
      %v399 = vunpack.c.l.b16 %v318
      %v400 = vunpack.c.l.b16 %v319
      %v401 = vunpack.c.l.b16 %v320
      %v402 = vunpack.c.l.b16 %v321
      %v403 = vunpack.c.l.b16 %v322
      %v404 = vunpack.c.l.b16 %v323
      %v405 = vunpack.c.l.b16 %v324
      %v406 = vunpack.c.l.b16 %v325
      %v407 = vunpack.c.l.b16 %v326
      %v408 = vunpack.c.l.b16 %v327
      %v409 = vunpack.c.l.b16 %v328
      %v410 = vunpack.c.l.b16 %v329
      %v411 = vunpack.c.l.b16 %v330
      %v412 = vunpack.c.l.b16 %v331
      %v413 = vunpack.c.l.b16 %v332
      %v414 = vunpack.c.l.b16 %v333
      %v415 = vunpack.c.l.b16 %v334
      %v416 = vunpack.c.l.b16 %v335
      %v417 = vunpack.c.l.b16 %v336
      %v418 = vunpack.c.l.b16 %v337
      %v419 = vunpack.c.l.b16 %v338
      %v420 = vunpack.c.l.b16 %v339
      %v421 = vunpack.c.l.b16 %v340
      %v422 = vunpack.c.l.b16 %v341
      %v423 = vunpack.c.l.b16 %v342
      %v424 = vpack.c.b16 %v393, %v392
      %v425 = vpack.c.b16 %v395, %v394
      %v426 = vpack.c.b16 %v397, %v396
      %v427 = vpack.c.b16 %v399, %v398
      %v428 = vpack.c.b16 %v401, %v400
      %v429 = vpack.c.b16 %v403, %v402
      %v430 = vpack.c.b16 %v405, %v404
      %v431 = vpack.c.b16 %v407, %v406
      %v432 = vpack.c.b16 %v409, %v408
      %v433 = vpack.c.b16 %v411, %v410
      %v434 = vpack.c.b16 %v413, %v412
      %v435 = vpack.c.b16 %v415, %v414
      %v436 = vpack.c.b16 %v417, %v416
      %v437 = vpack.c.b16 %v419, %v418
      %v438 = vpack.c.b16 %v421, %v420
      %v439 = vpack.c.b16 %v423, %v422
      %456 = vmatprep.subr.bf16.mxu0 0
      %457 = vmatpush1.bf16.msra.mxu0 %v424
      %458 = vmatprep.subr.bf16.mxu0 0
      %459 = vmatpush1.bf16.msra.mxu0 %v425
      %460 = vmatprep.subr.bf16.mxu0 0
      %461 = vmatpush1.bf16.msra.mxu0 %v426
      %462 = vmatprep.subr.bf16.mxu0 0
      %463 = vmatpush1.bf16.msra.mxu0 %v427
      %464 = vmatprep.subr.bf16.mxu0 0
      %465 = vmatpush1.bf16.msra.mxu0 %v428
      %466 = vmatprep.subr.bf16.mxu0 0
      %467 = vmatpush1.bf16.msra.mxu0 %v429
      %468 = vmatprep.subr.bf16.mxu0 0
      %469 = vmatpush1.bf16.msra.mxu0 %v430
      %470 = vmatprep.subr.bf16.mxu0 0
      %471 = vmatpush1.bf16.msra.mxu0 %v431
      %472 = vmatprep.subr.bf16.mxu0 0
      %473 = vmatpush1.bf16.msra.mxu0 %v432
      %474 = vmatprep.subr.bf16.mxu0 0
      %475 = vmatpush1.bf16.msra.mxu0 %v433
      %476 = vmatprep.subr.bf16.mxu0 0
      %477 = vmatpush1.bf16.msra.mxu0 %v434
      %478 = vmatprep.subr.bf16.mxu0 0
      %479 = vmatpush1.bf16.msra.mxu0 %v435
      %480 = vmatprep.subr.bf16.mxu0 0
      %481 = vmatpush1.bf16.msra.mxu0 %v436
      %482 = vmatprep.subr.bf16.mxu0 0
      %483 = vmatpush1.bf16.msra.mxu0 %v437
      %484 = vmatprep.subr.bf16.mxu0 0
      %485 = vmatpush1.bf16.msra.mxu0 %v438
      %486 = vmatprep.subr.bf16.mxu0 0
      %487 = vmatpush1.bf16.msra.mxu0 %v439
      %488 = vmatprep.mubr.bf16.mxu0 %v357
      %489 = vmatmul.mubr.bf16.gmra.mrb[0].mxu0 %v356
      %v490 = vpop.f32.mrb[0].mxu0
      %v491 = vadd.f32 %v348, %v490
      %v492 = vpop.f32.mrb[0].mxu0
      %v493 = vpop.f32.mrb[0].mxu0
      %v494 = vadd.f32 %v348, %v493
      %v495 = vpop.f32.mrb[0].mxu0
      %496 = vdwg.mxu0
      %v497 = vmax.f32 %v491, 0.0
      %v498 = vmax.f32 %v494, 0.0
      %v499 = vpack.c.bf16 %v498, %v497
      %v500 = vld [vmem:[%s4] sm:$0xf]
      %v501 = vld [vmem:[%s4 + $0x4] sm:$0xf]
      %v502 = vld [vmem:[%s4 + $0x8] sm:$0xf]
      %v503 = vld [vmem:[%s4 + $0xc] sm:$0xf]
      %v504 = vld [vmem:[%s5] sm:$0x1]
      %v506 = vlaneseq
      %v507 = vshrl.u32 %v506, 7
      %v508 = vsub.s32 0, %v507
      %v509 = vrot.slane %v504, %v508
      %v515 = vunpack.c.l.b16 %v500
      %v516 = vunpack.c.l.b16 %v501
      %v517 = vunpack.c.l.b16 %v502
      %v518 = vunpack.c.l.b16 %v503
      %v519 = vpack.c.b16 %v516, %v515
      %v520 = vpack.c.b16 %v518, %v517
      %vm523 = vcmask 261120
      %v525 = vsel %vm523, %v499, 0
      %527 = vmatprep.subr.bf16.mxu0 0
      %528 = vmatpush1.bf16.msra.mxu0 %v519
      %529 = vmatprep.subr.bf16.mxu0 0
      %530 = vmatpush1.bf16.msra.mxu0 %v520
      %531 = vmatprep.subr.bf16.mxu0 0
      %532 = vmatpush1.bf16.msra.mxu0 0
      %533 = vmatprep.subr.bf16.mxu0 0
      %534 = vmatpush1.bf16.msra.mxu0 0
      %535 = vmatprep.subr.bf16.mxu0 0
      %536 = vmatpush1.bf16.msra.mxu0 0
      %537 = vmatprep.subr.bf16.mxu0 0
      %538 = vmatpush1.bf16.msra.mxu0 0
      %539 = vmatprep.subr.bf16.mxu0 0
      %540 = vmatpush1.bf16.msra.mxu0 0
      %541 = vmatprep.subr.bf16.mxu0 0
      %542 = vmatpush1.bf16.msra.mxu0 0
      %543 = vmatprep.subr.bf16.mxu0 0
      %544 = vmatpush1.bf16.msra.mxu0 0
      %545 = vmatprep.subr.bf16.mxu0 0
      %546 = vmatpush1.bf16.msra.mxu0 0
      %547 = vmatprep.subr.bf16.mxu0 0
      %548 = vmatpush1.bf16.msra.mxu0 0
      %549 = vmatprep.subr.bf16.mxu0 0
      %550 = vmatpush1.bf16.msra.mxu0 0
      %551 = vmatprep.subr.bf16.mxu0 0
      %552 = vmatpush1.bf16.msra.mxu0 0
      %553 = vmatprep.subr.bf16.mxu0 0
      %554 = vmatpush1.bf16.msra.mxu0 0
      %555 = vmatprep.subr.bf16.mxu0 0
      %556 = vmatpush1.bf16.msra.mxu0 0
      %557 = vmatprep.subr.bf16.mxu0 0
      %558 = vmatpush1.bf16.msra.mxu0 0
      %559 = vmatprep.mubr.bf16.mxu0 0
      %560 = vmatmul.mubr.bf16.gmra.mrb[0].mxu0 %v525
      %v561 = vpop.f32.mrb[0].mxu0
      %v562 = vadd.f32 %v509, %v561
      %v563 = vpop.f32.mrb[0].mxu0
      %v564 = vpop.f32.mrb[0].mxu0
      %v565 = vadd.f32 %v509, %v564
      %v566 = vpop.f32.mrb[0].mxu0
      %567 = vdwg.mxu0
      %v568 = vmax.f32 %v562, 0.0
      %v569 = vmax.f32 %v565, 0.0
      %vm570 = vcmask 257024
      %571 = vst.msk [vmem:[#allocation2] sm:$0xf] %vm570, 0
      %572 = vst.msk [vmem:[#allocation2 + $0x4] sm:$0xf] %vm570, 0
      %vm573 = vcmask 256000
      %vm574 = vsmask.f32 2304
      %vm575 = vmand %vm573, %vm574
      %v576 = vld [vmem:[#allocation2 + $0x8] sm:$0x7]
      %v577 = vsel %vm575, 0, %v576
      %578 = vst [vmem:[#allocation2 + $0x8] sm:$0x7] %v577
      %v580 = vunpack.c.l.b16 %v499
      %v581 = vunpack.c.h.b16 %v499
      %v582 = vpack.c.b16 %v580, %v580
      %v583 = vpack.c.b16 %v581, %v581
      %586 = vst.msk [vmem:[#allocation2 + $0x4] sm:$0xf] %vm570, %v582
      %vm587 = vcmask 253952
      %vm588 = vsmask.f32 256
      %vm589 = vmand %vm587, %vm588
      %v590 = vld [vmem:[#allocation2 + $0x8] sm:$0x1]
      %v591 = vsel %vm589, %v583, %v590
      %592 = vst [vmem:[#allocation2 + $0x8] sm:$0x1] %v591
      %v593 = vld [vmem:[%s1] sm:$0xff]
      %v594 = vld [vmem:[%s1 + $0x8] sm:$0x1]
      %v595 = vld [vmem:[#allocation2] sm:$0xc]
      %v596 = vld [vmem:[#allocation2 + $0x4] sm:$0x7]
      %vm597 = vcmp.ge.s32.totalorder %v593, 1
      %vm598 = vcmp.ge.s32.totalorder %v594, 1
      %v599 = vsel %vm597, 1, 0
      %v600 = vsel %vm598, 1, 0
      %601 = vset.pattern.permute.xlu0 0
      %602 = vperm.xlu0 %601, %v599
      %v603 = vpop.permute.xlu0 %602
      %604 = vset.pattern.permute.xlu0 0
      %605 = vperm.xlu0 %604, %v600
      %v606 = vpop.permute.xlu0 %605
      %vm607 = vcmp.eq.s32.totalorder %v603, 1
      %vm608 = vcmp.eq.s32.totalorder %v606, 1
      %vm609 = vmpackc.low %vm607, %vm607
      %vm610 = vmpackc.low %vm608, %vm608
      %v611 = vsel %vm609, 65537, 0
      %v612 = vsel %vm610, 65537, 0
      %vm613 = vcmask 1041408
      %vm614 = vcmask 1045508
      %vm615 = vmor %vm613, %vm614
      %v616 = vrot.slane %v611, 6
      %v617 = vrot.slane %v616, 4
      %v618 = vrot.slane %v612, 6
      %v619 = vsel %vm615, %v617, %v618
      %vm620 = vcmp.ne.s16.totalorder %v616, 0
      %vm621 = vcmp.ne.s16.totalorder %v619, 0
      %v622 = vsel %vm620, %v595, 0
      %v623 = vsel %vm621, %v596, 0
      %v624 = vld [vmem:[%s6] sm:$0xf]
      %v625 = vld [vmem:[%s6 + $0x4] sm:$0xf]
      %v626 = vld [vmem:[%s6 + $0x8] sm:$0xf]
      %v627 = vld [vmem:[%s6 + $0xc] sm:$0xf]
      %s628 = scalar_lea.vmem %s6, 16
      %v629 = vld [vmem:[%s628] sm:$0xf]
      %v630 = vld [vmem:[%s628 + $0x4] sm:$0xf]
      %v631 = vld [vmem:[%s628 + $0x8] sm:$0xf]
      %v632 = vld [vmem:[%s628 + $0xc] sm:$0xf]
      %v635 = vunpack.c.l.b16 %v595
      %v636 = vunpack.c.l.b16 %v596
      %v637 = vpack.c.b16 %v636, %v635
      %v639 = vshrl.u32 %v637, 16
      %v641 = vrot.slane %v639, 2
      %v642 = vshll.u32 %v637, 16
      %v644 = vrot.slane %v642, 3
      %v645 = vor.u32 %v641, %v644
      %v650 = vunpack.c.l.b16 %v629
      %v651 = vunpack.c.l.b16 %v630
      %v652 = vunpack.c.l.b16 %v631
      %v653 = vunpack.c.l.b16 %v632
      %v654 = vpack.c.b16 %v651, %v650
      %v655 = vpack.c.b16 %v653, %v652
      %v659 = vsel %vm523, %v645, 0
      %661 = vmatprep.subr.bf16.mxu0 0
      %662 = vmatpush1.bf16.msra.mxu0 %v654
      %663 = vmatprep.subr.bf16.mxu0 0
      %664 = vmatpush1.bf16.msra.mxu0 %v655
      %665 = vmatprep.subr.bf16.mxu0 0
      %666 = vmatpush1.bf16.msra.mxu0 0
      %667 = vmatprep.subr.bf16.mxu0 0
      %668 = vmatpush1.bf16.msra.mxu0 0
      %669 = vmatprep.subr.bf16.mxu0 0
      %670 = vmatpush1.bf16.msra.mxu0 0
      %671 = vmatprep.subr.bf16.mxu0 0
      %672 = vmatpush1.bf16.msra.mxu0 0
      %673 = vmatprep.subr.bf16.mxu0 0
      %674 = vmatpush1.bf16.msra.mxu0 0
      %675 = vmatprep.subr.bf16.mxu0 0
      %676 = vmatpush1.bf16.msra.mxu0 0
      %677 = vmatprep.subr.bf16.mxu0 0
      %678 = vmatpush1.bf16.msra.mxu0 0
      %679 = vmatprep.subr.bf16.mxu0 0
      %680 = vmatpush1.bf16.msra.mxu0 0
      %681 = vmatprep.subr.bf16.mxu0 0
      %682 = vmatpush1.bf16.msra.mxu0 0
      %683 = vmatprep.subr.bf16.mxu0 0
      %684 = vmatpush1.bf16.msra.mxu0 0
      %685 = vmatprep.subr.bf16.mxu0 0
      %686 = vmatpush1.bf16.msra.mxu0 0
      %687 = vmatprep.subr.bf16.mxu0 0
      %688 = vmatpush1.bf16.msra.mxu0 0
      %689 = vmatprep.subr.bf16.mxu0 0
      %690 = vmatpush1.bf16.msra.mxu0 0
      %691 = vmatprep.subr.bf16.mxu0 0
      %692 = vmatpush1.bf16.msra.mxu0 0
      %693 = vmatprep.mubr.bf16.mxu0 0
      %694 = vmatmul.mubr.bf16.gmra.mrb[0].mxu0 %v659
      %v695 = vpop.f32.mrb[0].mxu0
      %v696 = vadd.f32 0.0, %v695
      %v697 = vpop.f32.mrb[0].mxu0
      %v698 = vpop.f32.mrb[0].mxu0
      %v699 = vadd.f32 0.0, %v698
      %v700 = vpop.f32.mrb[0].mxu0
      %701 = vdwg.mxu0
      %v704 = vunpack.c.l.b16 %v622
      %v705 = vunpack.c.l.b16 %v623
      %v706 = vpack.c.b16 %v705, %v704
      %v707 = vrot.slane %v706, 2
      %v712 = vunpack.c.l.b16 %v624
      %v713 = vunpack.c.l.b16 %v625
      %v714 = vunpack.c.l.b16 %v626
      %v715 = vunpack.c.l.b16 %v627
      %v716 = vpack.c.b16 %v713, %v712
      %v717 = vpack.c.b16 %v715, %v714
      %v721 = vsel %vm523, %v707, 0
      %723 = vmatprep.subr.bf16.mxu0 0
      %724 = vmatpush1.bf16.msra.mxu0 %v716
      %725 = vmatprep.subr.bf16.mxu0 0
      %726 = vmatpush1.bf16.msra.mxu0 %v717
      %727 = vmatprep.subr.bf16.mxu0 0
      %728 = vmatpush1.bf16.msra.mxu0 0
      %729 = vmatprep.subr.bf16.mxu0 0
      %730 = vmatpush1.bf16.msra.mxu0 0
      %731 = vmatprep.subr.bf16.mxu0 0
      %732 = vmatpush1.bf16.msra.mxu0 0
      %733 = vmatprep.subr.bf16.mxu0 0
      %734 = vmatpush1.bf16.msra.mxu0 0
      %735 = vmatprep.subr.bf16.mxu0 0
      %736 = vmatpush1.bf16.msra.mxu0 0
      %737 = vmatprep.subr.bf16.mxu0 0
      %738 = vmatpush1.bf16.msra.mxu0 0
      %739 = vmatprep.subr.bf16.mxu0 0
      %740 = vmatpush1.bf16.msra.mxu0 0
      %741 = vmatprep.subr.bf16.mxu0 0
      %742 = vmatpush1.bf16.msra.mxu0 0
      %743 = vmatprep.subr.bf16.mxu0 0
      %744 = vmatpush1.bf16.msra.mxu0 0
      %745 = vmatprep.subr.bf16.mxu0 0
      %746 = vmatpush1.bf16.msra.mxu0 0
      %747 = vmatprep.subr.bf16.mxu0 0
      %748 = vmatpush1.bf16.msra.mxu0 0
      %749 = vmatprep.subr.bf16.mxu0 0
      %750 = vmatpush1.bf16.msra.mxu0 0
      %751 = vmatprep.subr.bf16.mxu0 0
      %752 = vmatpush1.bf16.msra.mxu0 0
      %753 = vmatprep.subr.bf16.mxu0 0
      %754 = vmatpush1.bf16.msra.mxu0 0
      %755 = vmatprep.mubr.bf16.mxu0 0
      %756 = vmatmul.mubr.bf16.gmra.mrb[0].mxu0 %v721
      %v757 = vpop.f32.mrb[0].mxu0
      %v758 = vadd.f32 %v696, %v757
      %v759 = vpop.f32.mrb[0].mxu0
      %v760 = vpop.f32.mrb[0].mxu0
      %v761 = vadd.f32 %v699, %v760
      %v762 = vpop.f32.mrb[0].mxu0
      %763 = vdwg.mxu0
      %v764 = vld [vmem:[#allocation2] sm:$0x8]
      %v765 = vld [vmem:[#allocation2 + $0x4] sm:$0xf]
      %vm766 = vcmp.le.s32.totalorder %v593, 1
      %vm767 = vcmp.le.s32.totalorder %v594, 1
      %v768 = vsel %vm766, 1, 0
      %v769 = vsel %vm767, 1, 0
      %770 = vset.pattern.permute.xlu0 0
      %771 = vperm.xlu0 %770, %v768
      %v772 = vpop.permute.xlu0 %771
      %773 = vset.pattern.permute.xlu0 0
      %774 = vperm.xlu0 %773, %v769
      %v775 = vpop.permute.xlu0 %774
      %vm776 = vcmp.eq.s32.totalorder %v772, 1
      %vm777 = vcmp.eq.s32.totalorder %v775, 1
      %vm778 = vmpackc.low %vm776, %vm776
      %vm779 = vmpackc.low %vm777, %vm777
      %v780 = vsel %vm778, 65537, 0
      %v781 = vsel %vm779, 65537, 0
      %vm782 = vcmask 1042432
      %vm783 = vcmask 1046532
      %vm784 = vmor %vm782, %vm783
      %v785 = vrot.slane %v780, 5
      %v786 = vrot.slane %v785, 4
      %v787 = vrot.slane %v781, 5
      %v788 = vsel %vm784, %v786, %v787
      %vm789 = vcmp.ne.s16.totalorder %v785, 0
      %vm790 = vcmp.ne.s16.totalorder %v788, 0
      %v791 = vsel %vm789, %v764, 0
      %v792 = vsel %vm790, %v765, 0
      %s793 = scalar_lea.vmem %s6, 32
      %v794 = vld [vmem:[%s793] sm:$0xf]
      %v795 = vld [vmem:[%s793 + $0x4] sm:$0xf]
      %v796 = vld [vmem:[%s793 + $0x8] sm:$0xf]
      %v797 = vld [vmem:[%s793 + $0xc] sm:$0xf]
      %v800 = vunpack.c.l.b16 %v791
      %v801 = vunpack.c.l.b16 %v792
      %v802 = vpack.c.b16 %v801, %v800
      %v803 = vrot.slane %v802, 3
      %v808 = vunpack.c.l.b16 %v794
      %v809 = vunpack.c.l.b16 %v795
      %v810 = vunpack.c.l.b16 %v796
      %v811 = vunpack.c.l.b16 %v797
      %v812 = vpack.c.b16 %v809, %v808
      %v813 = vpack.c.b16 %v811, %v810
      %v817 = vsel %vm523, %v803, 0
      %819 = vmatprep.subr.bf16.mxu0 0
      %820 = vmatpush1.bf16.msra.mxu0 %v812
      %821 = vmatprep.subr.bf16.mxu0 0
      %822 = vmatpush1.bf16.msra.mxu0 %v813
      %823 = vmatprep.subr.bf16.mxu0 0
      %824 = vmatpush1.bf16.msra.mxu0 0
      %825 = vmatprep.subr.bf16.mxu0 0
      %826 = vmatpush1.bf16.msra.mxu0 0
      %827 = vmatprep.subr.bf16.mxu0 0
      %828 = vmatpush1.bf16.msra.mxu0 0
      %829 = vmatprep.subr.bf16.mxu0 0
      %830 = vmatpush1.bf16.msra.mxu0 0
      %831 = vmatprep.subr.bf16.mxu0 0
      %832 = vmatpush1.bf16.msra.mxu0 0
      %833 = vmatprep.subr.bf16.mxu0 0
      %834 = vmatpush1.bf16.msra.mxu0 0
      %835 = vmatprep.subr.bf16.mxu0 0
      %836 = vmatpush1.bf16.msra.mxu0 0
      %837 = vmatprep.subr.bf16.mxu0 0
      %838 = vmatpush1.bf16.msra.mxu0 0
      %839 = vmatprep.subr.bf16.mxu0 0
      %840 = vmatpush1.bf16.msra.mxu0 0
      %841 = vmatprep.subr.bf16.mxu0 0
      %842 = vmatpush1.bf16.msra.mxu0 0
      %843 = vmatprep.subr.bf16.mxu0 0
      %844 = vmatpush1.bf16.msra.mxu0 0
      %845 = vmatprep.subr.bf16.mxu0 0
      %846 = vmatpush1.bf16.msra.mxu0 0
      %847 = vmatprep.subr.bf16.mxu0 0
      %848 = vmatpush1.bf16.msra.mxu0 0
      %849 = vmatprep.subr.bf16.mxu0 0
      %850 = vmatpush1.bf16.msra.mxu0 0
      %851 = vmatprep.mubr.bf16.mxu0 0
      %852 = vmatmul.mubr.bf16.gmra.mrb[0].mxu0 %v817
      %v853 = vpop.f32.mrb[0].mxu0
      %v854 = vadd.f32 0.0, %v853
      %v855 = vpop.f32.mrb[0].mxu0
      %v856 = vpop.f32.mrb[0].mxu0
      %v857 = vadd.f32 0.0, %v856
      %v858 = vpop.f32.mrb[0].mxu0
      %859 = vdwg.mxu0
      %v860 = vadd.f32 %v758, %v854
      %v861 = vadd.f32 %v761, %v857
      %vm862 = vsmask.f32 3328
      %vm863 = vsmask.f32 7440
      %vm864 = vmor %vm862, %vm863
      %v866 = vshll.u32 %v611, 16
      %v868 = vrot.slane %v866, 5
      %v869 = vshrl.u32 %v611, 16
      %v871 = vrot.slane %v869, 4
      %v872 = vor.u32 %v871, %v868
      %v873 = vrot.slane %v872, 4
      %v875 = vshll.u32 %v612, 16
      %v877 = vrot.slane %v875, 5
      %v878 = vsel %vm864, %v873, %v877
      %vm879 = vcmp.ne.s16.totalorder %v868, 0
      %vm880 = vcmp.ne.s16.totalorder %v878, 0
      %v881 = vsel %vm879, %v764, 0
      %v882 = vsel %vm880, %v765, 0
      %s883 = scalar_lea.vmem %s6, 48
      %v884 = vld [vmem:[%s883] sm:$0xf]
      %v885 = vld [vmem:[%s883 + $0x4] sm:$0xf]
      %v886 = vld [vmem:[%s883 + $0x8] sm:$0xf]
      %v887 = vld [vmem:[%s883 + $0xc] sm:$0xf]
      %v890 = vunpack.c.l.b16 %v881
      %v891 = vunpack.c.l.b16 %v882
      %v892 = vpack.c.b16 %v891, %v890
      %v894 = vshrl.u32 %v892, 16
      %v896 = vrot.slane %v894, 3
      %v897 = vshll.u32 %v892, 16
      %v899 = vrot.slane %v897, 4
      %v900 = vor.u32 %v896, %v899
      %v905 = vunpack.c.l.b16 %v884
      %v906 = vunpack.c.l.b16 %v885
      %v907 = vunpack.c.l.b16 %v886
      %v908 = vunpack.c.l.b16 %v887
      %v909 = vpack.c.b16 %v906, %v905
      %v910 = vpack.c.b16 %v908, %v907
      %v914 = vsel %vm523, %v900, 0
      %916 = vmatprep.subr.bf16.mxu0 0
      %917 = vmatpush1.bf16.msra.mxu0 %v909
      %918 = vmatprep.subr.bf16.mxu0 0
      %919 = vmatpush1.bf16.msra.mxu0 %v910
      %920 = vmatprep.subr.bf16.mxu0 0
      %921 = vmatpush1.bf16.msra.mxu0 0
      %922 = vmatprep.subr.bf16.mxu0 0
      %923 = vmatpush1.bf16.msra.mxu0 0
      %924 = vmatprep.subr.bf16.mxu0 0
      %925 = vmatpush1.bf16.msra.mxu0 0
      %926 = vmatprep.subr.bf16.mxu0 0
      %927 = vmatpush1.bf16.msra.mxu0 0
      %928 = vmatprep.subr.bf16.mxu0 0
      %929 = vmatpush1.bf16.msra.mxu0 0
      %930 = vmatprep.subr.bf16.mxu0 0
      %931 = vmatpush1.bf16.msra.mxu0 0
      %932 = vmatprep.subr.bf16.mxu0 0
      %933 = vmatpush1.bf16.msra.mxu0 0
      %934 = vmatprep.subr.bf16.mxu0 0
      %935 = vmatpush1.bf16.msra.mxu0 0
      %936 = vmatprep.subr.bf16.mxu0 0
      %937 = vmatpush1.bf16.msra.mxu0 0
      %938 = vmatprep.subr.bf16.mxu0 0
      %939 = vmatpush1.bf16.msra.mxu0 0
      %940 = vmatprep.subr.bf16.mxu0 0
      %941 = vmatpush1.bf16.msra.mxu0 0
      %942 = vmatprep.subr.bf16.mxu0 0
      %943 = vmatpush1.bf16.msra.mxu0 0
      %944 = vmatprep.subr.bf16.mxu0 0
      %945 = vmatpush1.bf16.msra.mxu0 0
      %946 = vmatprep.subr.bf16.mxu0 0
      %947 = vmatpush1.bf16.msra.mxu0 0
      %948 = vmatprep.mubr.bf16.mxu0 0
      %949 = vmatmul.mubr.bf16.gmra.mrb[0].mxu0 %v914
      %v950 = vpop.f32.mrb[0].mxu0
      %v951 = vadd.f32 0.0, %v950
      %v952 = vpop.f32.mrb[0].mxu0
      %v953 = vpop.f32.mrb[0].mxu0
      %v954 = vadd.f32 0.0, %v953
      %v955 = vpop.f32.mrb[0].mxu0
      %956 = vdwg.mxu0
      %v957 = vadd.f32 %v860, %v951
      %v958 = vadd.f32 %v861, %v954
      %v959 = vld [vmem:[#allocation2 + $0x4] sm:$0xf]
      %v960 = vld [vmem:[#allocation2 + $0x8] sm:$0x1]
      %s961 = scalar_lea.vmem %s6, 64
      %v962 = vld [vmem:[%s961] sm:$0xf]
      %v963 = vld [vmem:[%s961 + $0x4] sm:$0xf]
      %v964 = vld [vmem:[%s961 + $0x8] sm:$0xf]
      %v965 = vld [vmem:[%s961 + $0xc] sm:$0xf]
      %v968 = vunpack.c.l.b16 %v959
      %v969 = vunpack.c.l.b16 %v960
      %v970 = vpack.c.b16 %v969, %v968
      %v975 = vunpack.c.l.b16 %v962
      %v976 = vunpack.c.l.b16 %v963
      %v977 = vunpack.c.l.b16 %v964
      %v978 = vunpack.c.l.b16 %v965
      %v979 = vpack.c.b16 %v976, %v975
      %v980 = vpack.c.b16 %v978, %v977
      %v984 = vsel %vm523, %v970, 0
      %986 = vmatprep.subr.bf16.mxu0 0
      %987 = vmatpush1.bf16.msra.mxu0 %v979
      %988 = vmatprep.subr.bf16.mxu0 0
      %989 = vmatpush1.bf16.msra.mxu0 %v980
      %990 = vmatprep.subr.bf16.mxu0 0
      %991 = vmatpush1.bf16.msra.mxu0 0
      %992 = vmatprep.subr.bf16.mxu0 0
      %993 = vmatpush1.bf16.msra.mxu0 0
      %994 = vmatprep.subr.bf16.mxu0 0
      %995 = vmatpush1.bf16.msra.mxu0 0
      %996 = vmatprep.subr.bf16.mxu0 0
      %997 = vmatpush1.bf16.msra.mxu0 0
      %998 = vmatprep.subr.bf16.mxu0 0
      %999 = vmatpush1.bf16.msra.mxu0 0
      %1000 = vmatprep.subr.bf16.mxu0 0
      %1001 = vmatpush1.bf16.msra.mxu0 0
      %1002 = vmatprep.subr.bf16.mxu0 0
      %1003 = vmatpush1.bf16.msra.mxu0 0
      %1004 = vmatprep.subr.bf16.mxu0 0
      %1005 = vmatpush1.bf16.msra.mxu0 0
      %1006 = vmatprep.subr.bf16.mxu0 0
      %1007 = vmatpush1.bf16.msra.mxu0 0
      %1008 = vmatprep.subr.bf16.mxu0 0
      %1009 = vmatpush1.bf16.msra.mxu0 0
      %1010 = vmatprep.subr.bf16.mxu0 0
      %1011 = vmatpush1.bf16.msra.mxu0 0
      %1012 = vmatprep.subr.bf16.mxu0 0
      %1013 = vmatpush1.bf16.msra.mxu0 0
      %1014 = vmatprep.subr.bf16.mxu0 0
      %1015 = vmatpush1.bf16.msra.mxu0 0
      %1016 = vmatprep.subr.bf16.mxu0 0
      %1017 = vmatpush1.bf16.msra.mxu0 0
      %1018 = vmatprep.mubr.bf16.mxu0 0
      %1019 = vmatmul.mubr.bf16.gmra.mrb[0].mxu0 %v984
      %v1020 = vpop.f32.mrb[0].mxu0
      %v1021 = vadd.f32 0.0, %v1020
      %v1022 = vpop.f32.mrb[0].mxu0
      %v1023 = vpop.f32.mrb[0].mxu0
      %v1024 = vadd.f32 0.0, %v1023
      %v1025 = vpop.f32.mrb[0].mxu0
      %1026 = vdwg.mxu0
      %v1027 = vadd.f32 %v957, %v1021
      %v1028 = vadd.f32 %v958, %v1024
      %vm1029 = vsmask.f32 4368
      %vm1030 = vmor %vm588, %vm1029
      %v1032 = vshrl.u32 %v780, 16
      %v1034 = vrot.slane %v1032, 7
      %v1035 = vshll.u32 %v780, 16
      %v1037 = vor.u32 %v1034, %v1035
      %v1038 = vrot.slane %v1034, 4
      %v1040 = vshll.u32 %v781, 16
      %v1042 = vsel %vm1030, %v1038, %v1040
      %vm1043 = vcmp.ne.s16.totalorder %v1037, 0
      %vm1044 = vcmp.ne.s16.totalorder %v1042, 0
      %v1045 = vsel %vm1043, %v959, 0
      %v1046 = vsel %vm1044, %v960, 0
      %s1047 = scalar_lea.vmem %s6, 80
      %v1048 = vld [vmem:[%s1047] sm:$0xf]
      %v1049 = vld [vmem:[%s1047 + $0x4] sm:$0xf]
      %v1050 = vld [vmem:[%s1047 + $0x8] sm:$0xf]
      %v1051 = vld [vmem:[%s1047 + $0xc] sm:$0xf]
      %v1054 = vunpack.c.l.b16 %v1045
      %v1055 = vunpack.c.l.b16 %v1046
      %v1056 = vpack.c.b16 %v1055, %v1054
      %v1058 = vshrl.u32 %v1056, 16
      %v1060 = vshll.u32 %v1056, 16
      %v1062 = vrot.slane %v1060, 1
      %v1063 = vor.u32 %v1058, %v1062
      %v1068 = vunpack.c.l.b16 %v1048
      %v1069 = vunpack.c.l.b16 %v1049
      %v1070 = vunpack.c.l.b16 %v1050
      %v1071 = vunpack.c.l.b16 %v1051
      %v1072 = vpack.c.b16 %v1069, %v1068
      %v1073 = vpack.c.b16 %v1071, %v1070
      %v1077 = vsel %vm523, %v1063, 0
      %1079 = vmatprep.subr.bf16.mxu0 0
      %1080 = vmatpush1.bf16.msra.mxu0 %v1072
      %1081 = vmatprep.subr.bf16.mxu0 0
      %1082 = vmatpush1.bf16.msra.mxu0 %v1073
      %1083 = vmatprep.subr.bf16.mxu0 0
      %1084 = vmatpush1.bf16.msra.mxu0 0
      %1085 = vmatprep.subr.bf16.mxu0 0
      %1086 = vmatpush1.bf16.msra.mxu0 0
      %1087 = vmatprep.subr.bf16.mxu0 0
      %1088 = vmatpush1.bf16.msra.mxu0 0
      %1089 = vmatprep.subr.bf16.mxu0 0
      %1090 = vmatpush1.bf16.msra.mxu0 0
      %1091 = vmatprep.subr.bf16.mxu0 0
      %1092 = vmatpush1.bf16.msra.mxu0 0
      %1093 = vmatprep.subr.bf16.mxu0 0
      %1094 = vmatpush1.bf16.msra.mxu0 0
      %1095 = vmatprep.subr.bf16.mxu0 0
      %1096 = vmatpush1.bf16.msra.mxu0 0
      %1097 = vmatprep.subr.bf16.mxu0 0
      %1098 = vmatpush1.bf16.msra.mxu0 0
      %1099 = vmatprep.subr.bf16.mxu0 0
      %1100 = vmatpush1.bf16.msra.mxu0 0
      %1101 = vmatprep.subr.bf16.mxu0 0
      %1102 = vmatpush1.bf16.msra.mxu0 0
      %1103 = vmatprep.subr.bf16.mxu0 0
      %1104 = vmatpush1.bf16.msra.mxu0 0
      %1105 = vmatprep.subr.bf16.mxu0 0
      %1106 = vmatpush1.bf16.msra.mxu0 0
      %1107 = vmatprep.subr.bf16.mxu0 0
      %1108 = vmatpush1.bf16.msra.mxu0 0
      %1109 = vmatprep.subr.bf16.mxu0 0
      %1110 = vmatpush1.bf16.msra.mxu0 0
      %1111 = vmatprep.mubr.bf16.mxu0 0
      %1112 = vmatmul.mubr.bf16.gmra.mrb[0].mxu0 %v1077
      %v1113 = vpop.f32.mrb[0].mxu0
      %v1114 = vadd.f32 0.0, %v1113
      %v1115 = vpop.f32.mrb[0].mxu0
      %v1116 = vpop.f32.mrb[0].mxu0
      %v1117 = vadd.f32 0.0, %v1116
      %v1118 = vpop.f32.mrb[0].mxu0
      %1119 = vdwg.mxu0
      %v1120 = vadd.f32 %v1027, %v1114
      %v1121 = vadd.f32 %v1028, %v1117
      %v1122 = vld [vmem:[#allocation2 + $0x4] sm:$0xe]
      %v1123 = vld [vmem:[#allocation2 + $0x8] sm:$0x3]
      %vm1124 = vcmask 1040384
      %vm1125 = vcmask 1044484
      %vm1126 = vmor %vm1124, %vm1125
      %v1127 = vrot.slane %v611, 7
      %v1128 = vrot.slane %v1127, 4
      %v1129 = vrot.slane %v612, 7
      %v1130 = vsel %vm1126, %v1128, %v1129
      %vm1131 = vcmp.ne.s16.totalorder %v1127, 0
      %vm1132 = vcmp.ne.s16.totalorder %v1130, 0
      %v1133 = vsel %vm1131, %v1122, 0
      %v1134 = vsel %vm1132, %v1123, 0
      %s1135 = scalar_lea.vmem %s6, 96
      %v1136 = vld [vmem:[%s1135] sm:$0xf]
      %v1137 = vld [vmem:[%s1135 + $0x4] sm:$0xf]
      %v1138 = vld [vmem:[%s1135 + $0x8] sm:$0xf]
      %v1139 = vld [vmem:[%s1135 + $0xc] sm:$0xf]
      %v1142 = vunpack.c.l.b16 %v1133
      %v1143 = vunpack.c.l.b16 %v1134
      %v1144 = vpack.c.b16 %v1143, %v1142
      %v1145 = vrot.slane %v1144, 1
      %v1150 = vunpack.c.l.b16 %v1136
      %v1151 = vunpack.c.l.b16 %v1137
      %v1152 = vunpack.c.l.b16 %v1138
      %v1153 = vunpack.c.l.b16 %v1139
      %v1154 = vpack.c.b16 %v1151, %v1150
      %v1155 = vpack.c.b16 %v1153, %v1152
      %v1159 = vsel %vm523, %v1145, 0
      %1161 = vmatprep.subr.bf16.mxu0 0
      %1162 = vmatpush1.bf16.msra.mxu0 %v1154
      %1163 = vmatprep.subr.bf16.mxu0 0
      %1164 = vmatpush1.bf16.msra.mxu0 %v1155
      %1165 = vmatprep.subr.bf16.mxu0 0
      %1166 = vmatpush1.bf16.msra.mxu0 0
      %1167 = vmatprep.subr.bf16.mxu0 0
      %1168 = vmatpush1.bf16.msra.mxu0 0
      %1169 = vmatprep.subr.bf16.mxu0 0
      %1170 = vmatpush1.bf16.msra.mxu0 0
      %1171 = vmatprep.subr.bf16.mxu0 0
      %1172 = vmatpush1.bf16.msra.mxu0 0
      %1173 = vmatprep.subr.bf16.mxu0 0
      %1174 = vmatpush1.bf16.msra.mxu0 0
      %1175 = vmatprep.subr.bf16.mxu0 0
      %1176 = vmatpush1.bf16.msra.mxu0 0
      %1177 = vmatprep.subr.bf16.mxu0 0
      %1178 = vmatpush1.bf16.msra.mxu0 0
      %1179 = vmatprep.subr.bf16.mxu0 0
      %1180 = vmatpush1.bf16.msra.mxu0 0
      %1181 = vmatprep.subr.bf16.mxu0 0
      %1182 = vmatpush1.bf16.msra.mxu0 0
      %1183 = vmatprep.subr.bf16.mxu0 0
      %1184 = vmatpush1.bf16.msra.mxu0 0
      %1185 = vmatprep.subr.bf16.mxu0 0
      %1186 = vmatpush1.bf16.msra.mxu0 0
      %1187 = vmatprep.subr.bf16.mxu0 0
      %1188 = vmatpush1.bf16.msra.mxu0 0
      %1189 = vmatprep.subr.bf16.mxu0 0
      %1190 = vmatpush1.bf16.msra.mxu0 0
      %1191 = vmatprep.subr.bf16.mxu0 0
      %1192 = vmatpush1.bf16.msra.mxu0 0
      %1193 = vmatprep.mubr.bf16.mxu0 0
      %1194 = vmatmul.mubr.bf16.gmra.mrb[0].mxu0 %v1159
      %v1195 = vpop.f32.mrb[0].mxu0
      %v1196 = vadd.f32 0.0, %v1195
      %v1197 = vpop.f32.mrb[0].mxu0
      %v1198 = vpop.f32.mrb[0].mxu0
      %v1199 = vadd.f32 0.0, %v1198
      %v1200 = vpop.f32.mrb[0].mxu0
      %1201 = vdwg.mxu0
      %v1202 = vadd.f32 %v1120, %v1196
      %v1203 = vadd.f32 %v1121, %v1199
      %s1204 = scalar_lea.vmem %s6, 112
      %v1205 = vld [vmem:[%s1204] sm:$0xf]
      %v1206 = vld [vmem:[%s1204 + $0x4] sm:$0xf]
      %v1207 = vld [vmem:[%s1204 + $0x8] sm:$0xf]
      %v1208 = vld [vmem:[%s1204 + $0xc] sm:$0xf]
      %v1211 = vunpack.c.l.b16 %v1122
      %v1212 = vunpack.c.l.b16 %v1123
      %v1213 = vpack.c.b16 %v1212, %v1211
      %v1215 = vshrl.u32 %v1213, 16
      %v1217 = vrot.slane %v1215, 1
      %v1218 = vshll.u32 %v1213, 16
      %v1220 = vrot.slane %v1218, 2
      %v1221 = vor.u32 %v1217, %v1220
      %v1226 = vunpack.c.l.b16 %v1205
      %v1227 = vunpack.c.l.b16 %v1206
      %v1228 = vunpack.c.l.b16 %v1207
      %v1229 = vunpack.c.l.b16 %v1208
      %v1230 = vpack.c.b16 %v1227, %v1226
      %v1231 = vpack.c.b16 %v1229, %v1228
      %v1235 = vsel %vm523, %v1221, 0
      %1237 = vmatprep.subr.bf16.mxu0 0
      %1238 = vmatpush1.bf16.msra.mxu0 %v1230
      %1239 = vmatprep.subr.bf16.mxu0 0
      %1240 = vmatpush1.bf16.msra.mxu0 %v1231
      %1241 = vmatprep.subr.bf16.mxu0 0
      %1242 = vmatpush1.bf16.msra.mxu0 0
      %1243 = vmatprep.subr.bf16.mxu0 0
      %1244 = vmatpush1.bf16.msra.mxu0 0
      %1245 = vmatprep.subr.bf16.mxu0 0
      %1246 = vmatpush1.bf16.msra.mxu0 0
      %1247 = vmatprep.subr.bf16.mxu0 0
      %1248 = vmatpush1.bf16.msra.mxu0 0
      %1249 = vmatprep.subr.bf16.mxu0 0
      %1250 = vmatpush1.bf16.msra.mxu0 0
      %1251 = vmatprep.subr.bf16.mxu0 0
      %1252 = vmatpush1.bf16.msra.mxu0 0
      %1253 = vmatprep.subr.bf16.mxu0 0
      %1254 = vmatpush1.bf16.msra.mxu0 0
      %1255 = vmatprep.subr.bf16.mxu0 0
      %1256 = vmatpush1.bf16.msra.mxu0 0
      %1257 = vmatprep.subr.bf16.mxu0 0
      %1258 = vmatpush1.bf16.msra.mxu0 0
      %1259 = vmatprep.subr.bf16.mxu0 0
      %1260 = vmatpush1.bf16.msra.mxu0 0
      %1261 = vmatprep.subr.bf16.mxu0 0
      %1262 = vmatpush1.bf16.msra.mxu0 0
      %1263 = vmatprep.subr.bf16.mxu0 0
      %1264 = vmatpush1.bf16.msra.mxu0 0
      %1265 = vmatprep.subr.bf16.mxu0 0
      %1266 = vmatpush1.bf16.msra.mxu0 0
      %1267 = vmatprep.subr.bf16.mxu0 0
      %1268 = vmatpush1.bf16.msra.mxu0 0
      %1269 = vmatprep.mubr.bf16.mxu0 0
      %1270 = vmatmul.mubr.bf16.gmra.mrb[0].mxu0 %v1235
      %v1271 = vpop.f32.mrb[0].mxu0
      %v1272 = vadd.f32 0.0, %v1271
      %v1273 = vpop.f32.mrb[0].mxu0
      %v1274 = vpop.f32.mrb[0].mxu0
      %v1275 = vadd.f32 0.0, %v1274
      %v1276 = vpop.f32.mrb[0].mxu0
      %1277 = vdwg.mxu0
      %v1278 = vadd.f32 %v1202, %v1272
      %v1279 = vadd.f32 %v1203, %v1275
      %v1280 = vld [vmem:[#allocation2 + $0x4] sm:$0xc]
      %v1281 = vld [vmem:[#allocation2 + $0x8] sm:$0x7]
      %v1282 = vrot.slane %v780, 6
      %v1283 = vrot.slane %v1282, 4
      %v1284 = vrot.slane %v781, 6
      %v1285 = vsel %vm615, %v1283, %v1284
      %vm1286 = vcmp.ne.s16.totalorder %v1282, 0
      %vm1287 = vcmp.ne.s16.totalorder %v1285, 0
      %v1288 = vsel %vm1286, %v1280, 0
      %v1289 = vsel %vm1287, %v1281, 0
      %s1290 = scalar_lea.vmem %s6, 128
      %v1291 = vld [vmem:[%s1290] sm:$0xf]
      %v1292 = vld [vmem:[%s1290 + $0x4] sm:$0xf]
      %v1293 = vld [vmem:[%s1290 + $0x8] sm:$0xf]
      %v1294 = vld [vmem:[%s1290 + $0xc] sm:$0xf]
      %v1297 = vunpack.c.l.b16 %v1288
      %v1298 = vunpack.c.l.b16 %v1289
      %v1299 = vpack.c.b16 %v1298, %v1297
      %v1300 = vrot.slane %v1299, 2
      %v1305 = vunpack.c.l.b16 %v1291
      %v1306 = vunpack.c.l.b16 %v1292
      %v1307 = vunpack.c.l.b16 %v1293
      %v1308 = vunpack.c.l.b16 %v1294
      %v1309 = vpack.c.b16 %v1306, %v1305
      %v1310 = vpack.c.b16 %v1308, %v1307
      %v1314 = vsel %vm523, %v1300, 0
      %1316 = vmatprep.subr.bf16.mxu0 0
      %1317 = vmatpush1.bf16.msra.mxu0 %v1309
      %1318 = vmatprep.subr.bf16.mxu0 0
      %1319 = vmatpush1.bf16.msra.mxu0 %v1310
      %1320 = vmatprep.subr.bf16.mxu0 0
      %1321 = vmatpush1.bf16.msra.mxu0 0
      %1322 = vmatprep.subr.bf16.mxu0 0
      %1323 = vmatpush1.bf16.msra.mxu0 0
      %1324 = vmatprep.subr.bf16.mxu0 0
      %1325 = vmatpush1.bf16.msra.mxu0 0
      %1326 = vmatprep.subr.bf16.mxu0 0
      %1327 = vmatpush1.bf16.msra.mxu0 0
      %1328 = vmatprep.subr.bf16.mxu0 0
      %1329 = vmatpush1.bf16.msra.mxu0 0
      %1330 = vmatprep.subr.bf16.mxu0 0
      %1331 = vmatpush1.bf16.msra.mxu0 0
      %1332 = vmatprep.subr.bf16.mxu0 0
      %1333 = vmatpush1.bf16.msra.mxu0 0
      %1334 = vmatprep.subr.bf16.mxu0 0
      %1335 = vmatpush1.bf16.msra.mxu0 0
      %1336 = vmatprep.subr.bf16.mxu0 0
      %1337 = vmatpush1.bf16.msra.mxu0 0
      %1338 = vmatprep.subr.bf16.mxu0 0
      %1339 = vmatpush1.bf16.msra.mxu0 0
      %1340 = vmatprep.subr.bf16.mxu0 0
      %1341 = vmatpush1.bf16.msra.mxu0 0
      %1342 = vmatprep.subr.bf16.mxu0 0
      %1343 = vmatpush1.bf16.msra.mxu0 0
      %1344 = vmatprep.subr.bf16.mxu0 0
      %1345 = vmatpush1.bf16.msra.mxu0 0
      %1346 = vmatprep.subr.bf16.mxu0 0
      %1347 = vmatpush1.bf16.msra.mxu0 0
      %1348 = vmatprep.mubr.bf16.mxu0 0
      %1349 = vmatmul.mubr.bf16.gmra.mrb[0].mxu0 %v1314
      %v1350 = vpop.f32.mrb[0].mxu0
      %v1351 = vadd.f32 0.0, %v1350
      %v1352 = vpop.f32.mrb[0].mxu0
      %v1353 = vpop.f32.mrb[0].mxu0
      %v1354 = vadd.f32 0.0, %v1353
      %v1355 = vpop.f32.mrb[0].mxu0
      %1356 = vdwg.mxu0
      %v1357 = vadd.f32 %v1278, %v1351
      %v1358 = vadd.f32 %v1279, %v1354
      %v1359 = vld [vmem:[%s7] sm:$0x1]
      %v1361 = vlaneseq
      %v1362 = vshrl.u32 %v1361, 7
      %v1363 = vsub.s32 0, %v1362
      %v1364 = vrot.slane %v1359, %v1363
      %v1366 = vadd.f32 %v1357, %v1364
      %v1367 = vadd.f32 %v1358, %v1364
      %v1368 = vmax.f32 %v1366, 0.0
      %v1369 = vmax.f32 %v1367, 0.0
      %v1370 = vpack.c.bf16 %v569, %v568
      %v1371 = vpack.c.bf16 %v1369, %v1368
      %v1374 = vunpack.c.l.b16 %v1370
      %v1375 = vunpack.c.l.b16 %v1371
      %v1376 = vunpack.c.h.b16 %v1370
      %v1377 = vunpack.c.h.b16 %v1371
      %v1378 = vpack.c.b16 %v1375, %v1374
      %v1379 = vpack.c.b16 %v1377, %v1376
      %1382 = vst [vmem:[%s305] sm:$0xff] %v1378
      %vm1383 = vmand %vm1124, %vm588
      %vm1384 = vsmask.f32 4352
      %vm1385 = vmand %vm1125, %vm1384
      %vm1386 = vmor %vm1385, %vm1383
      %v1387 = vld [vmem:[%s305 + $0x8] sm:$0x11]
      %v1388 = vsel %vm1386, %v1379, %v1387
      %1389 = vst [vmem:[%s305 + $0x8] sm:$0x11] %v1388
      %p1390 = scmp.lt.s32.totalorder %s19, 1
      %s1391 = scalar_select %p1390, %s19, 1
      %s1392 = smul.addr %s1391, 4
      %s1393 = smul.addr %s1392, 4
      %s1394 = scalar_lea.vmem %s8, %s1393
      // Predicated region
      $region53: #{squeezenet3d_forward.13} parent=51 // pred_check
        %p1395 = pneg %p210
      $region54: #{squeezenet3d_forward.13} parent=51 // pred_check_branch
        %1397 = sbr.rel (%p1395) target = $region56
      $region55: #{squeezenet3d_forward.13} parent=51 // pred_region
        _
      $region56: #{squeezenet3d_forward.13} parent=51 // pred_fallthru
        _
    $region52: #{squeezenet3d_forward.13} parent=5 // pred_fallthru
      _
    %p1398 = scmp.le.s32.totalorder 2, %s14
    // Predicated region
    $region57: #{squeezenet3d_forward.13} parent=5 // pred_check
      %p1399 = pneg %p1398
    $region58: #{squeezenet3d_forward.13} parent=5 // pred_check_branch
      %1401 = sbr.rel (%p1399) target = $region60
    $region59: #{squeezenet3d_forward.13} parent=5 // pred_region
      %s1402 = ssub.s32 %s14, 2
      // Predicated region
      $region61: #{squeezenet3d_forward.13} parent=59 // pred_check
        %p1403 = pneg %p216
      $region62: #{squeezenet3d_forward.13} parent=59 // pred_check_branch
        %1405 = sbr.rel (%p1403) target = $region64
      $region63: #{squeezenet3d_forward.13} parent=59 // pred_region
        %p1406 = scmp.lt.s32.totalorder %s20, 1
        %s1407 = scalar_select %p1406, %s20, 1
        %s1408 = smul.addr %s1407, 4
        %s1409 = smul.addr %s1408, 4
        %s1410 = scalar_lea.vmem %s8, %s1409
      $region64: #{squeezenet3d_forward.13} parent=59 // pred_fallthru
        _
    $region60: #{squeezenet3d_forward.13} parent=5 // pred_fallthru
      _
  $region6: #{squeezenet3d_forward.13} parent=0 // loop_footer
    %s18 = sadd.s32 1, %s14
  $region7: #{squeezenet3d_forward.13} parent=0 // loop_footer_branch
    %13 = sbr.rel target = $region3
  $region8: #{squeezenet3d_forward.13} parent=0 // loop_exit
    _

// kernel: squeezenet3d_forward.14
$region0: #{squeezenet3d_forward.14}
  #allocation0 [shape = 'u32[]', space=smem, size = 0x4, offset = 0x4, fixed_abs, tag = 'smem constant byte address 0x4 - core index']
  #allocation1 [shape = 'u32[144,128]{1,0:T(1,128)}', space=vmem, size = 0x12000, scoped, tag = 'internal scratch']
  #allocation2 [shape = 'bf16[11,48]{1,0:T(8,128)(2,1)}', space=vmem, size = 0x1000, scoped, tag = 'scratch operand']
  #allocation3 [shape = 's32[1,1]{1,0:T(1,128)S(1)}', space=vmem, size = 0x200, scoped, tag = 'scoped memory for squeezenet3d_forward.14']
  %s0 = inlined_call_operand.vmem [shape: bf16[2,1,256], index: 0, kind: input, shape index: {}]
  %s1 = inlined_call_operand.<no memory space> [shape: s32[1,1], index: 1, kind: input, shape index: {}]
  %s2 = inlined_call_operand.vmem [shape: bf16[256,48], index: 2, kind: input, shape index: {}]
  %s3 = inlined_call_operand.vmem [shape: f32[1,48], index: 3, kind: input, shape index: {}]
  %s4 = inlined_call_operand.vmem [shape: bf16[48,192], index: 4, kind: input, shape index: {}]
  %s5 = inlined_call_operand.vmem [shape: f32[1,192], index: 5, kind: input, shape index: {}]
  %s6 = inlined_call_operand.vmem [shape: bf16[9,48,192], index: 6, kind: input, shape index: {}]
  %s7 = inlined_call_operand.vmem [shape: f32[1,192], index: 7, kind: input, shape index: {}]
  %s8 = inlined_call_operand.vmem [shape: bf16[2,1,384], index: 8, kind: output, shape index: {}]
  %s9 = sld [smem:[#allocation0]]
  $region65: #{squeezenet3d_forward.14} parent=0
    _
  %s11 = ssub.s32 1, %s9
  %s12 = scalar_select 0, %s11, %s9
  %v13 = vstv %s1
  %14 = vst [vmem:[#allocation3] sm:$0x1] %v13
  loop: start=0, step=1, limit=4
  $region2: #{squeezenet3d_forward.14} parent=0 // loop_pre_header
    _
  $region3: #{squeezenet3d_forward.14} parent=0 // loop_header
    %s16 = sphi 0, %s20
    %p17 = scmp.ge.s32.totalorder %s16, 4
    %s26 = sphi 0, %s28
    %s29 = sphi 0, %s26
    %s30 = sphi 0, %s29
    %s46 = sphi 0, %s30
    %s50 = sphi 0, %s50
    %s52 = sphi 0, %s50
    %s53 = sphi 0, %s52
    %s67 = sphi 0, %s53
    %s71 = sphi 0, %s71
    %s73 = sphi 0, %s71
    %s74 = sphi 0, %s73
    %s88 = sphi 0, %s74
    %s92 = sphi 0, %s92
    %s94 = sphi 0, %s92
    %s95 = sphi 0, %s94
    %s109 = sphi 0, %s95
    %s113 = sphi 0, %s113
    %s115 = sphi 0, %s113
    %s116 = sphi 0, %s115
    %s130 = sphi 0, %s116
    %s134 = sphi 0, %s134
    %s136 = sphi 0, %s134
    %s137 = sphi 0, %s136
    %s151 = sphi 0, %s137
    %s155 = sphi 0, %s155
    %s157 = sphi 0, %s155
    %s158 = sphi 0, %s157
    %s172 = sphi 0, %s158
    %s176 = sphi 0, %s176
    %s178 = sphi 0, %s176
    %s179 = sphi 0, %s178
    %s193 = sphi 0, %s179
    %s199 = sphi 0, %s201
    %s202 = sphi 0, %s199
    %s203 = sphi 0, %s202
    %s219 = sphi 0, %s203
  $region4: #{squeezenet3d_forward.14} parent=0 // loop_header_branch
    %19 = sbr.rel (%p17) target = $region8
  $region5: #{squeezenet3d_forward.14} parent=0 // loop_body
    %s21 = ssub.s32 %s16, 1
    %s22 = ssub.s32 %s16, 2
    %s23 = sadd.s32 %s16, 1
    %s24 = ssub.s32 %s16, %s23
    %p25 = scmp.eq.s32.totalorder %s24, 0
    %s27 = sadd.s32 %s26, 1
    %s28 = scalar_select %p25, %s26, %s27
    %p31 = pneg %p25
    %p32 = scmp.eq.s32.totalorder %s16, 1
    %p33 = por %p31, %p32
    %p34 = scmp.ne.s32.totalorder %s26, %s29
    %p35 = scmp.eq.s32.totalorder %s16, 0
    %p36 = por %p34, %p35
    %p37 = scmp.ne.s32.totalorder %s26, %s29
    %p38 = scmp.eq.s32.totalorder %s21, 1
    %p39 = por %p37, %p38
    %p40 = scmp.ne.s32.totalorder %s29, %s30
    %p41 = scmp.eq.s32.totalorder %s21, 0
    %p42 = por %p40, %p41
    %p43 = scmp.ne.s32.totalorder %s29, %s30
    %p44 = scmp.eq.s32.totalorder %s22, 1
    %p45 = por %p43, %p44
    %p47 = scmp.ne.s32.totalorder %s30, %s46
    %p48 = scmp.eq.s32.totalorder %s22, 0
    %p49 = por %p47, %p48
    %s51 = sadd.s32 %s50, 1
    %p54 = scmp.eq.s32.totalorder %s16, 1
    %p55 = scmp.ne.s32.totalorder %s50, %s52
    %p56 = scmp.eq.s32.totalorder %s16, 0
    %p57 = por %p55, %p56
    %p58 = scmp.ne.s32.totalorder %s50, %s52
    %p59 = scmp.eq.s32.totalorder %s21, 1
    %p60 = por %p58, %p59
    %p61 = scmp.ne.s32.totalorder %s52, %s53
    %p62 = scmp.eq.s32.totalorder %s21, 0
    %p63 = por %p61, %p62
    %p64 = scmp.ne.s32.totalorder %s52, %s53
    %p65 = scmp.eq.s32.totalorder %s22, 1
    %p66 = por %p64, %p65
    %p68 = scmp.ne.s32.totalorder %s53, %s67
    %p69 = scmp.eq.s32.totalorder %s22, 0
    %p70 = por %p68, %p69
    %s72 = sadd.s32 %s71, 1
    %p75 = scmp.eq.s32.totalorder %s16, 1
    %p76 = scmp.ne.s32.totalorder %s71, %s73
    %p77 = scmp.eq.s32.totalorder %s16, 0
    %p78 = por %p76, %p77
    %p79 = scmp.ne.s32.totalorder %s71, %s73
    %p80 = scmp.eq.s32.totalorder %s21, 1
    %p81 = por %p79, %p80
    %p82 = scmp.ne.s32.totalorder %s73, %s74
    %p83 = scmp.eq.s32.totalorder %s21, 0
    %p84 = por %p82, %p83
    %p85 = scmp.ne.s32.totalorder %s73, %s74
    %p86 = scmp.eq.s32.totalorder %s22, 1
    %p87 = por %p85, %p86
    %p89 = scmp.ne.s32.totalorder %s74, %s88
    %p90 = scmp.eq.s32.totalorder %s22, 0
    %p91 = por %p89, %p90
    %s93 = sadd.s32 %s92, 1
    %p96 = scmp.eq.s32.totalorder %s16, 1
    %p97 = scmp.ne.s32.totalorder %s92, %s94
    %p98 = scmp.eq.s32.totalorder %s16, 0
    %p99 = por %p97, %p98
    %p100 = scmp.ne.s32.totalorder %s92, %s94
    %p101 = scmp.eq.s32.totalorder %s21, 1
    %p102 = por %p100, %p101
    %p103 = scmp.ne.s32.totalorder %s94, %s95
    %p104 = scmp.eq.s32.totalorder %s21, 0
    %p105 = por %p103, %p104
    %p106 = scmp.ne.s32.totalorder %s94, %s95
    %p107 = scmp.eq.s32.totalorder %s22, 1
    %p108 = por %p106, %p107
    %p110 = scmp.ne.s32.totalorder %s95, %s109
    %p111 = scmp.eq.s32.totalorder %s22, 0
    %p112 = por %p110, %p111
    %s114 = sadd.s32 %s113, 1
    %p117 = scmp.eq.s32.totalorder %s16, 1
    %p118 = scmp.ne.s32.totalorder %s113, %s115
    %p119 = scmp.eq.s32.totalorder %s16, 0
    %p120 = por %p118, %p119
    %p121 = scmp.ne.s32.totalorder %s113, %s115
    %p122 = scmp.eq.s32.totalorder %s21, 1
    %p123 = por %p121, %p122
    %p124 = scmp.ne.s32.totalorder %s115, %s116
    %p125 = scmp.eq.s32.totalorder %s21, 0
    %p126 = por %p124, %p125
    %p127 = scmp.ne.s32.totalorder %s115, %s116
    %p128 = scmp.eq.s32.totalorder %s22, 1
    %p129 = por %p127, %p128
    %p131 = scmp.ne.s32.totalorder %s116, %s130
    %p132 = scmp.eq.s32.totalorder %s22, 0
    %p133 = por %p131, %p132
    %s135 = sadd.s32 %s134, 1
    %p138 = scmp.eq.s32.totalorder %s16, 1
    %p139 = scmp.ne.s32.totalorder %s134, %s136
    %p140 = scmp.eq.s32.totalorder %s16, 0
    %p141 = por %p139, %p140
    %p142 = scmp.ne.s32.totalorder %s134, %s136
    %p143 = scmp.eq.s32.totalorder %s21, 1
    %p144 = por %p142, %p143
    %p145 = scmp.ne.s32.totalorder %s136, %s137
    %p146 = scmp.eq.s32.totalorder %s21, 0
    %p147 = por %p145, %p146
    %p148 = scmp.ne.s32.totalorder %s136, %s137
    %p149 = scmp.eq.s32.totalorder %s22, 1
    %p150 = por %p148, %p149
    %p152 = scmp.ne.s32.totalorder %s137, %s151
    %p153 = scmp.eq.s32.totalorder %s22, 0
    %p154 = por %p152, %p153
    %s156 = sadd.s32 %s155, 1
    %p159 = scmp.eq.s32.totalorder %s16, 1
    %p160 = scmp.ne.s32.totalorder %s155, %s157
    %p161 = scmp.eq.s32.totalorder %s16, 0
    %p162 = por %p160, %p161
    %p163 = scmp.ne.s32.totalorder %s155, %s157
    %p164 = scmp.eq.s32.totalorder %s21, 1
    %p165 = por %p163, %p164
    %p166 = scmp.ne.s32.totalorder %s157, %s158
    %p167 = scmp.eq.s32.totalorder %s21, 0
    %p168 = por %p166, %p167
    %p169 = scmp.ne.s32.totalorder %s157, %s158
    %p170 = scmp.eq.s32.totalorder %s22, 1
    %p171 = por %p169, %p170
    %p173 = scmp.ne.s32.totalorder %s158, %s172
    %p174 = scmp.eq.s32.totalorder %s22, 0
    %p175 = por %p173, %p174
    %s177 = sadd.s32 %s176, 1
    %p180 = scmp.eq.s32.totalorder %s16, 1
    %p181 = scmp.ne.s32.totalorder %s176, %s178
    %p182 = scmp.eq.s32.totalorder %s16, 0
    %p183 = por %p181, %p182
    %p184 = scmp.ne.s32.totalorder %s176, %s178
    %p185 = scmp.eq.s32.totalorder %s21, 1
    %p186 = por %p184, %p185
    %p187 = scmp.ne.s32.totalorder %s178, %s179
    %p188 = scmp.eq.s32.totalorder %s21, 0
    %p189 = por %p187, %p188
    %p190 = scmp.ne.s32.totalorder %s178, %s179
    %p191 = scmp.eq.s32.totalorder %s22, 1
    %p192 = por %p190, %p191
    %p194 = scmp.ne.s32.totalorder %s179, %s193
    %p195 = scmp.eq.s32.totalorder %s22, 0
    %p196 = por %p194, %p195
    %s197 = ssub.s32 %s16, %s23
    %p198 = scmp.eq.s32.totalorder %s197, 0
    %s200 = sadd.s32 %s199, 1
    %s201 = scalar_select %p198, %s199, %s200
    %p204 = pneg %p198
    %p205 = scmp.eq.s32.totalorder %s16, 1
    %p206 = por %p204, %p205
    %p207 = scmp.ne.s32.totalorder %s199, %s202
    %p208 = scmp.eq.s32.totalorder %s16, 0
    %p209 = por %p207, %p208
    %p210 = scmp.ne.s32.totalorder %s199, %s202
    %p211 = scmp.eq.s32.totalorder %s21, 1
    %p212 = por %p210, %p211
    %p213 = scmp.ne.s32.totalorder %s202, %s203
    %p214 = scmp.eq.s32.totalorder %s21, 0
    %p215 = por %p213, %p214
    %p216 = scmp.ne.s32.totalorder %s202, %s203
    %p217 = scmp.eq.s32.totalorder %s22, 1
    %p218 = por %p216, %p217
    %p220 = scmp.ne.s32.totalorder %s203, %s219
    %p221 = scmp.eq.s32.totalorder %s22, 0
    %p222 = por %p220, %p221
    %p223 = scmp.le.s32.totalorder 1, %s16
    %p224 = scmp.lt.s32.totalorder %s16, 3
    %p225 = pnand %p223, %p224
    %p226 = pneg %p225
    // Predicated region
    $region9: #{squeezenet3d_forward.14} parent=5 // pred_check
      _
    $region10: #{squeezenet3d_forward.14} parent=5 // pred_check_branch
      %228 = sbr.rel (%p225) target = $region12
    $region11: #{squeezenet3d_forward.14} parent=5 // pred_region
      %s229 = ssub.s32 %s16, 1
      // Predicated region
      $region13: #{squeezenet3d_forward.14} parent=11 // pred_check
        %p230 = pneg %p63
      $region14: #{squeezenet3d_forward.14} parent=11 // pred_check_branch
        %232 = sbr.rel (%p230) target = $region16
      $region15: #{squeezenet3d_forward.14} parent=11 // pred_region
        _
      $region16: #{squeezenet3d_forward.14} parent=11 // pred_fallthru
        _
      // Predicated region
      $region17: #{squeezenet3d_forward.14} parent=11 // pred_check
        %p233 = pneg %p84
      $region18: #{squeezenet3d_forward.14} parent=11 // pred_check_branch
        %235 = sbr.rel (%p233) target = $region20
      $region19: #{squeezenet3d_forward.14} parent=11 // pred_region
        _
      $region20: #{squeezenet3d_forward.14} parent=11 // pred_fallthru
        _
      // Predicated region
      $region21: #{squeezenet3d_forward.14} parent=11 // pred_check
        %p236 = pneg %p105
      $region22: #{squeezenet3d_forward.14} parent=11 // pred_check_branch
        %238 = sbr.rel (%p236) target = $region24
      $region23: #{squeezenet3d_forward.14} parent=11 // pred_region
        _
      $region24: #{squeezenet3d_forward.14} parent=11 // pred_fallthru
        _
      // Predicated region
      $region25: #{squeezenet3d_forward.14} parent=11 // pred_check
        %p239 = pneg %p126
      $region26: #{squeezenet3d_forward.14} parent=11 // pred_check_branch
        %241 = sbr.rel (%p239) target = $region28
      $region27: #{squeezenet3d_forward.14} parent=11 // pred_region
        _
      $region28: #{squeezenet3d_forward.14} parent=11 // pred_fallthru
        _
      // Predicated region
      $region29: #{squeezenet3d_forward.14} parent=11 // pred_check
        %p242 = pneg %p147
      $region30: #{squeezenet3d_forward.14} parent=11 // pred_check_branch
        %244 = sbr.rel (%p242) target = $region32
      $region31: #{squeezenet3d_forward.14} parent=11 // pred_region
        _
      $region32: #{squeezenet3d_forward.14} parent=11 // pred_fallthru
        _
      // Predicated region
      $region33: #{squeezenet3d_forward.14} parent=11 // pred_check
        %p245 = pneg %p168
      $region34: #{squeezenet3d_forward.14} parent=11 // pred_check_branch
        %247 = sbr.rel (%p245) target = $region36
      $region35: #{squeezenet3d_forward.14} parent=11 // pred_region
        _
      $region36: #{squeezenet3d_forward.14} parent=11 // pred_fallthru
        _
      // Predicated region
      $region37: #{squeezenet3d_forward.14} parent=11 // pred_check
        %p248 = pneg %p189
      $region38: #{squeezenet3d_forward.14} parent=11 // pred_check_branch
        %250 = sbr.rel (%p248) target = $region40
      $region39: #{squeezenet3d_forward.14} parent=11 // pred_region
        _
      $region40: #{squeezenet3d_forward.14} parent=11 // pred_fallthru
        _
    $region12: #{squeezenet3d_forward.14} parent=5 // pred_fallthru
      _
    %p251 = scmp.lt.s32.totalorder %s16, 2
    // Predicated region
    $region41: #{squeezenet3d_forward.14} parent=5 // pred_check
      %p252 = pneg %p251
    $region42: #{squeezenet3d_forward.14} parent=5 // pred_check_branch
      %254 = sbr.rel (%p252) target = $region44
    $region43: #{squeezenet3d_forward.14} parent=5 // pred_region
      // Predicated region
      $region45: #{squeezenet3d_forward.14} parent=43 // pred_check
        %p255 = pneg %p36
      $region46: #{squeezenet3d_forward.14} parent=43 // pred_check_branch
        %257 = sbr.rel (%p255) target = $region48
      $region47: #{squeezenet3d_forward.14} parent=43 // pred_region
        %p258 = scmp.lt.s32.totalorder %s16, 1
        %s259 = scalar_select %p258, %s16, 1
        %s260 = smul.addr %s259, 2
        %s261 = scalar_lea.vmem %s0, %s260
      $region48: #{squeezenet3d_forward.14} parent=43 // pred_fallthru
        _
    $region44: #{squeezenet3d_forward.14} parent=5 // pred_fallthru
      _
    %p262 = scmp.le.s32.totalorder 1, %s16
    %p263 = scmp.lt.s32.totalorder %s16, 3
    %p264 = pnand %p262, %p263
    %p265 = pneg %p264
    // Predicated region
    $region49: #{squeezenet3d_forward.14} parent=5 // pred_check
      _
    $region50: #{squeezenet3d_forward.14} parent=5 // pred_check_branch
      %267 = sbr.rel (%p264) target = $region52
    $region51: #{squeezenet3d_forward.14} parent=5 // pred_region
      %s268 = ssub.s32 %s16, 1
      %p269 = scmp.lt.s32.totalorder %s21, 1
      %s270 = scalar_select %p269, %s21, 1
      %s271 = smul.addr %s270, 2
      %s272 = scalar_lea.vmem %s0, %s271
      %p273 = pneg %p42
      %p274 = pneg %p39
      %p275 = pneg %p63
      %p276 = pneg %p60
      %p277 = pneg %p84
      %p278 = pneg %p81
      %p279 = pneg %p105
      %p280 = pneg %p102
      %p281 = pneg %p126
      %p282 = pneg %p123
      %p283 = pneg %p147
      %p284 = pneg %p144
      %p285 = pneg %p168
      %p286 = pneg %p165
      %p287 = pneg %p189
      %p288 = pneg %p186
      %p289 = pneg %p215
      %p290 = pneg %p212
      %p291 = scmp.lt.s32.totalorder %s21, 1
      %s292 = scalar_select %p291, %s21, 1
      %s293 = smul.addr %s292, 3
      %s294 = scalar_lea.vmem %s8, %s293
      %p295 = scmp.lt.s32.totalorder %s21, 1
      %s296 = scalar_select %p295, %s21, 1
      %s297 = smul.addr %s296, 2
      %s298 = scalar_lea.vmem %s0, %s297
      %p299 = scmp.lt.s32.totalorder %s21, 1
      %s300 = scalar_select %p299, %s21, 1
      %s301 = smul.addr %s300, 3
      %s302 = scalar_lea.vmem %s8, %s301
      %v304 = vld [vmem:[%s298] sm:$0x3]
      %v305 = vld [vmem:[%s2] sm:$0xf]
      %v306 = vld [vmem:[%s2 + $0x4] sm:$0xf]
      %v307 = vld [vmem:[%s2 + $0x8] sm:$0xf]
      %v308 = vld [vmem:[%s2 + $0xc] sm:$0xf]
      %v309 = vld [vmem:[%s2 + $0x10] sm:$0xf]
      %v310 = vld [vmem:[%s2 + $0x14] sm:$0xf]
      %v311 = vld [vmem:[%s2 + $0x18] sm:$0xf]
      %v312 = vld [vmem:[%s2 + $0x1c] sm:$0xf]
      %v313 = vld [vmem:[%s2 + $0x20] sm:$0xf]
      %v314 = vld [vmem:[%s2 + $0x24] sm:$0xf]
      %v315 = vld [vmem:[%s2 + $0x28] sm:$0xf]
      %v316 = vld [vmem:[%s2 + $0x2c] sm:$0xf]
      %v317 = vld [vmem:[%s2 + $0x30] sm:$0xf]
      %v318 = vld [vmem:[%s2 + $0x34] sm:$0xf]
      %v319 = vld [vmem:[%s2 + $0x38] sm:$0xf]
      %v320 = vld [vmem:[%s2 + $0x3c] sm:$0xf]
      %v321 = vld [vmem:[%s2 + $0x40] sm:$0xf]
      %v322 = vld [vmem:[%s2 + $0x44] sm:$0xf]
      %v323 = vld [vmem:[%s2 + $0x48] sm:$0xf]
      %v324 = vld [vmem:[%s2 + $0x4c] sm:$0xf]
      %v325 = vld [vmem:[%s2 + $0x50] sm:$0xf]
      %v326 = vld [vmem:[%s2 + $0x54] sm:$0xf]
      %v327 = vld [vmem:[%s2 + $0x58] sm:$0xf]
      %v328 = vld [vmem:[%s2 + $0x5c] sm:$0xf]
      %v329 = vld [vmem:[%s2 + $0x60] sm:$0xf]
      %v330 = vld [vmem:[%s2 + $0x64] sm:$0xf]
      %v331 = vld [vmem:[%s2 + $0x68] sm:$0xf]
      %v332 = vld [vmem:[%s2 + $0x6c] sm:$0xf]
      %v333 = vld [vmem:[%s2 + $0x70] sm:$0xf]
      %v334 = vld [vmem:[%s2 + $0x74] sm:$0xf]
      %v335 = vld [vmem:[%s2 + $0x78] sm:$0xf]
      %v336 = vld [vmem:[%s2 + $0x7c] sm:$0xf]
      %v337 = vld [vmem:[%s3] sm:$0x1]
      %v340 = vunpack.c.l.s4 1966171168
      %v341 = vunpack.c.0.s8 %v340
      %v342 = vlaneseq
      %v343 = vshrl.u32 %v342, 7
      %v344 = vsub.s32 %v341, %v343
      %v345 = vrot.slane %v304, %v344
      %v346 = vcombine.high %v345, %v345
      %v348 = vunpack.c.l.s4 1966171168
      %v349 = vunpack.c.0.s8 %v348
      %v350 = vlaneseq
      %v351 = vshrl.u32 %v350, 7
      %v352 = vsub.s32 %v349, %v351
      %v353 = vrot.slane %v345, %v352
      %v355 = vunpack.c.l.s4 1966171168
      %v356 = vunpack.c.0.s8 %v355
      %v357 = vlaneseq
      %v358 = vshrl.u32 %v357, 7
      %v359 = vsub.s32 %v356, %v358
      %v360 = vrot.slane %v346, %v359
      %v395 = vunpack.c.l.b16 %v305
      %v396 = vunpack.c.l.b16 %v306
      %v397 = vunpack.c.l.b16 %v307
      %v398 = vunpack.c.l.b16 %v308
      %v399 = vunpack.c.l.b16 %v309
      %v400 = vunpack.c.l.b16 %v310
      %v401 = vunpack.c.l.b16 %v311
      %v402 = vunpack.c.l.b16 %v312
      %v403 = vunpack.c.l.b16 %v313
      %v404 = vunpack.c.l.b16 %v314
      %v405 = vunpack.c.l.b16 %v315
      %v406 = vunpack.c.l.b16 %v316
      %v407 = vunpack.c.l.b16 %v317
      %v408 = vunpack.c.l.b16 %v318
      %v409 = vunpack.c.l.b16 %v319
      %v410 = vunpack.c.l.b16 %v320
      %v411 = vunpack.c.l.b16 %v321
      %v412 = vunpack.c.l.b16 %v322
      %v413 = vunpack.c.l.b16 %v323
      %v414 = vunpack.c.l.b16 %v324
      %v415 = vunpack.c.l.b16 %v325
      %v416 = vunpack.c.l.b16 %v326
      %v417 = vunpack.c.l.b16 %v327
      %v418 = vunpack.c.l.b16 %v328
      %v419 = vunpack.c.l.b16 %v329
      %v420 = vunpack.c.l.b16 %v330
      %v421 = vunpack.c.l.b16 %v331
      %v422 = vunpack.c.l.b16 %v332
      %v423 = vunpack.c.l.b16 %v333
      %v424 = vunpack.c.l.b16 %v334
      %v425 = vunpack.c.l.b16 %v335
      %v426 = vunpack.c.l.b16 %v336
      %v427 = vpack.c.b16 %v396, %v395
      %v428 = vpack.c.b16 %v398, %v397
      %v429 = vpack.c.b16 %v400, %v399
      %v430 = vpack.c.b16 %v402, %v401
      %v431 = vpack.c.b16 %v404, %v403
      %v432 = vpack.c.b16 %v406, %v405
      %v433 = vpack.c.b16 %v408, %v407
      %v434 = vpack.c.b16 %v410, %v409
      %v435 = vpack.c.b16 %v412, %v411
      %v436 = vpack.c.b16 %v414, %v413
      %v437 = vpack.c.b16 %v416, %v415
      %v438 = vpack.c.b16 %v418, %v417
      %v439 = vpack.c.b16 %v420, %v419
      %v440 = vpack.c.b16 %v422, %v421
      %v441 = vpack.c.b16 %v424, %v423
      %v442 = vpack.c.b16 %v426, %v425
      %459 = vmatprep.subr.bf16.mxu0 0
      %460 = vmatpush1.bf16.msra.mxu0 %v427
      %461 = vmatprep.subr.bf16.mxu0 0
      %462 = vmatpush1.bf16.msra.mxu0 %v428
      %463 = vmatprep.subr.bf16.mxu0 0
      %464 = vmatpush1.bf16.msra.mxu0 %v429
      %465 = vmatprep.subr.bf16.mxu0 0
      %466 = vmatpush1.bf16.msra.mxu0 %v430
      %467 = vmatprep.subr.bf16.mxu0 0
      %468 = vmatpush1.bf16.msra.mxu0 %v431
      %469 = vmatprep.subr.bf16.mxu0 0
      %470 = vmatpush1.bf16.msra.mxu0 %v432
      %471 = vmatprep.subr.bf16.mxu0 0
      %472 = vmatpush1.bf16.msra.mxu0 %v433
      %473 = vmatprep.subr.bf16.mxu0 0
      %474 = vmatpush1.bf16.msra.mxu0 %v434
      %475 = vmatprep.subr.bf16.mxu0 0
      %476 = vmatpush1.bf16.msra.mxu0 %v435
      %477 = vmatprep.subr.bf16.mxu0 0
      %478 = vmatpush1.bf16.msra.mxu0 %v436
      %479 = vmatprep.subr.bf16.mxu0 0
      %480 = vmatpush1.bf16.msra.mxu0 %v437
      %481 = vmatprep.subr.bf16.mxu0 0
      %482 = vmatpush1.bf16.msra.mxu0 %v438
      %483 = vmatprep.subr.bf16.mxu0 0
      %484 = vmatpush1.bf16.msra.mxu0 %v439
      %485 = vmatprep.subr.bf16.mxu0 0
      %486 = vmatpush1.bf16.msra.mxu0 %v440
      %487 = vmatprep.subr.bf16.mxu0 0
      %488 = vmatpush1.bf16.msra.mxu0 %v441
      %489 = vmatprep.subr.bf16.mxu0 0
      %490 = vmatpush1.bf16.msra.mxu0 %v442
      %491 = vmatprep.mubr.bf16.mxu0 %v360
      %492 = vmatmul.mubr.bf16.gmra.mrb[0].mxu0 %v353
      %v493 = vpop.f32.mrb[0].mxu0
      %v494 = vadd.f32 %v337, %v493
      %v495 = vpop.f32.mrb[0].mxu0
      %v496 = vpop.f32.mrb[0].mxu0
      %v497 = vpop.f32.mrb[0].mxu0
      %498 = vdwg.mxu0
      %v499 = vmax.f32 %v494, 0.0
      %v500 = vpack.c.bf16 %v499, %v499
      %v501 = vld [vmem:[%s4] sm:$0xff]
      %v502 = vld [vmem:[%s4 + $0x8] sm:$0xff]
      %v503 = vld [vmem:[%s4 + $0x10] sm:$0xff]
      %v504 = vld [vmem:[%s4 + $0x18] sm:$0xff]
      %v505 = vld [vmem:[%s4 + $0x20] sm:$0xff]
      %v506 = vld [vmem:[%s4 + $0x28] sm:$0xff]
      %v507 = vld [vmem:[%s5] sm:$0x3]
      %v514 = vunpack.c.l.b16 %v501
      %v515 = vunpack.c.h.b16 %v501
      %v516 = vunpack.c.l.b16 %v502
      %v517 = vunpack.c.h.b16 %v502
      %v518 = vunpack.c.l.b16 %v503
      %v519 = vunpack.c.h.b16 %v503
      %v520 = vunpack.c.l.b16 %v504
      %v521 = vunpack.c.h.b16 %v504
      %v522 = vunpack.c.l.b16 %v505
      %v523 = vunpack.c.h.b16 %v505
      %v524 = vunpack.c.l.b16 %v506
      %v525 = vunpack.c.h.b16 %v506
      %v526 = vpack.c.b16 %v516, %v514
      %v527 = vpack.c.b16 %v517, %v515
      %v528 = vpack.c.b16 %v520, %v518
      %v529 = vpack.c.b16 %v521, %v519
      %v530 = vpack.c.b16 %v524, %v522
      %v531 = vpack.c.b16 %v525, %v523
      %v539 = vlaneseq
      %v540 = vshrl.u32 %v539, 7
      %v541 = vsub.s32 0, %v540
      %v542 = vrot.slane %v507, %v541
      %v543 = vlaneseq
      %v544 = vshrl.u32 %v543, 7
      %v545 = vsub.s32 1, %v544
      %v546 = vrot.slane %v507, %v545
      %vm549 = vcmask 392192
      %v551 = vsel %vm549, %v500, 0
      %553 = vmatprep.subr.bf16.mxu0 %v527
      %554 = vmatpush1.bf16.msra.mxu0 %v526
      %555 = vmatprep.subr.bf16.mxu0 %v529
      %556 = vmatpush1.bf16.msra.mxu0 %v528
      %557 = vmatprep.subr.bf16.mxu0 %v531
      %558 = vmatpush1.bf16.msra.mxu0 %v530
      %559 = vmatprep.subr.bf16.mxu0 0
      %560 = vmatpush1.bf16.msra.mxu0 0
      %561 = vmatprep.subr.bf16.mxu0 0
      %562 = vmatpush1.bf16.msra.mxu0 0
      %563 = vmatprep.subr.bf16.mxu0 0
      %564 = vmatpush1.bf16.msra.mxu0 0
      %565 = vmatprep.subr.bf16.mxu0 0
      %566 = vmatpush1.bf16.msra.mxu0 0
      %567 = vmatprep.subr.bf16.mxu0 0
      %568 = vmatpush1.bf16.msra.mxu0 0
      %569 = vmatprep.subr.bf16.mxu0 0
      %570 = vmatpush1.bf16.msra.mxu0 0
      %571 = vmatprep.subr.bf16.mxu0 0
      %572 = vmatpush1.bf16.msra.mxu0 0
      %573 = vmatprep.subr.bf16.mxu0 0
      %574 = vmatpush1.bf16.msra.mxu0 0
      %575 = vmatprep.subr.bf16.mxu0 0
      %576 = vmatpush1.bf16.msra.mxu0 0
      %577 = vmatprep.subr.bf16.mxu0 0
      %578 = vmatpush1.bf16.msra.mxu0 0
      %579 = vmatprep.subr.bf16.mxu0 0
      %580 = vmatpush1.bf16.msra.mxu0 0
      %581 = vmatprep.subr.bf16.mxu0 0
      %582 = vmatpush1.bf16.msra.mxu0 0
      %583 = vmatprep.subr.bf16.mxu0 0
      %584 = vmatpush1.bf16.msra.mxu0 0
      %585 = vmatprep.mubr.bf16.mxu0 0
      %586 = vmatmul.mubr.bf16.gmra.mrb[0].mxu0 %v551
      %v587 = vpop.f32.mrb[0].mxu0
      %v588 = vadd.f32 %v542, %v587
      %v589 = vpop.f32.mrb[0].mxu0
      %v590 = vadd.f32 %v546, %v589
      %v591 = vpop.f32.mrb[0].mxu0
      %v592 = vpop.f32.mrb[0].mxu0
      %593 = vdwg.mxu0
      %v594 = vmax.f32 %v588, 0.0
      %v595 = vmax.f32 %v590, 0.0
      %vm596 = vcmask 388096
      %597 = vst.msk [vmem:[#allocation2] sm:$0xf] %vm596, 0
      %vm598 = vcmask 386048
      %vm599 = vsmask.f32 1280
      %vm600 = vmand %vm598, %vm599
      %v601 = vld [vmem:[#allocation2 + $0x4] sm:$0x3]
      %v602 = vsel %vm600, 0, %v601
      %603 = vst [vmem:[#allocation2 + $0x4] sm:$0x3] %v602
      %vm604 = vcmask 385024
      %vm605 = vsmask.f32 256
      %vm606 = vmand %vm604, %vm605
      %v607 = vld [vmem:[#allocation2 + $0x4] sm:$0x1]
      %v608 = vsel %vm606, %v500, %v607
      %609 = vst [vmem:[#allocation2 + $0x4] sm:$0x1] %v608
      %v610 = vld [vmem:[#allocation2 + $0x4] sm:$0x1]
      %s611 = scalar_lea.vmem %s6, 192
      %v612 = vld [vmem:[%s611] sm:$0xff]
      %v613 = vld [vmem:[%s611 + $0x8] sm:$0xff]
      %v614 = vld [vmem:[%s611 + $0x10] sm:$0xff]
      %v615 = vld [vmem:[%s611 + $0x18] sm:$0xff]
      %v616 = vld [vmem:[%s611 + $0x20] sm:$0xff]
      %v617 = vld [vmem:[%s611 + $0x28] sm:$0xff]
      %v618 = vld [vmem:[%s7] sm:$0x3]
      %v625 = vunpack.c.l.b16 %v612
      %v626 = vunpack.c.h.b16 %v612
      %v627 = vunpack.c.l.b16 %v613
      %v628 = vunpack.c.h.b16 %v613
      %v629 = vunpack.c.l.b16 %v614
      %v630 = vunpack.c.h.b16 %v614
      %v631 = vunpack.c.l.b16 %v615
      %v632 = vunpack.c.h.b16 %v615
      %v633 = vunpack.c.l.b16 %v616
      %v634 = vunpack.c.h.b16 %v616
      %v635 = vunpack.c.l.b16 %v617
      %v636 = vunpack.c.h.b16 %v617
      %v637 = vpack.c.b16 %v627, %v625
      %v638 = vpack.c.b16 %v628, %v626
      %v639 = vpack.c.b16 %v631, %v629
      %v640 = vpack.c.b16 %v632, %v630
      %v641 = vpack.c.b16 %v635, %v633
      %v642 = vpack.c.b16 %v636, %v634
      %v650 = vlaneseq
      %v651 = vshrl.u32 %v650, 7
      %v652 = vsub.s32 0, %v651
      %v653 = vrot.slane %v618, %v652
      %v654 = vlaneseq
      %v655 = vshrl.u32 %v654, 7
      %v656 = vsub.s32 1, %v655
      %v657 = vrot.slane %v618, %v656
      %v661 = vsel %vm549, %v610, 0
      %663 = vmatprep.subr.bf16.mxu0 %v638
      %664 = vmatpush1.bf16.msra.mxu0 %v637
      %665 = vmatprep.subr.bf16.mxu0 %v640
      %666 = vmatpush1.bf16.msra.mxu0 %v639
      %667 = vmatprep.subr.bf16.mxu0 %v642
      %668 = vmatpush1.bf16.msra.mxu0 %v641
      %669 = vmatprep.subr.bf16.mxu0 0
      %670 = vmatpush1.bf16.msra.mxu0 0
      %671 = vmatprep.subr.bf16.mxu0 0
      %672 = vmatpush1.bf16.msra.mxu0 0
      %673 = vmatprep.subr.bf16.mxu0 0
      %674 = vmatpush1.bf16.msra.mxu0 0
      %675 = vmatprep.subr.bf16.mxu0 0
      %676 = vmatpush1.bf16.msra.mxu0 0
      %677 = vmatprep.subr.bf16.mxu0 0
      %678 = vmatpush1.bf16.msra.mxu0 0
      %679 = vmatprep.subr.bf16.mxu0 0
      %680 = vmatpush1.bf16.msra.mxu0 0
      %681 = vmatprep.subr.bf16.mxu0 0
      %682 = vmatpush1.bf16.msra.mxu0 0
      %683 = vmatprep.subr.bf16.mxu0 0
      %684 = vmatpush1.bf16.msra.mxu0 0
      %685 = vmatprep.subr.bf16.mxu0 0
      %686 = vmatpush1.bf16.msra.mxu0 0
      %687 = vmatprep.subr.bf16.mxu0 0
      %688 = vmatpush1.bf16.msra.mxu0 0
      %689 = vmatprep.subr.bf16.mxu0 0
      %690 = vmatpush1.bf16.msra.mxu0 0
      %691 = vmatprep.subr.bf16.mxu0 0
      %692 = vmatpush1.bf16.msra.mxu0 0
      %693 = vmatprep.subr.bf16.mxu0 0
      %694 = vmatpush1.bf16.msra.mxu0 0
      %695 = vmatprep.mubr.bf16.mxu0 0
      %696 = vmatmul.mubr.bf16.gmra.mrb[0].mxu0 %v661
      %v697 = vpop.f32.mrb[0].mxu0
      %v698 = vadd.f32 %v653, %v697
      %v699 = vpop.f32.mrb[0].mxu0
      %v700 = vadd.f32 %v657, %v699
      %v701 = vpop.f32.mrb[0].mxu0
      %v702 = vpop.f32.mrb[0].mxu0
      %703 = vdwg.mxu0
      %v704 = vmax.f32 %v698, 0.0
      %v705 = vmax.f32 %v700, 0.0
      %708 = vrot.lane.b32.xlu0 %v704, 64
      %v709 = vpop.permute.xlu0 %708
      %710 = vrot.lane.b32.xlu0 %v705, 64
      %v711 = vpop.permute.xlu0 %710
      %vm712 = vcmask 523264
      %v713 = vsel %vm712, %v709, %v711
      %v716 = vsel %vm712, %v595, %v709
      %v717 = vpack.c.bf16 %v594, %v594
      %v718 = vpack.c.bf16 %v716, %v716
      %v719 = vpack.c.bf16 %v713, %v713
      %v723 = vcombine.low %v717, %v718
      %v725 = vunpack.c.l.s4 1966171168
      %v726 = vunpack.c.0.s8 %v725
      %v727 = vlaneseq
      %v728 = vshrl.u32 %v727, 7
      %v729 = vsub.s32 %v726, %v728
      %v730 = vrot.slane %v723, %v729
      %v732 = vunpack.c.l.s4 1966171168
      %v733 = vunpack.c.0.s8 %v732
      %v734 = vlaneseq
      %v735 = vshrl.u32 %v734, 7
      %v736 = vsub.s32 %v733, %v735
      %v737 = vrot.slane %v719, %v736
      %v738 = vcombine.low %v730, %v737
      %v740 = vunpack.c.l.s4 1966171168
      %v741 = vunpack.c.0.s8 %v740
      %v742 = vlaneseq
      %v743 = vshrl.u32 %v742, 7
      %v744 = vsub.s32 %v741, %v743
      %v745 = vrot.slane %v738, %v744
      %vm747 = vcmask 1040384
      %vm748 = vmand %vm747, %vm605
      %vm749 = vcmask 1041409
      %vm750 = vmand %vm749, %vm599
      %vm751 = vmor %vm750, %vm748
      %vm752 = vcmask 1042434
      %vm753 = vsmask.f32 2304
      %vm754 = vmand %vm752, %vm753
      %vm755 = vmor %vm754, %vm751
      %v756 = vld [vmem:[%s302] sm:$0x7]
      %v757 = vsel %vm755, %v745, %v756
      %758 = vst [vmem:[%s302] sm:$0x7] %v757
      %p759 = scmp.lt.s32.totalorder %s21, 1
      %s760 = scalar_select %p759, %s21, 1
      %s761 = smul.addr %s760, 3
      %s762 = scalar_lea.vmem %s8, %s761
      // Predicated region
      $region53: #{squeezenet3d_forward.14} parent=51 // pred_check
        %p763 = pneg %p212
      $region54: #{squeezenet3d_forward.14} parent=51 // pred_check_branch
        %765 = sbr.rel (%p763) target = $region56
      $region55: #{squeezenet3d_forward.14} parent=51 // pred_region
        _
      $region56: #{squeezenet3d_forward.14} parent=51 // pred_fallthru
        _
    $region52: #{squeezenet3d_forward.14} parent=5 // pred_fallthru
      _
    %p766 = scmp.le.s32.totalorder 2, %s16
    // Predicated region
    $region57: #{squeezenet3d_forward.14} parent=5 // pred_check
      %p767 = pneg %p766
    $region58: #{squeezenet3d_forward.14} parent=5 // pred_check_branch
      %769 = sbr.rel (%p767) target = $region60
    $region59: #{squeezenet3d_forward.14} parent=5 // pred_region
      %s770 = ssub.s32 %s16, 2
      // Predicated region
      $region61: #{squeezenet3d_forward.14} parent=59 // pred_check
        %p771 = pneg %p218
      $region62: #{squeezenet3d_forward.14} parent=59 // pred_check_branch
        %773 = sbr.rel (%p771) target = $region64
      $region63: #{squeezenet3d_forward.14} parent=59 // pred_region
        %p774 = scmp.lt.s32.totalorder %s22, 1
        %s775 = scalar_select %p774, %s22, 1
        %s776 = smul.addr %s775, 3
        %s777 = scalar_lea.vmem %s8, %s776
      $region64: #{squeezenet3d_forward.14} parent=59 // pred_fallthru
        _
    $region60: #{squeezenet3d_forward.14} parent=5 // pred_fallthru
      _
  $region6: #{squeezenet3d_forward.14} parent=0 // loop_footer
    %s20 = sadd.s32 1, %s16
  $region7: #{squeezenet3d_forward.14} parent=0 // loop_footer_branch
    %15 = sbr.rel target = $region3
  $region8: #{squeezenet3d_forward.14} parent=0 // loop_exit
    _

// kernel: squeezenet3d_forward.15
$region0: #{squeezenet3d_forward.15}
  #allocation0 [shape = 'u32[]', space=smem, size = 0x4, offset = 0x4, fixed_abs, tag = 'smem constant byte address 0x4 - core index']
  #allocation1 [shape = 'u32[144,128]{1,0:T(1,128)}', space=vmem, size = 0x12000, scoped, tag = 'internal scratch']
  #allocation2 [shape = 'bf16[11,48]{1,0:T(8,128)(2,1)}', space=vmem, size = 0x1000, scoped, tag = 'scratch operand']
  #allocation3 [shape = 's32[1,1]{1,0:T(1,128)S(1)}', space=vmem, size = 0x200, scoped, tag = 'scoped memory for squeezenet3d_forward.15']
  %s0 = inlined_call_operand.vmem [shape: bf16[2,1,384], index: 0, kind: input, shape index: {}]
  %s1 = inlined_call_operand.<no memory space> [shape: s32[1,1], index: 1, kind: input, shape index: {}]
  %s2 = inlined_call_operand.vmem [shape: bf16[384,48], index: 2, kind: input, shape index: {}]
  %s3 = inlined_call_operand.vmem [shape: f32[1,48], index: 3, kind: input, shape index: {}]
  %s4 = inlined_call_operand.vmem [shape: bf16[48,192], index: 4, kind: input, shape index: {}]
  %s5 = inlined_call_operand.vmem [shape: f32[1,192], index: 5, kind: input, shape index: {}]
  %s6 = inlined_call_operand.vmem [shape: bf16[9,48,192], index: 6, kind: input, shape index: {}]
  %s7 = inlined_call_operand.vmem [shape: f32[1,192], index: 7, kind: input, shape index: {}]
  %s8 = inlined_call_operand.vmem [shape: bf16[2,1,384], index: 8, kind: output, shape index: {}]
  %s9 = sld [smem:[#allocation0]]
  $region65: #{squeezenet3d_forward.15} parent=0
    _
  %s11 = ssub.s32 1, %s9
  %s12 = scalar_select 0, %s11, %s9
  %v13 = vstv %s1
  %14 = vst [vmem:[#allocation3] sm:$0x1] %v13
  loop: start=0, step=1, limit=4
  $region2: #{squeezenet3d_forward.15} parent=0 // loop_pre_header
    _
  $region3: #{squeezenet3d_forward.15} parent=0 // loop_header
    %s16 = sphi 0, %s20
    %p17 = scmp.ge.s32.totalorder %s16, 4
    %s26 = sphi 0, %s28
    %s29 = sphi 0, %s26
    %s30 = sphi 0, %s29
    %s46 = sphi 0, %s30
    %s50 = sphi 0, %s50
    %s52 = sphi 0, %s50
    %s53 = sphi 0, %s52
    %s67 = sphi 0, %s53
    %s71 = sphi 0, %s71
    %s73 = sphi 0, %s71
    %s74 = sphi 0, %s73
    %s88 = sphi 0, %s74
    %s92 = sphi 0, %s92
    %s94 = sphi 0, %s92
    %s95 = sphi 0, %s94
    %s109 = sphi 0, %s95
    %s113 = sphi 0, %s113
    %s115 = sphi 0, %s113
    %s116 = sphi 0, %s115
    %s130 = sphi 0, %s116
    %s134 = sphi 0, %s134
    %s136 = sphi 0, %s134
    %s137 = sphi 0, %s136
    %s151 = sphi 0, %s137
    %s155 = sphi 0, %s155
    %s157 = sphi 0, %s155
    %s158 = sphi 0, %s157
    %s172 = sphi 0, %s158
    %s176 = sphi 0, %s176
    %s178 = sphi 0, %s176
    %s179 = sphi 0, %s178
    %s193 = sphi 0, %s179
    %s199 = sphi 0, %s201
    %s202 = sphi 0, %s199
    %s203 = sphi 0, %s202
    %s219 = sphi 0, %s203
  $region4: #{squeezenet3d_forward.15} parent=0 // loop_header_branch
    %19 = sbr.rel (%p17) target = $region8
  $region5: #{squeezenet3d_forward.15} parent=0 // loop_body
    %s21 = ssub.s32 %s16, 1
    %s22 = ssub.s32 %s16, 2
    %s23 = sadd.s32 %s16, 1
    %s24 = ssub.s32 %s16, %s23
    %p25 = scmp.eq.s32.totalorder %s24, 0
    %s27 = sadd.s32 %s26, 1
    %s28 = scalar_select %p25, %s26, %s27
    %p31 = pneg %p25
    %p32 = scmp.eq.s32.totalorder %s16, 1
    %p33 = por %p31, %p32
    %p34 = scmp.ne.s32.totalorder %s26, %s29
    %p35 = scmp.eq.s32.totalorder %s16, 0
    %p36 = por %p34, %p35
    %p37 = scmp.ne.s32.totalorder %s26, %s29
    %p38 = scmp.eq.s32.totalorder %s21, 1
    %p39 = por %p37, %p38
    %p40 = scmp.ne.s32.totalorder %s29, %s30
    %p41 = scmp.eq.s32.totalorder %s21, 0
    %p42 = por %p40, %p41
    %p43 = scmp.ne.s32.totalorder %s29, %s30
    %p44 = scmp.eq.s32.totalorder %s22, 1
    %p45 = por %p43, %p44
    %p47 = scmp.ne.s32.totalorder %s30, %s46
    %p48 = scmp.eq.s32.totalorder %s22, 0
    %p49 = por %p47, %p48
    %s51 = sadd.s32 %s50, 1
    %p54 = scmp.eq.s32.totalorder %s16, 1
    %p55 = scmp.ne.s32.totalorder %s50, %s52
    %p56 = scmp.eq.s32.totalorder %s16, 0
    %p57 = por %p55, %p56
    %p58 = scmp.ne.s32.totalorder %s50, %s52
    %p59 = scmp.eq.s32.totalorder %s21, 1
    %p60 = por %p58, %p59
    %p61 = scmp.ne.s32.totalorder %s52, %s53
    %p62 = scmp.eq.s32.totalorder %s21, 0
    %p63 = por %p61, %p62
    %p64 = scmp.ne.s32.totalorder %s52, %s53
    %p65 = scmp.eq.s32.totalorder %s22, 1
    %p66 = por %p64, %p65
    %p68 = scmp.ne.s32.totalorder %s53, %s67
    %p69 = scmp.eq.s32.totalorder %s22, 0
    %p70 = por %p68, %p69
    %s72 = sadd.s32 %s71, 1
    %p75 = scmp.eq.s32.totalorder %s16, 1
    %p76 = scmp.ne.s32.totalorder %s71, %s73
    %p77 = scmp.eq.s32.totalorder %s16, 0
    %p78 = por %p76, %p77
    %p79 = scmp.ne.s32.totalorder %s71, %s73
    %p80 = scmp.eq.s32.totalorder %s21, 1
    %p81 = por %p79, %p80
    %p82 = scmp.ne.s32.totalorder %s73, %s74
    %p83 = scmp.eq.s32.totalorder %s21, 0
    %p84 = por %p82, %p83
    %p85 = scmp.ne.s32.totalorder %s73, %s74
    %p86 = scmp.eq.s32.totalorder %s22, 1
    %p87 = por %p85, %p86
    %p89 = scmp.ne.s32.totalorder %s74, %s88
    %p90 = scmp.eq.s32.totalorder %s22, 0
    %p91 = por %p89, %p90
    %s93 = sadd.s32 %s92, 1
    %p96 = scmp.eq.s32.totalorder %s16, 1
    %p97 = scmp.ne.s32.totalorder %s92, %s94
    %p98 = scmp.eq.s32.totalorder %s16, 0
    %p99 = por %p97, %p98
    %p100 = scmp.ne.s32.totalorder %s92, %s94
    %p101 = scmp.eq.s32.totalorder %s21, 1
    %p102 = por %p100, %p101
    %p103 = scmp.ne.s32.totalorder %s94, %s95
    %p104 = scmp.eq.s32.totalorder %s21, 0
    %p105 = por %p103, %p104
    %p106 = scmp.ne.s32.totalorder %s94, %s95
    %p107 = scmp.eq.s32.totalorder %s22, 1
    %p108 = por %p106, %p107
    %p110 = scmp.ne.s32.totalorder %s95, %s109
    %p111 = scmp.eq.s32.totalorder %s22, 0
    %p112 = por %p110, %p111
    %s114 = sadd.s32 %s113, 1
    %p117 = scmp.eq.s32.totalorder %s16, 1
    %p118 = scmp.ne.s32.totalorder %s113, %s115
    %p119 = scmp.eq.s32.totalorder %s16, 0
    %p120 = por %p118, %p119
    %p121 = scmp.ne.s32.totalorder %s113, %s115
    %p122 = scmp.eq.s32.totalorder %s21, 1
    %p123 = por %p121, %p122
    %p124 = scmp.ne.s32.totalorder %s115, %s116
    %p125 = scmp.eq.s32.totalorder %s21, 0
    %p126 = por %p124, %p125
    %p127 = scmp.ne.s32.totalorder %s115, %s116
    %p128 = scmp.eq.s32.totalorder %s22, 1
    %p129 = por %p127, %p128
    %p131 = scmp.ne.s32.totalorder %s116, %s130
    %p132 = scmp.eq.s32.totalorder %s22, 0
    %p133 = por %p131, %p132
    %s135 = sadd.s32 %s134, 1
    %p138 = scmp.eq.s32.totalorder %s16, 1
    %p139 = scmp.ne.s32.totalorder %s134, %s136
    %p140 = scmp.eq.s32.totalorder %s16, 0
    %p141 = por %p139, %p140
    %p142 = scmp.ne.s32.totalorder %s134, %s136
    %p143 = scmp.eq.s32.totalorder %s21, 1
    %p144 = por %p142, %p143
    %p145 = scmp.ne.s32.totalorder %s136, %s137
    %p146 = scmp.eq.s32.totalorder %s21, 0
    %p147 = por %p145, %p146
    %p148 = scmp.ne.s32.totalorder %s136, %s137
    %p149 = scmp.eq.s32.totalorder %s22, 1
    %p150 = por %p148, %p149
    %p152 = scmp.ne.s32.totalorder %s137, %s151
    %p153 = scmp.eq.s32.totalorder %s22, 0
    %p154 = por %p152, %p153
    %s156 = sadd.s32 %s155, 1
    %p159 = scmp.eq.s32.totalorder %s16, 1
    %p160 = scmp.ne.s32.totalorder %s155, %s157
    %p161 = scmp.eq.s32.totalorder %s16, 0
    %p162 = por %p160, %p161
    %p163 = scmp.ne.s32.totalorder %s155, %s157
    %p164 = scmp.eq.s32.totalorder %s21, 1
    %p165 = por %p163, %p164
    %p166 = scmp.ne.s32.totalorder %s157, %s158
    %p167 = scmp.eq.s32.totalorder %s21, 0
    %p168 = por %p166, %p167
    %p169 = scmp.ne.s32.totalorder %s157, %s158
    %p170 = scmp.eq.s32.totalorder %s22, 1
    %p171 = por %p169, %p170
    %p173 = scmp.ne.s32.totalorder %s158, %s172
    %p174 = scmp.eq.s32.totalorder %s22, 0
    %p175 = por %p173, %p174
    %s177 = sadd.s32 %s176, 1
    %p180 = scmp.eq.s32.totalorder %s16, 1
    %p181 = scmp.ne.s32.totalorder %s176, %s178
    %p182 = scmp.eq.s32.totalorder %s16, 0
    %p183 = por %p181, %p182
    %p184 = scmp.ne.s32.totalorder %s176, %s178
    %p185 = scmp.eq.s32.totalorder %s21, 1
    %p186 = por %p184, %p185
    %p187 = scmp.ne.s32.totalorder %s178, %s179
    %p188 = scmp.eq.s32.totalorder %s21, 0
    %p189 = por %p187, %p188
    %p190 = scmp.ne.s32.totalorder %s178, %s179
    %p191 = scmp.eq.s32.totalorder %s22, 1
    %p192 = por %p190, %p191
    %p194 = scmp.ne.s32.totalorder %s179, %s193
    %p195 = scmp.eq.s32.totalorder %s22, 0
    %p196 = por %p194, %p195
    %s197 = ssub.s32 %s16, %s23
    %p198 = scmp.eq.s32.totalorder %s197, 0
    %s200 = sadd.s32 %s199, 1
    %s201 = scalar_select %p198, %s199, %s200
    %p204 = pneg %p198
    %p205 = scmp.eq.s32.totalorder %s16, 1
    %p206 = por %p204, %p205
    %p207 = scmp.ne.s32.totalorder %s199, %s202
    %p208 = scmp.eq.s32.totalorder %s16, 0
    %p209 = por %p207, %p208
    %p210 = scmp.ne.s32.totalorder %s199, %s202
    %p211 = scmp.eq.s32.totalorder %s21, 1
    %p212 = por %p210, %p211
    %p213 = scmp.ne.s32.totalorder %s202, %s203
    %p214 = scmp.eq.s32.totalorder %s21, 0
    %p215 = por %p213, %p214
    %p216 = scmp.ne.s32.totalorder %s202, %s203
    %p217 = scmp.eq.s32.totalorder %s22, 1
    %p218 = por %p216, %p217
    %p220 = scmp.ne.s32.totalorder %s203, %s219
    %p221 = scmp.eq.s32.totalorder %s22, 0
    %p222 = por %p220, %p221
    %p223 = scmp.le.s32.totalorder 1, %s16
    %p224 = scmp.lt.s32.totalorder %s16, 3
    %p225 = pnand %p223, %p224
    %p226 = pneg %p225
    // Predicated region
    $region9: #{squeezenet3d_forward.15} parent=5 // pred_check
      _
    $region10: #{squeezenet3d_forward.15} parent=5 // pred_check_branch
      %228 = sbr.rel (%p225) target = $region12
    $region11: #{squeezenet3d_forward.15} parent=5 // pred_region
      %s229 = ssub.s32 %s16, 1
      // Predicated region
      $region13: #{squeezenet3d_forward.15} parent=11 // pred_check
        %p230 = pneg %p63
      $region14: #{squeezenet3d_forward.15} parent=11 // pred_check_branch
        %232 = sbr.rel (%p230) target = $region16
      $region15: #{squeezenet3d_forward.15} parent=11 // pred_region
        _
      $region16: #{squeezenet3d_forward.15} parent=11 // pred_fallthru
        _
      // Predicated region
      $region17: #{squeezenet3d_forward.15} parent=11 // pred_check
        %p233 = pneg %p84
      $region18: #{squeezenet3d_forward.15} parent=11 // pred_check_branch
        %235 = sbr.rel (%p233) target = $region20
      $region19: #{squeezenet3d_forward.15} parent=11 // pred_region
        _
      $region20: #{squeezenet3d_forward.15} parent=11 // pred_fallthru
        _
      // Predicated region
      $region21: #{squeezenet3d_forward.15} parent=11 // pred_check
        %p236 = pneg %p105
      $region22: #{squeezenet3d_forward.15} parent=11 // pred_check_branch
        %238 = sbr.rel (%p236) target = $region24
      $region23: #{squeezenet3d_forward.15} parent=11 // pred_region
        _
      $region24: #{squeezenet3d_forward.15} parent=11 // pred_fallthru
        _
      // Predicated region
      $region25: #{squeezenet3d_forward.15} parent=11 // pred_check
        %p239 = pneg %p126
      $region26: #{squeezenet3d_forward.15} parent=11 // pred_check_branch
        %241 = sbr.rel (%p239) target = $region28
      $region27: #{squeezenet3d_forward.15} parent=11 // pred_region
        _
      $region28: #{squeezenet3d_forward.15} parent=11 // pred_fallthru
        _
      // Predicated region
      $region29: #{squeezenet3d_forward.15} parent=11 // pred_check
        %p242 = pneg %p147
      $region30: #{squeezenet3d_forward.15} parent=11 // pred_check_branch
        %244 = sbr.rel (%p242) target = $region32
      $region31: #{squeezenet3d_forward.15} parent=11 // pred_region
        _
      $region32: #{squeezenet3d_forward.15} parent=11 // pred_fallthru
        _
      // Predicated region
      $region33: #{squeezenet3d_forward.15} parent=11 // pred_check
        %p245 = pneg %p168
      $region34: #{squeezenet3d_forward.15} parent=11 // pred_check_branch
        %247 = sbr.rel (%p245) target = $region36
      $region35: #{squeezenet3d_forward.15} parent=11 // pred_region
        _
      $region36: #{squeezenet3d_forward.15} parent=11 // pred_fallthru
        _
      // Predicated region
      $region37: #{squeezenet3d_forward.15} parent=11 // pred_check
        %p248 = pneg %p189
      $region38: #{squeezenet3d_forward.15} parent=11 // pred_check_branch
        %250 = sbr.rel (%p248) target = $region40
      $region39: #{squeezenet3d_forward.15} parent=11 // pred_region
        _
      $region40: #{squeezenet3d_forward.15} parent=11 // pred_fallthru
        _
    $region12: #{squeezenet3d_forward.15} parent=5 // pred_fallthru
      _
    %p251 = scmp.lt.s32.totalorder %s16, 2
    // Predicated region
    $region41: #{squeezenet3d_forward.15} parent=5 // pred_check
      %p252 = pneg %p251
    $region42: #{squeezenet3d_forward.15} parent=5 // pred_check_branch
      %254 = sbr.rel (%p252) target = $region44
    $region43: #{squeezenet3d_forward.15} parent=5 // pred_region
      // Predicated region
      $region45: #{squeezenet3d_forward.15} parent=43 // pred_check
        %p255 = pneg %p36
      $region46: #{squeezenet3d_forward.15} parent=43 // pred_check_branch
        %257 = sbr.rel (%p255) target = $region48
      $region47: #{squeezenet3d_forward.15} parent=43 // pred_region
        %p258 = scmp.lt.s32.totalorder %s16, 1
        %s259 = scalar_select %p258, %s16, 1
        %s260 = smul.addr %s259, 3
        %s261 = scalar_lea.vmem %s0, %s260
      $region48: #{squeezenet3d_forward.15} parent=43 // pred_fallthru
        _
    $region44: #{squeezenet3d_forward.15} parent=5 // pred_fallthru
      _
    %p262 = scmp.le.s32.totalorder 1, %s16
    %p263 = scmp.lt.s32.totalorder %s16, 3
    %p264 = pnand %p262, %p263
    %p265 = pneg %p264
    // Predicated region
    $region49: #{squeezenet3d_forward.15} parent=5 // pred_check
      _
    $region50: #{squeezenet3d_forward.15} parent=5 // pred_check_branch
      %267 = sbr.rel (%p264) target = $region52
    $region51: #{squeezenet3d_forward.15} parent=5 // pred_region
      %s268 = ssub.s32 %s16, 1
      %p269 = scmp.lt.s32.totalorder %s21, 1
      %s270 = scalar_select %p269, %s21, 1
      %s271 = smul.addr %s270, 3
      %s272 = scalar_lea.vmem %s0, %s271
      %p273 = pneg %p42
      %p274 = pneg %p39
      %p275 = pneg %p63
      %p276 = pneg %p60
      %p277 = pneg %p84
      %p278 = pneg %p81
      %p279 = pneg %p105
      %p280 = pneg %p102
      %p281 = pneg %p126
      %p282 = pneg %p123
      %p283 = pneg %p147
      %p284 = pneg %p144
      %p285 = pneg %p168
      %p286 = pneg %p165
      %p287 = pneg %p189
      %p288 = pneg %p186
      %p289 = pneg %p215
      %p290 = pneg %p212
      %p291 = scmp.lt.s32.totalorder %s21, 1
      %s292 = scalar_select %p291, %s21, 1
      %s293 = smul.addr %s292, 3
      %s294 = scalar_lea.vmem %s8, %s293
      %p295 = scmp.lt.s32.totalorder %s21, 1
      %s296 = scalar_select %p295, %s21, 1
      %s297 = smul.addr %s296, 3
      %s298 = scalar_lea.vmem %s0, %s297
      %p299 = scmp.lt.s32.totalorder %s21, 1
      %s300 = scalar_select %p299, %s21, 1
      %s301 = smul.addr %s300, 3
      %s302 = scalar_lea.vmem %s8, %s301
      %v304 = vld [vmem:[%s298] sm:$0x7]
      %v305 = vld [vmem:[%s2] sm:$0xf]
      %v306 = vld [vmem:[%s2 + $0x4] sm:$0xf]
      %v307 = vld [vmem:[%s2 + $0x8] sm:$0xf]
      %v308 = vld [vmem:[%s2 + $0xc] sm:$0xf]
      %v309 = vld [vmem:[%s2 + $0x10] sm:$0xf]
      %v310 = vld [vmem:[%s2 + $0x14] sm:$0xf]
      %v311 = vld [vmem:[%s2 + $0x18] sm:$0xf]
      %v312 = vld [vmem:[%s2 + $0x1c] sm:$0xf]
      %v313 = vld [vmem:[%s2 + $0x20] sm:$0xf]
      %v314 = vld [vmem:[%s2 + $0x24] sm:$0xf]
      %v315 = vld [vmem:[%s2 + $0x28] sm:$0xf]
      %v316 = vld [vmem:[%s2 + $0x2c] sm:$0xf]
      %v317 = vld [vmem:[%s2 + $0x30] sm:$0xf]
      %v318 = vld [vmem:[%s2 + $0x34] sm:$0xf]
      %v319 = vld [vmem:[%s2 + $0x38] sm:$0xf]
      %v320 = vld [vmem:[%s2 + $0x3c] sm:$0xf]
      %v321 = vld [vmem:[%s2 + $0x40] sm:$0xf]
      %v322 = vld [vmem:[%s2 + $0x44] sm:$0xf]
      %v323 = vld [vmem:[%s2 + $0x48] sm:$0xf]
      %v324 = vld [vmem:[%s2 + $0x4c] sm:$0xf]
      %v325 = vld [vmem:[%s2 + $0x50] sm:$0xf]
      %v326 = vld [vmem:[%s2 + $0x54] sm:$0xf]
      %v327 = vld [vmem:[%s2 + $0x58] sm:$0xf]
      %v328 = vld [vmem:[%s2 + $0x5c] sm:$0xf]
      %v329 = vld [vmem:[%s2 + $0x60] sm:$0xf]
      %v330 = vld [vmem:[%s2 + $0x64] sm:$0xf]
      %v331 = vld [vmem:[%s2 + $0x68] sm:$0xf]
      %v332 = vld [vmem:[%s2 + $0x6c] sm:$0xf]
      %v333 = vld [vmem:[%s2 + $0x70] sm:$0xf]
      %v334 = vld [vmem:[%s2 + $0x74] sm:$0xf]
      %v335 = vld [vmem:[%s2 + $0x78] sm:$0xf]
      %v336 = vld [vmem:[%s2 + $0x7c] sm:$0xf]
      %v337 = vld [vmem:[%s2 + $0x80] sm:$0xf]
      %v338 = vld [vmem:[%s2 + $0x84] sm:$0xf]
      %v339 = vld [vmem:[%s2 + $0x88] sm:$0xf]
      %v340 = vld [vmem:[%s2 + $0x8c] sm:$0xf]
      %v341 = vld [vmem:[%s2 + $0x90] sm:$0xf]
      %v342 = vld [vmem:[%s2 + $0x94] sm:$0xf]
      %v343 = vld [vmem:[%s2 + $0x98] sm:$0xf]
      %v344 = vld [vmem:[%s2 + $0x9c] sm:$0xf]
      %v345 = vld [vmem:[%s2 + $0xa0] sm:$0xf]
      %v346 = vld [vmem:[%s2 + $0xa4] sm:$0xf]
      %v347 = vld [vmem:[%s2 + $0xa8] sm:$0xf]
      %v348 = vld [vmem:[%s2 + $0xac] sm:$0xf]
      %v349 = vld [vmem:[%s2 + $0xb0] sm:$0xf]
      %v350 = vld [vmem:[%s2 + $0xb4] sm:$0xf]
      %v351 = vld [vmem:[%s2 + $0xb8] sm:$0xf]
      %v352 = vld [vmem:[%s2 + $0xbc] sm:$0xf]
      %v353 = vld [vmem:[%s3] sm:$0x1]
      %v356 = vunpack.c.l.s4 1966171168
      %v357 = vunpack.c.0.s8 %v356
      %v358 = vlaneseq
      %v359 = vshrl.u32 %v358, 7
      %v360 = vsub.s32 %v357, %v359
      %v361 = vrot.slane %v304, %v360
      %v362 = vcombine.high %v361, %v361
      %v364 = vunpack.c.l.s4 1966171168
      %v365 = vunpack.c.0.s8 %v364
      %v366 = vlaneseq
      %v367 = vshrl.u32 %v366, 7
      %v368 = vsub.s32 %v365, %v367
      %v369 = vrot.slane %v361, %v368
      %v371 = vunpack.c.l.s4 1966171168
      %v372 = vunpack.c.0.s8 %v371
      %v373 = vlaneseq
      %v374 = vshrl.u32 %v373, 7
      %v375 = vsub.s32 %v372, %v374
      %v376 = vrot.slane %v362, %v375
      %v377 = vcombine.high %v369, %v369
      %v429 = vunpack.c.l.b16 %v305
      %v430 = vunpack.c.l.b16 %v306
      %v431 = vunpack.c.l.b16 %v307
      %v432 = vunpack.c.l.b16 %v308
      %v433 = vunpack.c.l.b16 %v309
      %v434 = vunpack.c.l.b16 %v310
      %v435 = vunpack.c.l.b16 %v311
      %v436 = vunpack.c.l.b16 %v312
      %v437 = vunpack.c.l.b16 %v313
      %v438 = vunpack.c.l.b16 %v314
      %v439 = vunpack.c.l.b16 %v315
      %v440 = vunpack.c.l.b16 %v316
      %v441 = vunpack.c.l.b16 %v317
      %v442 = vunpack.c.l.b16 %v318
      %v443 = vunpack.c.l.b16 %v319
      %v444 = vunpack.c.l.b16 %v320
      %v445 = vunpack.c.l.b16 %v321
      %v446 = vunpack.c.l.b16 %v322
      %v447 = vunpack.c.l.b16 %v323
      %v448 = vunpack.c.l.b16 %v324
      %v449 = vunpack.c.l.b16 %v325
      %v450 = vunpack.c.l.b16 %v326
      %v451 = vunpack.c.l.b16 %v327
      %v452 = vunpack.c.l.b16 %v328
      %v453 = vunpack.c.l.b16 %v329
      %v454 = vunpack.c.l.b16 %v330
      %v455 = vunpack.c.l.b16 %v331
      %v456 = vunpack.c.l.b16 %v332
      %v457 = vunpack.c.l.b16 %v333
      %v458 = vunpack.c.l.b16 %v334
      %v459 = vunpack.c.l.b16 %v335
      %v460 = vunpack.c.l.b16 %v336
      %v461 = vunpack.c.l.b16 %v337
      %v462 = vunpack.c.l.b16 %v338
      %v463 = vunpack.c.l.b16 %v339
      %v464 = vunpack.c.l.b16 %v340
      %v465 = vunpack.c.l.b16 %v341
      %v466 = vunpack.c.l.b16 %v342
      %v467 = vunpack.c.l.b16 %v343
      %v468 = vunpack.c.l.b16 %v344
      %v469 = vunpack.c.l.b16 %v345
      %v470 = vunpack.c.l.b16 %v346
      %v471 = vunpack.c.l.b16 %v347
      %v472 = vunpack.c.l.b16 %v348
      %v473 = vunpack.c.l.b16 %v349
      %v474 = vunpack.c.l.b16 %v350
      %v475 = vunpack.c.l.b16 %v351
      %v476 = vunpack.c.l.b16 %v352
      %v477 = vpack.c.b16 %v430, %v429
      %v478 = vpack.c.b16 %v432, %v431
      %v479 = vpack.c.b16 %v434, %v433
      %v480 = vpack.c.b16 %v436, %v435
      %v481 = vpack.c.b16 %v438, %v437
      %v482 = vpack.c.b16 %v440, %v439
      %v483 = vpack.c.b16 %v442, %v441
      %v484 = vpack.c.b16 %v444, %v443
      %v485 = vpack.c.b16 %v446, %v445
      %v486 = vpack.c.b16 %v448, %v447
      %v487 = vpack.c.b16 %v450, %v449
      %v488 = vpack.c.b16 %v452, %v451
      %v489 = vpack.c.b16 %v454, %v453
      %v490 = vpack.c.b16 %v456, %v455
      %v491 = vpack.c.b16 %v458, %v457
      %v492 = vpack.c.b16 %v460, %v459
      %v493 = vpack.c.b16 %v462, %v461
      %v494 = vpack.c.b16 %v464, %v463
      %v495 = vpack.c.b16 %v466, %v465
      %v496 = vpack.c.b16 %v468, %v467
      %v497 = vpack.c.b16 %v470, %v469
      %v498 = vpack.c.b16 %v472, %v471
      %v499 = vpack.c.b16 %v474, %v473
      %v500 = vpack.c.b16 %v476, %v475
      %525 = vmatprep.subr.bf16.mxu0 0
      %526 = vmatpush1.bf16.msra.mxu0 %v477
      %527 = vmatprep.subr.bf16.mxu0 0
      %528 = vmatpush1.bf16.msra.mxu0 %v478
      %529 = vmatprep.subr.bf16.mxu0 0
      %530 = vmatpush1.bf16.msra.mxu0 %v479
      %531 = vmatprep.subr.bf16.mxu0 0
      %532 = vmatpush1.bf16.msra.mxu0 %v480
      %533 = vmatprep.subr.bf16.mxu0 0
      %534 = vmatpush1.bf16.msra.mxu0 %v481
      %535 = vmatprep.subr.bf16.mxu0 0
      %536 = vmatpush1.bf16.msra.mxu0 %v482
      %537 = vmatprep.subr.bf16.mxu0 0
      %538 = vmatpush1.bf16.msra.mxu0 %v483
      %539 = vmatprep.subr.bf16.mxu0 0
      %540 = vmatpush1.bf16.msra.mxu0 %v484
      %541 = vmatprep.subr.bf16.mxu0 0
      %542 = vmatpush1.bf16.msra.mxu0 %v485
      %543 = vmatprep.subr.bf16.mxu0 0
      %544 = vmatpush1.bf16.msra.mxu0 %v486
      %545 = vmatprep.subr.bf16.mxu0 0
      %546 = vmatpush1.bf16.msra.mxu0 %v487
      %547 = vmatprep.subr.bf16.mxu0 0
      %548 = vmatpush1.bf16.msra.mxu0 %v488
      %549 = vmatprep.subr.bf16.mxu0 0
      %550 = vmatpush1.bf16.msra.mxu0 %v489
      %551 = vmatprep.subr.bf16.mxu0 0
      %552 = vmatpush1.bf16.msra.mxu0 %v490
      %553 = vmatprep.subr.bf16.mxu0 0
      %554 = vmatpush1.bf16.msra.mxu0 %v491
      %555 = vmatprep.subr.bf16.mxu0 0
      %556 = vmatpush1.bf16.msra.mxu0 %v492
      %557 = vmatprep.mubr.bf16.mxu0 %v376
      %558 = vmatmul.mubr.bf16.gmra.mrb[0].mxu0 %v369
      %v559 = vpop.f32.mrb[0].mxu0
      %v560 = vadd.f32 %v353, %v559
      %v561 = vpop.f32.mrb[0].mxu0
      %v562 = vpop.f32.mrb[0].mxu0
      %v563 = vpop.f32.mrb[0].mxu0
      %564 = vdwg.mxu0
      %565 = vmatprep.subr.bf16.mxu0 0
      %566 = vmatpush1.bf16.msra.mxu0 %v493
      %567 = vmatprep.subr.bf16.mxu0 0
      %568 = vmatpush1.bf16.msra.mxu0 %v494
      %569 = vmatprep.subr.bf16.mxu0 0
      %570 = vmatpush1.bf16.msra.mxu0 %v495
      %571 = vmatprep.subr.bf16.mxu0 0
      %572 = vmatpush1.bf16.msra.mxu0 %v496
      %573 = vmatprep.subr.bf16.mxu0 0
      %574 = vmatpush1.bf16.msra.mxu0 %v497
      %575 = vmatprep.subr.bf16.mxu0 0
      %576 = vmatpush1.bf16.msra.mxu0 %v498
      %577 = vmatprep.subr.bf16.mxu0 0
      %578 = vmatpush1.bf16.msra.mxu0 %v499
      %579 = vmatprep.subr.bf16.mxu0 0
      %580 = vmatpush1.bf16.msra.mxu0 %v500
      %581 = vmatprep.subr.bf16.mxu0 0
      %582 = vmatpush1.bf16.msra.mxu0 0
      %583 = vmatprep.subr.bf16.mxu0 0
      %584 = vmatpush1.bf16.msra.mxu0 0
      %585 = vmatprep.subr.bf16.mxu0 0
      %586 = vmatpush1.bf16.msra.mxu0 0
      %587 = vmatprep.subr.bf16.mxu0 0
      %588 = vmatpush1.bf16.msra.mxu0 0
      %589 = vmatprep.subr.bf16.mxu0 0
      %590 = vmatpush1.bf16.msra.mxu0 0
      %591 = vmatprep.subr.bf16.mxu0 0
      %592 = vmatpush1.bf16.msra.mxu0 0
      %593 = vmatprep.subr.bf16.mxu0 0
      %594 = vmatpush1.bf16.msra.mxu0 0
      %595 = vmatprep.subr.bf16.mxu0 0
      %596 = vmatpush1.bf16.msra.mxu0 0
      %597 = vmatprep.mubr.bf16.mxu0 0
      %598 = vmatmul.mubr.bf16.gmra.mrb[0].mxu0 %v377
      %v599 = vpop.f32.mrb[0].mxu0
      %v600 = vadd.f32 %v560, %v599
      %v601 = vpop.f32.mrb[0].mxu0
      %v602 = vpop.f32.mrb[0].mxu0
      %v603 = vpop.f32.mrb[0].mxu0
      %604 = vdwg.mxu0
      %v605 = vmax.f32 %v600, 0.0
      %v606 = vpack.c.bf16 %v605, %v605
      %v607 = vld [vmem:[%s4] sm:$0xff]
      %v608 = vld [vmem:[%s4 + $0x8] sm:$0xff]
      %v609 = vld [vmem:[%s4 + $0x10] sm:$0xff]
      %v610 = vld [vmem:[%s4 + $0x18] sm:$0xff]
      %v611 = vld [vmem:[%s4 + $0x20] sm:$0xff]
      %v612 = vld [vmem:[%s4 + $0x28] sm:$0xff]
      %v613 = vld [vmem:[%s5] sm:$0x3]
      %v620 = vunpack.c.l.b16 %v607
      %v621 = vunpack.c.h.b16 %v607
      %v622 = vunpack.c.l.b16 %v608
      %v623 = vunpack.c.h.b16 %v608
      %v624 = vunpack.c.l.b16 %v609
      %v625 = vunpack.c.h.b16 %v609
      %v626 = vunpack.c.l.b16 %v610
      %v627 = vunpack.c.h.b16 %v610
      %v628 = vunpack.c.l.b16 %v611
      %v629 = vunpack.c.h.b16 %v611
      %v630 = vunpack.c.l.b16 %v612
      %v631 = vunpack.c.h.b16 %v612
      %v632 = vpack.c.b16 %v622, %v620
      %v633 = vpack.c.b16 %v623, %v621
      %v634 = vpack.c.b16 %v626, %v624
      %v635 = vpack.c.b16 %v627, %v625
      %v636 = vpack.c.b16 %v630, %v628
      %v637 = vpack.c.b16 %v631, %v629
      %v645 = vlaneseq
      %v646 = vshrl.u32 %v645, 7
      %v647 = vsub.s32 0, %v646
      %v648 = vrot.slane %v613, %v647
      %v649 = vlaneseq
      %v650 = vshrl.u32 %v649, 7
      %v651 = vsub.s32 1, %v650
      %v652 = vrot.slane %v613, %v651
      %vm655 = vcmask 392192
      %v657 = vsel %vm655, %v606, 0
      %659 = vmatprep.subr.bf16.mxu0 %v633
      %660 = vmatpush1.bf16.msra.mxu0 %v632
      %661 = vmatprep.subr.bf16.mxu0 %v635
      %662 = vmatpush1.bf16.msra.mxu0 %v634
      %663 = vmatprep.subr.bf16.mxu0 %v637
      %664 = vmatpush1.bf16.msra.mxu0 %v636
      %665 = vmatprep.subr.bf16.mxu0 0
      %666 = vmatpush1.bf16.msra.mxu0 0
      %667 = vmatprep.subr.bf16.mxu0 0
      %668 = vmatpush1.bf16.msra.mxu0 0
      %669 = vmatprep.subr.bf16.mxu0 0
      %670 = vmatpush1.bf16.msra.mxu0 0
      %671 = vmatprep.subr.bf16.mxu0 0
      %672 = vmatpush1.bf16.msra.mxu0 0
      %673 = vmatprep.subr.bf16.mxu0 0
      %674 = vmatpush1.bf16.msra.mxu0 0
      %675 = vmatprep.subr.bf16.mxu0 0
      %676 = vmatpush1.bf16.msra.mxu0 0
      %677 = vmatprep.subr.bf16.mxu0 0
      %678 = vmatpush1.bf16.msra.mxu0 0
      %679 = vmatprep.subr.bf16.mxu0 0
      %680 = vmatpush1.bf16.msra.mxu0 0
      %681 = vmatprep.subr.bf16.mxu0 0
      %682 = vmatpush1.bf16.msra.mxu0 0
      %683 = vmatprep.subr.bf16.mxu0 0
      %684 = vmatpush1.bf16.msra.mxu0 0
      %685 = vmatprep.subr.bf16.mxu0 0
      %686 = vmatpush1.bf16.msra.mxu0 0
      %687 = vmatprep.subr.bf16.mxu0 0
      %688 = vmatpush1.bf16.msra.mxu0 0
      %689 = vmatprep.subr.bf16.mxu0 0
      %690 = vmatpush1.bf16.msra.mxu0 0
      %691 = vmatprep.mubr.bf16.mxu0 0
      %692 = vmatmul.mubr.bf16.gmra.mrb[0].mxu0 %v657
      %v693 = vpop.f32.mrb[0].mxu0
      %v694 = vadd.f32 %v648, %v693
      %v695 = vpop.f32.mrb[0].mxu0
      %v696 = vadd.f32 %v652, %v695
      %v697 = vpop.f32.mrb[0].mxu0
      %v698 = vpop.f32.mrb[0].mxu0
      %699 = vdwg.mxu0
      %v700 = vmax.f32 %v694, 0.0
      %v701 = vmax.f32 %v696, 0.0
      %vm702 = vcmask 388096
      %703 = vst.msk [vmem:[#allocation2] sm:$0xf] %vm702, 0
      %vm704 = vcmask 386048
      %vm705 = vsmask.f32 1280
      %vm706 = vmand %vm704, %vm705
      %v707 = vld [vmem:[#allocation2 + $0x4] sm:$0x3]
      %v708 = vsel %vm706, 0, %v707
      %709 = vst [vmem:[#allocation2 + $0x4] sm:$0x3] %v708
      %vm710 = vcmask 385024
      %vm711 = vsmask.f32 256
      %vm712 = vmand %vm710, %vm711
      %v713 = vld [vmem:[#allocation2 + $0x4] sm:$0x1]
      %v714 = vsel %vm712, %v606, %v713
      %715 = vst [vmem:[#allocation2 + $0x4] sm:$0x1] %v714
      %v716 = vld [vmem:[#allocation2 + $0x4] sm:$0x1]
      %s717 = scalar_lea.vmem %s6, 192
      %v718 = vld [vmem:[%s717] sm:$0xff]
      %v719 = vld [vmem:[%s717 + $0x8] sm:$0xff]
      %v720 = vld [vmem:[%s717 + $0x10] sm:$0xff]
      %v721 = vld [vmem:[%s717 + $0x18] sm:$0xff]
      %v722 = vld [vmem:[%s717 + $0x20] sm:$0xff]
      %v723 = vld [vmem:[%s717 + $0x28] sm:$0xff]
      %v724 = vld [vmem:[%s7] sm:$0x3]
      %v731 = vunpack.c.l.b16 %v718
      %v732 = vunpack.c.h.b16 %v718
      %v733 = vunpack.c.l.b16 %v719
      %v734 = vunpack.c.h.b16 %v719
      %v735 = vunpack.c.l.b16 %v720
      %v736 = vunpack.c.h.b16 %v720
      %v737 = vunpack.c.l.b16 %v721
      %v738 = vunpack.c.h.b16 %v721
      %v739 = vunpack.c.l.b16 %v722
      %v740 = vunpack.c.h.b16 %v722
      %v741 = vunpack.c.l.b16 %v723
      %v742 = vunpack.c.h.b16 %v723
      %v743 = vpack.c.b16 %v733, %v731
      %v744 = vpack.c.b16 %v734, %v732
      %v745 = vpack.c.b16 %v737, %v735
      %v746 = vpack.c.b16 %v738, %v736
      %v747 = vpack.c.b16 %v741, %v739
      %v748 = vpack.c.b16 %v742, %v740
      %v756 = vlaneseq
      %v757 = vshrl.u32 %v756, 7
      %v758 = vsub.s32 0, %v757
      %v759 = vrot.slane %v724, %v758
      %v760 = vlaneseq
      %v761 = vshrl.u32 %v760, 7
      %v762 = vsub.s32 1, %v761
      %v763 = vrot.slane %v724, %v762
      %v767 = vsel %vm655, %v716, 0
      %769 = vmatprep.subr.bf16.mxu0 %v744
      %770 = vmatpush1.bf16.msra.mxu0 %v743
      %771 = vmatprep.subr.bf16.mxu0 %v746
      %772 = vmatpush1.bf16.msra.mxu0 %v745
      %773 = vmatprep.subr.bf16.mxu0 %v748
      %774 = vmatpush1.bf16.msra.mxu0 %v747
      %775 = vmatprep.subr.bf16.mxu0 0
      %776 = vmatpush1.bf16.msra.mxu0 0
      %777 = vmatprep.subr.bf16.mxu0 0
      %778 = vmatpush1.bf16.msra.mxu0 0
      %779 = vmatprep.subr.bf16.mxu0 0
      %780 = vmatpush1.bf16.msra.mxu0 0
      %781 = vmatprep.subr.bf16.mxu0 0
      %782 = vmatpush1.bf16.msra.mxu0 0
      %783 = vmatprep.subr.bf16.mxu0 0
      %784 = vmatpush1.bf16.msra.mxu0 0
      %785 = vmatprep.subr.bf16.mxu0 0
      %786 = vmatpush1.bf16.msra.mxu0 0
      %787 = vmatprep.subr.bf16.mxu0 0
      %788 = vmatpush1.bf16.msra.mxu0 0
      %789 = vmatprep.subr.bf16.mxu0 0
      %790 = vmatpush1.bf16.msra.mxu0 0
      %791 = vmatprep.subr.bf16.mxu0 0
      %792 = vmatpush1.bf16.msra.mxu0 0
      %793 = vmatprep.subr.bf16.mxu0 0
      %794 = vmatpush1.bf16.msra.mxu0 0
      %795 = vmatprep.subr.bf16.mxu0 0
      %796 = vmatpush1.bf16.msra.mxu0 0
      %797 = vmatprep.subr.bf16.mxu0 0
      %798 = vmatpush1.bf16.msra.mxu0 0
      %799 = vmatprep.subr.bf16.mxu0 0
      %800 = vmatpush1.bf16.msra.mxu0 0
      %801 = vmatprep.mubr.bf16.mxu0 0
      %802 = vmatmul.mubr.bf16.gmra.mrb[0].mxu0 %v767
      %v803 = vpop.f32.mrb[0].mxu0
      %v804 = vadd.f32 %v759, %v803
      %v805 = vpop.f32.mrb[0].mxu0
      %v806 = vadd.f32 %v763, %v805
      %v807 = vpop.f32.mrb[0].mxu0
      %v808 = vpop.f32.mrb[0].mxu0
      %809 = vdwg.mxu0
      %v810 = vmax.f32 %v804, 0.0
      %v811 = vmax.f32 %v806, 0.0
      %814 = vrot.lane.b32.xlu0 %v810, 64
      %v815 = vpop.permute.xlu0 %814
      %816 = vrot.lane.b32.xlu0 %v811, 64
      %v817 = vpop.permute.xlu0 %816
      %vm818 = vcmask 523264
      %v819 = vsel %vm818, %v815, %v817
      %v822 = vsel %vm818, %v701, %v815
      %v823 = vpack.c.bf16 %v700, %v700
      %v824 = vpack.c.bf16 %v822, %v822
      %v825 = vpack.c.bf16 %v819, %v819
      %v829 = vcombine.low %v823, %v824
      %v831 = vunpack.c.l.s4 1966171168
      %v832 = vunpack.c.0.s8 %v831
      %v833 = vlaneseq
      %v834 = vshrl.u32 %v833, 7
      %v835 = vsub.s32 %v832, %v834
      %v836 = vrot.slane %v829, %v835
      %v838 = vunpack.c.l.s4 1966171168
      %v839 = vunpack.c.0.s8 %v838
      %v840 = vlaneseq
      %v841 = vshrl.u32 %v840, 7
      %v842 = vsub.s32 %v839, %v841
      %v843 = vrot.slane %v825, %v842
      %v844 = vcombine.low %v836, %v843
      %v846 = vunpack.c.l.s4 1966171168
      %v847 = vunpack.c.0.s8 %v846
      %v848 = vlaneseq
      %v849 = vshrl.u32 %v848, 7
      %v850 = vsub.s32 %v847, %v849
      %v851 = vrot.slane %v844, %v850
      %vm853 = vcmask 1040384
      %vm854 = vmand %vm853, %vm711
      %vm855 = vcmask 1041409
      %vm856 = vmand %vm855, %vm705
      %vm857 = vmor %vm856, %vm854
      %vm858 = vcmask 1042434
      %vm859 = vsmask.f32 2304
      %vm860 = vmand %vm858, %vm859
      %vm861 = vmor %vm860, %vm857
      %v862 = vld [vmem:[%s302] sm:$0x7]
      %v863 = vsel %vm861, %v851, %v862
      %864 = vst [vmem:[%s302] sm:$0x7] %v863
      %p865 = scmp.lt.s32.totalorder %s21, 1
      %s866 = scalar_select %p865, %s21, 1
      %s867 = smul.addr %s866, 3
      %s868 = scalar_lea.vmem %s8, %s867
      // Predicated region
      $region53: #{squeezenet3d_forward.15} parent=51 // pred_check
        %p869 = pneg %p212
      $region54: #{squeezenet3d_forward.15} parent=51 // pred_check_branch
        %871 = sbr.rel (%p869) target = $region56
      $region55: #{squeezenet3d_forward.15} parent=51 // pred_region
        _
      $region56: #{squeezenet3d_forward.15} parent=51 // pred_fallthru
        _
    $region52: #{squeezenet3d_forward.15} parent=5 // pred_fallthru
      _
    %p872 = scmp.le.s32.totalorder 2, %s16
    // Predicated region
    $region57: #{squeezenet3d_forward.15} parent=5 // pred_check
      %p873 = pneg %p872
    $region58: #{squeezenet3d_forward.15} parent=5 // pred_check_branch
      %875 = sbr.rel (%p873) target = $region60
    $region59: #{squeezenet3d_forward.15} parent=5 // pred_region
      %s876 = ssub.s32 %s16, 2
      // Predicated region
      $region61: #{squeezenet3d_forward.15} parent=59 // pred_check
        %p877 = pneg %p218
      $region62: #{squeezenet3d_forward.15} parent=59 // pred_check_branch
        %879 = sbr.rel (%p877) target = $region64
      $region63: #{squeezenet3d_forward.15} parent=59 // pred_region
        %p880 = scmp.lt.s32.totalorder %s22, 1
        %s881 = scalar_select %p880, %s22, 1
        %s882 = smul.addr %s881, 3
        %s883 = scalar_lea.vmem %s8, %s882
      $region64: #{squeezenet3d_forward.15} parent=59 // pred_fallthru
        _
    $region60: #{squeezenet3d_forward.15} parent=5 // pred_fallthru
      _
  $region6: #{squeezenet3d_forward.15} parent=0 // loop_footer
    %s20 = sadd.s32 1, %s16
  $region7: #{squeezenet3d_forward.15} parent=0 // loop_footer_branch
    %15 = sbr.rel target = $region3
  $region8: #{squeezenet3d_forward.15} parent=0 // loop_exit
    _

// kernel: squeezenet3d_forward.16
$region0: #{squeezenet3d_forward.16}
  #allocation0 [shape = 'u32[]', space=smem, size = 0x4, offset = 0x4, fixed_abs, tag = 'smem constant byte address 0x4 - core index']
  #allocation1 [shape = 'u32[144,128]{1,0:T(1,128)}', space=vmem, size = 0x12000, scoped, tag = 'internal scratch']
  #allocation2 [shape = 'bf16[11,64]{1,0:T(8,128)(2,1)}', space=vmem, size = 0x1000, scoped, tag = 'scratch operand']
  #allocation3 [shape = 's32[1,1]{1,0:T(1,128)S(1)}', space=vmem, size = 0x200, scoped, tag = 'scoped memory for squeezenet3d_forward.16']
  %s0 = inlined_call_operand.vmem [shape: bf16[2,1,384], index: 0, kind: input, shape index: {}]
  %s1 = inlined_call_operand.<no memory space> [shape: s32[1,1], index: 1, kind: input, shape index: {}]
  %s2 = inlined_call_operand.vmem [shape: bf16[384,64], index: 2, kind: input, shape index: {}]
  %s3 = inlined_call_operand.vmem [shape: f32[1,64], index: 3, kind: input, shape index: {}]
  %s4 = inlined_call_operand.vmem [shape: bf16[64,256], index: 4, kind: input, shape index: {}]
  %s5 = inlined_call_operand.vmem [shape: f32[1,256], index: 5, kind: input, shape index: {}]
  %s6 = inlined_call_operand.vmem [shape: bf16[9,64,256], index: 6, kind: input, shape index: {}]
  %s7 = inlined_call_operand.vmem [shape: f32[1,256], index: 7, kind: input, shape index: {}]
  %s8 = inlined_call_operand.vmem [shape: bf16[2,1,512], index: 8, kind: output, shape index: {}]
  %s9 = sld [smem:[#allocation0]]
  $region65: #{squeezenet3d_forward.16} parent=0
    _
  %s11 = ssub.s32 1, %s9
  %s12 = scalar_select 0, %s11, %s9
  %v13 = vstv %s1
  %14 = vst [vmem:[#allocation3] sm:$0x1] %v13
  loop: start=0, step=1, limit=4
  $region2: #{squeezenet3d_forward.16} parent=0 // loop_pre_header
    _
  $region3: #{squeezenet3d_forward.16} parent=0 // loop_header
    %s16 = sphi 0, %s20
    %p17 = scmp.ge.s32.totalorder %s16, 4
    %s26 = sphi 0, %s28
    %s29 = sphi 0, %s26
    %s30 = sphi 0, %s29
    %s46 = sphi 0, %s30
    %s50 = sphi 0, %s50
    %s52 = sphi 0, %s50
    %s53 = sphi 0, %s52
    %s67 = sphi 0, %s53
    %s71 = sphi 0, %s71
    %s73 = sphi 0, %s71
    %s74 = sphi 0, %s73
    %s88 = sphi 0, %s74
    %s92 = sphi 0, %s92
    %s94 = sphi 0, %s92
    %s95 = sphi 0, %s94
    %s109 = sphi 0, %s95
    %s113 = sphi 0, %s113
    %s115 = sphi 0, %s113
    %s116 = sphi 0, %s115
    %s130 = sphi 0, %s116
    %s134 = sphi 0, %s134
    %s136 = sphi 0, %s134
    %s137 = sphi 0, %s136
    %s151 = sphi 0, %s137
    %s155 = sphi 0, %s155
    %s157 = sphi 0, %s155
    %s158 = sphi 0, %s157
    %s172 = sphi 0, %s158
    %s176 = sphi 0, %s176
    %s178 = sphi 0, %s176
    %s179 = sphi 0, %s178
    %s193 = sphi 0, %s179
    %s199 = sphi 0, %s201
    %s202 = sphi 0, %s199
    %s203 = sphi 0, %s202
    %s219 = sphi 0, %s203
  $region4: #{squeezenet3d_forward.16} parent=0 // loop_header_branch
    %19 = sbr.rel (%p17) target = $region8
  $region5: #{squeezenet3d_forward.16} parent=0 // loop_body
    %s21 = ssub.s32 %s16, 1
    %s22 = ssub.s32 %s16, 2
    %s23 = sadd.s32 %s16, 1
    %s24 = ssub.s32 %s16, %s23
    %p25 = scmp.eq.s32.totalorder %s24, 0
    %s27 = sadd.s32 %s26, 1
    %s28 = scalar_select %p25, %s26, %s27
    %p31 = pneg %p25
    %p32 = scmp.eq.s32.totalorder %s16, 1
    %p33 = por %p31, %p32
    %p34 = scmp.ne.s32.totalorder %s26, %s29
    %p35 = scmp.eq.s32.totalorder %s16, 0
    %p36 = por %p34, %p35
    %p37 = scmp.ne.s32.totalorder %s26, %s29
    %p38 = scmp.eq.s32.totalorder %s21, 1
    %p39 = por %p37, %p38
    %p40 = scmp.ne.s32.totalorder %s29, %s30
    %p41 = scmp.eq.s32.totalorder %s21, 0
    %p42 = por %p40, %p41
    %p43 = scmp.ne.s32.totalorder %s29, %s30
    %p44 = scmp.eq.s32.totalorder %s22, 1
    %p45 = por %p43, %p44
    %p47 = scmp.ne.s32.totalorder %s30, %s46
    %p48 = scmp.eq.s32.totalorder %s22, 0
    %p49 = por %p47, %p48
    %s51 = sadd.s32 %s50, 1
    %p54 = scmp.eq.s32.totalorder %s16, 1
    %p55 = scmp.ne.s32.totalorder %s50, %s52
    %p56 = scmp.eq.s32.totalorder %s16, 0
    %p57 = por %p55, %p56
    %p58 = scmp.ne.s32.totalorder %s50, %s52
    %p59 = scmp.eq.s32.totalorder %s21, 1
    %p60 = por %p58, %p59
    %p61 = scmp.ne.s32.totalorder %s52, %s53
    %p62 = scmp.eq.s32.totalorder %s21, 0
    %p63 = por %p61, %p62
    %p64 = scmp.ne.s32.totalorder %s52, %s53
    %p65 = scmp.eq.s32.totalorder %s22, 1
    %p66 = por %p64, %p65
    %p68 = scmp.ne.s32.totalorder %s53, %s67
    %p69 = scmp.eq.s32.totalorder %s22, 0
    %p70 = por %p68, %p69
    %s72 = sadd.s32 %s71, 1
    %p75 = scmp.eq.s32.totalorder %s16, 1
    %p76 = scmp.ne.s32.totalorder %s71, %s73
    %p77 = scmp.eq.s32.totalorder %s16, 0
    %p78 = por %p76, %p77
    %p79 = scmp.ne.s32.totalorder %s71, %s73
    %p80 = scmp.eq.s32.totalorder %s21, 1
    %p81 = por %p79, %p80
    %p82 = scmp.ne.s32.totalorder %s73, %s74
    %p83 = scmp.eq.s32.totalorder %s21, 0
    %p84 = por %p82, %p83
    %p85 = scmp.ne.s32.totalorder %s73, %s74
    %p86 = scmp.eq.s32.totalorder %s22, 1
    %p87 = por %p85, %p86
    %p89 = scmp.ne.s32.totalorder %s74, %s88
    %p90 = scmp.eq.s32.totalorder %s22, 0
    %p91 = por %p89, %p90
    %s93 = sadd.s32 %s92, 1
    %p96 = scmp.eq.s32.totalorder %s16, 1
    %p97 = scmp.ne.s32.totalorder %s92, %s94
    %p98 = scmp.eq.s32.totalorder %s16, 0
    %p99 = por %p97, %p98
    %p100 = scmp.ne.s32.totalorder %s92, %s94
    %p101 = scmp.eq.s32.totalorder %s21, 1
    %p102 = por %p100, %p101
    %p103 = scmp.ne.s32.totalorder %s94, %s95
    %p104 = scmp.eq.s32.totalorder %s21, 0
    %p105 = por %p103, %p104
    %p106 = scmp.ne.s32.totalorder %s94, %s95
    %p107 = scmp.eq.s32.totalorder %s22, 1
    %p108 = por %p106, %p107
    %p110 = scmp.ne.s32.totalorder %s95, %s109
    %p111 = scmp.eq.s32.totalorder %s22, 0
    %p112 = por %p110, %p111
    %s114 = sadd.s32 %s113, 1
    %p117 = scmp.eq.s32.totalorder %s16, 1
    %p118 = scmp.ne.s32.totalorder %s113, %s115
    %p119 = scmp.eq.s32.totalorder %s16, 0
    %p120 = por %p118, %p119
    %p121 = scmp.ne.s32.totalorder %s113, %s115
    %p122 = scmp.eq.s32.totalorder %s21, 1
    %p123 = por %p121, %p122
    %p124 = scmp.ne.s32.totalorder %s115, %s116
    %p125 = scmp.eq.s32.totalorder %s21, 0
    %p126 = por %p124, %p125
    %p127 = scmp.ne.s32.totalorder %s115, %s116
    %p128 = scmp.eq.s32.totalorder %s22, 1
    %p129 = por %p127, %p128
    %p131 = scmp.ne.s32.totalorder %s116, %s130
    %p132 = scmp.eq.s32.totalorder %s22, 0
    %p133 = por %p131, %p132
    %s135 = sadd.s32 %s134, 1
    %p138 = scmp.eq.s32.totalorder %s16, 1
    %p139 = scmp.ne.s32.totalorder %s134, %s136
    %p140 = scmp.eq.s32.totalorder %s16, 0
    %p141 = por %p139, %p140
    %p142 = scmp.ne.s32.totalorder %s134, %s136
    %p143 = scmp.eq.s32.totalorder %s21, 1
    %p144 = por %p142, %p143
    %p145 = scmp.ne.s32.totalorder %s136, %s137
    %p146 = scmp.eq.s32.totalorder %s21, 0
    %p147 = por %p145, %p146
    %p148 = scmp.ne.s32.totalorder %s136, %s137
    %p149 = scmp.eq.s32.totalorder %s22, 1
    %p150 = por %p148, %p149
    %p152 = scmp.ne.s32.totalorder %s137, %s151
    %p153 = scmp.eq.s32.totalorder %s22, 0
    %p154 = por %p152, %p153
    %s156 = sadd.s32 %s155, 1
    %p159 = scmp.eq.s32.totalorder %s16, 1
    %p160 = scmp.ne.s32.totalorder %s155, %s157
    %p161 = scmp.eq.s32.totalorder %s16, 0
    %p162 = por %p160, %p161
    %p163 = scmp.ne.s32.totalorder %s155, %s157
    %p164 = scmp.eq.s32.totalorder %s21, 1
    %p165 = por %p163, %p164
    %p166 = scmp.ne.s32.totalorder %s157, %s158
    %p167 = scmp.eq.s32.totalorder %s21, 0
    %p168 = por %p166, %p167
    %p169 = scmp.ne.s32.totalorder %s157, %s158
    %p170 = scmp.eq.s32.totalorder %s22, 1
    %p171 = por %p169, %p170
    %p173 = scmp.ne.s32.totalorder %s158, %s172
    %p174 = scmp.eq.s32.totalorder %s22, 0
    %p175 = por %p173, %p174
    %s177 = sadd.s32 %s176, 1
    %p180 = scmp.eq.s32.totalorder %s16, 1
    %p181 = scmp.ne.s32.totalorder %s176, %s178
    %p182 = scmp.eq.s32.totalorder %s16, 0
    %p183 = por %p181, %p182
    %p184 = scmp.ne.s32.totalorder %s176, %s178
    %p185 = scmp.eq.s32.totalorder %s21, 1
    %p186 = por %p184, %p185
    %p187 = scmp.ne.s32.totalorder %s178, %s179
    %p188 = scmp.eq.s32.totalorder %s21, 0
    %p189 = por %p187, %p188
    %p190 = scmp.ne.s32.totalorder %s178, %s179
    %p191 = scmp.eq.s32.totalorder %s22, 1
    %p192 = por %p190, %p191
    %p194 = scmp.ne.s32.totalorder %s179, %s193
    %p195 = scmp.eq.s32.totalorder %s22, 0
    %p196 = por %p194, %p195
    %s197 = ssub.s32 %s16, %s23
    %p198 = scmp.eq.s32.totalorder %s197, 0
    %s200 = sadd.s32 %s199, 1
    %s201 = scalar_select %p198, %s199, %s200
    %p204 = pneg %p198
    %p205 = scmp.eq.s32.totalorder %s16, 1
    %p206 = por %p204, %p205
    %p207 = scmp.ne.s32.totalorder %s199, %s202
    %p208 = scmp.eq.s32.totalorder %s16, 0
    %p209 = por %p207, %p208
    %p210 = scmp.ne.s32.totalorder %s199, %s202
    %p211 = scmp.eq.s32.totalorder %s21, 1
    %p212 = por %p210, %p211
    %p213 = scmp.ne.s32.totalorder %s202, %s203
    %p214 = scmp.eq.s32.totalorder %s21, 0
    %p215 = por %p213, %p214
    %p216 = scmp.ne.s32.totalorder %s202, %s203
    %p217 = scmp.eq.s32.totalorder %s22, 1
    %p218 = por %p216, %p217
    %p220 = scmp.ne.s32.totalorder %s203, %s219
    %p221 = scmp.eq.s32.totalorder %s22, 0
    %p222 = por %p220, %p221
    %p223 = scmp.le.s32.totalorder 1, %s16
    %p224 = scmp.lt.s32.totalorder %s16, 3
    %p225 = pnand %p223, %p224
    %p226 = pneg %p225
    // Predicated region
    $region9: #{squeezenet3d_forward.16} parent=5 // pred_check
      _
    $region10: #{squeezenet3d_forward.16} parent=5 // pred_check_branch
      %228 = sbr.rel (%p225) target = $region12
    $region11: #{squeezenet3d_forward.16} parent=5 // pred_region
      %s229 = ssub.s32 %s16, 1
      // Predicated region
      $region13: #{squeezenet3d_forward.16} parent=11 // pred_check
        %p230 = pneg %p63
      $region14: #{squeezenet3d_forward.16} parent=11 // pred_check_branch
        %232 = sbr.rel (%p230) target = $region16
      $region15: #{squeezenet3d_forward.16} parent=11 // pred_region
        _
      $region16: #{squeezenet3d_forward.16} parent=11 // pred_fallthru
        _
      // Predicated region
      $region17: #{squeezenet3d_forward.16} parent=11 // pred_check
        %p233 = pneg %p84
      $region18: #{squeezenet3d_forward.16} parent=11 // pred_check_branch
        %235 = sbr.rel (%p233) target = $region20
      $region19: #{squeezenet3d_forward.16} parent=11 // pred_region
        _
      $region20: #{squeezenet3d_forward.16} parent=11 // pred_fallthru
        _
      // Predicated region
      $region21: #{squeezenet3d_forward.16} parent=11 // pred_check
        %p236 = pneg %p105
      $region22: #{squeezenet3d_forward.16} parent=11 // pred_check_branch
        %238 = sbr.rel (%p236) target = $region24
      $region23: #{squeezenet3d_forward.16} parent=11 // pred_region
        _
      $region24: #{squeezenet3d_forward.16} parent=11 // pred_fallthru
        _
      // Predicated region
      $region25: #{squeezenet3d_forward.16} parent=11 // pred_check
        %p239 = pneg %p126
      $region26: #{squeezenet3d_forward.16} parent=11 // pred_check_branch
        %241 = sbr.rel (%p239) target = $region28
      $region27: #{squeezenet3d_forward.16} parent=11 // pred_region
        _
      $region28: #{squeezenet3d_forward.16} parent=11 // pred_fallthru
        _
      // Predicated region
      $region29: #{squeezenet3d_forward.16} parent=11 // pred_check
        %p242 = pneg %p147
      $region30: #{squeezenet3d_forward.16} parent=11 // pred_check_branch
        %244 = sbr.rel (%p242) target = $region32
      $region31: #{squeezenet3d_forward.16} parent=11 // pred_region
        _
      $region32: #{squeezenet3d_forward.16} parent=11 // pred_fallthru
        _
      // Predicated region
      $region33: #{squeezenet3d_forward.16} parent=11 // pred_check
        %p245 = pneg %p168
      $region34: #{squeezenet3d_forward.16} parent=11 // pred_check_branch
        %247 = sbr.rel (%p245) target = $region36
      $region35: #{squeezenet3d_forward.16} parent=11 // pred_region
        _
      $region36: #{squeezenet3d_forward.16} parent=11 // pred_fallthru
        _
      // Predicated region
      $region37: #{squeezenet3d_forward.16} parent=11 // pred_check
        %p248 = pneg %p189
      $region38: #{squeezenet3d_forward.16} parent=11 // pred_check_branch
        %250 = sbr.rel (%p248) target = $region40
      $region39: #{squeezenet3d_forward.16} parent=11 // pred_region
        _
      $region40: #{squeezenet3d_forward.16} parent=11 // pred_fallthru
        _
    $region12: #{squeezenet3d_forward.16} parent=5 // pred_fallthru
      _
    %p251 = scmp.lt.s32.totalorder %s16, 2
    // Predicated region
    $region41: #{squeezenet3d_forward.16} parent=5 // pred_check
      %p252 = pneg %p251
    $region42: #{squeezenet3d_forward.16} parent=5 // pred_check_branch
      %254 = sbr.rel (%p252) target = $region44
    $region43: #{squeezenet3d_forward.16} parent=5 // pred_region
      // Predicated region
      $region45: #{squeezenet3d_forward.16} parent=43 // pred_check
        %p255 = pneg %p36
      $region46: #{squeezenet3d_forward.16} parent=43 // pred_check_branch
        %257 = sbr.rel (%p255) target = $region48
      $region47: #{squeezenet3d_forward.16} parent=43 // pred_region
        %p258 = scmp.lt.s32.totalorder %s16, 1
        %s259 = scalar_select %p258, %s16, 1
        %s260 = smul.addr %s259, 3
        %s261 = scalar_lea.vmem %s0, %s260
      $region48: #{squeezenet3d_forward.16} parent=43 // pred_fallthru
        _
    $region44: #{squeezenet3d_forward.16} parent=5 // pred_fallthru
      _
    %p262 = scmp.le.s32.totalorder 1, %s16
    %p263 = scmp.lt.s32.totalorder %s16, 3
    %p264 = pnand %p262, %p263
    %p265 = pneg %p264
    // Predicated region
    $region49: #{squeezenet3d_forward.16} parent=5 // pred_check
      _
    $region50: #{squeezenet3d_forward.16} parent=5 // pred_check_branch
      %267 = sbr.rel (%p264) target = $region52
    $region51: #{squeezenet3d_forward.16} parent=5 // pred_region
      %s268 = ssub.s32 %s16, 1
      %p269 = scmp.lt.s32.totalorder %s21, 1
      %s270 = scalar_select %p269, %s21, 1
      %s271 = smul.addr %s270, 3
      %s272 = scalar_lea.vmem %s0, %s271
      %p273 = pneg %p42
      %p274 = pneg %p39
      %p275 = pneg %p63
      %p276 = pneg %p60
      %p277 = pneg %p84
      %p278 = pneg %p81
      %p279 = pneg %p105
      %p280 = pneg %p102
      %p281 = pneg %p126
      %p282 = pneg %p123
      %p283 = pneg %p147
      %p284 = pneg %p144
      %p285 = pneg %p168
      %p286 = pneg %p165
      %p287 = pneg %p189
      %p288 = pneg %p186
      %p289 = pneg %p215
      %p290 = pneg %p212
      %p291 = scmp.lt.s32.totalorder %s21, 1
      %s292 = scalar_select %p291, %s21, 1
      %s293 = smul.addr %s292, 4
      %s294 = scalar_lea.vmem %s8, %s293
      %p295 = scmp.lt.s32.totalorder %s21, 1
      %s296 = scalar_select %p295, %s21, 1
      %s297 = smul.addr %s296, 3
      %s298 = scalar_lea.vmem %s0, %s297
      %p299 = scmp.lt.s32.totalorder %s21, 1
      %s300 = scalar_select %p299, %s21, 1
      %s301 = smul.addr %s300, 4
      %s302 = scalar_lea.vmem %s8, %s301
      %v304 = vld [vmem:[%s298] sm:$0x7]
      %v305 = vld [vmem:[%s2] sm:$0xf]
      %v306 = vld [vmem:[%s2 + $0x4] sm:$0xf]
      %v307 = vld [vmem:[%s2 + $0x8] sm:$0xf]
      %v308 = vld [vmem:[%s2 + $0xc] sm:$0xf]
      %v309 = vld [vmem:[%s2 + $0x10] sm:$0xf]
      %v310 = vld [vmem:[%s2 + $0x14] sm:$0xf]
      %v311 = vld [vmem:[%s2 + $0x18] sm:$0xf]
      %v312 = vld [vmem:[%s2 + $0x1c] sm:$0xf]
      %v313 = vld [vmem:[%s2 + $0x20] sm:$0xf]
      %v314 = vld [vmem:[%s2 + $0x24] sm:$0xf]
      %v315 = vld [vmem:[%s2 + $0x28] sm:$0xf]
      %v316 = vld [vmem:[%s2 + $0x2c] sm:$0xf]
      %v317 = vld [vmem:[%s2 + $0x30] sm:$0xf]
      %v318 = vld [vmem:[%s2 + $0x34] sm:$0xf]
      %v319 = vld [vmem:[%s2 + $0x38] sm:$0xf]
      %v320 = vld [vmem:[%s2 + $0x3c] sm:$0xf]
      %v321 = vld [vmem:[%s2 + $0x40] sm:$0xf]
      %v322 = vld [vmem:[%s2 + $0x44] sm:$0xf]
      %v323 = vld [vmem:[%s2 + $0x48] sm:$0xf]
      %v324 = vld [vmem:[%s2 + $0x4c] sm:$0xf]
      %v325 = vld [vmem:[%s2 + $0x50] sm:$0xf]
      %v326 = vld [vmem:[%s2 + $0x54] sm:$0xf]
      %v327 = vld [vmem:[%s2 + $0x58] sm:$0xf]
      %v328 = vld [vmem:[%s2 + $0x5c] sm:$0xf]
      %v329 = vld [vmem:[%s2 + $0x60] sm:$0xf]
      %v330 = vld [vmem:[%s2 + $0x64] sm:$0xf]
      %v331 = vld [vmem:[%s2 + $0x68] sm:$0xf]
      %v332 = vld [vmem:[%s2 + $0x6c] sm:$0xf]
      %v333 = vld [vmem:[%s2 + $0x70] sm:$0xf]
      %v334 = vld [vmem:[%s2 + $0x74] sm:$0xf]
      %v335 = vld [vmem:[%s2 + $0x78] sm:$0xf]
      %v336 = vld [vmem:[%s2 + $0x7c] sm:$0xf]
      %v337 = vld [vmem:[%s2 + $0x80] sm:$0xf]
      %v338 = vld [vmem:[%s2 + $0x84] sm:$0xf]
      %v339 = vld [vmem:[%s2 + $0x88] sm:$0xf]
      %v340 = vld [vmem:[%s2 + $0x8c] sm:$0xf]
      %v341 = vld [vmem:[%s2 + $0x90] sm:$0xf]
      %v342 = vld [vmem:[%s2 + $0x94] sm:$0xf]
      %v343 = vld [vmem:[%s2 + $0x98] sm:$0xf]
      %v344 = vld [vmem:[%s2 + $0x9c] sm:$0xf]
      %v345 = vld [vmem:[%s2 + $0xa0] sm:$0xf]
      %v346 = vld [vmem:[%s2 + $0xa4] sm:$0xf]
      %v347 = vld [vmem:[%s2 + $0xa8] sm:$0xf]
      %v348 = vld [vmem:[%s2 + $0xac] sm:$0xf]
      %v349 = vld [vmem:[%s2 + $0xb0] sm:$0xf]
      %v350 = vld [vmem:[%s2 + $0xb4] sm:$0xf]
      %v351 = vld [vmem:[%s2 + $0xb8] sm:$0xf]
      %v352 = vld [vmem:[%s2 + $0xbc] sm:$0xf]
      %v353 = vld [vmem:[%s3] sm:$0x1]
      %v356 = vunpack.c.l.s4 1966171168
      %v357 = vunpack.c.0.s8 %v356
      %v358 = vlaneseq
      %v359 = vshrl.u32 %v358, 7
      %v360 = vsub.s32 %v357, %v359
      %v361 = vrot.slane %v304, %v360
      %v362 = vcombine.high %v361, %v361
      %v364 = vunpack.c.l.s4 1966171168
      %v365 = vunpack.c.0.s8 %v364
      %v366 = vlaneseq
      %v367 = vshrl.u32 %v366, 7
      %v368 = vsub.s32 %v365, %v367
      %v369 = vrot.slane %v361, %v368
      %v371 = vunpack.c.l.s4 1966171168
      %v372 = vunpack.c.0.s8 %v371
      %v373 = vlaneseq
      %v374 = vshrl.u32 %v373, 7
      %v375 = vsub.s32 %v372, %v374
      %v376 = vrot.slane %v362, %v375
      %v377 = vcombine.high %v369, %v369
      %v429 = vunpack.c.l.b16 %v305
      %v430 = vunpack.c.l.b16 %v306
      %v431 = vunpack.c.l.b16 %v307
      %v432 = vunpack.c.l.b16 %v308
      %v433 = vunpack.c.l.b16 %v309
      %v434 = vunpack.c.l.b16 %v310
      %v435 = vunpack.c.l.b16 %v311
      %v436 = vunpack.c.l.b16 %v312
      %v437 = vunpack.c.l.b16 %v313
      %v438 = vunpack.c.l.b16 %v314
      %v439 = vunpack.c.l.b16 %v315
      %v440 = vunpack.c.l.b16 %v316
      %v441 = vunpack.c.l.b16 %v317
      %v442 = vunpack.c.l.b16 %v318
      %v443 = vunpack.c.l.b16 %v319
      %v444 = vunpack.c.l.b16 %v320
      %v445 = vunpack.c.l.b16 %v321
      %v446 = vunpack.c.l.b16 %v322
      %v447 = vunpack.c.l.b16 %v323
      %v448 = vunpack.c.l.b16 %v324
      %v449 = vunpack.c.l.b16 %v325
      %v450 = vunpack.c.l.b16 %v326
      %v451 = vunpack.c.l.b16 %v327
      %v452 = vunpack.c.l.b16 %v328
      %v453 = vunpack.c.l.b16 %v329
      %v454 = vunpack.c.l.b16 %v330
      %v455 = vunpack.c.l.b16 %v331
      %v456 = vunpack.c.l.b16 %v332
      %v457 = vunpack.c.l.b16 %v333
      %v458 = vunpack.c.l.b16 %v334
      %v459 = vunpack.c.l.b16 %v335
      %v460 = vunpack.c.l.b16 %v336
      %v461 = vunpack.c.l.b16 %v337
      %v462 = vunpack.c.l.b16 %v338
      %v463 = vunpack.c.l.b16 %v339
      %v464 = vunpack.c.l.b16 %v340
      %v465 = vunpack.c.l.b16 %v341
      %v466 = vunpack.c.l.b16 %v342
      %v467 = vunpack.c.l.b16 %v343
      %v468 = vunpack.c.l.b16 %v344
      %v469 = vunpack.c.l.b16 %v345
      %v470 = vunpack.c.l.b16 %v346
      %v471 = vunpack.c.l.b16 %v347
      %v472 = vunpack.c.l.b16 %v348
      %v473 = vunpack.c.l.b16 %v349
      %v474 = vunpack.c.l.b16 %v350
      %v475 = vunpack.c.l.b16 %v351
      %v476 = vunpack.c.l.b16 %v352
      %v477 = vpack.c.b16 %v430, %v429
      %v478 = vpack.c.b16 %v432, %v431
      %v479 = vpack.c.b16 %v434, %v433
      %v480 = vpack.c.b16 %v436, %v435
      %v481 = vpack.c.b16 %v438, %v437
      %v482 = vpack.c.b16 %v440, %v439
      %v483 = vpack.c.b16 %v442, %v441
      %v484 = vpack.c.b16 %v444, %v443
      %v485 = vpack.c.b16 %v446, %v445
      %v486 = vpack.c.b16 %v448, %v447
      %v487 = vpack.c.b16 %v450, %v449
      %v488 = vpack.c.b16 %v452, %v451
      %v489 = vpack.c.b16 %v454, %v453
      %v490 = vpack.c.b16 %v456, %v455
      %v491 = vpack.c.b16 %v458, %v457
      %v492 = vpack.c.b16 %v460, %v459
      %v493 = vpack.c.b16 %v462, %v461
      %v494 = vpack.c.b16 %v464, %v463
      %v495 = vpack.c.b16 %v466, %v465
      %v496 = vpack.c.b16 %v468, %v467
      %v497 = vpack.c.b16 %v470, %v469
      %v498 = vpack.c.b16 %v472, %v471
      %v499 = vpack.c.b16 %v474, %v473
      %v500 = vpack.c.b16 %v476, %v475
      %525 = vmatprep.subr.bf16.mxu0 0
      %526 = vmatpush1.bf16.msra.mxu0 %v477
      %527 = vmatprep.subr.bf16.mxu0 0
      %528 = vmatpush1.bf16.msra.mxu0 %v478
      %529 = vmatprep.subr.bf16.mxu0 0
      %530 = vmatpush1.bf16.msra.mxu0 %v479
      %531 = vmatprep.subr.bf16.mxu0 0
      %532 = vmatpush1.bf16.msra.mxu0 %v480
      %533 = vmatprep.subr.bf16.mxu0 0
      %534 = vmatpush1.bf16.msra.mxu0 %v481
      %535 = vmatprep.subr.bf16.mxu0 0
      %536 = vmatpush1.bf16.msra.mxu0 %v482
      %537 = vmatprep.subr.bf16.mxu0 0
      %538 = vmatpush1.bf16.msra.mxu0 %v483
      %539 = vmatprep.subr.bf16.mxu0 0
      %540 = vmatpush1.bf16.msra.mxu0 %v484
      %541 = vmatprep.subr.bf16.mxu0 0
      %542 = vmatpush1.bf16.msra.mxu0 %v485
      %543 = vmatprep.subr.bf16.mxu0 0
      %544 = vmatpush1.bf16.msra.mxu0 %v486
      %545 = vmatprep.subr.bf16.mxu0 0
      %546 = vmatpush1.bf16.msra.mxu0 %v487
      %547 = vmatprep.subr.bf16.mxu0 0
      %548 = vmatpush1.bf16.msra.mxu0 %v488
      %549 = vmatprep.subr.bf16.mxu0 0
      %550 = vmatpush1.bf16.msra.mxu0 %v489
      %551 = vmatprep.subr.bf16.mxu0 0
      %552 = vmatpush1.bf16.msra.mxu0 %v490
      %553 = vmatprep.subr.bf16.mxu0 0
      %554 = vmatpush1.bf16.msra.mxu0 %v491
      %555 = vmatprep.subr.bf16.mxu0 0
      %556 = vmatpush1.bf16.msra.mxu0 %v492
      %557 = vmatprep.mubr.bf16.mxu0 %v376
      %558 = vmatmul.mubr.bf16.gmra.mrb[0].mxu0 %v369
      %v559 = vpop.f32.mrb[0].mxu0
      %v560 = vadd.f32 %v353, %v559
      %v561 = vpop.f32.mrb[0].mxu0
      %v562 = vpop.f32.mrb[0].mxu0
      %v563 = vpop.f32.mrb[0].mxu0
      %564 = vdwg.mxu0
      %565 = vmatprep.subr.bf16.mxu0 0
      %566 = vmatpush1.bf16.msra.mxu0 %v493
      %567 = vmatprep.subr.bf16.mxu0 0
      %568 = vmatpush1.bf16.msra.mxu0 %v494
      %569 = vmatprep.subr.bf16.mxu0 0
      %570 = vmatpush1.bf16.msra.mxu0 %v495
      %571 = vmatprep.subr.bf16.mxu0 0
      %572 = vmatpush1.bf16.msra.mxu0 %v496
      %573 = vmatprep.subr.bf16.mxu0 0
      %574 = vmatpush1.bf16.msra.mxu0 %v497
      %575 = vmatprep.subr.bf16.mxu0 0
      %576 = vmatpush1.bf16.msra.mxu0 %v498
      %577 = vmatprep.subr.bf16.mxu0 0
      %578 = vmatpush1.bf16.msra.mxu0 %v499
      %579 = vmatprep.subr.bf16.mxu0 0
      %580 = vmatpush1.bf16.msra.mxu0 %v500
      %581 = vmatprep.subr.bf16.mxu0 0
      %582 = vmatpush1.bf16.msra.mxu0 0
      %583 = vmatprep.subr.bf16.mxu0 0
      %584 = vmatpush1.bf16.msra.mxu0 0
      %585 = vmatprep.subr.bf16.mxu0 0
      %586 = vmatpush1.bf16.msra.mxu0 0
      %587 = vmatprep.subr.bf16.mxu0 0
      %588 = vmatpush1.bf16.msra.mxu0 0
      %589 = vmatprep.subr.bf16.mxu0 0
      %590 = vmatpush1.bf16.msra.mxu0 0
      %591 = vmatprep.subr.bf16.mxu0 0
      %592 = vmatpush1.bf16.msra.mxu0 0
      %593 = vmatprep.subr.bf16.mxu0 0
      %594 = vmatpush1.bf16.msra.mxu0 0
      %595 = vmatprep.subr.bf16.mxu0 0
      %596 = vmatpush1.bf16.msra.mxu0 0
      %597 = vmatprep.mubr.bf16.mxu0 0
      %598 = vmatmul.mubr.bf16.gmra.mrb[0].mxu0 %v377
      %v599 = vpop.f32.mrb[0].mxu0
      %v600 = vadd.f32 %v560, %v599
      %v601 = vpop.f32.mrb[0].mxu0
      %v602 = vpop.f32.mrb[0].mxu0
      %v603 = vpop.f32.mrb[0].mxu0
      %604 = vdwg.mxu0
      %v605 = vmax.f32 %v600, 0.0
      %v606 = vpack.c.bf16 %v605, %v605
      %v607 = vld [vmem:[%s4] sm:$0xff]
      %v608 = vld [vmem:[%s4 + $0x8] sm:$0xff]
      %v609 = vld [vmem:[%s4 + $0x10] sm:$0xff]
      %v610 = vld [vmem:[%s4 + $0x18] sm:$0xff]
      %v611 = vld [vmem:[%s4 + $0x20] sm:$0xff]
      %v612 = vld [vmem:[%s4 + $0x28] sm:$0xff]
      %v613 = vld [vmem:[%s4 + $0x30] sm:$0xff]
      %v614 = vld [vmem:[%s4 + $0x38] sm:$0xff]
      %v615 = vld [vmem:[%s5] sm:$0x3]
      %v624 = vunpack.c.l.b16 %v607
      %v625 = vunpack.c.h.b16 %v607
      %v626 = vunpack.c.l.b16 %v608
      %v627 = vunpack.c.h.b16 %v608
      %v628 = vunpack.c.l.b16 %v609
      %v629 = vunpack.c.h.b16 %v609
      %v630 = vunpack.c.l.b16 %v610
      %v631 = vunpack.c.h.b16 %v610
      %v632 = vunpack.c.l.b16 %v611
      %v633 = vunpack.c.h.b16 %v611
      %v634 = vunpack.c.l.b16 %v612
      %v635 = vunpack.c.h.b16 %v612
      %v636 = vunpack.c.l.b16 %v613
      %v637 = vunpack.c.h.b16 %v613
      %v638 = vunpack.c.l.b16 %v614
      %v639 = vunpack.c.h.b16 %v614
      %v640 = vpack.c.b16 %v626, %v624
      %v641 = vpack.c.b16 %v627, %v625
      %v642 = vpack.c.b16 %v630, %v628
      %v643 = vpack.c.b16 %v631, %v629
      %v644 = vpack.c.b16 %v634, %v632
      %v645 = vpack.c.b16 %v635, %v633
      %v646 = vpack.c.b16 %v638, %v636
      %v647 = vpack.c.b16 %v639, %v637
      %v657 = vlaneseq
      %v658 = vshrl.u32 %v657, 7
      %v659 = vsub.s32 0, %v658
      %v660 = vrot.slane %v615, %v659
      %v661 = vlaneseq
      %v662 = vshrl.u32 %v661, 7
      %v663 = vsub.s32 1, %v662
      %v664 = vrot.slane %v615, %v663
      %vm667 = vcmask 523264
      %v669 = vsel %vm667, %v606, 0
      %671 = vmatprep.subr.bf16.mxu0 %v641
      %672 = vmatpush1.bf16.msra.mxu0 %v640
      %673 = vmatprep.subr.bf16.mxu0 %v643
      %674 = vmatpush1.bf16.msra.mxu0 %v642
      %675 = vmatprep.subr.bf16.mxu0 %v645
      %676 = vmatpush1.bf16.msra.mxu0 %v644
      %677 = vmatprep.subr.bf16.mxu0 %v647
      %678 = vmatpush1.bf16.msra.mxu0 %v646
      %679 = vmatprep.subr.bf16.mxu0 0
      %680 = vmatpush1.bf16.msra.mxu0 0
      %681 = vmatprep.subr.bf16.mxu0 0
      %682 = vmatpush1.bf16.msra.mxu0 0
      %683 = vmatprep.subr.bf16.mxu0 0
      %684 = vmatpush1.bf16.msra.mxu0 0
      %685 = vmatprep.subr.bf16.mxu0 0
      %686 = vmatpush1.bf16.msra.mxu0 0
      %687 = vmatprep.subr.bf16.mxu0 0
      %688 = vmatpush1.bf16.msra.mxu0 0
      %689 = vmatprep.subr.bf16.mxu0 0
      %690 = vmatpush1.bf16.msra.mxu0 0
      %691 = vmatprep.subr.bf16.mxu0 0
      %692 = vmatpush1.bf16.msra.mxu0 0
      %693 = vmatprep.subr.bf16.mxu0 0
      %694 = vmatpush1.bf16.msra.mxu0 0
      %695 = vmatprep.subr.bf16.mxu0 0
      %696 = vmatpush1.bf16.msra.mxu0 0
      %697 = vmatprep.subr.bf16.mxu0 0
      %698 = vmatpush1.bf16.msra.mxu0 0
      %699 = vmatprep.subr.bf16.mxu0 0
      %700 = vmatpush1.bf16.msra.mxu0 0
      %701 = vmatprep.subr.bf16.mxu0 0
      %702 = vmatpush1.bf16.msra.mxu0 0
      %703 = vmatprep.mubr.bf16.mxu0 0
      %704 = vmatmul.mubr.bf16.gmra.mrb[0].mxu0 %v669
      %v705 = vpop.f32.mrb[0].mxu0
      %v706 = vadd.f32 %v660, %v705
      %v707 = vpop.f32.mrb[0].mxu0
      %v708 = vadd.f32 %v664, %v707
      %v709 = vpop.f32.mrb[0].mxu0
      %v710 = vpop.f32.mrb[0].mxu0
      %711 = vdwg.mxu0
      %v712 = vmax.f32 %v706, 0.0
      %v713 = vmax.f32 %v708, 0.0
      %vm714 = vcmask 519168
      %715 = vst.msk [vmem:[#allocation2] sm:$0xf] %vm714, 0
      %vm716 = vcmask 517120
      %vm717 = vsmask.f32 1280
      %vm718 = vmand %vm716, %vm717
      %v719 = vld [vmem:[#allocation2 + $0x4] sm:$0x3]
      %v720 = vsel %vm718, 0, %v719
      %721 = vst [vmem:[#allocation2 + $0x4] sm:$0x3] %v720
      %vm722 = vcmask 516096
      %vm723 = vsmask.f32 256
      %vm724 = vmand %vm722, %vm723
      %v725 = vld [vmem:[#allocation2 + $0x4] sm:$0x1]
      %v726 = vsel %vm724, %v606, %v725
      %727 = vst [vmem:[#allocation2 + $0x4] sm:$0x1] %v726
      %v728 = vld [vmem:[#allocation2 + $0x4] sm:$0x1]
      %s729 = scalar_lea.vmem %s6, 256
      %v730 = vld [vmem:[%s729] sm:$0xff]
      %v731 = vld [vmem:[%s729 + $0x8] sm:$0xff]
      %v732 = vld [vmem:[%s729 + $0x10] sm:$0xff]
      %v733 = vld [vmem:[%s729 + $0x18] sm:$0xff]
      %v734 = vld [vmem:[%s729 + $0x20] sm:$0xff]
      %v735 = vld [vmem:[%s729 + $0x28] sm:$0xff]
      %v736 = vld [vmem:[%s729 + $0x30] sm:$0xff]
      %v737 = vld [vmem:[%s729 + $0x38] sm:$0xff]
      %v738 = vld [vmem:[%s7] sm:$0x3]
      %v747 = vunpack.c.l.b16 %v730
      %v748 = vunpack.c.h.b16 %v730
      %v749 = vunpack.c.l.b16 %v731
      %v750 = vunpack.c.h.b16 %v731
      %v751 = vunpack.c.l.b16 %v732
      %v752 = vunpack.c.h.b16 %v732
      %v753 = vunpack.c.l.b16 %v733
      %v754 = vunpack.c.h.b16 %v733
      %v755 = vunpack.c.l.b16 %v734
      %v756 = vunpack.c.h.b16 %v734
      %v757 = vunpack.c.l.b16 %v735
      %v758 = vunpack.c.h.b16 %v735
      %v759 = vunpack.c.l.b16 %v736
      %v760 = vunpack.c.h.b16 %v736
      %v761 = vunpack.c.l.b16 %v737
      %v762 = vunpack.c.h.b16 %v737
      %v763 = vpack.c.b16 %v749, %v747
      %v764 = vpack.c.b16 %v750, %v748
      %v765 = vpack.c.b16 %v753, %v751
      %v766 = vpack.c.b16 %v754, %v752
      %v767 = vpack.c.b16 %v757, %v755
      %v768 = vpack.c.b16 %v758, %v756
      %v769 = vpack.c.b16 %v761, %v759
      %v770 = vpack.c.b16 %v762, %v760
      %v780 = vlaneseq
      %v781 = vshrl.u32 %v780, 7
      %v782 = vsub.s32 0, %v781
      %v783 = vrot.slane %v738, %v782
      %v784 = vlaneseq
      %v785 = vshrl.u32 %v784, 7
      %v786 = vsub.s32 1, %v785
      %v787 = vrot.slane %v738, %v786
      %v791 = vsel %vm667, %v728, 0
      %793 = vmatprep.subr.bf16.mxu0 %v764
      %794 = vmatpush1.bf16.msra.mxu0 %v763
      %795 = vmatprep.subr.bf16.mxu0 %v766
      %796 = vmatpush1.bf16.msra.mxu0 %v765
      %797 = vmatprep.subr.bf16.mxu0 %v768
      %798 = vmatpush1.bf16.msra.mxu0 %v767
      %799 = vmatprep.subr.bf16.mxu0 %v770
      %800 = vmatpush1.bf16.msra.mxu0 %v769
      %801 = vmatprep.subr.bf16.mxu0 0
      %802 = vmatpush1.bf16.msra.mxu0 0
      %803 = vmatprep.subr.bf16.mxu0 0
      %804 = vmatpush1.bf16.msra.mxu0 0
      %805 = vmatprep.subr.bf16.mxu0 0
      %806 = vmatpush1.bf16.msra.mxu0 0
      %807 = vmatprep.subr.bf16.mxu0 0
      %808 = vmatpush1.bf16.msra.mxu0 0
      %809 = vmatprep.subr.bf16.mxu0 0
      %810 = vmatpush1.bf16.msra.mxu0 0
      %811 = vmatprep.subr.bf16.mxu0 0
      %812 = vmatpush1.bf16.msra.mxu0 0
      %813 = vmatprep.subr.bf16.mxu0 0
      %814 = vmatpush1.bf16.msra.mxu0 0
      %815 = vmatprep.subr.bf16.mxu0 0
      %816 = vmatpush1.bf16.msra.mxu0 0
      %817 = vmatprep.subr.bf16.mxu0 0
      %818 = vmatpush1.bf16.msra.mxu0 0
      %819 = vmatprep.subr.bf16.mxu0 0
      %820 = vmatpush1.bf16.msra.mxu0 0
      %821 = vmatprep.subr.bf16.mxu0 0
      %822 = vmatpush1.bf16.msra.mxu0 0
      %823 = vmatprep.subr.bf16.mxu0 0
      %824 = vmatpush1.bf16.msra.mxu0 0
      %825 = vmatprep.mubr.bf16.mxu0 0
      %826 = vmatmul.mubr.bf16.gmra.mrb[0].mxu0 %v791
      %v827 = vpop.f32.mrb[0].mxu0
      %v828 = vadd.f32 %v783, %v827
      %v829 = vpop.f32.mrb[0].mxu0
      %v830 = vadd.f32 %v787, %v829
      %v831 = vpop.f32.mrb[0].mxu0
      %v832 = vpop.f32.mrb[0].mxu0
      %833 = vdwg.mxu0
      %v834 = vmax.f32 %v828, 0.0
      %v835 = vmax.f32 %v830, 0.0
      %v836 = vpack.c.bf16 %v712, %v712
      %v837 = vpack.c.bf16 %v713, %v713
      %v838 = vpack.c.bf16 %v834, %v834
      %v839 = vpack.c.bf16 %v835, %v835
      %v844 = vcombine.low %v836, %v837
      %v845 = vcombine.low %v838, %v839
      %v847 = vunpack.c.l.s4 1966171168
      %v848 = vunpack.c.0.s8 %v847
      %v849 = vlaneseq
      %v850 = vshrl.u32 %v849, 7
      %v851 = vsub.s32 %v848, %v850
      %v852 = vrot.slane %v844, %v851
      %v854 = vunpack.c.l.s4 1966171168
      %v855 = vunpack.c.0.s8 %v854
      %v856 = vlaneseq
      %v857 = vshrl.u32 %v856, 7
      %v858 = vsub.s32 %v855, %v857
      %v859 = vrot.slane %v845, %v858
      %v860 = vcombine.low %v852, %v859
      %v862 = vunpack.c.l.s4 1966171168
      %v863 = vunpack.c.0.s8 %v862
      %v864 = vlaneseq
      %v865 = vshrl.u32 %v864, 7
      %v866 = vsub.s32 %v863, %v865
      %v867 = vrot.slane %v860, %v866
      %vm869 = vcmask 1040384
      %vm870 = vmand %vm869, %vm723
      %vm871 = vcmask 1041409
      %vm872 = vmand %vm871, %vm717
      %vm873 = vmor %vm872, %vm870
      %vm874 = vcmask 1042434
      %vm875 = vsmask.f32 2304
      %vm876 = vmand %vm874, %vm875
      %vm877 = vmor %vm876, %vm873
      %vm878 = vcmask 1043459
      %vm879 = vsmask.f32 3328
      %vm880 = vmand %vm878, %vm879
      %vm881 = vmor %vm880, %vm877
      %v882 = vld [vmem:[%s302] sm:$0xf]
      %v883 = vsel %vm881, %v867, %v882
      %884 = vst [vmem:[%s302] sm:$0xf] %v883
      %p885 = scmp.lt.s32.totalorder %s21, 1
      %s886 = scalar_select %p885, %s21, 1
      %s887 = smul.addr %s886, 4
      %s888 = scalar_lea.vmem %s8, %s887
      // Predicated region
      $region53: #{squeezenet3d_forward.16} parent=51 // pred_check
        %p889 = pneg %p212
      $region54: #{squeezenet3d_forward.16} parent=51 // pred_check_branch
        %891 = sbr.rel (%p889) target = $region56
      $region55: #{squeezenet3d_forward.16} parent=51 // pred_region
        _
      $region56: #{squeezenet3d_forward.16} parent=51 // pred_fallthru
        _
    $region52: #{squeezenet3d_forward.16} parent=5 // pred_fallthru
      _
    %p892 = scmp.le.s32.totalorder 2, %s16
    // Predicated region
    $region57: #{squeezenet3d_forward.16} parent=5 // pred_check
      %p893 = pneg %p892
    $region58: #{squeezenet3d_forward.16} parent=5 // pred_check_branch
      %895 = sbr.rel (%p893) target = $region60
    $region59: #{squeezenet3d_forward.16} parent=5 // pred_region
      %s896 = ssub.s32 %s16, 2
      // Predicated region
      $region61: #{squeezenet3d_forward.16} parent=59 // pred_check
        %p897 = pneg %p218
      $region62: #{squeezenet3d_forward.16} parent=59 // pred_check_branch
        %899 = sbr.rel (%p897) target = $region64
      $region63: #{squeezenet3d_forward.16} parent=59 // pred_region
        %p900 = scmp.lt.s32.totalorder %s22, 1
        %s901 = scalar_select %p900, %s22, 1
        %s902 = smul.addr %s901, 4
        %s903 = scalar_lea.vmem %s8, %s902
      $region64: #{squeezenet3d_forward.16} parent=59 // pred_fallthru
        _
    $region60: #{squeezenet3d_forward.16} parent=5 // pred_fallthru
      _
  $region6: #{squeezenet3d_forward.16} parent=0 // loop_footer
    %s20 = sadd.s32 1, %s16
  $region7: #{squeezenet3d_forward.16} parent=0 // loop_footer_branch
    %15 = sbr.rel target = $region3
  $region8: #{squeezenet3d_forward.16} parent=0 // loop_exit
    _

// kernel: squeezenet3d_forward.17
$region0: #{squeezenet3d_forward.17}
  #allocation0 [shape = 'u32[]', space=smem, size = 0x4, offset = 0x4, fixed_abs, tag = 'smem constant byte address 0x4 - core index']
  #allocation1 [shape = 'u32[144,128]{1,0:T(1,128)}', space=vmem, size = 0x12000, scoped, tag = 'internal scratch']
  #allocation2 [shape = 'bf16[11,64]{1,0:T(8,128)(2,1)}', space=vmem, size = 0x1000, scoped, tag = 'scratch operand']
  #allocation3 [shape = 's32[1,1]{1,0:T(1,128)S(1)}', space=vmem, size = 0x200, scoped, tag = 'scoped memory for squeezenet3d_forward.17']
  %s0 = inlined_call_operand.vmem [shape: bf16[2,1,512], index: 0, kind: input, shape index: {}]
  %s1 = inlined_call_operand.<no memory space> [shape: s32[1,1], index: 1, kind: input, shape index: {}]
  %s2 = inlined_call_operand.vmem [shape: bf16[512,64], index: 2, kind: input, shape index: {}]
  %s3 = inlined_call_operand.vmem [shape: f32[1,64], index: 3, kind: input, shape index: {}]
  %s4 = inlined_call_operand.vmem [shape: bf16[64,256], index: 4, kind: input, shape index: {}]
  %s5 = inlined_call_operand.vmem [shape: f32[1,256], index: 5, kind: input, shape index: {}]
  %s6 = inlined_call_operand.vmem [shape: bf16[9,64,256], index: 6, kind: input, shape index: {}]
  %s7 = inlined_call_operand.vmem [shape: f32[1,256], index: 7, kind: input, shape index: {}]
  %s8 = inlined_call_operand.vmem [shape: bf16[2,1,512], index: 8, kind: output, shape index: {}]
  %s9 = sld [smem:[#allocation0]]
  $region65: #{squeezenet3d_forward.17} parent=0
    _
  %s11 = ssub.s32 1, %s9
  %s12 = scalar_select 0, %s11, %s9
  %v13 = vstv %s1
  %14 = vst [vmem:[#allocation3] sm:$0x1] %v13
  loop: start=0, step=1, limit=4
  $region2: #{squeezenet3d_forward.17} parent=0 // loop_pre_header
    _
  $region3: #{squeezenet3d_forward.17} parent=0 // loop_header
    %s16 = sphi 0, %s20
    %p17 = scmp.ge.s32.totalorder %s16, 4
    %s26 = sphi 0, %s28
    %s29 = sphi 0, %s26
    %s30 = sphi 0, %s29
    %s46 = sphi 0, %s30
    %s50 = sphi 0, %s50
    %s52 = sphi 0, %s50
    %s53 = sphi 0, %s52
    %s67 = sphi 0, %s53
    %s71 = sphi 0, %s71
    %s73 = sphi 0, %s71
    %s74 = sphi 0, %s73
    %s88 = sphi 0, %s74
    %s92 = sphi 0, %s92
    %s94 = sphi 0, %s92
    %s95 = sphi 0, %s94
    %s109 = sphi 0, %s95
    %s113 = sphi 0, %s113
    %s115 = sphi 0, %s113
    %s116 = sphi 0, %s115
    %s130 = sphi 0, %s116
    %s134 = sphi 0, %s134
    %s136 = sphi 0, %s134
    %s137 = sphi 0, %s136
    %s151 = sphi 0, %s137
    %s155 = sphi 0, %s155
    %s157 = sphi 0, %s155
    %s158 = sphi 0, %s157
    %s172 = sphi 0, %s158
    %s176 = sphi 0, %s176
    %s178 = sphi 0, %s176
    %s179 = sphi 0, %s178
    %s193 = sphi 0, %s179
    %s199 = sphi 0, %s201
    %s202 = sphi 0, %s199
    %s203 = sphi 0, %s202
    %s219 = sphi 0, %s203
  $region4: #{squeezenet3d_forward.17} parent=0 // loop_header_branch
    %19 = sbr.rel (%p17) target = $region8
  $region5: #{squeezenet3d_forward.17} parent=0 // loop_body
    %s21 = ssub.s32 %s16, 1
    %s22 = ssub.s32 %s16, 2
    %s23 = sadd.s32 %s16, 1
    %s24 = ssub.s32 %s16, %s23
    %p25 = scmp.eq.s32.totalorder %s24, 0
    %s27 = sadd.s32 %s26, 1
    %s28 = scalar_select %p25, %s26, %s27
    %p31 = pneg %p25
    %p32 = scmp.eq.s32.totalorder %s16, 1
    %p33 = por %p31, %p32
    %p34 = scmp.ne.s32.totalorder %s26, %s29
    %p35 = scmp.eq.s32.totalorder %s16, 0
    %p36 = por %p34, %p35
    %p37 = scmp.ne.s32.totalorder %s26, %s29
    %p38 = scmp.eq.s32.totalorder %s21, 1
    %p39 = por %p37, %p38
    %p40 = scmp.ne.s32.totalorder %s29, %s30
    %p41 = scmp.eq.s32.totalorder %s21, 0
    %p42 = por %p40, %p41
    %p43 = scmp.ne.s32.totalorder %s29, %s30
    %p44 = scmp.eq.s32.totalorder %s22, 1
    %p45 = por %p43, %p44
    %p47 = scmp.ne.s32.totalorder %s30, %s46
    %p48 = scmp.eq.s32.totalorder %s22, 0
    %p49 = por %p47, %p48
    %s51 = sadd.s32 %s50, 1
    %p54 = scmp.eq.s32.totalorder %s16, 1
    %p55 = scmp.ne.s32.totalorder %s50, %s52
    %p56 = scmp.eq.s32.totalorder %s16, 0
    %p57 = por %p55, %p56
    %p58 = scmp.ne.s32.totalorder %s50, %s52
    %p59 = scmp.eq.s32.totalorder %s21, 1
    %p60 = por %p58, %p59
    %p61 = scmp.ne.s32.totalorder %s52, %s53
    %p62 = scmp.eq.s32.totalorder %s21, 0
    %p63 = por %p61, %p62
    %p64 = scmp.ne.s32.totalorder %s52, %s53
    %p65 = scmp.eq.s32.totalorder %s22, 1
    %p66 = por %p64, %p65
    %p68 = scmp.ne.s32.totalorder %s53, %s67
    %p69 = scmp.eq.s32.totalorder %s22, 0
    %p70 = por %p68, %p69
    %s72 = sadd.s32 %s71, 1
    %p75 = scmp.eq.s32.totalorder %s16, 1
    %p76 = scmp.ne.s32.totalorder %s71, %s73
    %p77 = scmp.eq.s32.totalorder %s16, 0
    %p78 = por %p76, %p77
    %p79 = scmp.ne.s32.totalorder %s71, %s73
    %p80 = scmp.eq.s32.totalorder %s21, 1
    %p81 = por %p79, %p80
    %p82 = scmp.ne.s32.totalorder %s73, %s74
    %p83 = scmp.eq.s32.totalorder %s21, 0
    %p84 = por %p82, %p83
    %p85 = scmp.ne.s32.totalorder %s73, %s74
    %p86 = scmp.eq.s32.totalorder %s22, 1
    %p87 = por %p85, %p86
    %p89 = scmp.ne.s32.totalorder %s74, %s88
    %p90 = scmp.eq.s32.totalorder %s22, 0
    %p91 = por %p89, %p90
    %s93 = sadd.s32 %s92, 1
    %p96 = scmp.eq.s32.totalorder %s16, 1
    %p97 = scmp.ne.s32.totalorder %s92, %s94
    %p98 = scmp.eq.s32.totalorder %s16, 0
    %p99 = por %p97, %p98
    %p100 = scmp.ne.s32.totalorder %s92, %s94
    %p101 = scmp.eq.s32.totalorder %s21, 1
    %p102 = por %p100, %p101
    %p103 = scmp.ne.s32.totalorder %s94, %s95
    %p104 = scmp.eq.s32.totalorder %s21, 0
    %p105 = por %p103, %p104
    %p106 = scmp.ne.s32.totalorder %s94, %s95
    %p107 = scmp.eq.s32.totalorder %s22, 1
    %p108 = por %p106, %p107
    %p110 = scmp.ne.s32.totalorder %s95, %s109
    %p111 = scmp.eq.s32.totalorder %s22, 0
    %p112 = por %p110, %p111
    %s114 = sadd.s32 %s113, 1
    %p117 = scmp.eq.s32.totalorder %s16, 1
    %p118 = scmp.ne.s32.totalorder %s113, %s115
    %p119 = scmp.eq.s32.totalorder %s16, 0
    %p120 = por %p118, %p119
    %p121 = scmp.ne.s32.totalorder %s113, %s115
    %p122 = scmp.eq.s32.totalorder %s21, 1
    %p123 = por %p121, %p122
    %p124 = scmp.ne.s32.totalorder %s115, %s116
    %p125 = scmp.eq.s32.totalorder %s21, 0
    %p126 = por %p124, %p125
    %p127 = scmp.ne.s32.totalorder %s115, %s116
    %p128 = scmp.eq.s32.totalorder %s22, 1
    %p129 = por %p127, %p128
    %p131 = scmp.ne.s32.totalorder %s116, %s130
    %p132 = scmp.eq.s32.totalorder %s22, 0
    %p133 = por %p131, %p132
    %s135 = sadd.s32 %s134, 1
    %p138 = scmp.eq.s32.totalorder %s16, 1
    %p139 = scmp.ne.s32.totalorder %s134, %s136
    %p140 = scmp.eq.s32.totalorder %s16, 0
    %p141 = por %p139, %p140
    %p142 = scmp.ne.s32.totalorder %s134, %s136
    %p143 = scmp.eq.s32.totalorder %s21, 1
    %p144 = por %p142, %p143
    %p145 = scmp.ne.s32.totalorder %s136, %s137
    %p146 = scmp.eq.s32.totalorder %s21, 0
    %p147 = por %p145, %p146
    %p148 = scmp.ne.s32.totalorder %s136, %s137
    %p149 = scmp.eq.s32.totalorder %s22, 1
    %p150 = por %p148, %p149
    %p152 = scmp.ne.s32.totalorder %s137, %s151
    %p153 = scmp.eq.s32.totalorder %s22, 0
    %p154 = por %p152, %p153
    %s156 = sadd.s32 %s155, 1
    %p159 = scmp.eq.s32.totalorder %s16, 1
    %p160 = scmp.ne.s32.totalorder %s155, %s157
    %p161 = scmp.eq.s32.totalorder %s16, 0
    %p162 = por %p160, %p161
    %p163 = scmp.ne.s32.totalorder %s155, %s157
    %p164 = scmp.eq.s32.totalorder %s21, 1
    %p165 = por %p163, %p164
    %p166 = scmp.ne.s32.totalorder %s157, %s158
    %p167 = scmp.eq.s32.totalorder %s21, 0
    %p168 = por %p166, %p167
    %p169 = scmp.ne.s32.totalorder %s157, %s158
    %p170 = scmp.eq.s32.totalorder %s22, 1
    %p171 = por %p169, %p170
    %p173 = scmp.ne.s32.totalorder %s158, %s172
    %p174 = scmp.eq.s32.totalorder %s22, 0
    %p175 = por %p173, %p174
    %s177 = sadd.s32 %s176, 1
    %p180 = scmp.eq.s32.totalorder %s16, 1
    %p181 = scmp.ne.s32.totalorder %s176, %s178
    %p182 = scmp.eq.s32.totalorder %s16, 0
    %p183 = por %p181, %p182
    %p184 = scmp.ne.s32.totalorder %s176, %s178
    %p185 = scmp.eq.s32.totalorder %s21, 1
    %p186 = por %p184, %p185
    %p187 = scmp.ne.s32.totalorder %s178, %s179
    %p188 = scmp.eq.s32.totalorder %s21, 0
    %p189 = por %p187, %p188
    %p190 = scmp.ne.s32.totalorder %s178, %s179
    %p191 = scmp.eq.s32.totalorder %s22, 1
    %p192 = por %p190, %p191
    %p194 = scmp.ne.s32.totalorder %s179, %s193
    %p195 = scmp.eq.s32.totalorder %s22, 0
    %p196 = por %p194, %p195
    %s197 = ssub.s32 %s16, %s23
    %p198 = scmp.eq.s32.totalorder %s197, 0
    %s200 = sadd.s32 %s199, 1
    %s201 = scalar_select %p198, %s199, %s200
    %p204 = pneg %p198
    %p205 = scmp.eq.s32.totalorder %s16, 1
    %p206 = por %p204, %p205
    %p207 = scmp.ne.s32.totalorder %s199, %s202
    %p208 = scmp.eq.s32.totalorder %s16, 0
    %p209 = por %p207, %p208
    %p210 = scmp.ne.s32.totalorder %s199, %s202
    %p211 = scmp.eq.s32.totalorder %s21, 1
    %p212 = por %p210, %p211
    %p213 = scmp.ne.s32.totalorder %s202, %s203
    %p214 = scmp.eq.s32.totalorder %s21, 0
    %p215 = por %p213, %p214
    %p216 = scmp.ne.s32.totalorder %s202, %s203
    %p217 = scmp.eq.s32.totalorder %s22, 1
    %p218 = por %p216, %p217
    %p220 = scmp.ne.s32.totalorder %s203, %s219
    %p221 = scmp.eq.s32.totalorder %s22, 0
    %p222 = por %p220, %p221
    %p223 = scmp.le.s32.totalorder 1, %s16
    %p224 = scmp.lt.s32.totalorder %s16, 3
    %p225 = pnand %p223, %p224
    %p226 = pneg %p225
    // Predicated region
    $region9: #{squeezenet3d_forward.17} parent=5 // pred_check
      _
    $region10: #{squeezenet3d_forward.17} parent=5 // pred_check_branch
      %228 = sbr.rel (%p225) target = $region12
    $region11: #{squeezenet3d_forward.17} parent=5 // pred_region
      %s229 = ssub.s32 %s16, 1
      // Predicated region
      $region13: #{squeezenet3d_forward.17} parent=11 // pred_check
        %p230 = pneg %p63
      $region14: #{squeezenet3d_forward.17} parent=11 // pred_check_branch
        %232 = sbr.rel (%p230) target = $region16
      $region15: #{squeezenet3d_forward.17} parent=11 // pred_region
        _
      $region16: #{squeezenet3d_forward.17} parent=11 // pred_fallthru
        _
      // Predicated region
      $region17: #{squeezenet3d_forward.17} parent=11 // pred_check
        %p233 = pneg %p84
      $region18: #{squeezenet3d_forward.17} parent=11 // pred_check_branch
        %235 = sbr.rel (%p233) target = $region20
      $region19: #{squeezenet3d_forward.17} parent=11 // pred_region
        _
      $region20: #{squeezenet3d_forward.17} parent=11 // pred_fallthru
        _
      // Predicated region
      $region21: #{squeezenet3d_forward.17} parent=11 // pred_check
        %p236 = pneg %p105
      $region22: #{squeezenet3d_forward.17} parent=11 // pred_check_branch
        %238 = sbr.rel (%p236) target = $region24
      $region23: #{squeezenet3d_forward.17} parent=11 // pred_region
        _
      $region24: #{squeezenet3d_forward.17} parent=11 // pred_fallthru
        _
      // Predicated region
      $region25: #{squeezenet3d_forward.17} parent=11 // pred_check
        %p239 = pneg %p126
      $region26: #{squeezenet3d_forward.17} parent=11 // pred_check_branch
        %241 = sbr.rel (%p239) target = $region28
      $region27: #{squeezenet3d_forward.17} parent=11 // pred_region
        _
      $region28: #{squeezenet3d_forward.17} parent=11 // pred_fallthru
        _
      // Predicated region
      $region29: #{squeezenet3d_forward.17} parent=11 // pred_check
        %p242 = pneg %p147
      $region30: #{squeezenet3d_forward.17} parent=11 // pred_check_branch
        %244 = sbr.rel (%p242) target = $region32
      $region31: #{squeezenet3d_forward.17} parent=11 // pred_region
        _
      $region32: #{squeezenet3d_forward.17} parent=11 // pred_fallthru
        _
      // Predicated region
      $region33: #{squeezenet3d_forward.17} parent=11 // pred_check
        %p245 = pneg %p168
      $region34: #{squeezenet3d_forward.17} parent=11 // pred_check_branch
        %247 = sbr.rel (%p245) target = $region36
      $region35: #{squeezenet3d_forward.17} parent=11 // pred_region
        _
      $region36: #{squeezenet3d_forward.17} parent=11 // pred_fallthru
        _
      // Predicated region
      $region37: #{squeezenet3d_forward.17} parent=11 // pred_check
        %p248 = pneg %p189
      $region38: #{squeezenet3d_forward.17} parent=11 // pred_check_branch
        %250 = sbr.rel (%p248) target = $region40
      $region39: #{squeezenet3d_forward.17} parent=11 // pred_region
        _
      $region40: #{squeezenet3d_forward.17} parent=11 // pred_fallthru
        _
    $region12: #{squeezenet3d_forward.17} parent=5 // pred_fallthru
      _
    %p251 = scmp.lt.s32.totalorder %s16, 2
    // Predicated region
    $region41: #{squeezenet3d_forward.17} parent=5 // pred_check
      %p252 = pneg %p251
    $region42: #{squeezenet3d_forward.17} parent=5 // pred_check_branch
      %254 = sbr.rel (%p252) target = $region44
    $region43: #{squeezenet3d_forward.17} parent=5 // pred_region
      // Predicated region
      $region45: #{squeezenet3d_forward.17} parent=43 // pred_check
        %p255 = pneg %p36
      $region46: #{squeezenet3d_forward.17} parent=43 // pred_check_branch
        %257 = sbr.rel (%p255) target = $region48
      $region47: #{squeezenet3d_forward.17} parent=43 // pred_region
        %p258 = scmp.lt.s32.totalorder %s16, 1
        %s259 = scalar_select %p258, %s16, 1
        %s260 = smul.addr %s259, 4
        %s261 = scalar_lea.vmem %s0, %s260
      $region48: #{squeezenet3d_forward.17} parent=43 // pred_fallthru
        _
    $region44: #{squeezenet3d_forward.17} parent=5 // pred_fallthru
      _
    %p262 = scmp.le.s32.totalorder 1, %s16
    %p263 = scmp.lt.s32.totalorder %s16, 3
    %p264 = pnand %p262, %p263
    %p265 = pneg %p264
    // Predicated region
    $region49: #{squeezenet3d_forward.17} parent=5 // pred_check
      _
    $region50: #{squeezenet3d_forward.17} parent=5 // pred_check_branch
      %267 = sbr.rel (%p264) target = $region52
    $region51: #{squeezenet3d_forward.17} parent=5 // pred_region
      %s268 = ssub.s32 %s16, 1
      %p269 = scmp.lt.s32.totalorder %s21, 1
      %s270 = scalar_select %p269, %s21, 1
      %s271 = smul.addr %s270, 4
      %s272 = scalar_lea.vmem %s0, %s271
      %p273 = pneg %p42
      %p274 = pneg %p39
      %p275 = pneg %p63
      %p276 = pneg %p60
      %p277 = pneg %p84
      %p278 = pneg %p81
      %p279 = pneg %p105
      %p280 = pneg %p102
      %p281 = pneg %p126
      %p282 = pneg %p123
      %p283 = pneg %p147
      %p284 = pneg %p144
      %p285 = pneg %p168
      %p286 = pneg %p165
      %p287 = pneg %p189
      %p288 = pneg %p186
      %p289 = pneg %p215
      %p290 = pneg %p212
      %p291 = scmp.lt.s32.totalorder %s21, 1
      %s292 = scalar_select %p291, %s21, 1
      %s293 = smul.addr %s292, 4
      %s294 = scalar_lea.vmem %s8, %s293
      %p295 = scmp.lt.s32.totalorder %s21, 1
      %s296 = scalar_select %p295, %s21, 1
      %s297 = smul.addr %s296, 4
      %s298 = scalar_lea.vmem %s0, %s297
      %p299 = scmp.lt.s32.totalorder %s21, 1
      %s300 = scalar_select %p299, %s21, 1
      %s301 = smul.addr %s300, 4
      %s302 = scalar_lea.vmem %s8, %s301
      %v304 = vld [vmem:[%s298] sm:$0xf]
      %v305 = vld [vmem:[%s2] sm:$0xf]
      %v306 = vld [vmem:[%s2 + $0x4] sm:$0xf]
      %v307 = vld [vmem:[%s2 + $0x8] sm:$0xf]
      %v308 = vld [vmem:[%s2 + $0xc] sm:$0xf]
      %v309 = vld [vmem:[%s2 + $0x10] sm:$0xf]
      %v310 = vld [vmem:[%s2 + $0x14] sm:$0xf]
      %v311 = vld [vmem:[%s2 + $0x18] sm:$0xf]
      %v312 = vld [vmem:[%s2 + $0x1c] sm:$0xf]
      %v313 = vld [vmem:[%s2 + $0x20] sm:$0xf]
      %v314 = vld [vmem:[%s2 + $0x24] sm:$0xf]
      %v315 = vld [vmem:[%s2 + $0x28] sm:$0xf]
      %v316 = vld [vmem:[%s2 + $0x2c] sm:$0xf]
      %v317 = vld [vmem:[%s2 + $0x30] sm:$0xf]
      %v318 = vld [vmem:[%s2 + $0x34] sm:$0xf]
      %v319 = vld [vmem:[%s2 + $0x38] sm:$0xf]
      %v320 = vld [vmem:[%s2 + $0x3c] sm:$0xf]
      %v321 = vld [vmem:[%s2 + $0x40] sm:$0xf]
      %v322 = vld [vmem:[%s2 + $0x44] sm:$0xf]
      %v323 = vld [vmem:[%s2 + $0x48] sm:$0xf]
      %v324 = vld [vmem:[%s2 + $0x4c] sm:$0xf]
      %v325 = vld [vmem:[%s2 + $0x50] sm:$0xf]
      %v326 = vld [vmem:[%s2 + $0x54] sm:$0xf]
      %v327 = vld [vmem:[%s2 + $0x58] sm:$0xf]
      %v328 = vld [vmem:[%s2 + $0x5c] sm:$0xf]
      %v329 = vld [vmem:[%s2 + $0x60] sm:$0xf]
      %v330 = vld [vmem:[%s2 + $0x64] sm:$0xf]
      %v331 = vld [vmem:[%s2 + $0x68] sm:$0xf]
      %v332 = vld [vmem:[%s2 + $0x6c] sm:$0xf]
      %v333 = vld [vmem:[%s2 + $0x70] sm:$0xf]
      %v334 = vld [vmem:[%s2 + $0x74] sm:$0xf]
      %v335 = vld [vmem:[%s2 + $0x78] sm:$0xf]
      %v336 = vld [vmem:[%s2 + $0x7c] sm:$0xf]
      %v337 = vld [vmem:[%s2 + $0x80] sm:$0xf]
      %v338 = vld [vmem:[%s2 + $0x84] sm:$0xf]
      %v339 = vld [vmem:[%s2 + $0x88] sm:$0xf]
      %v340 = vld [vmem:[%s2 + $0x8c] sm:$0xf]
      %v341 = vld [vmem:[%s2 + $0x90] sm:$0xf]
      %v342 = vld [vmem:[%s2 + $0x94] sm:$0xf]
      %v343 = vld [vmem:[%s2 + $0x98] sm:$0xf]
      %v344 = vld [vmem:[%s2 + $0x9c] sm:$0xf]
      %v345 = vld [vmem:[%s2 + $0xa0] sm:$0xf]
      %v346 = vld [vmem:[%s2 + $0xa4] sm:$0xf]
      %v347 = vld [vmem:[%s2 + $0xa8] sm:$0xf]
      %v348 = vld [vmem:[%s2 + $0xac] sm:$0xf]
      %v349 = vld [vmem:[%s2 + $0xb0] sm:$0xf]
      %v350 = vld [vmem:[%s2 + $0xb4] sm:$0xf]
      %v351 = vld [vmem:[%s2 + $0xb8] sm:$0xf]
      %v352 = vld [vmem:[%s2 + $0xbc] sm:$0xf]
      %v353 = vld [vmem:[%s2 + $0xc0] sm:$0xf]
      %v354 = vld [vmem:[%s2 + $0xc4] sm:$0xf]
      %v355 = vld [vmem:[%s2 + $0xc8] sm:$0xf]
      %v356 = vld [vmem:[%s2 + $0xcc] sm:$0xf]
      %v357 = vld [vmem:[%s2 + $0xd0] sm:$0xf]
      %v358 = vld [vmem:[%s2 + $0xd4] sm:$0xf]
      %v359 = vld [vmem:[%s2 + $0xd8] sm:$0xf]
      %v360 = vld [vmem:[%s2 + $0xdc] sm:$0xf]
      %v361 = vld [vmem:[%s2 + $0xe0] sm:$0xf]
      %v362 = vld [vmem:[%s2 + $0xe4] sm:$0xf]
      %v363 = vld [vmem:[%s2 + $0xe8] sm:$0xf]
      %v364 = vld [vmem:[%s2 + $0xec] sm:$0xf]
      %v365 = vld [vmem:[%s2 + $0xf0] sm:$0xf]
      %v366 = vld [vmem:[%s2 + $0xf4] sm:$0xf]
      %v367 = vld [vmem:[%s2 + $0xf8] sm:$0xf]
      %v368 = vld [vmem:[%s2 + $0xfc] sm:$0xf]
      %v369 = vld [vmem:[%s3] sm:$0x1]
      %v372 = vunpack.c.l.s4 1966171168
      %v373 = vunpack.c.0.s8 %v372
      %v374 = vlaneseq
      %v375 = vshrl.u32 %v374, 7
      %v376 = vsub.s32 %v373, %v375
      %v377 = vrot.slane %v304, %v376
      %v378 = vcombine.high %v377, %v377
      %v380 = vunpack.c.l.s4 1966171168
      %v381 = vunpack.c.0.s8 %v380
      %v382 = vlaneseq
      %v383 = vshrl.u32 %v382, 7
      %v384 = vsub.s32 %v381, %v383
      %v385 = vrot.slane %v377, %v384
      %v387 = vunpack.c.l.s4 1966171168
      %v388 = vunpack.c.0.s8 %v387
      %v389 = vlaneseq
      %v390 = vshrl.u32 %v389, 7
      %v391 = vsub.s32 %v388, %v390
      %v392 = vrot.slane %v378, %v391
      %v393 = vcombine.high %v385, %v385
      %v394 = vcombine.high %v392, %v392
      %v463 = vunpack.c.l.b16 %v305
      %v464 = vunpack.c.l.b16 %v306
      %v465 = vunpack.c.l.b16 %v307
      %v466 = vunpack.c.l.b16 %v308
      %v467 = vunpack.c.l.b16 %v309
      %v468 = vunpack.c.l.b16 %v310
      %v469 = vunpack.c.l.b16 %v311
      %v470 = vunpack.c.l.b16 %v312
      %v471 = vunpack.c.l.b16 %v313
      %v472 = vunpack.c.l.b16 %v314
      %v473 = vunpack.c.l.b16 %v315
      %v474 = vunpack.c.l.b16 %v316
      %v475 = vunpack.c.l.b16 %v317
      %v476 = vunpack.c.l.b16 %v318
      %v477 = vunpack.c.l.b16 %v319
      %v478 = vunpack.c.l.b16 %v320
      %v479 = vunpack.c.l.b16 %v321
      %v480 = vunpack.c.l.b16 %v322
      %v481 = vunpack.c.l.b16 %v323
      %v482 = vunpack.c.l.b16 %v324
      %v483 = vunpack.c.l.b16 %v325
      %v484 = vunpack.c.l.b16 %v326
      %v485 = vunpack.c.l.b16 %v327
      %v486 = vunpack.c.l.b16 %v328
      %v487 = vunpack.c.l.b16 %v329
      %v488 = vunpack.c.l.b16 %v330
      %v489 = vunpack.c.l.b16 %v331
      %v490 = vunpack.c.l.b16 %v332
      %v491 = vunpack.c.l.b16 %v333
      %v492 = vunpack.c.l.b16 %v334
      %v493 = vunpack.c.l.b16 %v335
      %v494 = vunpack.c.l.b16 %v336
      %v495 = vunpack.c.l.b16 %v337
      %v496 = vunpack.c.l.b16 %v338
      %v497 = vunpack.c.l.b16 %v339
      %v498 = vunpack.c.l.b16 %v340
      %v499 = vunpack.c.l.b16 %v341
      %v500 = vunpack.c.l.b16 %v342
      %v501 = vunpack.c.l.b16 %v343
      %v502 = vunpack.c.l.b16 %v344
      %v503 = vunpack.c.l.b16 %v345
      %v504 = vunpack.c.l.b16 %v346
      %v505 = vunpack.c.l.b16 %v347
      %v506 = vunpack.c.l.b16 %v348
      %v507 = vunpack.c.l.b16 %v349
      %v508 = vunpack.c.l.b16 %v350
      %v509 = vunpack.c.l.b16 %v351
      %v510 = vunpack.c.l.b16 %v352
      %v511 = vunpack.c.l.b16 %v353
      %v512 = vunpack.c.l.b16 %v354
      %v513 = vunpack.c.l.b16 %v355
      %v514 = vunpack.c.l.b16 %v356
      %v515 = vunpack.c.l.b16 %v357
      %v516 = vunpack.c.l.b16 %v358
      %v517 = vunpack.c.l.b16 %v359
      %v518 = vunpack.c.l.b16 %v360
      %v519 = vunpack.c.l.b16 %v361
      %v520 = vunpack.c.l.b16 %v362
      %v521 = vunpack.c.l.b16 %v363
      %v522 = vunpack.c.l.b16 %v364
      %v523 = vunpack.c.l.b16 %v365
      %v524 = vunpack.c.l.b16 %v366
      %v525 = vunpack.c.l.b16 %v367
      %v526 = vunpack.c.l.b16 %v368
      %v527 = vpack.c.b16 %v464, %v463
      %v528 = vpack.c.b16 %v466, %v465
      %v529 = vpack.c.b16 %v468, %v467
      %v530 = vpack.c.b16 %v470, %v469
      %v531 = vpack.c.b16 %v472, %v471
      %v532 = vpack.c.b16 %v474, %v473
      %v533 = vpack.c.b16 %v476, %v475
      %v534 = vpack.c.b16 %v478, %v477
      %v535 = vpack.c.b16 %v480, %v479
      %v536 = vpack.c.b16 %v482, %v481
      %v537 = vpack.c.b16 %v484, %v483
      %v538 = vpack.c.b16 %v486, %v485
      %v539 = vpack.c.b16 %v488, %v487
      %v540 = vpack.c.b16 %v490, %v489
      %v541 = vpack.c.b16 %v492, %v491
      %v542 = vpack.c.b16 %v494, %v493
      %v543 = vpack.c.b16 %v496, %v495
      %v544 = vpack.c.b16 %v498, %v497
      %v545 = vpack.c.b16 %v500, %v499
      %v546 = vpack.c.b16 %v502, %v501
      %v547 = vpack.c.b16 %v504, %v503
      %v548 = vpack.c.b16 %v506, %v505
      %v549 = vpack.c.b16 %v508, %v507
      %v550 = vpack.c.b16 %v510, %v509
      %v551 = vpack.c.b16 %v512, %v511
      %v552 = vpack.c.b16 %v514, %v513
      %v553 = vpack.c.b16 %v516, %v515
      %v554 = vpack.c.b16 %v518, %v517
      %v555 = vpack.c.b16 %v520, %v519
      %v556 = vpack.c.b16 %v522, %v521
      %v557 = vpack.c.b16 %v524, %v523
      %v558 = vpack.c.b16 %v526, %v525
      %591 = vmatprep.subr.bf16.mxu0 0
      %592 = vmatpush1.bf16.msra.mxu0 %v527
      %593 = vmatprep.subr.bf16.mxu0 0
      %594 = vmatpush1.bf16.msra.mxu0 %v528
      %595 = vmatprep.subr.bf16.mxu0 0
      %596 = vmatpush1.bf16.msra.mxu0 %v529
      %597 = vmatprep.subr.bf16.mxu0 0
      %598 = vmatpush1.bf16.msra.mxu0 %v530
      %599 = vmatprep.subr.bf16.mxu0 0
      %600 = vmatpush1.bf16.msra.mxu0 %v531
      %601 = vmatprep.subr.bf16.mxu0 0
      %602 = vmatpush1.bf16.msra.mxu0 %v532
      %603 = vmatprep.subr.bf16.mxu0 0
      %604 = vmatpush1.bf16.msra.mxu0 %v533
      %605 = vmatprep.subr.bf16.mxu0 0
      %606 = vmatpush1.bf16.msra.mxu0 %v534
      %607 = vmatprep.subr.bf16.mxu0 0
      %608 = vmatpush1.bf16.msra.mxu0 %v535
      %609 = vmatprep.subr.bf16.mxu0 0
      %610 = vmatpush1.bf16.msra.mxu0 %v536
      %611 = vmatprep.subr.bf16.mxu0 0
      %612 = vmatpush1.bf16.msra.mxu0 %v537
      %613 = vmatprep.subr.bf16.mxu0 0
      %614 = vmatpush1.bf16.msra.mxu0 %v538
      %615 = vmatprep.subr.bf16.mxu0 0
      %616 = vmatpush1.bf16.msra.mxu0 %v539
      %617 = vmatprep.subr.bf16.mxu0 0
      %618 = vmatpush1.bf16.msra.mxu0 %v540
      %619 = vmatprep.subr.bf16.mxu0 0
      %620 = vmatpush1.bf16.msra.mxu0 %v541
      %621 = vmatprep.subr.bf16.mxu0 0
      %622 = vmatpush1.bf16.msra.mxu0 %v542
      %623 = vmatprep.mubr.bf16.mxu0 %v392
      %624 = vmatmul.mubr.bf16.gmra.mrb[0].mxu0 %v385
      %v625 = vpop.f32.mrb[0].mxu0
      %v626 = vadd.f32 %v369, %v625
      %v627 = vpop.f32.mrb[0].mxu0
      %v628 = vpop.f32.mrb[0].mxu0
      %v629 = vpop.f32.mrb[0].mxu0
      %630 = vdwg.mxu0
      %631 = vmatprep.subr.bf16.mxu0 0
      %632 = vmatpush1.bf16.msra.mxu0 %v543
      %633 = vmatprep.subr.bf16.mxu0 0
      %634 = vmatpush1.bf16.msra.mxu0 %v544
      %635 = vmatprep.subr.bf16.mxu0 0
      %636 = vmatpush1.bf16.msra.mxu0 %v545
      %637 = vmatprep.subr.bf16.mxu0 0
      %638 = vmatpush1.bf16.msra.mxu0 %v546
      %639 = vmatprep.subr.bf16.mxu0 0
      %640 = vmatpush1.bf16.msra.mxu0 %v547
      %641 = vmatprep.subr.bf16.mxu0 0
      %642 = vmatpush1.bf16.msra.mxu0 %v548
      %643 = vmatprep.subr.bf16.mxu0 0
      %644 = vmatpush1.bf16.msra.mxu0 %v549
      %645 = vmatprep.subr.bf16.mxu0 0
      %646 = vmatpush1.bf16.msra.mxu0 %v550
      %647 = vmatprep.subr.bf16.mxu0 0
      %648 = vmatpush1.bf16.msra.mxu0 %v551
      %649 = vmatprep.subr.bf16.mxu0 0
      %650 = vmatpush1.bf16.msra.mxu0 %v552
      %651 = vmatprep.subr.bf16.mxu0 0
      %652 = vmatpush1.bf16.msra.mxu0 %v553
      %653 = vmatprep.subr.bf16.mxu0 0
      %654 = vmatpush1.bf16.msra.mxu0 %v554
      %655 = vmatprep.subr.bf16.mxu0 0
      %656 = vmatpush1.bf16.msra.mxu0 %v555
      %657 = vmatprep.subr.bf16.mxu0 0
      %658 = vmatpush1.bf16.msra.mxu0 %v556
      %659 = vmatprep.subr.bf16.mxu0 0
      %660 = vmatpush1.bf16.msra.mxu0 %v557
      %661 = vmatprep.subr.bf16.mxu0 0
      %662 = vmatpush1.bf16.msra.mxu0 %v558
      %663 = vmatprep.mubr.bf16.mxu0 %v394
      %664 = vmatmul.mubr.bf16.gmra.mrb[0].mxu0 %v393
      %v665 = vpop.f32.mrb[0].mxu0
      %v666 = vadd.f32 %v626, %v665
      %v667 = vpop.f32.mrb[0].mxu0
      %v668 = vpop.f32.mrb[0].mxu0
      %v669 = vpop.f32.mrb[0].mxu0
      %670 = vdwg.mxu0
      %v671 = vmax.f32 %v666, 0.0
      %v672 = vpack.c.bf16 %v671, %v671
      %v673 = vld [vmem:[%s4] sm:$0xff]
      %v674 = vld [vmem:[%s4 + $0x8] sm:$0xff]
      %v675 = vld [vmem:[%s4 + $0x10] sm:$0xff]
      %v676 = vld [vmem:[%s4 + $0x18] sm:$0xff]
      %v677 = vld [vmem:[%s4 + $0x20] sm:$0xff]
      %v678 = vld [vmem:[%s4 + $0x28] sm:$0xff]
      %v679 = vld [vmem:[%s4 + $0x30] sm:$0xff]
      %v680 = vld [vmem:[%s4 + $0x38] sm:$0xff]
      %v681 = vld [vmem:[%s5] sm:$0x3]
      %v690 = vunpack.c.l.b16 %v673
      %v691 = vunpack.c.h.b16 %v673
      %v692 = vunpack.c.l.b16 %v674
      %v693 = vunpack.c.h.b16 %v674
      %v694 = vunpack.c.l.b16 %v675
      %v695 = vunpack.c.h.b16 %v675
      %v696 = vunpack.c.l.b16 %v676
      %v697 = vunpack.c.h.b16 %v676
      %v698 = vunpack.c.l.b16 %v677
      %v699 = vunpack.c.h.b16 %v677
      %v700 = vunpack.c.l.b16 %v678
      %v701 = vunpack.c.h.b16 %v678
      %v702 = vunpack.c.l.b16 %v679
      %v703 = vunpack.c.h.b16 %v679
      %v704 = vunpack.c.l.b16 %v680
      %v705 = vunpack.c.h.b16 %v680
      %v706 = vpack.c.b16 %v692, %v690
      %v707 = vpack.c.b16 %v693, %v691
      %v708 = vpack.c.b16 %v696, %v694
      %v709 = vpack.c.b16 %v697, %v695
      %v710 = vpack.c.b16 %v700, %v698
      %v711 = vpack.c.b16 %v701, %v699
      %v712 = vpack.c.b16 %v704, %v702
      %v713 = vpack.c.b16 %v705, %v703
      %v723 = vlaneseq
      %v724 = vshrl.u32 %v723, 7
      %v725 = vsub.s32 0, %v724
      %v726 = vrot.slane %v681, %v725
      %v727 = vlaneseq
      %v728 = vshrl.u32 %v727, 7
      %v729 = vsub.s32 1, %v728
      %v730 = vrot.slane %v681, %v729
      %vm733 = vcmask 523264
      %v735 = vsel %vm733, %v672, 0
      %737 = vmatprep.subr.bf16.mxu0 %v707
      %738 = vmatpush1.bf16.msra.mxu0 %v706
      %739 = vmatprep.subr.bf16.mxu0 %v709
      %740 = vmatpush1.bf16.msra.mxu0 %v708
      %741 = vmatprep.subr.bf16.mxu0 %v711
      %742 = vmatpush1.bf16.msra.mxu0 %v710
      %743 = vmatprep.subr.bf16.mxu0 %v713
      %744 = vmatpush1.bf16.msra.mxu0 %v712
      %745 = vmatprep.subr.bf16.mxu0 0
      %746 = vmatpush1.bf16.msra.mxu0 0
      %747 = vmatprep.subr.bf16.mxu0 0
      %748 = vmatpush1.bf16.msra.mxu0 0
      %749 = vmatprep.subr.bf16.mxu0 0
      %750 = vmatpush1.bf16.msra.mxu0 0
      %751 = vmatprep.subr.bf16.mxu0 0
      %752 = vmatpush1.bf16.msra.mxu0 0
      %753 = vmatprep.subr.bf16.mxu0 0
      %754 = vmatpush1.bf16.msra.mxu0 0
      %755 = vmatprep.subr.bf16.mxu0 0
      %756 = vmatpush1.bf16.msra.mxu0 0
      %757 = vmatprep.subr.bf16.mxu0 0
      %758 = vmatpush1.bf16.msra.mxu0 0
      %759 = vmatprep.subr.bf16.mxu0 0
      %760 = vmatpush1.bf16.msra.mxu0 0
      %761 = vmatprep.subr.bf16.mxu0 0
      %762 = vmatpush1.bf16.msra.mxu0 0
      %763 = vmatprep.subr.bf16.mxu0 0
      %764 = vmatpush1.bf16.msra.mxu0 0
      %765 = vmatprep.subr.bf16.mxu0 0
      %766 = vmatpush1.bf16.msra.mxu0 0
      %767 = vmatprep.subr.bf16.mxu0 0
      %768 = vmatpush1.bf16.msra.mxu0 0
      %769 = vmatprep.mubr.bf16.mxu0 0
      %770 = vmatmul.mubr.bf16.gmra.mrb[0].mxu0 %v735
      %v771 = vpop.f32.mrb[0].mxu0
      %v772 = vadd.f32 %v726, %v771
      %v773 = vpop.f32.mrb[0].mxu0
      %v774 = vadd.f32 %v730, %v773
      %v775 = vpop.f32.mrb[0].mxu0
      %v776 = vpop.f32.mrb[0].mxu0
      %777 = vdwg.mxu0
      %v778 = vmax.f32 %v772, 0.0
      %v779 = vmax.f32 %v774, 0.0
      %vm780 = vcmask 519168
      %781 = vst.msk [vmem:[#allocation2] sm:$0xf] %vm780, 0
      %vm782 = vcmask 517120
      %vm783 = vsmask.f32 1280
      %vm784 = vmand %vm782, %vm783
      %v785 = vld [vmem:[#allocation2 + $0x4] sm:$0x3]
      %v786 = vsel %vm784, 0, %v785
      %787 = vst [vmem:[#allocation2 + $0x4] sm:$0x3] %v786
      %vm788 = vcmask 516096
      %vm789 = vsmask.f32 256
      %vm790 = vmand %vm788, %vm789
      %v791 = vld [vmem:[#allocation2 + $0x4] sm:$0x1]
      %v792 = vsel %vm790, %v672, %v791
      %793 = vst [vmem:[#allocation2 + $0x4] sm:$0x1] %v792
      %v794 = vld [vmem:[#allocation2 + $0x4] sm:$0x1]
      %s795 = scalar_lea.vmem %s6, 256
      %v796 = vld [vmem:[%s795] sm:$0xff]
      %v797 = vld [vmem:[%s795 + $0x8] sm:$0xff]
      %v798 = vld [vmem:[%s795 + $0x10] sm:$0xff]
      %v799 = vld [vmem:[%s795 + $0x18] sm:$0xff]
      %v800 = vld [vmem:[%s795 + $0x20] sm:$0xff]
      %v801 = vld [vmem:[%s795 + $0x28] sm:$0xff]
      %v802 = vld [vmem:[%s795 + $0x30] sm:$0xff]
      %v803 = vld [vmem:[%s795 + $0x38] sm:$0xff]
      %v804 = vld [vmem:[%s7] sm:$0x3]
      %v813 = vunpack.c.l.b16 %v796
      %v814 = vunpack.c.h.b16 %v796
      %v815 = vunpack.c.l.b16 %v797
      %v816 = vunpack.c.h.b16 %v797
      %v817 = vunpack.c.l.b16 %v798
      %v818 = vunpack.c.h.b16 %v798
      %v819 = vunpack.c.l.b16 %v799
      %v820 = vunpack.c.h.b16 %v799
      %v821 = vunpack.c.l.b16 %v800
      %v822 = vunpack.c.h.b16 %v800
      %v823 = vunpack.c.l.b16 %v801
      %v824 = vunpack.c.h.b16 %v801
      %v825 = vunpack.c.l.b16 %v802
      %v826 = vunpack.c.h.b16 %v802
      %v827 = vunpack.c.l.b16 %v803
      %v828 = vunpack.c.h.b16 %v803
      %v829 = vpack.c.b16 %v815, %v813
      %v830 = vpack.c.b16 %v816, %v814
      %v831 = vpack.c.b16 %v819, %v817
      %v832 = vpack.c.b16 %v820, %v818
      %v833 = vpack.c.b16 %v823, %v821
      %v834 = vpack.c.b16 %v824, %v822
      %v835 = vpack.c.b16 %v827, %v825
      %v836 = vpack.c.b16 %v828, %v826
      %v846 = vlaneseq
      %v847 = vshrl.u32 %v846, 7
      %v848 = vsub.s32 0, %v847
      %v849 = vrot.slane %v804, %v848
      %v850 = vlaneseq
      %v851 = vshrl.u32 %v850, 7
      %v852 = vsub.s32 1, %v851
      %v853 = vrot.slane %v804, %v852
      %v857 = vsel %vm733, %v794, 0
      %859 = vmatprep.subr.bf16.mxu0 %v830
      %860 = vmatpush1.bf16.msra.mxu0 %v829
      %861 = vmatprep.subr.bf16.mxu0 %v832
      %862 = vmatpush1.bf16.msra.mxu0 %v831
      %863 = vmatprep.subr.bf16.mxu0 %v834
      %864 = vmatpush1.bf16.msra.mxu0 %v833
      %865 = vmatprep.subr.bf16.mxu0 %v836
      %866 = vmatpush1.bf16.msra.mxu0 %v835
      %867 = vmatprep.subr.bf16.mxu0 0
      %868 = vmatpush1.bf16.msra.mxu0 0
      %869 = vmatprep.subr.bf16.mxu0 0
      %870 = vmatpush1.bf16.msra.mxu0 0
      %871 = vmatprep.subr.bf16.mxu0 0
      %872 = vmatpush1.bf16.msra.mxu0 0
      %873 = vmatprep.subr.bf16.mxu0 0
      %874 = vmatpush1.bf16.msra.mxu0 0
      %875 = vmatprep.subr.bf16.mxu0 0
      %876 = vmatpush1.bf16.msra.mxu0 0
      %877 = vmatprep.subr.bf16.mxu0 0
      %878 = vmatpush1.bf16.msra.mxu0 0
      %879 = vmatprep.subr.bf16.mxu0 0
      %880 = vmatpush1.bf16.msra.mxu0 0
      %881 = vmatprep.subr.bf16.mxu0 0
      %882 = vmatpush1.bf16.msra.mxu0 0
      %883 = vmatprep.subr.bf16.mxu0 0
      %884 = vmatpush1.bf16.msra.mxu0 0
      %885 = vmatprep.subr.bf16.mxu0 0
      %886 = vmatpush1.bf16.msra.mxu0 0
      %887 = vmatprep.subr.bf16.mxu0 0
      %888 = vmatpush1.bf16.msra.mxu0 0
      %889 = vmatprep.subr.bf16.mxu0 0
      %890 = vmatpush1.bf16.msra.mxu0 0
      %891 = vmatprep.mubr.bf16.mxu0 0
      %892 = vmatmul.mubr.bf16.gmra.mrb[0].mxu0 %v857
      %v893 = vpop.f32.mrb[0].mxu0
      %v894 = vadd.f32 %v849, %v893
      %v895 = vpop.f32.mrb[0].mxu0
      %v896 = vadd.f32 %v853, %v895
      %v897 = vpop.f32.mrb[0].mxu0
      %v898 = vpop.f32.mrb[0].mxu0
      %899 = vdwg.mxu0
      %v900 = vmax.f32 %v894, 0.0
      %v901 = vmax.f32 %v896, 0.0
      %v902 = vpack.c.bf16 %v778, %v778
      %v903 = vpack.c.bf16 %v779, %v779
      %v904 = vpack.c.bf16 %v900, %v900
      %v905 = vpack.c.bf16 %v901, %v901
      %v910 = vcombine.low %v902, %v903
      %v911 = vcombine.low %v904, %v905
      %v913 = vunpack.c.l.s4 1966171168
      %v914 = vunpack.c.0.s8 %v913
      %v915 = vlaneseq
      %v916 = vshrl.u32 %v915, 7
      %v917 = vsub.s32 %v914, %v916
      %v918 = vrot.slane %v910, %v917
      %v920 = vunpack.c.l.s4 1966171168
      %v921 = vunpack.c.0.s8 %v920
      %v922 = vlaneseq
      %v923 = vshrl.u32 %v922, 7
      %v924 = vsub.s32 %v921, %v923
      %v925 = vrot.slane %v911, %v924
      %v926 = vcombine.low %v918, %v925
      %v928 = vunpack.c.l.s4 1966171168
      %v929 = vunpack.c.0.s8 %v928
      %v930 = vlaneseq
      %v931 = vshrl.u32 %v930, 7
      %v932 = vsub.s32 %v929, %v931
      %v933 = vrot.slane %v926, %v932
      %vm935 = vcmask 1040384
      %vm936 = vmand %vm935, %vm789
      %vm937 = vcmask 1041409
      %vm938 = vmand %vm937, %vm783
      %vm939 = vmor %vm938, %vm936
      %vm940 = vcmask 1042434
      %vm941 = vsmask.f32 2304
      %vm942 = vmand %vm940, %vm941
      %vm943 = vmor %vm942, %vm939
      %vm944 = vcmask 1043459
      %vm945 = vsmask.f32 3328
      %vm946 = vmand %vm944, %vm945
      %vm947 = vmor %vm946, %vm943
      %v948 = vld [vmem:[%s302] sm:$0xf]
      %v949 = vsel %vm947, %v933, %v948
      %950 = vst [vmem:[%s302] sm:$0xf] %v949
      %p951 = scmp.lt.s32.totalorder %s21, 1
      %s952 = scalar_select %p951, %s21, 1
      %s953 = smul.addr %s952, 4
      %s954 = scalar_lea.vmem %s8, %s953
      // Predicated region
      $region53: #{squeezenet3d_forward.17} parent=51 // pred_check
        %p955 = pneg %p212
      $region54: #{squeezenet3d_forward.17} parent=51 // pred_check_branch
        %957 = sbr.rel (%p955) target = $region56
      $region55: #{squeezenet3d_forward.17} parent=51 // pred_region
        _
      $region56: #{squeezenet3d_forward.17} parent=51 // pred_fallthru
        _
    $region52: #{squeezenet3d_forward.17} parent=5 // pred_fallthru
      _
    %p958 = scmp.le.s32.totalorder 2, %s16
    // Predicated region
    $region57: #{squeezenet3d_forward.17} parent=5 // pred_check
      %p959 = pneg %p958
    $region58: #{squeezenet3d_forward.17} parent=5 // pred_check_branch
      %961 = sbr.rel (%p959) target = $region60
    $region59: #{squeezenet3d_forward.17} parent=5 // pred_region
      %s962 = ssub.s32 %s16, 2
      // Predicated region
      $region61: #{squeezenet3d_forward.17} parent=59 // pred_check
        %p963 = pneg %p218
      $region62: #{squeezenet3d_forward.17} parent=59 // pred_check_branch
        %965 = sbr.rel (%p963) target = $region64
      $region63: #{squeezenet3d_forward.17} parent=59 // pred_region
        %p966 = scmp.lt.s32.totalorder %s22, 1
        %s967 = scalar_select %p966, %s22, 1
        %s968 = smul.addr %s967, 4
        %s969 = scalar_lea.vmem %s8, %s968
      $region64: #{squeezenet3d_forward.17} parent=59 // pred_fallthru
        _
    $region60: #{squeezenet3d_forward.17} parent=5 // pred_fallthru
      _
  $region6: #{squeezenet3d_forward.17} parent=0 // loop_footer
    %s20 = sadd.s32 1, %s16
  $region7: #{squeezenet3d_forward.17} parent=0 // loop_footer_branch
    %15 = sbr.rel target = $region3
  $region8: #{squeezenet3d_forward.17} parent=0 // loop_exit
    _

</llo_original>
